<compile_context>
chip_gen: v7x
topology: tpu7x:2x2x1
jax: 0.10.0
libtpu: 0.0.40
codegen_flags: <defaults>
</compile_context>

<pallas_src>
import math

import jax
import jax.numpy as jnp
import numpy as np
from jax.experimental import pallas as pl
from jax.experimental.pallas import tpu as pltpu

GROUPS = 32                 # GroupNorm num_groups used everywhere in this module
_MXU_DTYPE = jnp.bfloat16   # MXU operand dtype (accumulation stays f32)
_ACT_DTYPE = jnp.bfloat16   # inter-stage activation handoff dtype
_KV_TILE = 512              # flash-attention KV chunk (whole S when S <= _KV_TILE)


# ----------------------------------------------------------------------------
# Feature probe: single-buffered BlockSpecs for grid-invariant operands
# ----------------------------------------------------------------------------
_BUFFERED_SINGLE = None


def _buffered_single_ok():
    """Probe pipeline_mode=pl.Buffered(buffer_count=1) support (single-buffer constant operands)."""
    global _BUFFERED_SINGLE
    if _BUFFERED_SINGLE is None:
        try:
            def _copy(x_ref, o_ref):
                o_ref[...] = x_ref[...]

            f = pl.pallas_call(
                _copy,
                out_shape=jax.ShapeDtypeStruct((8, 128), jnp.float32),
                grid=(2,),
                in_specs=[pl.BlockSpec((8, 128), lambda i: (0, 0),
                                       pipeline_mode=pl.Buffered(buffer_count=1))],
                out_specs=pl.BlockSpec((8, 128), lambda i: (0, 0)),
            )
            res = jax.block_until_ready(f(jnp.ones((8, 128), jnp.float32)))
            _BUFFERED_SINGLE = bool(np.all(np.asarray(res) == 1.0))
        except Exception:
            _BUFFERED_SINGLE = False
    return _BUFFERED_SINGLE


def _const_spec(shape):
    """BlockSpec for a grid-invariant operand (same block every grid step).
    Single-buffered when supported -> halves its VMEM footprint at zero perf cost."""
    imap = lambda *_: (0,) * len(shape)
    if _buffered_single_ok():
        return pl.BlockSpec(shape, imap, pipeline_mode=pl.Buffered(buffer_count=1))
    return pl.BlockSpec(shape, imap)


def _vmem_limit(nbytes):
    """Scoped-VMEM request from the computed buffer budget (1.5x headroom), clamped to
    [32 MiB, 64 MiB] so small shapes don't under-request and v7x's physical 64 MiB holds."""
    return int(min(max(nbytes * 3 // 2, 32 * 1024 * 1024), 64 * 1024 * 1024))


# ----------------------------------------------------------------------------
# In-kernel helpers (operate on VMEM-resident values inside the Pallas kernels)
# ----------------------------------------------------------------------------
def _group_norm(x, gamma, beta, gmat, inv_n, eps, apply_silu):
    """Two-pass GroupNorm over a (rows, C) block (+ optional SiLU), all in f32.
    Group stats come from ONE dot of the per-channel sums against the dense (C, C)
    group-indicator matrix (removes a serialized skinny-matmul dependency)."""
    s1 = jnp.sum(x, axis=0, keepdims=True)                                    # (1, C)
    mean = jnp.dot(s1, gmat, preferred_element_type=jnp.float32) * inv_n      # (1, C)
    d = x - mean
    s2 = jnp.sum(d * d, axis=0, keepdims=True)                                # (1, C)
    var = jnp.dot(s2, gmat, preferred_element_type=jnp.float32) * inv_n       # (1, C)
    y = d * (jax.lax.rsqrt(var + eps) * gamma) + beta
    if apply_silu:
        y = y * jax.nn.sigmoid(y)
    return y


def _conv2d_3x3(y_f32, w_ref, bias, W, mask_l, mask_r):
    """3x3 'SAME' zero-padded conv on a flattened (H*W, C) image (W minor), bf16 MXU / f32 acc.

    Boundary masks are applied ONCE to the two dx-shifted copies (reused for every dy); the 9 taps
    are W-aligned static slices of W-row zero-padded copies of those three arrays."""
    S, C = y_f32.shape
    y = y_f32.astype(_MXU_DTYPE)
    zero_row = jnp.zeros((1, C), _MXU_DTYPE)
    y_l = jnp.where(mask_l, jnp.concatenate([zero_row, y[:-1, :]], axis=0), zero_row)  # dx = -1
    y_r = jnp.where(mask_r, jnp.concatenate([y[1:, :], zero_row], axis=0), zero_row)   # dx = +1
    zpad = jnp.zeros((W, C), _MXU_DTYPE)
    taps = [jnp.concatenate([zpad, t, zpad], axis=0) for t in (y_l, y, y_r)]  # dx = -1, 0, +1
    acc = None
    k = 0
    for dy in (-1, 0, 1):
        base = W + dy * W
        for dx in range(3):
            contrib = jnp.dot(taps[dx][base:base + S, :], w_ref[k],
                              preferred_element_type=jnp.float32)
            acc = contrib if acc is None else acc + contrib
            k += 1
    return acc + bias


def _conv_temporal_3(y_f32, w_ref, bias, T, S):
    """(3,1,1) zero-padded Conv3d over frames on a flattened (T*S, C) block, bf16 MXU / f32 acc."""
    C = y_f32.shape[-1]
    y = y_f32.astype(_MXU_DTYPE)
    zp = jnp.zeros((S, C), _MXU_DTYPE)
    ypad = jnp.concatenate([zp, y, zp], axis=0)                               # ((T+2)*S, C)
    acc = None
    for k in range(3):
        contrib = jnp.dot(ypad[k * S:k * S + T * S, :], w_ref[k],
                          preferred_element_type=jnp.float32)
        acc = contrib if acc is None else acc + contrib
    return acc + bias


# ----------------------------------------------------------------------------
# Pallas kernels
# ----------------------------------------------------------------------------
def _make_spatial_resblock_kernel(S, C, H, W, eps):
    inv_n = 1.0 / (S * (C // GROUPS))

    def kernel(x_ref, gm_ref, g1_ref, b1_ref, w1_ref, wb1_ref,
               g2_ref, b2_ref, w2_ref, wb2_ref, o_ref):
        x = x_ref[0].astype(jnp.float32)                                      # (S, C)
        gmat = gm_ref[...].astype(jnp.float32)
        col = jax.lax.broadcasted_iota(jnp.int32, (S, C), 0) % W              # x coord per row
        mask_l = col >= 1
        mask_r = col <= W - 2
        h = _group_norm(x, g1_ref[...].astype(jnp.float32), b1_ref[...].astype(jnp.float32),
                        gmat, inv_n, eps, True)
        h = _conv2d_3x3(h, w1_ref, wb1_ref[...].astype(jnp.float32), W, mask_l, mask_r)
        h = _group_norm(h, g2_ref[...].astype(jnp.float32), b2_ref[...].astype(jnp.float32),
                        gmat, inv_n, eps, True)
        h = _conv2d_3x3(h, w2_ref, wb2_ref[...].astype(jnp.float32), W, mask_l, mask_r)
        o_ref[0] = (x + h).astype(o_ref.dtype)                                # residual, scale 1

    return kernel


def spatial_resblock(x, p, gmat, H, W):
    N, S, C = x.shape
    kern = _make_spatial_resblock_kernel(S, C, H, W, 1e-6)
    act = pl.BlockSpec((1, S, C), lambda i: (i, 0, 0))
    vec = _const_spec((1, C))
    wsp = _const_spec((9, C, C))
    act_b = S * C * x.dtype.itemsize
    w_b = 2 * 9 * C * C * 2 + C * C * 2 + 8 * C * 4
    wf = 1 if _buffered_single_ok() else 2
    vmem = _vmem_limit(4 * act_b + wf * w_b + 8 * S * C * 4)
    cost = pl.CostEstimate(flops=N * 36 * S * C * C,
                           transcendentals=N * 3 * S * C,
                           bytes_accessed=N * 2 * act_b + w_b)
    return pl.pallas_call(
        kern,
        out_shape=jax.ShapeDtypeStruct((N, S, C), x.dtype),
        grid=(N,),
        in_specs=[act, _const_spec((C, C)),
                  vec, vec, wsp, vec,
                  vec, vec, wsp, vec],
        out_specs=act,
        compiler_params=pltpu.CompilerParams(dimension_semantics=("parallel",),
                                             vmem_limit_bytes=vmem),
        cost_estimate=cost,
    )(x, gmat,
      p["n1_g"], p["n1_b"], p["c1_w"], p["c1_b"],
      p["n2_g"], p["n2_b"], p["c2_w"], p["c2_b"])


def _make_temporal_resblock_kernel(T, S, C, eps):
    inv_n = 1.0 / (T * S * (C // GROUPS))

    def kernel(x_ref, gm_ref, g1_ref, b1_ref, w1_ref, wb1_ref,
               g2_ref, b2_ref, w2_ref, wb2_ref, beta_ref, o_ref):
        x = x_ref[0].astype(jnp.float32)                                      # (T*S, C) = x_spatial
        gmat = gm_ref[...].astype(jnp.float32)
        h = _group_norm(x, g1_ref[...].astype(jnp.float32), b1_ref[...].astype(jnp.float32),
                        gmat, inv_n, eps, True)
        h = _conv_temporal_3(h, w1_ref, wb1_ref[...].astype(jnp.float32), T, S)
        h = _group_norm(h, g2_ref[...].astype(jnp.float32), b2_ref[...].astype(jnp.float32),
                        gmat, inv_n, eps, True)
        h = _conv_temporal_3(h, w2_ref, wb2_ref[...].astype(jnp.float32), T, S)
        # AlphaBlender('learned', switch=True), folded: out = x_spatial + sigmoid(m) * h_temporal
        beta = beta_ref[0]
        o_ref[0] = (x + beta * h).astype(o_ref.dtype)

    return kernel


def temporal_resblock(xt, p, gmat, beta, T, S):
    B, TS, C = xt.shape
    kern = _make_temporal_resblock_kernel(T, S, C, 1e-5)
    act = pl.BlockSpec((1, TS, C), lambda b: (b, 0, 0))
    vec = _const_spec((1, C))
    wsp = _const_spec((3, C, C))
    act_b = TS * C * xt.dtype.itemsize
    w_b = 2 * 3 * C * C * 2 + C * C * 2 + 8 * C * 4
    wf = 1 if _buffered_single_ok() else 2
    vmem = _vmem_limit(4 * act_b + wf * w_b + 8 * TS * C * 4)
    cost = pl.CostEstimate(flops=B * 12 * TS * C * C,
                           transcendentals=B * 3 * TS * C,
                           bytes_accessed=B * 2 * act_b + w_b)
    return pl.pallas_call(
        kern,
        out_shape=jax.ShapeDtypeStruct((B, TS, C), xt.dtype),
        grid=(B,),
        in_specs=[act, _const_spec((C, C)),
                  vec, vec, wsp, vec,
                  vec, vec, wsp, vec,
                  pl.BlockSpec(memory_space=pltpu.MemorySpace.SMEM)],
        out_specs=act,
        compiler_params=pltpu.CompilerParams(dimension_semantics=("parallel",),
                                             vmem_limit_bytes=vmem),
        cost_estimate=cost,
    )(xt, gmat,
      p["tn1_g"], p["tn1_b"], p["tc1_w"], p["tc1_b"],
      p["tn2_g"], p["tn2_b"], p["tc2_w"], p["tc2_b"], beta)


def _make_attention_kernel(S, C, heads, head_dim, eps):
    inv_n = 1.0 / (S * (C // GROUPS))
    scale = 1.0 / math.sqrt(head_dim)
    kv_tile = S if S <= _KV_TILE else _KV_TILE

    def kernel(x_ref, gm_ref, g_ref, b_ref, wq_ref, bq_ref, wk_ref, bk_ref,
               wv_ref, bv_ref, wo_ref, bo_ref, o_ref):
        x = x_ref[0].astype(jnp.float32)                                      # residual kept
        gmat = gm_ref[...].astype(jnp.float32)
        xn = _group_norm(x, g_ref[...].astype(jnp.float32), b_ref[...].astype(jnp.float32),
                         gmat, inv_n, eps, False)
        xb = xn.astype(_MXU_DTYPE)
        q = jnp.dot(xb, wq_ref[...], preferred_element_type=jnp.float32) + bq_ref[...].astype(jnp.float32)
        k = jnp.dot(xb, wk_ref[...], preferred_element_type=jnp.float32) + bk_ref[...].astype(jnp.float32)
        v = jnp.dot(xb, wv_ref[...], preferred_element_type=jnp.float32) + bv_ref[...].astype(jnp.float32)
        outs = []
        for hh in range(heads):
            sl = slice(hh * head_dim, (hh + 1) * head_dim)
            qh = q[:, sl].astype(_MXU_DTYPE)
            kh = k[:, sl].astype(_MXU_DTYPE)
            vh = v[:, sl].astype(_MXU_DTYPE)
            # KV-chunked online softmax (flash-style): the (S, S) logits never materialize; softmax
            # stats stay in f32, matmul operands in bf16, final normalization is an exact divide.
            m_i = jnp.full((S, 1), -jnp.inf, jnp.float32)
            l_i = jnp.zeros((S, 1), jnp.float32)
            acc = jnp.zeros((S, head_dim), jnp.float32)
            for start in range(0, S, kv_tile):
                stop = min(start + kv_tile, S)
                kc = kh[start:stop, :]
                vc = vh[start:stop, :]
                logits = jax.lax.dot_general(qh, kc, (((1,), (1,)), ((), ())),
                                             preferred_element_type=jnp.float32) * scale
                m_new = jnp.maximum(m_i, jnp.max(logits, axis=-1, keepdims=True))
                alpha = jnp.exp(m_i - m_new)
                p = jnp.exp(logits - m_new)
                l_i = alpha * l_i + jnp.sum(p, axis=-1, keepdims=True)
                acc = alpha * acc + jnp.dot(p.astype(_MXU_DTYPE), vc,
                                            preferred_element_type=jnp.float32)
                m_i = m_new
            outs.append(acc / l_i)
        attn = outs[0] if heads == 1 else jnp.concatenate(outs, axis=-1)
        out = jnp.dot(attn.astype(_MXU_DTYPE), wo_ref[...],
                      preferred_element_type=jnp.float32) + bo_ref[...].astype(jnp.float32)
        o_ref[0] = (out + x).astype(o_ref.dtype)                              # residual_connection=True

    return kernel


def attention(x, p, gmat, heads, head_dim):
    N, S, C = x.shape
    inner = heads * head_dim
    kern = _make_attention_kernel(S, C, heads, head_dim, 1e-6)
    act = pl.BlockSpec((1, S, C), lambda i: (i, 0, 0))
    act_b = S * C * x.dtype.itemsize
    w_b = 4 * C * inner * 2 + C * C * 2 + 8 * C * 4
    wf = 1 if _buffered_single_ok() else 2
    vmem = _vmem_limit(4 * act_b + wf * w_b + 6 * S * C * 4 + 2 * S * min(S, _KV_TILE) * 4)
    cost = pl.CostEstimate(flops=N * (8 * S * C * inner + 4 * S * S * inner),
                           transcendentals=N * S * S,
                           bytes_accessed=N * 2 * act_b + w_b)
    return pl.pallas_call(
        kern,
        out_shape=jax.ShapeDtypeStruct((N, S, C), x.dtype),
        grid=(N,),
        in_specs=[act, _const_spec((C, C)),
                  _const_spec((1, C)), _const_spec((1, C)),
                  _const_spec((C, inner)), _const_spec((1, inner)),
                  _const_spec((C, inner)), _const_spec((1, inner)),
                  _const_spec((C, inner)), _const_spec((1, inner)),
                  _const_spec((inner, C)), _const_spec((1, C))],
        out_specs=act,
        compiler_params=pltpu.CompilerParams(dimension_semantics=("parallel",),
                                             vmem_limit_bytes=vmem),
        cost_estimate=cost,
    )(x, gmat, p["gn_g"], p["gn_b"], p["wq"], p["bq"], p["wk"], p["bk"],
      p["wv"], p["bv"], p["wo"], p["bo"])


# ----------------------------------------------------------------------------
# Forward wrapper (plain-JAX glue: only transposes / metadata reshapes / weight casts)
# ----------------------------------------------------------------------------
def spatio_temporal_res_block(x, p, gmat, B, T, H, W):
    BF, S, C = x.shape
    x_spatial = spatial_resblock(x, p, gmat, H, W)
    beta = jax.nn.sigmoid(p["mix"]).astype(jnp.float32)        # sigmoid(merge factor), shape (1,)
    xt = x_spatial.reshape(B, T * S, C)                        # contiguous, metadata-only reshape
    out = temporal_resblock(xt, p, gmat, beta, T, S)
    return out.reshape(BF, S, C)


def mid_block_temporal_decoder_forward(params, hidden_states, image_only_indicator, heads, head_dim):
    """hidden_states: (B*T, C, H, W) NCHW; image_only_indicator: (B, T). Returns NCHW."""
    BF, C, H, W = hidden_states.shape
    B, T = image_only_indicator.shape
    S = H * W
    in_dtype = hidden_states.dtype
    # channels-last tokens, bf16 inter-stage handoffs (cast back to input dtype at the end)
    x = jnp.transpose(hidden_states, (0, 2, 3, 1)).reshape(BF, S, C).astype(_ACT_DTYPE)
    gmat = params["gmat"]
    x = spatio_temporal_res_block(x, params["resnets"][0], gmat, B, T, H, W)
    for p_res, p_attn in zip(params["resnets"][1:], params["attentions"]):
        x = attention(x, p_attn, gmat, heads, head_dim)
        x = spatio_temporal_res_block(x, p_res, gmat, B, T, H, W)
    return jnp.transpose(x.reshape(BF, H, W, C), (0, 3, 1, 2)).astype(in_dtype)


def prepare_params(params):
    """Cast MXU matmul operands (conv / projection weights, group matrix) to bf16 so the cast is
    done once in HBM, not per grid step.  GN affine params, biases and the merge factor stay f32."""
    def cast_res(p):
        p = dict(p)
        for k in ("c1_w", "c2_w", "tc1_w", "tc2_w"):
            p[k] = p[k].astype(_MXU_DTYPE)
        return p

    def cast_attn(p):
        p = dict(p)
        for k in ("wq", "wk", "wv", "wo"):
            p[k] = p[k].astype(_MXU_DTYPE)
        return p

    return dict(resnets=[cast_res(p) for p in params["resnets"]],
                attentions=[cast_attn(p) for p in params["attentions"]],
                gmat=params["gmat"].astype(_MXU_DTYPE))   # 0/1 entries -> exact in bf16


# ----------------------------------------------------------------------------
# Deterministic parameter initialization (synthetic, mirrors module __init__ shapes)
# ----------------------------------------------------------------------------
def init_params(key, in_channels, out_channels, attention_head_dim, num_layers):
    # TODO(synk): conv_shortcut (1x1 / 1x1x1) paths for in_channels != out_channels not needed here.
    assert in_channels == out_channels
    C = in_channels
    heads = in_channels // attention_head_dim
    inner = heads * attention_head_dim
    keys = iter(jax.random.split(key, 128))

    def w(shape, scale=0.05):
        return (scale * jax.random.normal(next(keys), shape)).astype(jnp.float32)

    def resnet_params():
        return dict(
            n1_g=1.0 + w((1, C)), n1_b=w((1, C)),
            c1_w=w((9, C, C), 0.08), c1_b=w((1, C), 0.02),
            n2_g=1.0 + w((1, C)), n2_b=w((1, C)),
            c2_w=w((9, C, C), 0.08), c2_b=w((1, C), 0.02),
            tn1_g=1.0 + w((1, C)), tn1_b=w((1, C)),
            tc1_w=w((3, C, C), 0.08), tc1_b=w((1, C), 0.02),
            tn2_g=1.0 + w((1, C)), tn2_b=w((1, C)),
            tc2_w=w((3, C, C), 0.08), tc2_b=w((1, C), 0.02),
            mix=jnp.zeros((1,), jnp.float32),   # merge_factor = 0.0
        )

    resnets = [resnet_params() for _ in range(num_layers)]
    attn = dict(
        gn_g=1.0 + w((1, C)), gn_b=w((1, C)),
        wq=w((C, inner)), bq=w((1, inner), 0.02),
        wk=w((C, inner)), bk=w((1, inner), 0.02),
        wv=w((C, inner)), bv=w((1, inner), 0.02),
        wo=w((inner, C)), bo=w((1, C), 0.02),
    )
    g = jnp.arange(C) // (C // GROUPS)
    A = (g[:, None] == jnp.arange(GROUPS)[None, :]).astype(jnp.float32)   # (C, G) indicator
    gmat = A @ A.T                                                        # dense (C, C) group matrix
    return dict(resnets=resnets, attentions=[attn], gmat=gmat)


# ----------------------------------------------------------------------------
# Pure-JAX reference (f32, HIGHEST precision — for correctness check)
# ----------------------------------------------------------------------------
def ref_forward(params, hidden_states, image_only_indicator, heads, head_dim):
    BF, C, H, W = hidden_states.shape
    B, T = image_only_indicator.shape
    S = H * W
    x = jnp.transpose(hidden_states, (0, 2, 3, 1)).reshape(BF, S, C)

    def gn(v, g, b, eps):
        N, S_, C_ = v.shape
        vg = v.reshape(N, S_, GROUPS, C_ // GROUPS)
        mean = jnp.mean(vg, axis=(1, 3), keepdims=True)
        var = jnp.mean((vg - mean) ** 2, axis=(1, 3), keepdims=True)
        return ((vg - mean) * jax.lax.rsqrt(var + eps)).reshape(N, S_, C_) * g + b

    silu = lambda v: v * jax.nn.sigmoid(v)

    def conv2d(v, w9, b):
        vi = v.reshape(BF, H, W, C)
        wk = w9.reshape(3, 3, C, C)
        y = jax.lax.conv_general_dilated(vi, wk, (1, 1), "SAME",
                                         dimension_numbers=("NHWC", "HWIO", "NHWC"),
                                         precision=jax.lax.Precision.HIGHEST)
        return (y + b).reshape(BF, S, C)

    def tconv(v, w3, b):
        vp = jnp.pad(v, ((0, 0), (1, 1), (0, 0), (0, 0)))
        y = sum(jnp.einsum("btsc,cd->btsd", vp[:, k:k + T], w3[k],
                           precision=jax.lax.Precision.HIGHEST) for k in range(3))
        return y + b

    def resblock(v, p):
        h = silu(gn(v, p["n1_g"], p["n1_b"], 1e-6))
        h = conv2d(h, p["c1_w"], p["c1_b"])
        h = silu(gn(h, p["n2_g"], p["n2_b"], 1e-6))
        h = conv2d(h, p["c2_w"], p["c2_b"])
        xs = v + h
        xt = xs.reshape(B, T, S, C)
        h = silu(gn(xt.reshape(B, T * S, C), p["tn1_g"], p["tn1_b"], 1e-5)).reshape(B, T, S, C)
        h = tconv(h, p["tc1_w"], p["tc1_b"])
        h = silu(gn(h.reshape(B, T * S, C), p["tn2_g"], p["tn2_b"], 1e-5)).reshape(B, T, S, C)
        h = tconv(h, p["tc2_w"], p["tc2_b"])
        x_temporal = xt + h
        alpha = 1.0 - jax.nn.sigmoid(p["mix"])[0]
        return (alpha * xt + (1.0 - alpha) * x_temporal).reshape(BF, S, C)

    def attn(v, p):
        xn = gn(v, p["gn_g"], p["gn_b"], 1e-6)
        q = xn @ p["wq"] + p["bq"]
        k = xn @ p["wk"] + p["bk"]
        val = xn @ p["wv"] + p["bv"]
        inner = heads * head_dim
        qh = q.reshape(BF, S, heads, head_dim).transpose(0, 2, 1, 3)
        kh = k.reshape(BF, S, heads, head_dim).transpose(0, 2, 1, 3)
        vh = val.reshape(BF, S, heads, head_dim).transpose(0, 2, 1, 3)
        logits = jnp.einsum("bhqd,bhkd->bhqk", qh, kh,
                            precision=jax.lax.Precision.HIGHEST) / math.sqrt(head_dim)
        probs = jax.nn.softmax(logits, axis=-1)
        o = jnp.einsum("bhqk,bhkd->bhqd", probs, vh, precision=jax.lax.Precision.HIGHEST)
        o = o.transpose(0, 2, 1, 3).reshape(BF, S, inner)
        return o @ p["wo"] + p["bo"] + v

    x = resblock(x, params["resnets"][0])
    for p_res, p_attn in zip(params["resnets"][1:], params["attentions"]):
        x = attn(x, p_attn)
        x = resblock(x, p_res)
    return jnp.transpose(x.reshape(BF, H, W, C), (0, 3, 1, 2))


# ----------------------------------------------------------------------------
if __name__ == "__main__":
    key = jax.random.PRNGKey(0)
    B, T, C, H, W = 2, 4, 32, 8, 8
    in_channels = out_channels = C
    attention_head_dim = 32            # heads = in_channels // attention_head_dim = 1
    num_layers = 2                     # exercises resnets[0] -> attention -> resnets[1]
    heads = in_channels // attention_head_dim

    _buffered_single_ok()              # warm the single-buffering feature probe

    k_x, k_p = jax.random.split(key)
    params = init_params(k_p, in_channels, out_channels, attention_head_dim, num_layers)
    pallas_params = prepare_params(params)                                       # bf16 weights in HBM
    hidden_states = jax.random.normal(k_x, (B * T, C, H, W), jnp.float32)        # NCHW like PyTorch
    image_only_indicator = jnp.zeros((B, T), jnp.float32)

    fwd = jax.jit(mid_block_temporal_decoder_forward, static_argnums=(3, 4))
    out = jax.block_until_ready(fwd(pallas_params, hidden_states, image_only_indicator,
                                    heads, attention_head_dim))

    ref = jax.block_until_ready(ref_forward(params, hidden_states, image_only_indicator,
                                            heads, attention_head_dim))
    assert out.shape == hidden_states.shape
    # bf16 MXU operands + bf16 inter-stage handoffs (f32 accumulation / GN / softmax) vs the
    # f32-HIGHEST reference: tolerance reflects the deliberate bf16 quantization only.
    assert np.allclose(np.asarray(out), np.asarray(ref), atol=5e-2, rtol=5e-2)
    print("KERNEL_OK")
</pallas_src>

<mosaic_0001>
module attributes {stable_mosaic.version = 11 : i64} {
  func.func @_copy(%arg0: i32, %arg1: memref<8x128xf32, #tpu.memory_space<vmem>>, %arg2: memref<8x128xf32, #tpu.memory_space<vmem>>) attributes {dimension_semantics = [#tpu.dimension_semantics<arbitrary>], iteration_bounds = array<i64: 2>, scalar_prefetch = 0 : i64, scratch_operands = 0 : i64, tpu.core_type = #tpu.core_type<tc>, window_params = [{pipeline_mode = #tpu.pipeline_mode<synchronous>, transform_indices = @transform_0, window_bounds = array<i64: 8, 128>}, {pipeline_mode = #tpu.pipeline_mode<synchronous>, transform_indices = @transform_1, window_bounds = array<i64: 8, 128>}]} {
    %c0 = arith.constant 0 : index
    %c0_0 = arith.constant 0 : index
    %0 = vector.load %arg1[%c0, %c0_0] : memref<8x128xf32, #tpu.memory_space<vmem>>, vector<8x128xf32>
    %c0_1 = arith.constant 0 : index
    %c0_2 = arith.constant 0 : index
    %1 = vector.load %arg2[%c0_1, %c0_2] : memref<8x128xf32, #tpu.memory_space<vmem>>, vector<8x128xf32>
    tpu.vector_store %arg2[%c0_1, %c0_2], %0 {strides = array<i32>} : memref<8x128xf32, #tpu.memory_space<vmem>>, vector<8x128xf32>,
    return
  }
  func.func @transform_0(%arg0: i32) -> (i32, i32) {
    %c0_i32 = arith.constant 0 : i32
    %c0_i32_0 = arith.constant 0 : i32
    %c0_i32_1 = arith.constant 0 : i32
    return %c0_i32, %c0_i32_0 : i32, i32
  }
  func.func @transform_1(%arg0: i32) -> (i32, i32) {
    %c0_i32 = arith.constant 0 : i32
    %c0_i32_0 = arith.constant 0 : i32
    %c0_i32_1 = arith.constant 0 : i32
    return %c0_i32, %c0_i32_0 : i32, i32
  }
}

module attributes {stable_mosaic.version = 11 : i64} {
  func.func @kernel(%arg0: i32, %arg1: memref<1x64x32xbf16, #tpu.memory_space<vmem>>, %arg2: memref<32x32xbf16, #tpu.memory_space<vmem>>, %arg3: memref<1x32xf32, #tpu.memory_space<vmem>>, %arg4: memref<1x32xf32, #tpu.memory_space<vmem>>, %arg5: memref<32x32xbf16, #tpu.memory_space<vmem>>, %arg6: memref<1x32xf32, #tpu.memory_space<vmem>>, %arg7: memref<32x32xbf16, #tpu.memory_space<vmem>>, %arg8: memref<1x32xf32, #tpu.memory_space<vmem>>, %arg9: memref<32x32xbf16, #tpu.memory_space<vmem>>, %arg10: memref<1x32xf32, #tpu.memory_space<vmem>>, %arg11: memref<32x32xbf16, #tpu.memory_space<vmem>>, %arg12: memref<1x32xf32, #tpu.memory_space<vmem>>, %arg13: memref<1x64x32xbf16, #tpu.memory_space<vmem>>) attributes {dimension_semantics = [#tpu.dimension_semantics<parallel>], iteration_bounds = array<i64: 8>, scalar_prefetch = 0 : i64, scratch_operands = 0 : i64, tpu.core_type = #tpu.core_type<tc>, window_params = [{transform_indices = @transform_0, window_bounds = array<i64: 1, 64, 32>}, {pipeline_mode = #tpu.pipeline_mode<synchronous>, transform_indices = @transform_1, window_bounds = array<i64: 32, 32>}, {pipeline_mode = #tpu.pipeline_mode<synchronous>, transform_indices = @transform_2, window_bounds = array<i64: 1, 32>}, {pipeline_mode = #tpu.pipeline_mode<synchronous>, transform_indices = @transform_3, window_bounds = array<i64: 1, 32>}, {pipeline_mode = #tpu.pipeline_mode<synchronous>, transform_indices = @transform_4, window_bounds = array<i64: 32, 32>}, {pipeline_mode = #tpu.pipeline_mode<synchronous>, transform_indices = @transform_5, window_bounds = array<i64: 1, 32>}, {pipeline_mode = #tpu.pipeline_mode<synchronous>, transform_indices = @transform_6, window_bounds = array<i64: 32, 32>}, {pipeline_mode = #tpu.pipeline_mode<synchronous>, transform_indices = @transform_7, window_bounds = array<i64: 1, 32>}, {pipeline_mode = #tpu.pipeline_mode<synchronous>, transform_indices = @transform_8, window_bounds = array<i64: 32, 32>}, {pipeline_mode = #tpu.pipeline_mode<synchronous>, transform_indices = @transform_9, window_bounds = array<i64: 1, 32>}, {pipeline_mode = #tpu.pipeline_mode<synchronous>, transform_indices = @transform_10, window_bounds = array<i64: 32, 32>}, {pipeline_mode = #tpu.pipeline_mode<synchronous>, transform_indices = @transform_11, window_bounds = array<i64: 1, 32>}, {transform_indices = @transform_12, window_bounds = array<i64: 1, 64, 32>}]} {
    %c0 = arith.constant 0 : index
    %c0_0 = arith.constant 0 : index
    %c0_1 = arith.constant 0 : index
    %0 = vector.load %arg1[%c0, %c0_0, %c0_1] : memref<1x64x32xbf16, #tpu.memory_space<vmem>>, vector<1x64x32xbf16>
    %1 = vector.shape_cast %0 : vector<1x64x32xbf16> to vector<64x32xbf16>
    %2 = arith.extf %1 : vector<64x32xbf16> to vector<64x32xf32>
    %c0_2 = arith.constant 0 : index
    %c0_3 = arith.constant 0 : index
    %3 = vector.load %arg2[%c0_2, %c0_3] : memref<32x32xbf16, #tpu.memory_space<vmem>>, vector<32x32xbf16>
    %4 = arith.extf %3 : vector<32x32xbf16> to vector<32x32xf32>
    %c0_4 = arith.constant 0 : index
    %c0_5 = arith.constant 0 : index
    %5 = vector.load %arg3[%c0_4, %c0_5] : memref<1x32xf32, #tpu.memory_space<vmem>>, vector<1x32xf32>
    %c0_6 = arith.constant 0 : index
    %c0_7 = arith.constant 0 : index
    %6 = vector.load %arg4[%c0_6, %c0_7] : memref<1x32xf32, #tpu.memory_space<vmem>>, vector<1x32xf32>
    %cst = arith.constant dense<0.000000e+00> : vector<32xf32>
    %7 = vector.multi_reduction <add>, %2, %cst [0] : vector<64x32xf32> to vector<32xf32>
    %8 = vector.shape_cast %7 : vector<32xf32> to vector<1x32xf32>
    %cst_8 = arith.constant dense<0.000000e+00> : vector<1x32xf32>
    %9 = tpu.matmul %8, %4, %cst_8 {dimension_numbers = #tpu.dot_dimension_numbers<[1], [0], [0], [1], [0, 0, 1, 1], [], []>} : vector<1x32xf32>, vector<32x32xf32>, vector<1x32xf32> -> vector<1x32xf32>
    %cst_9 = arith.constant 1.562500e-02 : f32
    %10 = vector.broadcast %cst_9 : f32 to vector<1x32xf32>
    %11 = arith.mulf %9, %10 : vector<1x32xf32>
    %12 = vector.broadcast %11 : vector<1x32xf32> to vector<64x32xf32>
    %13 = arith.subf %2, %12 : vector<64x32xf32>
    %14 = arith.mulf %13, %13 : vector<64x32xf32>
    %cst_10 = arith.constant dense<0.000000e+00> : vector<32xf32>
    %15 = vector.multi_reduction <add>, %14, %cst_10 [0] : vector<64x32xf32> to vector<32xf32>
    %16 = vector.shape_cast %15 : vector<32xf32> to vector<1x32xf32>
    %cst_11 = arith.constant dense<0.000000e+00> : vector<1x32xf32>
    %17 = tpu.matmul %16, %4, %cst_11 {dimension_numbers = #tpu.dot_dimension_numbers<[1], [0], [0], [1], [0, 0, 1, 1], [], []>} : vector<1x32xf32>, vector<32x32xf32>, vector<1x32xf32> -> vector<1x32xf32>
    %cst_12 = arith.constant 1.562500e-02 : f32
    %18 = vector.broadcast %cst_12 : f32 to vector<1x32xf32>
    %19 = arith.mulf %17, %18 : vector<1x32xf32>
    %cst_13 = arith.constant 9.99999997E-7 : f32
    %20 = vector.broadcast %cst_13 : f32 to vector<1x32xf32>
    %21 = arith.addf %19, %20 : vector<1x32xf32>
    %22 = math.rsqrt %21 : vector<1x32xf32>
    %23 = arith.mulf %22, %5 : vector<1x32xf32>
    %24 = vector.broadcast %23 : vector<1x32xf32> to vector<64x32xf32>
    %25 = arith.mulf %13, %24 : vector<64x32xf32>
    %26 = vector.broadcast %6 : vector<1x32xf32> to vector<64x32xf32>
    %27 = arith.addf %25, %26 : vector<64x32xf32>
    %28 = arith.truncf %27 : vector<64x32xf32> to vector<64x32xbf16>
    %c0_14 = arith.constant 0 : index
    %c0_15 = arith.constant 0 : index
    %29 = vector.load %arg5[%c0_14, %c0_15] : memref<32x32xbf16, #tpu.memory_space<vmem>>, vector<32x32xbf16>
    %cst_16 = arith.constant dense<0.000000e+00> : vector<64x32xf32>
    %30 = tpu.matmul %28, %29, %cst_16 {dimension_numbers = #tpu.dot_dimension_numbers<[1], [0], [0], [1], [0, 0, 1, 1], [], []>} : vector<64x32xbf16>, vector<32x32xbf16>, vector<64x32xf32> -> vector<64x32xf32>
    %c0_17 = arith.constant 0 : index
    %c0_18 = arith.constant 0 : index
    %31 = vector.load %arg6[%c0_17, %c0_18] : memref<1x32xf32, #tpu.memory_space<vmem>>, vector<1x32xf32>
    %32 = vector.broadcast %31 : vector<1x32xf32> to vector<64x32xf32>
    %33 = arith.addf %30, %32 : vector<64x32xf32>
    %c0_19 = arith.constant 0 : index
    %c0_20 = arith.constant 0 : index
    %34 = vector.load %arg7[%c0_19, %c0_20] : memref<32x32xbf16, #tpu.memory_space<vmem>>, vector<32x32xbf16>
    %cst_21 = arith.constant dense<0.000000e+00> : vector<64x32xf32>
    %35 = tpu.matmul %28, %34, %cst_21 {dimension_numbers = #tpu.dot_dimension_numbers<[1], [0], [0], [1], [0, 0, 1, 1], [], []>} : vector<64x32xbf16>, vector<32x32xbf16>, vector<64x32xf32> -> vector<64x32xf32>
    %c0_22 = arith.constant 0 : index
    %c0_23 = arith.constant 0 : index
    %36 = vector.load %arg8[%c0_22, %c0_23] : memref<1x32xf32, #tpu.memory_space<vmem>>, vector<1x32xf32>
    %37 = vector.broadcast %36 : vector<1x32xf32> to vector<64x32xf32>
    %38 = arith.addf %35, %37 : vector<64x32xf32>
    %c0_24 = arith.constant 0 : index
    %c0_25 = arith.constant 0 : index
    %39 = vector.load %arg9[%c0_24, %c0_25] : memref<32x32xbf16, #tpu.memory_space<vmem>>, vector<32x32xbf16>
    %cst_26 = arith.constant dense<0.000000e+00> : vector<64x32xf32>
    %40 = tpu.matmul %28, %39, %cst_26 {dimension_numbers = #tpu.dot_dimension_numbers<[1], [0], [0], [1], [0, 0, 1, 1], [], []>} : vector<64x32xbf16>, vector<32x32xbf16>, vector<64x32xf32> -> vector<64x32xf32>
    %c0_27 = arith.constant 0 : index
    %c0_28 = arith.constant 0 : index
    %41 = vector.load %arg10[%c0_27, %c0_28] : memref<1x32xf32, #tpu.memory_space<vmem>>, vector<1x32xf32>
    %42 = vector.broadcast %41 : vector<1x32xf32> to vector<64x32xf32>
    %43 = arith.addf %40, %42 : vector<64x32xf32>
    %44 = arith.truncf %33 : vector<64x32xf32> to vector<64x32xbf16>
    %45 = arith.truncf %38 : vector<64x32xf32> to vector<64x32xbf16>
    %46 = arith.truncf %43 : vector<64x32xf32> to vector<64x32xbf16>
    %cst_29 = arith.constant 0xFF800000 : f32
    %47 = vector.broadcast %cst_29 : f32 to vector<64x1xf32>
    %cst_30 = arith.constant 0.000000e+00 : f32
    %48 = vector.broadcast %cst_30 : f32 to vector<64x1xf32>
    %cst_31 = arith.constant 0.000000e+00 : f32
    %49 = vector.broadcast %cst_31 : f32 to vector<64x32xf32>
    %cst_32 = arith.constant dense<0.000000e+00> : vector<64x64xf32>
    %50 = tpu.matmul %44, %45, %cst_32 {dimension_numbers = #tpu.dot_dimension_numbers<[1], [1], [0], [0], [0, 0, 1, 0], [], []>} : vector<64x32xbf16>, vector<64x32xbf16>, vector<64x64xf32> -> vector<64x64xf32>
    %cst_33 = arith.constant 0.176776692 : f32
    %51 = vector.broadcast %cst_33 : f32 to vector<64x64xf32>
    %52 = arith.mulf %50, %51 : vector<64x64xf32>
    %cst_34 = arith.constant dense<0xFF800000> : vector<64xf32>
    %53 = vector.multi_reduction <maximumf>, %52, %cst_34 [1] : vector<64x64xf32> to vector<64xf32>
    %54 = vector.shape_cast %53 : vector<64xf32> to vector<64x1xf32>
    %55 = arith.maximumf %47, %54 : vector<64x1xf32>
    %56 = arith.subf %47, %55 : vector<64x1xf32>
    %57 = math.exp %56 : vector<64x1xf32>
    %58 = vector.broadcast %55 : vector<64x1xf32> to vector<64x64xf32>
    %59 = arith.subf %52, %58 : vector<64x64xf32>
    %60 = math.exp %59 : vector<64x64xf32>
    %61 = arith.mulf %57, %48 : vector<64x1xf32>
    %cst_35 = arith.constant dense<0.000000e+00> : vector<64xf32>
    %62 = vector.multi_reduction <add>, %60, %cst_35 [1] : vector<64x64xf32> to vector<64xf32>
    %63 = vector.shape_cast %62 : vector<64xf32> to vector<64x1xf32>
    %64 = arith.addf %61, %63 : vector<64x1xf32>
    %65 = vector.broadcast %57 : vector<64x1xf32> to vector<64x32xf32>
    %66 = arith.mulf %65, %49 : vector<64x32xf32>
    %67 = arith.truncf %60 : vector<64x64xf32> to vector<64x64xbf16>
    %cst_36 = arith.constant dense<0.000000e+00> : vector<64x32xf32>
    %68 = tpu.matmul %67, %46, %cst_36 {dimension_numbers = #tpu.dot_dimension_numbers<[1], [0], [0], [1], [0, 0, 1, 1], [], []>} : vector<64x64xbf16>, vector<64x32xbf16>, vector<64x32xf32> -> vector<64x32xf32>
    %69 = arith.addf %66, %68 : vector<64x32xf32>
    %70 = vector.broadcast %64 : vector<64x1xf32> to vector<64x32xf32>
    %71 = arith.divf %69, %70 : vector<64x32xf32>
    %72 = arith.truncf %71 : vector<64x32xf32> to vector<64x32xbf16>
    %c0_37 = arith.constant 0 : index
    %c0_38 = arith.constant 0 : index
    %73 = vector.load %arg11[%c0_37, %c0_38] : memref<32x32xbf16, #tpu.memory_space<vmem>>, vector<32x32xbf16>
    %cst_39 = arith.constant dense<0.000000e+00> : vector<64x32xf32>
    %74 = tpu.matmul %72, %73, %cst_39 {dimension_numbers = #tpu.dot_dimension_numbers<[1], [0], [0], [1], [0, 0, 1, 1], [], []>} : vector<64x32xbf16>, vector<32x32xbf16>, vector<64x32xf32> -> vector<64x32xf32>
    %c0_40 = arith.constant 0 : index
    %c0_41 = arith.constant 0 : index
    %75 = vector.load %arg12[%c0_40, %c0_41] : memref<1x32xf32, #tpu.memory_space<vmem>>, vector<1x32xf32>
    %76 = vector.broadcast %75 : vector<1x32xf32> to vector<64x32xf32>
    %77 = arith.addf %74, %76 : vector<64x32xf32>
    %78 = arith.addf %77, %2 : vector<64x32xf32>
    %79 = arith.truncf %78 : vector<64x32xf32> to vector<64x32xbf16>
    %c0_42 = arith.constant 0 : index
    %c0_43 = arith.constant 0 : index
    %c0_44 = arith.constant 0 : index
    %80 = vector.load %arg13[%c0_42, %c0_43, %c0_44] : memref<1x64x32xbf16, #tpu.memory_space<vmem>>, vector<1x64x32xbf16>
    %81 = vector.shape_cast %80 : vector<1x64x32xbf16> to vector<64x32xbf16>
    %82 = vector.shape_cast %79 : vector<64x32xbf16> to vector<1x64x32xbf16>
    tpu.vector_store %arg13[%c0_42, %c0_43, %c0_44], %82 {strides = array<i32>} : memref<1x64x32xbf16, #tpu.memory_space<vmem>>, vector<1x64x32xbf16>,
    return
  }
  func.func @transform_0(%arg0: i32) -> (i32, i32, i32) {
    %c0_i32 = arith.constant 0 : i32
    %c0_i32_0 = arith.constant 0 : i32
    %c0_i32_1 = arith.constant 0 : i32
    return %arg0, %c0_i32, %c0_i32_0 : i32, i32, i32
  }
  func.func @transform_1(%arg0: i32) -> (i32, i32) {
    %c0_i32 = arith.constant 0 : i32
    %c0_i32_0 = arith.constant 0 : i32
    %c0_i32_1 = arith.constant 0 : i32
    return %c0_i32, %c0_i32_0 : i32, i32
  }
  func.func @transform_2(%arg0: i32) -> (i32, i32) {
    %c0_i32 = arith.constant 0 : i32
    %c0_i32_0 = arith.constant 0 : i32
    %c0_i32_1 = arith.constant 0 : i32
    return %c0_i32, %c0_i32_0 : i32, i32
  }
  func.func @transform_3(%arg0: i32) -> (i32, i32) {
    %c0_i32 = arith.constant 0 : i32
    %c0_i32_0 = arith.constant 0 : i32
    %c0_i32_1 = arith.constant 0 : i32
    return %c0_i32, %c0_i32_0 : i32, i32
  }
  func.func @transform_4(%arg0: i32) -> (i32, i32) {
    %c0_i32 = arith.constant 0 : i32
    %c0_i32_0 = arith.constant 0 : i32
    %c0_i32_1 = arith.constant 0 : i32
    return %c0_i32, %c0_i32_0 : i32, i32
  }
  func.func @transform_5(%arg0: i32) -> (i32, i32) {
    %c0_i32 = arith.constant 0 : i32
    %c0_i32_0 = arith.constant 0 : i32
    %c0_i32_1 = arith.constant 0 : i32
    return %c0_i32, %c0_i32_0 : i32, i32
  }
  func.func @transform_6(%arg0: i32) -> (i32, i32) {
    %c0_i32 = arith.constant 0 : i32
    %c0_i32_0 = arith.constant 0 : i32
    %c0_i32_1 = arith.constant 0 : i32
    return %c0_i32, %c0_i32_0 : i32, i32
  }
  func.func @transform_7(%arg0: i32) -> (i32, i32) {
    %c0_i32 = arith.constant 0 : i32
    %c0_i32_0 = arith.constant 0 : i32
    %c0_i32_1 = arith.constant 0 : i32
    return %c0_i32, %c0_i32_0 : i32, i32
  }
  func.func @transform_8(%arg0: i32) -> (i32, i32) {
    %c0_i32 = arith.constant 0 : i32
    %c0_i32_0 = arith.constant 0 : i32
    %c0_i32_1 = arith.constant 0 : i32
    return %c0_i32, %c0_i32_0 : i32, i32
  }
  func.func @transform_9(%arg0: i32) -> (i32, i32) {
    %c0_i32 = arith.constant 0 : i32
    %c0_i32_0 = arith.constant 0 : i32
    %c0_i32_1 = arith.constant 0 : i32
    return %c0_i32, %c0_i32_0 : i32, i32
  }
  func.func @transform_10(%arg0: i32) -> (i32, i32) {
    %c0_i32 = arith.constant 0 : i32
    %c0_i32_0 = arith.constant 0 : i32
    %c0_i32_1 = arith.constant 0 : i32
    return %c0_i32, %c0_i32_0 : i32, i32
  }
  func.func @transform_11(%arg0: i32) -> (i32, i32) {
    %c0_i32 = arith.constant 0 : i32
    %c0_i32_0 = arith.constant 0 : i32
    %c0_i32_1 = arith.constant 0 : i32
    return %c0_i32, %c0_i32_0 : i32, i32
  }
  func.func @transform_12(%arg0: i32) -> (i32, i32, i32) {
    %c0_i32 = arith.constant 0 : i32
    %c0_i32_0 = arith.constant 0 : i32
    %c0_i32_1 = arith.constant 0 : i32
    return %arg0, %c0_i32, %c0_i32_0 : i32, i32, i32
  }
}

module attributes {stable_mosaic.version = 11 : i64} {
  func.func @kernel(%arg0: i32, %arg1: memref<1x64x32xbf16, #tpu.memory_space<vmem>>, %arg2: memref<32x32xbf16, #tpu.memory_space<vmem>>, %arg3: memref<1x32xf32, #tpu.memory_space<vmem>>, %arg4: memref<1x32xf32, #tpu.memory_space<vmem>>, %arg5: memref<9x32x32xbf16, #tpu.memory_space<vmem>>, %arg6: memref<1x32xf32, #tpu.memory_space<vmem>>, %arg7: memref<1x32xf32, #tpu.memory_space<vmem>>, %arg8: memref<1x32xf32, #tpu.memory_space<vmem>>, %arg9: memref<9x32x32xbf16, #tpu.memory_space<vmem>>, %arg10: memref<1x32xf32, #tpu.memory_space<vmem>>, %arg11: memref<1x64x32xbf16, #tpu.memory_space<vmem>>) attributes {dimension_semantics = [#tpu.dimension_semantics<parallel>], iteration_bounds = array<i64: 8>, scalar_prefetch = 0 : i64, scratch_operands = 0 : i64, tpu.core_type = #tpu.core_type<tc>, window_params = [{transform_indices = @transform_0, window_bounds = array<i64: 1, 64, 32>}, {pipeline_mode = #tpu.pipeline_mode<synchronous>, transform_indices = @transform_1, window_bounds = array<i64: 32, 32>}, {pipeline_mode = #tpu.pipeline_mode<synchronous>, transform_indices = @transform_2, window_bounds = array<i64: 1, 32>}, {pipeline_mode = #tpu.pipeline_mode<synchronous>, transform_indices = @transform_3, window_bounds = array<i64: 1, 32>}, {pipeline_mode = #tpu.pipeline_mode<synchronous>, transform_indices = @transform_4, window_bounds = array<i64: 9, 32, 32>}, {pipeline_mode = #tpu.pipeline_mode<synchronous>, transform_indices = @transform_5, window_bounds = array<i64: 1, 32>}, {pipeline_mode = #tpu.pipeline_mode<synchronous>, transform_indices = @transform_6, window_bounds = array<i64: 1, 32>}, {pipeline_mode = #tpu.pipeline_mode<synchronous>, transform_indices = @transform_7, window_bounds = array<i64: 1, 32>}, {pipeline_mode = #tpu.pipeline_mode<synchronous>, transform_indices = @transform_8, window_bounds = array<i64: 9, 32, 32>}, {pipeline_mode = #tpu.pipeline_mode<synchronous>, transform_indices = @transform_9, window_bounds = array<i64: 1, 32>}, {transform_indices = @transform_10, window_bounds = array<i64: 1, 64, 32>}]} {
    %c0 = arith.constant 0 : index
    %c0_0 = arith.constant 0 : index
    %c0_1 = arith.constant 0 : index
    %0 = vector.load %arg1[%c0, %c0_0, %c0_1] : memref<1x64x32xbf16, #tpu.memory_space<vmem>>, vector<1x64x32xbf16>
    %1 = vector.shape_cast %0 : vector<1x64x32xbf16> to vector<64x32xbf16>
    %2 = arith.extf %1 : vector<64x32xbf16> to vector<64x32xf32>
    %c0_2 = arith.constant 0 : index
    %c0_3 = arith.constant 0 : index
    %3 = vector.load %arg2[%c0_2, %c0_3] : memref<32x32xbf16, #tpu.memory_space<vmem>>, vector<32x32xbf16>
    %4 = arith.extf %3 : vector<32x32xbf16> to vector<32x32xf32>
    %5 = tpu.iota {dimensions = array<i32: 0>} : vector<64x32xi32>
    %c8_i32 = arith.constant 8 : i32
    %c0_i32 = arith.constant 0 : i32
    %6 = arith.cmpi eq, %c8_i32, %c0_i32 : i32
    %c1_i32 = arith.constant 1 : i32
    %7 = arith.select %6, %c1_i32, %c8_i32 : i32
    %8 = vector.broadcast %7 : i32 to vector<64x32xi32>
    %9 = arith.remsi %5, %8 : vector<64x32xi32>
    %c0_i32_4 = arith.constant 0 : i32
    %10 = vector.broadcast %c0_i32_4 : i32 to vector<64x32xi32>
    %11 = arith.cmpi ne, %9, %10 : vector<64x32xi32>
    %c0_i32_5 = arith.constant 0 : i32
    %12 = vector.broadcast %c0_i32_5 : i32 to vector<64x32xi32>
    %13 = arith.cmpi slt, %9, %12 : vector<64x32xi32>
    %c0_i32_6 = arith.constant 0 : i32
    %14 = arith.cmpi slt, %7, %c0_i32_6 : i32
    %15 = vector.broadcast %14 : i1 to vector<64x32xi1>
    %16 = vector.broadcast %15 : vector<64x32xi1> to vector<64x32xi1>
    %17 = arith.xori %13, %16 : vector<64x32xi1>
    %18 = arith.andi %17, %11 : vector<64x32xi1>
    %19 = vector.broadcast %7 : i32 to vector<64x32xi32>
    %20 = arith.addi %9, %19 : vector<64x32xi32>
    %21 = arith.select %18, %20, %9 : vector<64x32xi1>, vector<64x32xi32>
    %c1_i32_7 = arith.constant 1 : i32
    %22 = vector.broadcast %c1_i32_7 : i32 to vector<64x32xi32>
    %23 = arith.cmpi sge, %21, %22 : vector<64x32xi32>
    %c6_i32 = arith.constant 6 : i32
    %24 = vector.broadcast %c6_i32 : i32 to vector<64x32xi32>
    %25 = arith.cmpi sle, %21, %24 : vector<64x32xi32>
    %c0_8 = arith.constant 0 : index
    %c0_9 = arith.constant 0 : index
    %26 = vector.load %arg3[%c0_8, %c0_9] : memref<1x32xf32, #tpu.memory_space<vmem>>, vector<1x32xf32>
    %c0_10 = arith.constant 0 : index
    %c0_11 = arith.constant 0 : index
    %27 = vector.load %arg4[%c0_10, %c0_11] : memref<1x32xf32, #tpu.memory_space<vmem>>, vector<1x32xf32>
    %cst = arith.constant dense<0.000000e+00> : vector<32xf32>
    %28 = vector.multi_reduction <add>, %2, %cst [0] : vector<64x32xf32> to vector<32xf32>
    %29 = vector.shape_cast %28 : vector<32xf32> to vector<1x32xf32>
    %cst_12 = arith.constant dense<0.000000e+00> : vector<1x32xf32>
    %30 = tpu.matmul %29, %4, %cst_12 {dimension_numbers = #tpu.dot_dimension_numbers<[1], [0], [0], [1], [0, 0, 1, 1], [], []>} : vector<1x32xf32>, vector<32x32xf32>, vector<1x32xf32> -> vector<1x32xf32>
    %cst_13 = arith.constant 1.562500e-02 : f32
    %31 = vector.broadcast %cst_13 : f32 to vector<1x32xf32>
    %32 = arith.mulf %30, %31 : vector<1x32xf32>
    %33 = vector.broadcast %32 : vector<1x32xf32> to vector<64x32xf32>
    %34 = arith.subf %2, %33 : vector<64x32xf32>
    %35 = arith.mulf %34, %34 : vector<64x32xf32>
    %cst_14 = arith.constant dense<0.000000e+00> : vector<32xf32>
    %36 = vector.multi_reduction <add>, %35, %cst_14 [0] : vector<64x32xf32> to vector<32xf32>
    %37 = vector.shape_cast %36 : vector<32xf32> to vector<1x32xf32>
    %cst_15 = arith.constant dense<0.000000e+00> : vector<1x32xf32>
    %38 = tpu.matmul %37, %4, %cst_15 {dimension_numbers = #tpu.dot_dimension_numbers<[1], [0], [0], [1], [0, 0, 1, 1], [], []>} : vector<1x32xf32>, vector<32x32xf32>, vector<1x32xf32> -> vector<1x32xf32>
    %cst_16 = arith.constant 1.562500e-02 : f32
    %39 = vector.broadcast %cst_16 : f32 to vector<1x32xf32>
    %40 = arith.mulf %38, %39 : vector<1x32xf32>
    %cst_17 = arith.constant 9.99999997E-7 : f32
    %41 = vector.broadcast %cst_17 : f32 to vector<1x32xf32>
    %42 = arith.addf %40, %41 : vector<1x32xf32>
    %43 = math.rsqrt %42 : vector<1x32xf32>
    %44 = arith.mulf %43, %26 : vector<1x32xf32>
    %45 = vector.broadcast %44 : vector<1x32xf32> to vector<64x32xf32>
    %46 = arith.mulf %34, %45 : vector<64x32xf32>
    %47 = vector.broadcast %27 : vector<1x32xf32> to vector<64x32xf32>
    %48 = arith.addf %46, %47 : vector<64x32xf32>
    %49 = arith.negf %48 : vector<64x32xf32>
    %50 = math.exp %49 : vector<64x32xf32>
    %cst_18 = arith.constant 1.000000e+00 : f32
    %51 = vector.broadcast %cst_18 : f32 to vector<64x32xf32>
    %52 = arith.addf %51, %50 : vector<64x32xf32>
    %53 = arith.divf %51, %52 : vector<64x32xf32>
    %54 = arith.mulf %48, %53 : vector<64x32xf32>
    %c0_19 = arith.constant 0 : index
    %c0_20 = arith.constant 0 : index
    %55 = vector.load %arg6[%c0_19, %c0_20] : memref<1x32xf32, #tpu.memory_space<vmem>>, vector<1x32xf32>
    %56 = arith.truncf %54 : vector<64x32xf32> to vector<64x32xbf16>
    %cst_21 = arith.constant 0.000000e+00 : bf16
    %57 = vector.broadcast %cst_21 : bf16 to vector<1x32xbf16>
    %58 = vector.extract_strided_slice %56 {offsets = [0, 0], sizes = [63, 32], strides = [1, 1]} : vector<64x32xbf16> to vector<63x32xbf16>
    %59 = tpu.concatenate %57, %58 in 0 : vector<1x32xbf16>, vector<63x32xbf16> -> vector<64x32xbf16>
    %60 = vector.shape_cast %57 : vector<1x32xbf16> to vector<1x32xbf16>
    %61 = vector.broadcast %60 : vector<1x32xbf16> to vector<64x32xbf16>
    %62 = arith.select %23, %59, %61 : vector<64x32xi1>, vector<64x32xbf16>
    %63 = vector.extract_strided_slice %56 {offsets = [1, 0], sizes = [63, 32], strides = [1, 1]} : vector<64x32xbf16> to vector<63x32xbf16>
    %64 = tpu.concatenate %63, %57 in 0 : vector<63x32xbf16>, vector<1x32xbf16> -> vector<64x32xbf16>
    %65 = vector.shape_cast %57 : vector<1x32xbf16> to vector<1x32xbf16>
    %66 = vector.broadcast %65 : vector<1x32xbf16> to vector<64x32xbf16>
    %67 = arith.select %25, %64, %66 : vector<64x32xi1>, vector<64x32xbf16>
    %cst_22 = arith.constant 0.000000e+00 : bf16
    %68 = vector.broadcast %cst_22 : bf16 to vector<8x32xbf16>
    %69 = tpu.concatenate %68, %62, %68 in 0 : vector<8x32xbf16>, vector<64x32xbf16>, vector<8x32xbf16> -> vector<80x32xbf16>
    %70 = tpu.concatenate %68, %56, %68 in 0 : vector<8x32xbf16>, vector<64x32xbf16>, vector<8x32xbf16> -> vector<80x32xbf16>
    %71 = tpu.concatenate %68, %67, %68 in 0 : vector<8x32xbf16>, vector<64x32xbf16>, vector<8x32xbf16> -> vector<80x32xbf16>
    %72 = vector.extract_strided_slice %69 {offsets = [0, 0], sizes = [64, 32], strides = [1, 1]} : vector<80x32xbf16> to vector<64x32xbf16>
    %c0_23 = arith.constant 0 : index
    %c0_24 = arith.constant 0 : index
    %c0_25 = arith.constant 0 : index
    %73 = vector.load %arg5[%c0_23, %c0_24, %c0_25] : memref<9x32x32xbf16, #tpu.memory_space<vmem>>, vector<1x32x32xbf16>
    %74 = vector.shape_cast %73 : vector<1x32x32xbf16> to vector<32x32xbf16>
    %cst_26 = arith.constant dense<0.000000e+00> : vector<64x32xf32>
    %75 = tpu.matmul %72, %74, %cst_26 {dimension_numbers = #tpu.dot_dimension_numbers<[1], [0], [0], [1], [0, 0, 1, 1], [], []>} : vector<64x32xbf16>, vector<32x32xbf16>, vector<64x32xf32> -> vector<64x32xf32>
    %76 = vector.extract_strided_slice %70 {offsets = [0, 0], sizes = [64, 32], strides = [1, 1]} : vector<80x32xbf16> to vector<64x32xbf16>
    %c1 = arith.constant 1 : index
    %c0_27 = arith.constant 0 : index
    %c0_28 = arith.constant 0 : index
    %77 = vector.load %arg5[%c1, %c0_27, %c0_28] : memref<9x32x32xbf16, #tpu.memory_space<vmem>>, vector<1x32x32xbf16>
    %78 = vector.shape_cast %77 : vector<1x32x32xbf16> to vector<32x32xbf16>
    %cst_29 = arith.constant dense<0.000000e+00> : vector<64x32xf32>
    %79 = tpu.matmul %76, %78, %cst_29 {dimension_numbers = #tpu.dot_dimension_numbers<[1], [0], [0], [1], [0, 0, 1, 1], [], []>} : vector<64x32xbf16>, vector<32x32xbf16>, vector<64x32xf32> -> vector<64x32xf32>
    %80 = arith.addf %75, %79 : vector<64x32xf32>
    %81 = vector.extract_strided_slice %71 {offsets = [0, 0], sizes = [64, 32], strides = [1, 1]} : vector<80x32xbf16> to vector<64x32xbf16>
    %c2 = arith.constant 2 : index
    %c0_30 = arith.constant 0 : index
    %c0_31 = arith.constant 0 : index
    %82 = vector.load %arg5[%c2, %c0_30, %c0_31] : memref<9x32x32xbf16, #tpu.memory_space<vmem>>, vector<1x32x32xbf16>
    %83 = vector.shape_cast %82 : vector<1x32x32xbf16> to vector<32x32xbf16>
    %cst_32 = arith.constant dense<0.000000e+00> : vector<64x32xf32>
    %84 = tpu.matmul %81, %83, %cst_32 {dimension_numbers = #tpu.dot_dimension_numbers<[1], [0], [0], [1], [0, 0, 1, 1], [], []>} : vector<64x32xbf16>, vector<32x32xbf16>, vector<64x32xf32> -> vector<64x32xf32>
    %85 = arith.addf %80, %84 : vector<64x32xf32>
    %86 = vector.extract_strided_slice %69 {offsets = [8, 0], sizes = [64, 32], strides = [1, 1]} : vector<80x32xbf16> to vector<64x32xbf16>
    %c3 = arith.constant 3 : index
    %c0_33 = arith.constant 0 : index
    %c0_34 = arith.constant 0 : index
    %87 = vector.load %arg5[%c3, %c0_33, %c0_34] : memref<9x32x32xbf16, #tpu.memory_space<vmem>>, vector<1x32x32xbf16>
    %88 = vector.shape_cast %87 : vector<1x32x32xbf16> to vector<32x32xbf16>
    %cst_35 = arith.constant dense<0.000000e+00> : vector<64x32xf32>
    %89 = tpu.matmul %86, %88, %cst_35 {dimension_numbers = #tpu.dot_dimension_numbers<[1], [0], [0], [1], [0, 0, 1, 1], [], []>} : vector<64x32xbf16>, vector<32x32xbf16>, vector<64x32xf32> -> vector<64x32xf32>
    %90 = arith.addf %85, %89 : vector<64x32xf32>
    %91 = vector.extract_strided_slice %70 {offsets = [8, 0], sizes = [64, 32], strides = [1, 1]} : vector<80x32xbf16> to vector<64x32xbf16>
    %c4 = arith.constant 4 : index
    %c0_36 = arith.constant 0 : index
    %c0_37 = arith.constant 0 : index
    %92 = vector.load %arg5[%c4, %c0_36, %c0_37] : memref<9x32x32xbf16, #tpu.memory_space<vmem>>, vector<1x32x32xbf16>
    %93 = vector.shape_cast %92 : vector<1x32x32xbf16> to vector<32x32xbf16>
    %cst_38 = arith.constant dense<0.000000e+00> : vector<64x32xf32>
    %94 = tpu.matmul %91, %93, %cst_38 {dimension_numbers = #tpu.dot_dimension_numbers<[1], [0], [0], [1], [0, 0, 1, 1], [], []>} : vector<64x32xbf16>, vector<32x32xbf16>, vector<64x32xf32> -> vector<64x32xf32>
    %95 = arith.addf %90, %94 : vector<64x32xf32>
    %96 = vector.extract_strided_slice %71 {offsets = [8, 0], sizes = [64, 32], strides = [1, 1]} : vector<80x32xbf16> to vector<64x32xbf16>
    %c5 = arith.constant 5 : index
    %c0_39 = arith.constant 0 : index
    %c0_40 = arith.constant 0 : index
    %97 = vector.load %arg5[%c5, %c0_39, %c0_40] : memref<9x32x32xbf16, #tpu.memory_space<vmem>>, vector<1x32x32xbf16>
    %98 = vector.shape_cast %97 : vector<1x32x32xbf16> to vector<32x32xbf16>
    %cst_41 = arith.constant dense<0.000000e+00> : vector<64x32xf32>
    %99 = tpu.matmul %96, %98, %cst_41 {dimension_numbers = #tpu.dot_dimension_numbers<[1], [0], [0], [1], [0, 0, 1, 1], [], []>} : vector<64x32xbf16>, vector<32x32xbf16>, vector<64x32xf32> -> vector<64x32xf32>
    %100 = arith.addf %95, %99 : vector<64x32xf32>
    %101 = vector.extract_strided_slice %69 {offsets = [16, 0], sizes = [64, 32], strides = [1, 1]} : vector<80x32xbf16> to vector<64x32xbf16>
    %c6 = arith.constant 6 : index
    %c0_42 = arith.constant 0 : index
    %c0_43 = arith.constant 0 : index
    %102 = vector.load %arg5[%c6, %c0_42, %c0_43] : memref<9x32x32xbf16, #tpu.memory_space<vmem>>, vector<1x32x32xbf16>
    %103 = vector.shape_cast %102 : vector<1x32x32xbf16> to vector<32x32xbf16>
    %cst_44 = arith.constant dense<0.000000e+00> : vector<64x32xf32>
    %104 = tpu.matmul %101, %103, %cst_44 {dimension_numbers = #tpu.dot_dimension_numbers<[1], [0], [0], [1], [0, 0, 1, 1], [], []>} : vector<64x32xbf16>, vector<32x32xbf16>, vector<64x32xf32> -> vector<64x32xf32>
    %105 = arith.addf %100, %104 : vector<64x32xf32>
    %106 = vector.extract_strided_slice %70 {offsets = [16, 0], sizes = [64, 32], strides = [1, 1]} : vector<80x32xbf16> to vector<64x32xbf16>
    %c7 = arith.constant 7 : index
    %c0_45 = arith.constant 0 : index
    %c0_46 = arith.constant 0 : index
    %107 = vector.load %arg5[%c7, %c0_45, %c0_46] : memref<9x32x32xbf16, #tpu.memory_space<vmem>>, vector<1x32x32xbf16>
    %108 = vector.shape_cast %107 : vector<1x32x32xbf16> to vector<32x32xbf16>
    %cst_47 = arith.constant dense<0.000000e+00> : vector<64x32xf32>
    %109 = tpu.matmul %106, %108, %cst_47 {dimension_numbers = #tpu.dot_dimension_numbers<[1], [0], [0], [1], [0, 0, 1, 1], [], []>} : vector<64x32xbf16>, vector<32x32xbf16>, vector<64x32xf32> -> vector<64x32xf32>
    %110 = arith.addf %105, %109 : vector<64x32xf32>
    %111 = vector.extract_strided_slice %71 {offsets = [16, 0], sizes = [64, 32], strides = [1, 1]} : vector<80x32xbf16> to vector<64x32xbf16>
    %c8 = arith.constant 8 : index
    %c0_48 = arith.constant 0 : index
    %c0_49 = arith.constant 0 : index
    %112 = vector.load %arg5[%c8, %c0_48, %c0_49] : memref<9x32x32xbf16, #tpu.memory_space<vmem>>, vector<1x32x32xbf16>
    %113 = vector.shape_cast %112 : vector<1x32x32xbf16> to vector<32x32xbf16>
    %cst_50 = arith.constant dense<0.000000e+00> : vector<64x32xf32>
    %114 = tpu.matmul %111, %113, %cst_50 {dimension_numbers = #tpu.dot_dimension_numbers<[1], [0], [0], [1], [0, 0, 1, 1], [], []>} : vector<64x32xbf16>, vector<32x32xbf16>, vector<64x32xf32> -> vector<64x32xf32>
    %115 = arith.addf %110, %114 : vector<64x32xf32>
    %116 = vector.broadcast %55 : vector<1x32xf32> to vector<64x32xf32>
    %117 = arith.addf %115, %116 : vector<64x32xf32>
    %c0_51 = arith.constant 0 : index
    %c0_52 = arith.constant 0 : index
    %118 = vector.load %arg7[%c0_51, %c0_52] : memref<1x32xf32, #tpu.memory_space<vmem>>, vector<1x32xf32>
    %c0_53 = arith.constant 0 : index
    %c0_54 = arith.constant 0 : index
    %119 = vector.load %arg8[%c0_53, %c0_54] : memref<1x32xf32, #tpu.memory_space<vmem>>, vector<1x32xf32>
    %cst_55 = arith.constant dense<0.000000e+00> : vector<32xf32>
    %120 = vector.multi_reduction <add>, %117, %cst_55 [0] : vector<64x32xf32> to vector<32xf32>
    %121 = vector.shape_cast %120 : vector<32xf32> to vector<1x32xf32>
    %cst_56 = arith.constant dense<0.000000e+00> : vector<1x32xf32>
    %122 = tpu.matmul %121, %4, %cst_56 {dimension_numbers = #tpu.dot_dimension_numbers<[1], [0], [0], [1], [0, 0, 1, 1], [], []>} : vector<1x32xf32>, vector<32x32xf32>, vector<1x32xf32> -> vector<1x32xf32>
    %cst_57 = arith.constant 1.562500e-02 : f32
    %123 = vector.broadcast %cst_57 : f32 to vector<1x32xf32>
    %124 = arith.mulf %122, %123 : vector<1x32xf32>
    %125 = vector.broadcast %124 : vector<1x32xf32> to vector<64x32xf32>
    %126 = arith.subf %117, %125 : vector<64x32xf32>
    %127 = arith.mulf %126, %126 : vector<64x32xf32>
    %cst_58 = arith.constant dense<0.000000e+00> : vector<32xf32>
    %128 = vector.multi_reduction <add>, %127, %cst_58 [0] : vector<64x32xf32> to vector<32xf32>
    %129 = vector.shape_cast %128 : vector<32xf32> to vector<1x32xf32>
    %cst_59 = arith.constant dense<0.000000e+00> : vector<1x32xf32>
    %130 = tpu.matmul %129, %4, %cst_59 {dimension_numbers = #tpu.dot_dimension_numbers<[1], [0], [0], [1], [0, 0, 1, 1], [], []>} : vector<1x32xf32>, vector<32x32xf32>, vector<1x32xf32> -> vector<1x32xf32>
    %cst_60 = arith.constant 1.562500e-02 : f32
    %131 = vector.broadcast %cst_60 : f32 to vector<1x32xf32>
    %132 = arith.mulf %130, %131 : vector<1x32xf32>
    %cst_61 = arith.constant 9.99999997E-7 : f32
    %133 = vector.broadcast %cst_61 : f32 to vector<1x32xf32>
    %134 = arith.addf %132, %133 : vector<1x32xf32>
    %135 = math.rsqrt %134 : vector<1x32xf32>
    %136 = arith.mulf %135, %118 : vector<1x32xf32>
    %137 = vector.broadcast %136 : vector<1x32xf32> to vector<64x32xf32>
    %138 = arith.mulf %126, %137 : vector<64x32xf32>
    %139 = vector.broadcast %119 : vector<1x32xf32> to vector<64x32xf32>
    %140 = arith.addf %138, %139 : vector<64x32xf32>
    %141 = arith.negf %140 : vector<64x32xf32>
    %142 = math.exp %141 : vector<64x32xf32>
    %cst_62 = arith.constant 1.000000e+00 : f32
    %143 = vector.broadcast %cst_62 : f32 to vector<64x32xf32>
    %144 = arith.addf %143, %142 : vector<64x32xf32>
    %145 = arith.divf %143, %144 : vector<64x32xf32>
    %146 = arith.mulf %140, %145 : vector<64x32xf32>
    %c0_63 = arith.constant 0 : index
    %c0_64 = arith.constant 0 : index
    %147 = vector.load %arg10[%c0_63, %c0_64] : memref<1x32xf32, #tpu.memory_space<vmem>>, vector<1x32xf32>
    %148 = arith.truncf %146 : vector<64x32xf32> to vector<64x32xbf16>
    %cst_65 = arith.constant 0.000000e+00 : bf16
    %149 = vector.broadcast %cst_65 : bf16 to vector<1x32xbf16>
    %150 = vector.extract_strided_slice %148 {offsets = [0, 0], sizes = [63, 32], strides = [1, 1]} : vector<64x32xbf16> to vector<63x32xbf16>
    %151 = tpu.concatenate %149, %150 in 0 : vector<1x32xbf16>, vector<63x32xbf16> -> vector<64x32xbf16>
    %152 = vector.shape_cast %149 : vector<1x32xbf16> to vector<1x32xbf16>
    %153 = vector.broadcast %152 : vector<1x32xbf16> to vector<64x32xbf16>
    %154 = arith.select %23, %151, %153 : vector<64x32xi1>, vector<64x32xbf16>
    %155 = vector.extract_strided_slice %148 {offsets = [1, 0], sizes = [63, 32], strides = [1, 1]} : vector<64x32xbf16> to vector<63x32xbf16>
    %156 = tpu.concatenate %155, %149 in 0 : vector<63x32xbf16>, vector<1x32xbf16> -> vector<64x32xbf16>
    %157 = vector.shape_cast %149 : vector<1x32xbf16> to vector<1x32xbf16>
    %158 = vector.broadcast %157 : vector<1x32xbf16> to vector<64x32xbf16>
    %159 = arith.select %25, %156, %158 : vector<64x32xi1>, vector<64x32xbf16>
    %cst_66 = arith.constant 0.000000e+00 : bf16
    %160 = vector.broadcast %cst_66 : bf16 to vector<8x32xbf16>
    %161 = tpu.concatenate %160, %154, %160 in 0 : vector<8x32xbf16>, vector<64x32xbf16>, vector<8x32xbf16> -> vector<80x32xbf16>
    %162 = tpu.concatenate %160, %148, %160 in 0 : vector<8x32xbf16>, vector<64x32xbf16>, vector<8x32xbf16> -> vector<80x32xbf16>
    %163 = tpu.concatenate %160, %159, %160 in 0 : vector<8x32xbf16>, vector<64x32xbf16>, vector<8x32xbf16> -> vector<80x32xbf16>
    %164 = vector.extract_strided_slice %161 {offsets = [0, 0], sizes = [64, 32], strides = [1, 1]} : vector<80x32xbf16> to vector<64x32xbf16>
    %c0_67 = arith.constant 0 : index
    %c0_68 = arith.constant 0 : index
    %c0_69 = arith.constant 0 : index
    %165 = vector.load %arg9[%c0_67, %c0_68, %c0_69] : memref<9x32x32xbf16, #tpu.memory_space<vmem>>, vector<1x32x32xbf16>
    %166 = vector.shape_cast %165 : vector<1x32x32xbf16> to vector<32x32xbf16>
    %cst_70 = arith.constant dense<0.000000e+00> : vector<64x32xf32>
    %167 = tpu.matmul %164, %166, %cst_70 {dimension_numbers = #tpu.dot_dimension_numbers<[1], [0], [0], [1], [0, 0, 1, 1], [], []>} : vector<64x32xbf16>, vector<32x32xbf16>, vector<64x32xf32> -> vector<64x32xf32>
    %168 = vector.extract_strided_slice %162 {offsets = [0, 0], sizes = [64, 32], strides = [1, 1]} : vector<80x32xbf16> to vector<64x32xbf16>
    %c1_71 = arith.constant 1 : index
    %c0_72 = arith.constant 0 : index
    %c0_73 = arith.constant 0 : index
    %169 = vector.load %arg9[%c1_71, %c0_72, %c0_73] : memref<9x32x32xbf16, #tpu.memory_space<vmem>>, vector<1x32x32xbf16>
    %170 = vector.shape_cast %169 : vector<1x32x32xbf16> to vector<32x32xbf16>
    %cst_74 = arith.constant dense<0.000000e+00> : vector<64x32xf32>
    %171 = tpu.matmul %168, %170, %cst_74 {dimension_numbers = #tpu.dot_dimension_numbers<[1], [0], [0], [1], [0, 0, 1, 1], [], []>} : vector<64x32xbf16>, vector<32x32xbf16>, vector<64x32xf32> -> vector<64x32xf32>
    %172 = arith.addf %167, %171 : vector<64x32xf32>
    %173 = vector.extract_strided_slice %163 {offsets = [0, 0], sizes = [64, 32], strides = [1, 1]} : vector<80x32xbf16> to vector<64x32xbf16>
    %c2_75 = arith.constant 2 : index
    %c0_76 = arith.constant 0 : index
    %c0_77 = arith.constant 0 : index
    %174 = vector.load %arg9[%c2_75, %c0_76, %c0_77] : memref<9x32x32xbf16, #tpu.memory_space<vmem>>, vector<1x32x32xbf16>
    %175 = vector.shape_cast %174 : vector<1x32x32xbf16> to vector<32x32xbf16>
    %cst_78 = arith.constant dense<0.000000e+00> : vector<64x32xf32>
    %176 = tpu.matmul %173, %175, %cst_78 {dimension_numbers = #tpu.dot_dimension_numbers<[1], [0], [0], [1], [0, 0, 1, 1], [], []>} : vector<64x32xbf16>, vector<32x32xbf16>, vector<64x32xf32> -> vector<64x32xf32>
    %177 = arith.addf %172, %176 : vector<64x32xf32>
    %178 = vector.extract_strided_slice %161 {offsets = [8, 0], sizes = [64, 32], strides = [1, 1]} : vector<80x32xbf16> to vector<64x32xbf16>
    %c3_79 = arith.constant 3 : index
    %c0_80 = arith.constant 0 : index
    %c0_81 = arith.constant 0 : index
    %179 = vector.load %arg9[%c3_79, %c0_80, %c0_81] : memref<9x32x32xbf16, #tpu.memory_space<vmem>>, vector<1x32x32xbf16>
    %180 = vector.shape_cast %179 : vector<1x32x32xbf16> to vector<32x32xbf16>
    %cst_82 = arith.constant dense<0.000000e+00> : vector<64x32xf32>
    %181 = tpu.matmul %178, %180, %cst_82 {dimension_numbers = #tpu.dot_dimension_numbers<[1], [0], [0], [1], [0, 0, 1, 1], [], []>} : vector<64x32xbf16>, vector<32x32xbf16>, vector<64x32xf32> -> vector<64x32xf32>
    %182 = arith.addf %177, %181 : vector<64x32xf32>
    %183 = vector.extract_strided_slice %162 {offsets = [8, 0], sizes = [64, 32], strides = [1, 1]} : vector<80x32xbf16> to vector<64x32xbf16>
    %c4_83 = arith.constant 4 : index
    %c0_84 = arith.constant 0 : index
    %c0_85 = arith.constant 0 : index
    %184 = vector.load %arg9[%c4_83, %c0_84, %c0_85] : memref<9x32x32xbf16, #tpu.memory_space<vmem>>, vector<1x32x32xbf16>
    %185 = vector.shape_cast %184 : vector<1x32x32xbf16> to vector<32x32xbf16>
    %cst_86 = arith.constant dense<0.000000e+00> : vector<64x32xf32>
    %186 = tpu.matmul %183, %185, %cst_86 {dimension_numbers = #tpu.dot_dimension_numbers<[1], [0], [0], [1], [0, 0, 1, 1], [], []>} : vector<64x32xbf16>, vector<32x32xbf16>, vector<64x32xf32> -> vector<64x32xf32>
    %187 = arith.addf %182, %186 : vector<64x32xf32>
    %188 = vector.extract_strided_slice %163 {offsets = [8, 0], sizes = [64, 32], strides = [1, 1]} : vector<80x32xbf16> to vector<64x32xbf16>
    %c5_87 = arith.constant 5 : index
    %c0_88 = arith.constant 0 : index
    %c0_89 = arith.constant 0 : index
    %189 = vector.load %arg9[%c5_87, %c0_88, %c0_89] : memref<9x32x32xbf16, #tpu.memory_space<vmem>>, vector<1x32x32xbf16>
    %190 = vector.shape_cast %189 : vector<1x32x32xbf16> to vector<32x32xbf16>
    %cst_90 = arith.constant dense<0.000000e+00> : vector<64x32xf32>
    %191 = tpu.matmul %188, %190, %cst_90 {dimension_numbers = #tpu.dot_dimension_numbers<[1], [0], [0], [1], [0, 0, 1, 1], [], []>} : vector<64x32xbf16>, vector<32x32xbf16>, vector<64x32xf32> -> vector<64x32xf32>
    %192 = arith.addf %187, %191 : vector<64x32xf32>
    %193 = vector.extract_strided_slice %161 {offsets = [16, 0], sizes = [64, 32], strides = [1, 1]} : vector<80x32xbf16> to vector<64x32xbf16>
    %c6_91 = arith.constant 6 : index
    %c0_92 = arith.constant 0 : index
    %c0_93 = arith.constant 0 : index
    %194 = vector.load %arg9[%c6_91, %c0_92, %c0_93] : memref<9x32x32xbf16, #tpu.memory_space<vmem>>, vector<1x32x32xbf16>
    %195 = vector.shape_cast %194 : vector<1x32x32xbf16> to vector<32x32xbf16>
    %cst_94 = arith.constant dense<0.000000e+00> : vector<64x32xf32>
    %196 = tpu.matmul %193, %195, %cst_94 {dimension_numbers = #tpu.dot_dimension_numbers<[1], [0], [0], [1], [0, 0, 1, 1], [], []>} : vector<64x32xbf16>, vector<32x32xbf16>, vector<64x32xf32> -> vector<64x32xf32>
    %197 = arith.addf %192, %196 : vector<64x32xf32>
    %198 = vector.extract_strided_slice %162 {offsets = [16, 0], sizes = [64, 32], strides = [1, 1]} : vector<80x32xbf16> to vector<64x32xbf16>
    %c7_95 = arith.constant 7 : index
    %c0_96 = arith.constant 0 : index
    %c0_97 = arith.constant 0 : index
    %199 = vector.load %arg9[%c7_95, %c0_96, %c0_97] : memref<9x32x32xbf16, #tpu.memory_space<vmem>>, vector<1x32x32xbf16>
    %200 = vector.shape_cast %199 : vector<1x32x32xbf16> to vector<32x32xbf16>
    %cst_98 = arith.constant dense<0.000000e+00> : vector<64x32xf32>
    %201 = tpu.matmul %198, %200, %cst_98 {dimension_numbers = #tpu.dot_dimension_numbers<[1], [0], [0], [1], [0, 0, 1, 1], [], []>} : vector<64x32xbf16>, vector<32x32xbf16>, vector<64x32xf32> -> vector<64x32xf32>
    %202 = arith.addf %197, %201 : vector<64x32xf32>
    %203 = vector.extract_strided_slice %163 {offsets = [16, 0], sizes = [64, 32], strides = [1, 1]} : vector<80x32xbf16> to vector<64x32xbf16>
    %c8_99 = arith.constant 8 : index
    %c0_100 = arith.constant 0 : index
    %c0_101 = arith.constant 0 : index
    %204 = vector.load %arg9[%c8_99, %c0_100, %c0_101] : memref<9x32x32xbf16, #tpu.memory_space<vmem>>, vector<1x32x32xbf16>
    %205 = vector.shape_cast %204 : vector<1x32x32xbf16> to vector<32x32xbf16>
    %cst_102 = arith.constant dense<0.000000e+00> : vector<64x32xf32>
    %206 = tpu.matmul %203, %205, %cst_102 {dimension_numbers = #tpu.dot_dimension_numbers<[1], [0], [0], [1], [0, 0, 1, 1], [], []>} : vector<64x32xbf16>, vector<32x32xbf16>, vector<64x32xf32> -> vector<64x32xf32>
    %207 = arith.addf %202, %206 : vector<64x32xf32>
    %208 = vector.broadcast %147 : vector<1x32xf32> to vector<64x32xf32>
    %209 = arith.addf %207, %208 : vector<64x32xf32>
    %210 = arith.addf %2, %209 : vector<64x32xf32>
    %211 = arith.truncf %210 : vector<64x32xf32> to vector<64x32xbf16>
    %c0_103 = arith.constant 0 : index
    %c0_104 = arith.constant 0 : index
    %c0_105 = arith.constant 0 : index
    %212 = vector.load %arg11[%c0_103, %c0_104, %c0_105] : memref<1x64x32xbf16, #tpu.memory_space<vmem>>, vector<1x64x32xbf16>
    %213 = vector.shape_cast %212 : vector<1x64x32xbf16> to vector<64x32xbf16>
    %214 = vector.shape_cast %211 : vector<64x32xbf16> to vector<1x64x32xbf16>
    tpu.vector_store %arg11[%c0_103, %c0_104, %c0_105], %214 {strides = array<i32>} : memref<1x64x32xbf16, #tpu.memory_space<vmem>>, vector<1x64x32xbf16>,
    return
  }
  func.func @transform_0(%arg0: i32) -> (i32, i32, i32) {
    %c0_i32 = arith.constant 0 : i32
    %c0_i32_0 = arith.constant 0 : i32
    %c0_i32_1 = arith.constant 0 : i32
    return %arg0, %c0_i32, %c0_i32_0 : i32, i32, i32
  }
  func.func @transform_1(%arg0: i32) -> (i32, i32) {
    %c0_i32 = arith.constant 0 : i32
    %c0_i32_0 = arith.constant 0 : i32
    %c0_i32_1 = arith.constant 0 : i32
    return %c0_i32, %c0_i32_0 : i32, i32
  }
  func.func @transform_2(%arg0: i32) -> (i32, i32) {
    %c0_i32 = arith.constant 0 : i32
    %c0_i32_0 = arith.constant 0 : i32
    %c0_i32_1 = arith.constant 0 : i32
    return %c0_i32, %c0_i32_0 : i32, i32
  }
  func.func @transform_3(%arg0: i32) -> (i32, i32) {
    %c0_i32 = arith.constant 0 : i32
    %c0_i32_0 = arith.constant 0 : i32
    %c0_i32_1 = arith.constant 0 : i32
    return %c0_i32, %c0_i32_0 : i32, i32
  }
  func.func @transform_4(%arg0: i32) -> (i32, i32, i32) {
    %c0_i32 = arith.constant 0 : i32
    %c0_i32_0 = arith.constant 0 : i32
    %c0_i32_1 = arith.constant 0 : i32
    %c0_i32_2 = arith.constant 0 : i32
    return %c0_i32, %c0_i32_0, %c0_i32_1 : i32, i32, i32
  }
  func.func @transform_5(%arg0: i32) -> (i32, i32) {
    %c0_i32 = arith.constant 0 : i32
    %c0_i32_0 = arith.constant 0 : i32
    %c0_i32_1 = arith.constant 0 : i32
    return %c0_i32, %c0_i32_0 : i32, i32
  }
  func.func @transform_6(%arg0: i32) -> (i32, i32) {
    %c0_i32 = arith.constant 0 : i32
    %c0_i32_0 = arith.constant 0 : i32
    %c0_i32_1 = arith.constant 0 : i32
    return %c0_i32, %c0_i32_0 : i32, i32
  }
  func.func @transform_7(%arg0: i32) -> (i32, i32) {
    %c0_i32 = arith.constant 0 : i32
    %c0_i32_0 = arith.constant 0 : i32
    %c0_i32_1 = arith.constant 0 : i32
    return %c0_i32, %c0_i32_0 : i32, i32
  }
  func.func @transform_8(%arg0: i32) -> (i32, i32, i32) {
    %c0_i32 = arith.constant 0 : i32
    %c0_i32_0 = arith.constant 0 : i32
    %c0_i32_1 = arith.constant 0 : i32
    %c0_i32_2 = arith.constant 0 : i32
    return %c0_i32, %c0_i32_0, %c0_i32_1 : i32, i32, i32
  }
  func.func @transform_9(%arg0: i32) -> (i32, i32) {
    %c0_i32 = arith.constant 0 : i32
    %c0_i32_0 = arith.constant 0 : i32
    %c0_i32_1 = arith.constant 0 : i32
    return %c0_i32, %c0_i32_0 : i32, i32
  }
  func.func @transform_10(%arg0: i32) -> (i32, i32, i32) {
    %c0_i32 = arith.constant 0 : i32
    %c0_i32_0 = arith.constant 0 : i32
    %c0_i32_1 = arith.constant 0 : i32
    return %arg0, %c0_i32, %c0_i32_0 : i32, i32, i32
  }
}

module attributes {stable_mosaic.version = 11 : i64} {
  func.func @kernel(%arg0: i32, %arg1: memref<1x256x32xbf16, #tpu.memory_space<vmem>>, %arg2: memref<32x32xbf16, #tpu.memory_space<vmem>>, %arg3: memref<1x32xf32, #tpu.memory_space<vmem>>, %arg4: memref<1x32xf32, #tpu.memory_space<vmem>>, %arg5: memref<3x32x32xbf16, #tpu.memory_space<vmem>>, %arg6: memref<1x32xf32, #tpu.memory_space<vmem>>, %arg7: memref<1x32xf32, #tpu.memory_space<vmem>>, %arg8: memref<1x32xf32, #tpu.memory_space<vmem>>, %arg9: memref<3x32x32xbf16, #tpu.memory_space<vmem>>, %arg10: memref<1x32xf32, #tpu.memory_space<vmem>>, %arg11: memref<1xf32, #tpu.memory_space<smem>>, %arg12: memref<1x256x32xbf16, #tpu.memory_space<vmem>>) attributes {dimension_semantics = [#tpu.dimension_semantics<parallel>], iteration_bounds = array<i64: 2>, scalar_prefetch = 0 : i64, scratch_operands = 0 : i64, tpu.core_type = #tpu.core_type<tc>, window_params = [{transform_indices = @transform_0, window_bounds = array<i64: 1, 256, 32>}, {pipeline_mode = #tpu.pipeline_mode<synchronous>, transform_indices = @transform_1, window_bounds = array<i64: 32, 32>}, {pipeline_mode = #tpu.pipeline_mode<synchronous>, transform_indices = @transform_2, window_bounds = array<i64: 1, 32>}, {pipeline_mode = #tpu.pipeline_mode<synchronous>, transform_indices = @transform_3, window_bounds = array<i64: 1, 32>}, {pipeline_mode = #tpu.pipeline_mode<synchronous>, transform_indices = @transform_4, window_bounds = array<i64: 3, 32, 32>}, {pipeline_mode = #tpu.pipeline_mode<synchronous>, transform_indices = @transform_5, window_bounds = array<i64: 1, 32>}, {pipeline_mode = #tpu.pipeline_mode<synchronous>, transform_indices = @transform_6, window_bounds = array<i64: 1, 32>}, {pipeline_mode = #tpu.pipeline_mode<synchronous>, transform_indices = @transform_7, window_bounds = array<i64: 1, 32>}, {pipeline_mode = #tpu.pipeline_mode<synchronous>, transform_indices = @transform_8, window_bounds = array<i64: 3, 32, 32>}, {pipeline_mode = #tpu.pipeline_mode<synchronous>, transform_indices = @transform_9, window_bounds = array<i64: 1, 32>}, {transform_indices = @transform_10, window_bounds = array<i64: 1>}, {transform_indices = @transform_11, window_bounds = array<i64: 1, 256, 32>}]} {
    %c0 = arith.constant 0 : index
    %c0_0 = arith.constant 0 : index
    %c0_1 = arith.constant 0 : index
    %0 = vector.load %arg1[%c0, %c0_0, %c0_1] : memref<1x256x32xbf16, #tpu.memory_space<vmem>>, vector<1x256x32xbf16>
    %1 = vector.shape_cast %0 : vector<1x256x32xbf16> to vector<256x32xbf16>
    %2 = arith.extf %1 : vector<256x32xbf16> to vector<256x32xf32>
    %c0_2 = arith.constant 0 : index
    %c0_3 = arith.constant 0 : index
    %3 = vector.load %arg2[%c0_2, %c0_3] : memref<32x32xbf16, #tpu.memory_space<vmem>>, vector<32x32xbf16>
    %4 = arith.extf %3 : vector<32x32xbf16> to vector<32x32xf32>
    %c0_4 = arith.constant 0 : index
    %c0_5 = arith.constant 0 : index
    %5 = vector.load %arg3[%c0_4, %c0_5] : memref<1x32xf32, #tpu.memory_space<vmem>>, vector<1x32xf32>
    %c0_6 = arith.constant 0 : index
    %c0_7 = arith.constant 0 : index
    %6 = vector.load %arg4[%c0_6, %c0_7] : memref<1x32xf32, #tpu.memory_space<vmem>>, vector<1x32xf32>
    %cst = arith.constant dense<0.000000e+00> : vector<32xf32>
    %7 = vector.multi_reduction <add>, %2, %cst [0] : vector<256x32xf32> to vector<32xf32>
    %8 = vector.shape_cast %7 : vector<32xf32> to vector<1x32xf32>
    %cst_8 = arith.constant dense<0.000000e+00> : vector<1x32xf32>
    %9 = tpu.matmul %8, %4, %cst_8 {dimension_numbers = #tpu.dot_dimension_numbers<[1], [0], [0], [1], [0, 0, 1, 1], [], []>} : vector<1x32xf32>, vector<32x32xf32>, vector<1x32xf32> -> vector<1x32xf32>
    %cst_9 = arith.constant 3.906250e-03 : f32
    %10 = vector.broadcast %cst_9 : f32 to vector<1x32xf32>
    %11 = arith.mulf %9, %10 : vector<1x32xf32>
    %12 = vector.broadcast %11 : vector<1x32xf32> to vector<256x32xf32>
    %13 = arith.subf %2, %12 : vector<256x32xf32>
    %14 = arith.mulf %13, %13 : vector<256x32xf32>
    %cst_10 = arith.constant dense<0.000000e+00> : vector<32xf32>
    %15 = vector.multi_reduction <add>, %14, %cst_10 [0] : vector<256x32xf32> to vector<32xf32>
    %16 = vector.shape_cast %15 : vector<32xf32> to vector<1x32xf32>
    %cst_11 = arith.constant dense<0.000000e+00> : vector<1x32xf32>
    %17 = tpu.matmul %16, %4, %cst_11 {dimension_numbers = #tpu.dot_dimension_numbers<[1], [0], [0], [1], [0, 0, 1, 1], [], []>} : vector<1x32xf32>, vector<32x32xf32>, vector<1x32xf32> -> vector<1x32xf32>
    %cst_12 = arith.constant 3.906250e-03 : f32
    %18 = vector.broadcast %cst_12 : f32 to vector<1x32xf32>
    %19 = arith.mulf %17, %18 : vector<1x32xf32>
    %cst_13 = arith.constant 9.99999974E-6 : f32
    %20 = vector.broadcast %cst_13 : f32 to vector<1x32xf32>
    %21 = arith.addf %19, %20 : vector<1x32xf32>
    %22 = math.rsqrt %21 : vector<1x32xf32>
    %23 = arith.mulf %22, %5 : vector<1x32xf32>
    %24 = vector.broadcast %23 : vector<1x32xf32> to vector<256x32xf32>
    %25 = arith.mulf %13, %24 : vector<256x32xf32>
    %26 = vector.broadcast %6 : vector<1x32xf32> to vector<256x32xf32>
    %27 = arith.addf %25, %26 : vector<256x32xf32>
    %28 = arith.negf %27 : vector<256x32xf32>
    %29 = math.exp %28 : vector<256x32xf32>
    %cst_14 = arith.constant 1.000000e+00 : f32
    %30 = vector.broadcast %cst_14 : f32 to vector<256x32xf32>
    %31 = arith.addf %30, %29 : vector<256x32xf32>
    %32 = arith.divf %30, %31 : vector<256x32xf32>
    %33 = arith.mulf %27, %32 : vector<256x32xf32>
    %c0_15 = arith.constant 0 : index
    %c0_16 = arith.constant 0 : index
    %34 = vector.load %arg6[%c0_15, %c0_16] : memref<1x32xf32, #tpu.memory_space<vmem>>, vector<1x32xf32>
    %35 = arith.truncf %33 : vector<256x32xf32> to vector<256x32xbf16>
    %cst_17 = arith.constant 0.000000e+00 : bf16
    %36 = vector.broadcast %cst_17 : bf16 to vector<64x32xbf16>
    %37 = tpu.concatenate %36, %35, %36 in 0 : vector<64x32xbf16>, vector<256x32xbf16>, vector<64x32xbf16> -> vector<384x32xbf16>
    %38 = vector.extract_strided_slice %37 {offsets = [0, 0], sizes = [256, 32], strides = [1, 1]} : vector<384x32xbf16> to vector<256x32xbf16>
    %c0_18 = arith.constant 0 : index
    %c0_19 = arith.constant 0 : index
    %c0_20 = arith.constant 0 : index
    %39 = vector.load %arg5[%c0_18, %c0_19, %c0_20] : memref<3x32x32xbf16, #tpu.memory_space<vmem>>, vector<1x32x32xbf16>
    %40 = vector.shape_cast %39 : vector<1x32x32xbf16> to vector<32x32xbf16>
    %cst_21 = arith.constant dense<0.000000e+00> : vector<256x32xf32>
    %41 = tpu.matmul %38, %40, %cst_21 {dimension_numbers = #tpu.dot_dimension_numbers<[1], [0], [0], [1], [0, 0, 1, 1], [], []>} : vector<256x32xbf16>, vector<32x32xbf16>, vector<256x32xf32> -> vector<256x32xf32>
    %42 = vector.extract_strided_slice %37 {offsets = [64, 0], sizes = [256, 32], strides = [1, 1]} : vector<384x32xbf16> to vector<256x32xbf16>
    %c1 = arith.constant 1 : index
    %c0_22 = arith.constant 0 : index
    %c0_23 = arith.constant 0 : index
    %43 = vector.load %arg5[%c1, %c0_22, %c0_23] : memref<3x32x32xbf16, #tpu.memory_space<vmem>>, vector<1x32x32xbf16>
    %44 = vector.shape_cast %43 : vector<1x32x32xbf16> to vector<32x32xbf16>
    %cst_24 = arith.constant dense<0.000000e+00> : vector<256x32xf32>
    %45 = tpu.matmul %42, %44, %cst_24 {dimension_numbers = #tpu.dot_dimension_numbers<[1], [0], [0], [1], [0, 0, 1, 1], [], []>} : vector<256x32xbf16>, vector<32x32xbf16>, vector<256x32xf32> -> vector<256x32xf32>
    %46 = arith.addf %41, %45 : vector<256x32xf32>
    %47 = vector.extract_strided_slice %37 {offsets = [128, 0], sizes = [256, 32], strides = [1, 1]} : vector<384x32xbf16> to vector<256x32xbf16>
    %c2 = arith.constant 2 : index
    %c0_25 = arith.constant 0 : index
    %c0_26 = arith.constant 0 : index
    %48 = vector.load %arg5[%c2, %c0_25, %c0_26] : memref<3x32x32xbf16, #tpu.memory_space<vmem>>, vector<1x32x32xbf16>
    %49 = vector.shape_cast %48 : vector<1x32x32xbf16> to vector<32x32xbf16>
    %cst_27 = arith.constant dense<0.000000e+00> : vector<256x32xf32>
    %50 = tpu.matmul %47, %49, %cst_27 {dimension_numbers = #tpu.dot_dimension_numbers<[1], [0], [0], [1], [0, 0, 1, 1], [], []>} : vector<256x32xbf16>, vector<32x32xbf16>, vector<256x32xf32> -> vector<256x32xf32>
    %51 = arith.addf %46, %50 : vector<256x32xf32>
    %52 = vector.broadcast %34 : vector<1x32xf32> to vector<256x32xf32>
    %53 = arith.addf %51, %52 : vector<256x32xf32>
    %c0_28 = arith.constant 0 : index
    %c0_29 = arith.constant 0 : index
    %54 = vector.load %arg7[%c0_28, %c0_29] : memref<1x32xf32, #tpu.memory_space<vmem>>, vector<1x32xf32>
    %c0_30 = arith.constant 0 : index
    %c0_31 = arith.constant 0 : index
    %55 = vector.load %arg8[%c0_30, %c0_31] : memref<1x32xf32, #tpu.memory_space<vmem>>, vector<1x32xf32>
    %cst_32 = arith.constant dense<0.000000e+00> : vector<32xf32>
    %56 = vector.multi_reduction <add>, %53, %cst_32 [0] : vector<256x32xf32> to vector<32xf32>
    %57 = vector.shape_cast %56 : vector<32xf32> to vector<1x32xf32>
    %cst_33 = arith.constant dense<0.000000e+00> : vector<1x32xf32>
    %58 = tpu.matmul %57, %4, %cst_33 {dimension_numbers = #tpu.dot_dimension_numbers<[1], [0], [0], [1], [0, 0, 1, 1], [], []>} : vector<1x32xf32>, vector<32x32xf32>, vector<1x32xf32> -> vector<1x32xf32>
    %cst_34 = arith.constant 3.906250e-03 : f32
    %59 = vector.broadcast %cst_34 : f32 to vector<1x32xf32>
    %60 = arith.mulf %58, %59 : vector<1x32xf32>
    %61 = vector.broadcast %60 : vector<1x32xf32> to vector<256x32xf32>
    %62 = arith.subf %53, %61 : vector<256x32xf32>
    %63 = arith.mulf %62, %62 : vector<256x32xf32>
    %cst_35 = arith.constant dense<0.000000e+00> : vector<32xf32>
    %64 = vector.multi_reduction <add>, %63, %cst_35 [0] : vector<256x32xf32> to vector<32xf32>
    %65 = vector.shape_cast %64 : vector<32xf32> to vector<1x32xf32>
    %cst_36 = arith.constant dense<0.000000e+00> : vector<1x32xf32>
    %66 = tpu.matmul %65, %4, %cst_36 {dimension_numbers = #tpu.dot_dimension_numbers<[1], [0], [0], [1], [0, 0, 1, 1], [], []>} : vector<1x32xf32>, vector<32x32xf32>, vector<1x32xf32> -> vector<1x32xf32>
    %cst_37 = arith.constant 3.906250e-03 : f32
    %67 = vector.broadcast %cst_37 : f32 to vector<1x32xf32>
    %68 = arith.mulf %66, %67 : vector<1x32xf32>
    %cst_38 = arith.constant 9.99999974E-6 : f32
    %69 = vector.broadcast %cst_38 : f32 to vector<1x32xf32>
    %70 = arith.addf %68, %69 : vector<1x32xf32>
    %71 = math.rsqrt %70 : vector<1x32xf32>
    %72 = arith.mulf %71, %54 : vector<1x32xf32>
    %73 = vector.broadcast %72 : vector<1x32xf32> to vector<256x32xf32>
    %74 = arith.mulf %62, %73 : vector<256x32xf32>
    %75 = vector.broadcast %55 : vector<1x32xf32> to vector<256x32xf32>
    %76 = arith.addf %74, %75 : vector<256x32xf32>
    %77 = arith.negf %76 : vector<256x32xf32>
    %78 = math.exp %77 : vector<256x32xf32>
    %cst_39 = arith.constant 1.000000e+00 : f32
    %79 = vector.broadcast %cst_39 : f32 to vector<256x32xf32>
    %80 = arith.addf %79, %78 : vector<256x32xf32>
    %81 = arith.divf %79, %80 : vector<256x32xf32>
    %82 = arith.mulf %76, %81 : vector<256x32xf32>
    %c0_40 = arith.constant 0 : index
    %c0_41 = arith.constant 0 : index
    %83 = vector.load %arg10[%c0_40, %c0_41] : memref<1x32xf32, #tpu.memory_space<vmem>>, vector<1x32xf32>
    %84 = arith.truncf %82 : vector<256x32xf32> to vector<256x32xbf16>
    %cst_42 = arith.constant 0.000000e+00 : bf16
    %85 = vector.broadcast %cst_42 : bf16 to vector<64x32xbf16>
    %86 = tpu.concatenate %85, %84, %85 in 0 : vector<64x32xbf16>, vector<256x32xbf16>, vector<64x32xbf16> -> vector<384x32xbf16>
    %87 = vector.extract_strided_slice %86 {offsets = [0, 0], sizes = [256, 32], strides = [1, 1]} : vector<384x32xbf16> to vector<256x32xbf16>
    %c0_43 = arith.constant 0 : index
    %c0_44 = arith.constant 0 : index
    %c0_45 = arith.constant 0 : index
    %88 = vector.load %arg9[%c0_43, %c0_44, %c0_45] : memref<3x32x32xbf16, #tpu.memory_space<vmem>>, vector<1x32x32xbf16>
    %89 = vector.shape_cast %88 : vector<1x32x32xbf16> to vector<32x32xbf16>
    %cst_46 = arith.constant dense<0.000000e+00> : vector<256x32xf32>
    %90 = tpu.matmul %87, %89, %cst_46 {dimension_numbers = #tpu.dot_dimension_numbers<[1], [0], [0], [1], [0, 0, 1, 1], [], []>} : vector<256x32xbf16>, vector<32x32xbf16>, vector<256x32xf32> -> vector<256x32xf32>
    %91 = vector.extract_strided_slice %86 {offsets = [64, 0], sizes = [256, 32], strides = [1, 1]} : vector<384x32xbf16> to vector<256x32xbf16>
    %c1_47 = arith.constant 1 : index
    %c0_48 = arith.constant 0 : index
    %c0_49 = arith.constant 0 : index
    %92 = vector.load %arg9[%c1_47, %c0_48, %c0_49] : memref<3x32x32xbf16, #tpu.memory_space<vmem>>, vector<1x32x32xbf16>
    %93 = vector.shape_cast %92 : vector<1x32x32xbf16> to vector<32x32xbf16>
    %cst_50 = arith.constant dense<0.000000e+00> : vector<256x32xf32>
    %94 = tpu.matmul %91, %93, %cst_50 {dimension_numbers = #tpu.dot_dimension_numbers<[1], [0], [0], [1], [0, 0, 1, 1], [], []>} : vector<256x32xbf16>, vector<32x32xbf16>, vector<256x32xf32> -> vector<256x32xf32>
    %95 = arith.addf %90, %94 : vector<256x32xf32>
    %96 = vector.extract_strided_slice %86 {offsets = [128, 0], sizes = [256, 32], strides = [1, 1]} : vector<384x32xbf16> to vector<256x32xbf16>
    %c2_51 = arith.constant 2 : index
    %c0_52 = arith.constant 0 : index
    %c0_53 = arith.constant 0 : index
    %97 = vector.load %arg9[%c2_51, %c0_52, %c0_53] : memref<3x32x32xbf16, #tpu.memory_space<vmem>>, vector<1x32x32xbf16>
    %98 = vector.shape_cast %97 : vector<1x32x32xbf16> to vector<32x32xbf16>
    %cst_54 = arith.constant dense<0.000000e+00> : vector<256x32xf32>
    %99 = tpu.matmul %96, %98, %cst_54 {dimension_numbers = #tpu.dot_dimension_numbers<[1], [0], [0], [1], [0, 0, 1, 1], [], []>} : vector<256x32xbf16>, vector<32x32xbf16>, vector<256x32xf32> -> vector<256x32xf32>
    %100 = arith.addf %95, %99 : vector<256x32xf32>
    %101 = vector.broadcast %83 : vector<1x32xf32> to vector<256x32xf32>
    %102 = arith.addf %100, %101 : vector<256x32xf32>
    %c0_55 = arith.constant 0 : index
    %103 = memref.load %arg11[%c0_55] : memref<1xf32, #tpu.memory_space<smem>>
    %104 = vector.broadcast %103 : f32 to vector<256x32xf32>
    %105 = arith.mulf %104, %102 : vector<256x32xf32>
    %106 = arith.addf %2, %105 : vector<256x32xf32>
    %107 = arith.truncf %106 : vector<256x32xf32> to vector<256x32xbf16>
    %c0_56 = arith.constant 0 : index
    %c0_57 = arith.constant 0 : index
    %c0_58 = arith.constant 0 : index
    %108 = vector.load %arg12[%c0_56, %c0_57, %c0_58] : memref<1x256x32xbf16, #tpu.memory_space<vmem>>, vector<1x256x32xbf16>
    %109 = vector.shape_cast %108 : vector<1x256x32xbf16> to vector<256x32xbf16>
    %110 = vector.shape_cast %107 : vector<256x32xbf16> to vector<1x256x32xbf16>
    tpu.vector_store %arg12[%c0_56, %c0_57, %c0_58], %110 {strides = array<i32>} : memref<1x256x32xbf16, #tpu.memory_space<vmem>>, vector<1x256x32xbf16>,
    return
  }
  func.func @transform_0(%arg0: i32) -> (i32, i32, i32) {
    %c0_i32 = arith.constant 0 : i32
    %c0_i32_0 = arith.constant 0 : i32
    %c0_i32_1 = arith.constant 0 : i32
    return %arg0, %c0_i32, %c0_i32_0 : i32, i32, i32
  }
  func.func @transform_1(%arg0: i32) -> (i32, i32) {
    %c0_i32 = arith.constant 0 : i32
    %c0_i32_0 = arith.constant 0 : i32
    %c0_i32_1 = arith.constant 0 : i32
    return %c0_i32, %c0_i32_0 : i32, i32
  }
  func.func @transform_2(%arg0: i32) -> (i32, i32) {
    %c0_i32 = arith.constant 0 : i32
    %c0_i32_0 = arith.constant 0 : i32
    %c0_i32_1 = arith.constant 0 : i32
    return %c0_i32, %c0_i32_0 : i32, i32
  }
  func.func @transform_3(%arg0: i32) -> (i32, i32) {
    %c0_i32 = arith.constant 0 : i32
    %c0_i32_0 = arith.constant 0 : i32
    %c0_i32_1 = arith.constant 0 : i32
    return %c0_i32, %c0_i32_0 : i32, i32
  }
  func.func @transform_4(%arg0: i32) -> (i32, i32, i32) {
    %c0_i32 = arith.constant 0 : i32
    %c0_i32_0 = arith.constant 0 : i32
    %c0_i32_1 = arith.constant 0 : i32
    %c0_i32_2 = arith.constant 0 : i32
    return %c0_i32, %c0_i32_0, %c0_i32_1 : i32, i32, i32
  }
  func.func @transform_5(%arg0: i32) -> (i32, i32) {
    %c0_i32 = arith.constant 0 : i32
    %c0_i32_0 = arith.constant 0 : i32
    %c0_i32_1 = arith.constant 0 : i32
    return %c0_i32, %c0_i32_0 : i32, i32
  }
  func.func @transform_6(%arg0: i32) -> (i32, i32) {
    %c0_i32 = arith.constant 0 : i32
    %c0_i32_0 = arith.constant 0 : i32
    %c0_i32_1 = arith.constant 0 : i32
    return %c0_i32, %c0_i32_0 : i32, i32
  }
  func.func @transform_7(%arg0: i32) -> (i32, i32) {
    %c0_i32 = arith.constant 0 : i32
    %c0_i32_0 = arith.constant 0 : i32
    %c0_i32_1 = arith.constant 0 : i32
    return %c0_i32, %c0_i32_0 : i32, i32
  }
  func.func @transform_8(%arg0: i32) -> (i32, i32, i32) {
    %c0_i32 = arith.constant 0 : i32
    %c0_i32_0 = arith.constant 0 : i32
    %c0_i32_1 = arith.constant 0 : i32
    %c0_i32_2 = arith.constant 0 : i32
    return %c0_i32, %c0_i32_0, %c0_i32_1 : i32, i32, i32
  }
  func.func @transform_9(%arg0: i32) -> (i32, i32) {
    %c0_i32 = arith.constant 0 : i32
    %c0_i32_0 = arith.constant 0 : i32
    %c0_i32_1 = arith.constant 0 : i32
    return %c0_i32, %c0_i32_0 : i32, i32
  }
  func.func @transform_10(%arg0: i32) -> i32 {
    %c0_i32 = arith.constant 0 : i32
    %c0_i32_0 = arith.constant 0 : i32
    return %c0_i32 : i32
  }
  func.func @transform_11(%arg0: i32) -> (i32, i32, i32) {
    %c0_i32 = arith.constant 0 : i32
    %c0_i32_0 = arith.constant 0 : i32
    %c0_i32_1 = arith.constant 0 : i32
    return %arg0, %c0_i32, %c0_i32_0 : i32, i32, i32
  }
}

</mosaic_0001>

<llo_original>
// kernel: tpu_custom_call.1
$region0: #{tpu_custom_call.1}
  #allocation0 [shape = 'u32[]', space=smem, size = 0x4, offset = 0x4, fixed_abs, tag = 'smem constant byte address 0x4 - core index']
  #allocation1 [shape = 'u32[144,128]{1,0:T(1,128)}', space=vmem, size = 0x12000, scoped, tag = 'internal scratch']
  %s0 = inlined_call_operand.hbm [shape: f32[8,128], index: 0, kind: input, shape index: {}]
  %s1 = inlined_call_operand.hbm [shape: f32[8,128], index: 1, kind: output, shape index: {}]
  %s2 = sld [smem:[#allocation0]]
  $region41: #{tpu_custom_call.1} parent=0
    _
  %s4 = ssub.s32 1, %s2
  %s5 = scalar_select 0, %s4, %s2
  $region1: #{tpu_custom_call.1} parent=0
    #allocation2 [shape = 'u8[4096]{0}', space=vmem, size = 0x1000, scoped, tag = 'input window, operand 0, single buffered']
    #allocation3 [shape = 's32[2]{0}', space=sflag, size = 0x8, scoped, tag = 'scoped memory for tpu_custom_call.1']
    #allocation4 [shape = 's32[2]{0}', space=sflag, size = 0x8, scoped, tag = 'scoped memory for tpu_custom_call.1']
    #allocation5 [shape = 'u8[4096]{0}', space=vmem, size = 0x1000, scoped, tag = 'output window, operand 0, single buffered']
    %6 = vsyncpa [#allocation3], 0
    %7 = vsyncpa [#allocation4], 0
    loop: start=0, step=1, limit=4
    $region2: #{tpu_custom_call.1} parent=1 // loop_pre_header
      _
    $region3: #{tpu_custom_call.1} parent=1 // loop_header
      %s9 = sphi 0, %s13
      %p10 = scmp.ge.s32.totalorder %s9, 4
      %s17 = sphi 0, %s17
      %s19 = sphi 0, %s17
      %s20 = sphi 0, %s19
      %s34 = sphi 0, %s20
      %s38 = sphi 0, %s38
      %s40 = sphi 0, %s38
      %s41 = sphi 0, %s40
      %s55 = sphi 0, %s41
    $region4: #{tpu_custom_call.1} parent=1 // loop_header_branch
      %12 = sbr.rel (%p10) target = $region8
    $region5: #{tpu_custom_call.1} parent=1 // loop_body
      %s14 = ssub.s32 %s9, 1
      %s15 = ssub.s32 %s9, 2
      %s16 = sadd.s32 %s9, 1
      %s18 = sadd.s32 %s17, 1
      %p21 = scmp.eq.s32.totalorder %s9, 1
      %p22 = scmp.ne.s32.totalorder %s17, %s19
      %p23 = scmp.eq.s32.totalorder %s9, 0
      %p24 = por %p22, %p23
      %p25 = scmp.ne.s32.totalorder %s17, %s19
      %p26 = scmp.eq.s32.totalorder %s14, 1
      %p27 = por %p25, %p26
      %p28 = scmp.ne.s32.totalorder %s19, %s20
      %p29 = scmp.eq.s32.totalorder %s14, 0
      %p30 = por %p28, %p29
      %p31 = scmp.ne.s32.totalorder %s19, %s20
      %p32 = scmp.eq.s32.totalorder %s15, 1
      %p33 = por %p31, %p32
      %p35 = scmp.ne.s32.totalorder %s20, %s34
      %p36 = scmp.eq.s32.totalorder %s15, 0
      %p37 = por %p35, %p36
      %s39 = sadd.s32 %s38, 1
      %p42 = scmp.eq.s32.totalorder %s9, 1
      %p43 = scmp.ne.s32.totalorder %s38, %s40
      %p44 = scmp.eq.s32.totalorder %s9, 0
      %p45 = por %p43, %p44
      %p46 = scmp.ne.s32.totalorder %s38, %s40
      %p47 = scmp.eq.s32.totalorder %s14, 1
      %p48 = por %p46, %p47
      %p49 = scmp.ne.s32.totalorder %s40, %s41
      %p50 = scmp.eq.s32.totalorder %s14, 0
      %p51 = por %p49, %p50
      %p52 = scmp.ne.s32.totalorder %s40, %s41
      %p53 = scmp.eq.s32.totalorder %s15, 1
      %p54 = por %p52, %p53
      %p56 = scmp.ne.s32.totalorder %s41, %s55
      %p57 = scmp.eq.s32.totalorder %s15, 0
      %p58 = por %p56, %p57
      %p59 = scmp.le.s32.totalorder 1, %s9
      %p60 = scmp.lt.s32.totalorder %s9, 3
      %p61 = pnand %p59, %p60
      %p62 = pneg %p61
      // Predicated region
      $region9: #{tpu_custom_call.1} parent=5 // pred_check
        _
      $region10: #{tpu_custom_call.1} parent=5 // pred_check_branch
        %64 = sbr.rel (%p61) target = $region12
      $region11: #{tpu_custom_call.1} parent=5 // pred_region
        %s65 = ssub.s32 %s9, 1
        // Predicated region
        $region13: #{tpu_custom_call.1} parent=11 // pred_check
          %p66 = pneg %p30
        $region14: #{tpu_custom_call.1} parent=11 // pred_check_branch
          %68 = sbr.rel (%p66) target = $region16
        $region15: #{tpu_custom_call.1} parent=11 // pred_region
          %s70 = ssub.s32 128, 128
          %71 = vsyncadd [#allocation3], %s70
          %s73 = sshll.u32 [#allocation2], 4
          %s74 = int_to_ptr.vmem [resolvable:$true] %s73
          %76 = dma.hbm_to_vmem [thread:$0]  %s0, 128, %s74, [#allocation3]
        $region16: #{tpu_custom_call.1} parent=11 // pred_fallthru
          _
      $region12: #{tpu_custom_call.1} parent=5 // pred_fallthru
        _
      %p77 = scmp.lt.s32.totalorder %s9, 2
      // Predicated region
      $region17: #{tpu_custom_call.1} parent=5 // pred_check
        %p78 = pneg %p77
      $region18: #{tpu_custom_call.1} parent=5 // pred_check_branch
        %80 = sbr.rel (%p78) target = $region20
      $region19: #{tpu_custom_call.1} parent=5 // pred_region
        _
      $region20: #{tpu_custom_call.1} parent=5 // pred_fallthru
        _
      %p81 = scmp.le.s32.totalorder 1, %s9
      %p82 = scmp.lt.s32.totalorder %s9, 3
      %p83 = pnand %p81, %p82
      %p84 = pneg %p83
      // Predicated region
      $region21: #{tpu_custom_call.1} parent=5 // pred_check
        _
      $region22: #{tpu_custom_call.1} parent=5 // pred_check_branch
        %86 = sbr.rel (%p83) target = $region24
      $region23: #{tpu_custom_call.1} parent=5 // pred_region
        %s87 = ssub.s32 %s9, 1
        // Predicated region
        $region25: #{tpu_custom_call.1} parent=23 // pred_check
          %p88 = pneg %p30
        $region26: #{tpu_custom_call.1} parent=23 // pred_check_branch
          %90 = sbr.rel (%p88) target = $region28
        $region27: #{tpu_custom_call.1} parent=23 // pred_region
          %91 = dma.done [#allocation3], 128
        $region28: #{tpu_custom_call.1} parent=23 // pred_fallthru
          _
        %p92 = pneg %p30
        %p93 = pneg %p27
        %p94 = pneg %p51
        %p95 = pneg %p48
        %v96 = vld [vmem:[#allocation2] sm:$0xff]
        %97 = vst [vmem:[#allocation5] sm:$0xff] %v96
        // Predicated region
        $region29: #{tpu_custom_call.1} parent=23 // pred_check
          %p98 = pneg %p48
        $region30: #{tpu_custom_call.1} parent=23 // pred_check_branch
          %100 = sbr.rel (%p98) target = $region32
        $region31: #{tpu_custom_call.1} parent=23 // pred_region
          %s102 = ssub.s32 128, 128
          %103 = vsyncadd [#allocation4], %s102
          %s105 = sshll.u32 [#allocation5], 4
          %s106 = int_to_ptr.vmem [resolvable:$true] %s105
          %108 = dma.vmem_to_hbm [thread:$0]  %s106, 128, %s1, [#allocation4]
        $region32: #{tpu_custom_call.1} parent=23 // pred_fallthru
          _
        // Predicated region
        $region33: #{tpu_custom_call.1} parent=23 // pred_check
          %p109 = pneg %p48
        $region34: #{tpu_custom_call.1} parent=23 // pred_check_branch
          %111 = sbr.rel (%p109) target = $region36
        $region35: #{tpu_custom_call.1} parent=23 // pred_region
          %112 = dma.done [#allocation4], 128
        $region36: #{tpu_custom_call.1} parent=23 // pred_fallthru
          _
      $region24: #{tpu_custom_call.1} parent=5 // pred_fallthru
        _
      %p113 = scmp.le.s32.totalorder 2, %s9
      // Predicated region
      $region37: #{tpu_custom_call.1} parent=5 // pred_check
        %p114 = pneg %p113
      $region38: #{tpu_custom_call.1} parent=5 // pred_check_branch
        %116 = sbr.rel (%p114) target = $region40
      $region39: #{tpu_custom_call.1} parent=5 // pred_region
        %s117 = ssub.s32 %s9, 2
      $region40: #{tpu_custom_call.1} parent=5 // pred_fallthru
        _
    $region6: #{tpu_custom_call.1} parent=1 // loop_footer
      %s13 = sadd.s32 1, %s9
    $region7: #{tpu_custom_call.1} parent=1 // loop_footer_branch
      %8 = sbr.rel target = $region3
    $region8: #{tpu_custom_call.1} parent=1 // loop_exit
      _
    %118 = vsyncpa [#allocation3], 1
    %s119 = scalar_lea.sflag [#allocation3], 1
    %120 = vsyncpa %s119, 1
    %121 = vsyncpa [#allocation4], 1
    %s122 = scalar_lea.sflag [#allocation4], 1
    %123 = vsyncpa %s122, 1

// kernel: mid_block_temporal_decoder_forward.7
$region0: #{mid_block_temporal_decoder_forward.7}
  #allocation0 [shape = 'u32[]', space=smem, size = 0x4, offset = 0x4, fixed_abs, tag = 'smem constant byte address 0x4 - core index']
  #allocation1 [shape = 'u32[144,128]{1,0:T(1,128)}', space=vmem, size = 0x12000, scoped, tag = 'internal scratch']
  %s0 = inlined_call_operand.vmem [shape: bf16[8,64,32], index: 0, kind: input, shape index: {}]
  %s1 = inlined_call_operand.vmem [shape: bf16[32,32], index: 1, kind: input, shape index: {}]
  %s2 = inlined_call_operand.vmem [shape: f32[1,32], index: 2, kind: input, shape index: {}]
  %s3 = inlined_call_operand.vmem [shape: f32[1,32], index: 3, kind: input, shape index: {}]
  %s4 = inlined_call_operand.vmem [shape: bf16[32,32], index: 4, kind: input, shape index: {}]
  %s5 = inlined_call_operand.vmem [shape: f32[1,32], index: 5, kind: input, shape index: {}]
  %s6 = inlined_call_operand.vmem [shape: bf16[32,32], index: 6, kind: input, shape index: {}]
  %s7 = inlined_call_operand.vmem [shape: f32[1,32], index: 7, kind: input, shape index: {}]
  %s8 = inlined_call_operand.vmem [shape: bf16[32,32], index: 8, kind: input, shape index: {}]
  %s9 = inlined_call_operand.vmem [shape: f32[1,32], index: 9, kind: input, shape index: {}]
  %s10 = inlined_call_operand.vmem [shape: bf16[32,32], index: 10, kind: input, shape index: {}]
  %s11 = inlined_call_operand.vmem [shape: f32[1,32], index: 11, kind: input, shape index: {}]
  %s12 = inlined_call_operand.vmem [shape: bf16[8,64,32], index: 12, kind: output, shape index: {}]
  %s13 = sld [smem:[#allocation0]]
  $region81: #{mid_block_temporal_decoder_forward.7} parent=0
    _
  %s15 = ssub.s32 1, %s13
  %s16 = scalar_select 0, %s15, %s13
  loop: start=0, step=1, limit=10
  $region2: #{mid_block_temporal_decoder_forward.7} parent=0 // loop_pre_header
    _
  $region3: #{mid_block_temporal_decoder_forward.7} parent=0 // loop_header
    %s18 = sphi 0, %s22
    %p19 = scmp.ge.s32.totalorder %s18, 10
    %s28 = sphi 0, %s30
    %s31 = sphi 0, %s28
    %s32 = sphi 0, %s31
    %s48 = sphi 0, %s32
    %s52 = sphi 0, %s52
    %s54 = sphi 0, %s52
    %s55 = sphi 0, %s54
    %s69 = sphi 0, %s55
    %s73 = sphi 0, %s73
    %s75 = sphi 0, %s73
    %s76 = sphi 0, %s75
    %s90 = sphi 0, %s76
    %s94 = sphi 0, %s94
    %s96 = sphi 0, %s94
    %s97 = sphi 0, %s96
    %s111 = sphi 0, %s97
    %s115 = sphi 0, %s115
    %s117 = sphi 0, %s115
    %s118 = sphi 0, %s117
    %s132 = sphi 0, %s118
    %s136 = sphi 0, %s136
    %s138 = sphi 0, %s136
    %s139 = sphi 0, %s138
    %s153 = sphi 0, %s139
    %s157 = sphi 0, %s157
    %s159 = sphi 0, %s157
    %s160 = sphi 0, %s159
    %s174 = sphi 0, %s160
    %s178 = sphi 0, %s178
    %s180 = sphi 0, %s178
    %s181 = sphi 0, %s180
    %s195 = sphi 0, %s181
    %s199 = sphi 0, %s199
    %s201 = sphi 0, %s199
    %s202 = sphi 0, %s201
    %s216 = sphi 0, %s202
    %s220 = sphi 0, %s220
    %s222 = sphi 0, %s220
    %s223 = sphi 0, %s222
    %s237 = sphi 0, %s223
    %s241 = sphi 0, %s241
    %s243 = sphi 0, %s241
    %s244 = sphi 0, %s243
    %s258 = sphi 0, %s244
    %s262 = sphi 0, %s262
    %s264 = sphi 0, %s262
    %s265 = sphi 0, %s264
    %s279 = sphi 0, %s265
    %s285 = sphi 0, %s287
    %s288 = sphi 0, %s285
    %s289 = sphi 0, %s288
    %s305 = sphi 0, %s289
  $region4: #{mid_block_temporal_decoder_forward.7} parent=0 // loop_header_branch
    %21 = sbr.rel (%p19) target = $region8
  $region5: #{mid_block_temporal_decoder_forward.7} parent=0 // loop_body
    %s23 = ssub.s32 %s18, 1
    %s24 = ssub.s32 %s18, 2
    %s25 = sadd.s32 %s18, 1
    %s26 = ssub.s32 %s18, %s25
    %p27 = scmp.eq.s32.totalorder %s26, 0
    %s29 = sadd.s32 %s28, 1
    %s30 = scalar_select %p27, %s28, %s29
    %p33 = pneg %p27
    %p34 = scmp.eq.s32.totalorder %s18, 7
    %p35 = por %p33, %p34
    %p36 = scmp.ne.s32.totalorder %s28, %s31
    %p37 = scmp.eq.s32.totalorder %s18, 0
    %p38 = por %p36, %p37
    %p39 = scmp.ne.s32.totalorder %s28, %s31
    %p40 = scmp.eq.s32.totalorder %s23, 7
    %p41 = por %p39, %p40
    %p42 = scmp.ne.s32.totalorder %s31, %s32
    %p43 = scmp.eq.s32.totalorder %s23, 0
    %p44 = por %p42, %p43
    %p45 = scmp.ne.s32.totalorder %s31, %s32
    %p46 = scmp.eq.s32.totalorder %s24, 7
    %p47 = por %p45, %p46
    %p49 = scmp.ne.s32.totalorder %s32, %s48
    %p50 = scmp.eq.s32.totalorder %s24, 0
    %p51 = por %p49, %p50
    %s53 = sadd.s32 %s52, 1
    %p56 = scmp.eq.s32.totalorder %s18, 7
    %p57 = scmp.ne.s32.totalorder %s52, %s54
    %p58 = scmp.eq.s32.totalorder %s18, 0
    %p59 = por %p57, %p58
    %p60 = scmp.ne.s32.totalorder %s52, %s54
    %p61 = scmp.eq.s32.totalorder %s23, 7
    %p62 = por %p60, %p61
    %p63 = scmp.ne.s32.totalorder %s54, %s55
    %p64 = scmp.eq.s32.totalorder %s23, 0
    %p65 = por %p63, %p64
    %p66 = scmp.ne.s32.totalorder %s54, %s55
    %p67 = scmp.eq.s32.totalorder %s24, 7
    %p68 = por %p66, %p67
    %p70 = scmp.ne.s32.totalorder %s55, %s69
    %p71 = scmp.eq.s32.totalorder %s24, 0
    %p72 = por %p70, %p71
    %s74 = sadd.s32 %s73, 1
    %p77 = scmp.eq.s32.totalorder %s18, 7
    %p78 = scmp.ne.s32.totalorder %s73, %s75
    %p79 = scmp.eq.s32.totalorder %s18, 0
    %p80 = por %p78, %p79
    %p81 = scmp.ne.s32.totalorder %s73, %s75
    %p82 = scmp.eq.s32.totalorder %s23, 7
    %p83 = por %p81, %p82
    %p84 = scmp.ne.s32.totalorder %s75, %s76
    %p85 = scmp.eq.s32.totalorder %s23, 0
    %p86 = por %p84, %p85
    %p87 = scmp.ne.s32.totalorder %s75, %s76
    %p88 = scmp.eq.s32.totalorder %s24, 7
    %p89 = por %p87, %p88
    %p91 = scmp.ne.s32.totalorder %s76, %s90
    %p92 = scmp.eq.s32.totalorder %s24, 0
    %p93 = por %p91, %p92
    %s95 = sadd.s32 %s94, 1
    %p98 = scmp.eq.s32.totalorder %s18, 7
    %p99 = scmp.ne.s32.totalorder %s94, %s96
    %p100 = scmp.eq.s32.totalorder %s18, 0
    %p101 = por %p99, %p100
    %p102 = scmp.ne.s32.totalorder %s94, %s96
    %p103 = scmp.eq.s32.totalorder %s23, 7
    %p104 = por %p102, %p103
    %p105 = scmp.ne.s32.totalorder %s96, %s97
    %p106 = scmp.eq.s32.totalorder %s23, 0
    %p107 = por %p105, %p106
    %p108 = scmp.ne.s32.totalorder %s96, %s97
    %p109 = scmp.eq.s32.totalorder %s24, 7
    %p110 = por %p108, %p109
    %p112 = scmp.ne.s32.totalorder %s97, %s111
    %p113 = scmp.eq.s32.totalorder %s24, 0
    %p114 = por %p112, %p113
    %s116 = sadd.s32 %s115, 1
    %p119 = scmp.eq.s32.totalorder %s18, 7
    %p120 = scmp.ne.s32.totalorder %s115, %s117
    %p121 = scmp.eq.s32.totalorder %s18, 0
    %p122 = por %p120, %p121
    %p123 = scmp.ne.s32.totalorder %s115, %s117
    %p124 = scmp.eq.s32.totalorder %s23, 7
    %p125 = por %p123, %p124
    %p126 = scmp.ne.s32.totalorder %s117, %s118
    %p127 = scmp.eq.s32.totalorder %s23, 0
    %p128 = por %p126, %p127
    %p129 = scmp.ne.s32.totalorder %s117, %s118
    %p130 = scmp.eq.s32.totalorder %s24, 7
    %p131 = por %p129, %p130
    %p133 = scmp.ne.s32.totalorder %s118, %s132
    %p134 = scmp.eq.s32.totalorder %s24, 0
    %p135 = por %p133, %p134
    %s137 = sadd.s32 %s136, 1
    %p140 = scmp.eq.s32.totalorder %s18, 7
    %p141 = scmp.ne.s32.totalorder %s136, %s138
    %p142 = scmp.eq.s32.totalorder %s18, 0
    %p143 = por %p141, %p142
    %p144 = scmp.ne.s32.totalorder %s136, %s138
    %p145 = scmp.eq.s32.totalorder %s23, 7
    %p146 = por %p144, %p145
    %p147 = scmp.ne.s32.totalorder %s138, %s139
    %p148 = scmp.eq.s32.totalorder %s23, 0
    %p149 = por %p147, %p148
    %p150 = scmp.ne.s32.totalorder %s138, %s139
    %p151 = scmp.eq.s32.totalorder %s24, 7
    %p152 = por %p150, %p151
    %p154 = scmp.ne.s32.totalorder %s139, %s153
    %p155 = scmp.eq.s32.totalorder %s24, 0
    %p156 = por %p154, %p155
    %s158 = sadd.s32 %s157, 1
    %p161 = scmp.eq.s32.totalorder %s18, 7
    %p162 = scmp.ne.s32.totalorder %s157, %s159
    %p163 = scmp.eq.s32.totalorder %s18, 0
    %p164 = por %p162, %p163
    %p165 = scmp.ne.s32.totalorder %s157, %s159
    %p166 = scmp.eq.s32.totalorder %s23, 7
    %p167 = por %p165, %p166
    %p168 = scmp.ne.s32.totalorder %s159, %s160
    %p169 = scmp.eq.s32.totalorder %s23, 0
    %p170 = por %p168, %p169
    %p171 = scmp.ne.s32.totalorder %s159, %s160
    %p172 = scmp.eq.s32.totalorder %s24, 7
    %p173 = por %p171, %p172
    %p175 = scmp.ne.s32.totalorder %s160, %s174
    %p176 = scmp.eq.s32.totalorder %s24, 0
    %p177 = por %p175, %p176
    %s179 = sadd.s32 %s178, 1
    %p182 = scmp.eq.s32.totalorder %s18, 7
    %p183 = scmp.ne.s32.totalorder %s178, %s180
    %p184 = scmp.eq.s32.totalorder %s18, 0
    %p185 = por %p183, %p184
    %p186 = scmp.ne.s32.totalorder %s178, %s180
    %p187 = scmp.eq.s32.totalorder %s23, 7
    %p188 = por %p186, %p187
    %p189 = scmp.ne.s32.totalorder %s180, %s181
    %p190 = scmp.eq.s32.totalorder %s23, 0
    %p191 = por %p189, %p190
    %p192 = scmp.ne.s32.totalorder %s180, %s181
    %p193 = scmp.eq.s32.totalorder %s24, 7
    %p194 = por %p192, %p193
    %p196 = scmp.ne.s32.totalorder %s181, %s195
    %p197 = scmp.eq.s32.totalorder %s24, 0
    %p198 = por %p196, %p197
    %s200 = sadd.s32 %s199, 1
    %p203 = scmp.eq.s32.totalorder %s18, 7
    %p204 = scmp.ne.s32.totalorder %s199, %s201
    %p205 = scmp.eq.s32.totalorder %s18, 0
    %p206 = por %p204, %p205
    %p207 = scmp.ne.s32.totalorder %s199, %s201
    %p208 = scmp.eq.s32.totalorder %s23, 7
    %p209 = por %p207, %p208
    %p210 = scmp.ne.s32.totalorder %s201, %s202
    %p211 = scmp.eq.s32.totalorder %s23, 0
    %p212 = por %p210, %p211
    %p213 = scmp.ne.s32.totalorder %s201, %s202
    %p214 = scmp.eq.s32.totalorder %s24, 7
    %p215 = por %p213, %p214
    %p217 = scmp.ne.s32.totalorder %s202, %s216
    %p218 = scmp.eq.s32.totalorder %s24, 0
    %p219 = por %p217, %p218
    %s221 = sadd.s32 %s220, 1
    %p224 = scmp.eq.s32.totalorder %s18, 7
    %p225 = scmp.ne.s32.totalorder %s220, %s222
    %p226 = scmp.eq.s32.totalorder %s18, 0
    %p227 = por %p225, %p226
    %p228 = scmp.ne.s32.totalorder %s220, %s222
    %p229 = scmp.eq.s32.totalorder %s23, 7
    %p230 = por %p228, %p229
    %p231 = scmp.ne.s32.totalorder %s222, %s223
    %p232 = scmp.eq.s32.totalorder %s23, 0
    %p233 = por %p231, %p232
    %p234 = scmp.ne.s32.totalorder %s222, %s223
    %p235 = scmp.eq.s32.totalorder %s24, 7
    %p236 = por %p234, %p235
    %p238 = scmp.ne.s32.totalorder %s223, %s237
    %p239 = scmp.eq.s32.totalorder %s24, 0
    %p240 = por %p238, %p239
    %s242 = sadd.s32 %s241, 1
    %p245 = scmp.eq.s32.totalorder %s18, 7
    %p246 = scmp.ne.s32.totalorder %s241, %s243
    %p247 = scmp.eq.s32.totalorder %s18, 0
    %p248 = por %p246, %p247
    %p249 = scmp.ne.s32.totalorder %s241, %s243
    %p250 = scmp.eq.s32.totalorder %s23, 7
    %p251 = por %p249, %p250
    %p252 = scmp.ne.s32.totalorder %s243, %s244
    %p253 = scmp.eq.s32.totalorder %s23, 0
    %p254 = por %p252, %p253
    %p255 = scmp.ne.s32.totalorder %s243, %s244
    %p256 = scmp.eq.s32.totalorder %s24, 7
    %p257 = por %p255, %p256
    %p259 = scmp.ne.s32.totalorder %s244, %s258
    %p260 = scmp.eq.s32.totalorder %s24, 0
    %p261 = por %p259, %p260
    %s263 = sadd.s32 %s262, 1
    %p266 = scmp.eq.s32.totalorder %s18, 7
    %p267 = scmp.ne.s32.totalorder %s262, %s264
    %p268 = scmp.eq.s32.totalorder %s18, 0
    %p269 = por %p267, %p268
    %p270 = scmp.ne.s32.totalorder %s262, %s264
    %p271 = scmp.eq.s32.totalorder %s23, 7
    %p272 = por %p270, %p271
    %p273 = scmp.ne.s32.totalorder %s264, %s265
    %p274 = scmp.eq.s32.totalorder %s23, 0
    %p275 = por %p273, %p274
    %p276 = scmp.ne.s32.totalorder %s264, %s265
    %p277 = scmp.eq.s32.totalorder %s24, 7
    %p278 = por %p276, %p277
    %p280 = scmp.ne.s32.totalorder %s265, %s279
    %p281 = scmp.eq.s32.totalorder %s24, 0
    %p282 = por %p280, %p281
    %s283 = ssub.s32 %s18, %s25
    %p284 = scmp.eq.s32.totalorder %s283, 0
    %s286 = sadd.s32 %s285, 1
    %s287 = scalar_select %p284, %s285, %s286
    %p290 = pneg %p284
    %p291 = scmp.eq.s32.totalorder %s18, 7
    %p292 = por %p290, %p291
    %p293 = scmp.ne.s32.totalorder %s285, %s288
    %p294 = scmp.eq.s32.totalorder %s18, 0
    %p295 = por %p293, %p294
    %p296 = scmp.ne.s32.totalorder %s285, %s288
    %p297 = scmp.eq.s32.totalorder %s23, 7
    %p298 = por %p296, %p297
    %p299 = scmp.ne.s32.totalorder %s288, %s289
    %p300 = scmp.eq.s32.totalorder %s23, 0
    %p301 = por %p299, %p300
    %p302 = scmp.ne.s32.totalorder %s288, %s289
    %p303 = scmp.eq.s32.totalorder %s24, 7
    %p304 = por %p302, %p303
    %p306 = scmp.ne.s32.totalorder %s289, %s305
    %p307 = scmp.eq.s32.totalorder %s24, 0
    %p308 = por %p306, %p307
    %p309 = scmp.le.s32.totalorder 1, %s18
    %p310 = scmp.lt.s32.totalorder %s18, 9
    %p311 = pnand %p309, %p310
    %p312 = pneg %p311
    // Predicated region
    $region9: #{mid_block_temporal_decoder_forward.7} parent=5 // pred_check
      _
    $region10: #{mid_block_temporal_decoder_forward.7} parent=5 // pred_check_branch
      %314 = sbr.rel (%p311) target = $region12
    $region11: #{mid_block_temporal_decoder_forward.7} parent=5 // pred_region
      %s315 = ssub.s32 %s18, 1
      // Predicated region
      $region13: #{mid_block_temporal_decoder_forward.7} parent=11 // pred_check
        %p316 = pneg %p65
      $region14: #{mid_block_temporal_decoder_forward.7} parent=11 // pred_check_branch
        %318 = sbr.rel (%p316) target = $region16
      $region15: #{mid_block_temporal_decoder_forward.7} parent=11 // pred_region
        _
      $region16: #{mid_block_temporal_decoder_forward.7} parent=11 // pred_fallthru
        _
      // Predicated region
      $region17: #{mid_block_temporal_decoder_forward.7} parent=11 // pred_check
        %p319 = pneg %p86
      $region18: #{mid_block_temporal_decoder_forward.7} parent=11 // pred_check_branch
        %321 = sbr.rel (%p319) target = $region20
      $region19: #{mid_block_temporal_decoder_forward.7} parent=11 // pred_region
        _
      $region20: #{mid_block_temporal_decoder_forward.7} parent=11 // pred_fallthru
        _
      // Predicated region
      $region21: #{mid_block_temporal_decoder_forward.7} parent=11 // pred_check
        %p322 = pneg %p107
      $region22: #{mid_block_temporal_decoder_forward.7} parent=11 // pred_check_branch
        %324 = sbr.rel (%p322) target = $region24
      $region23: #{mid_block_temporal_decoder_forward.7} parent=11 // pred_region
        _
      $region24: #{mid_block_temporal_decoder_forward.7} parent=11 // pred_fallthru
        _
      // Predicated region
      $region25: #{mid_block_temporal_decoder_forward.7} parent=11 // pred_check
        %p325 = pneg %p128
      $region26: #{mid_block_temporal_decoder_forward.7} parent=11 // pred_check_branch
        %327 = sbr.rel (%p325) target = $region28
      $region27: #{mid_block_temporal_decoder_forward.7} parent=11 // pred_region
        _
      $region28: #{mid_block_temporal_decoder_forward.7} parent=11 // pred_fallthru
        _
      // Predicated region
      $region29: #{mid_block_temporal_decoder_forward.7} parent=11 // pred_check
        %p328 = pneg %p149
      $region30: #{mid_block_temporal_decoder_forward.7} parent=11 // pred_check_branch
        %330 = sbr.rel (%p328) target = $region32
      $region31: #{mid_block_temporal_decoder_forward.7} parent=11 // pred_region
        _
      $region32: #{mid_block_temporal_decoder_forward.7} parent=11 // pred_fallthru
        _
      // Predicated region
      $region33: #{mid_block_temporal_decoder_forward.7} parent=11 // pred_check
        %p331 = pneg %p170
      $region34: #{mid_block_temporal_decoder_forward.7} parent=11 // pred_check_branch
        %333 = sbr.rel (%p331) target = $region36
      $region35: #{mid_block_temporal_decoder_forward.7} parent=11 // pred_region
        _
      $region36: #{mid_block_temporal_decoder_forward.7} parent=11 // pred_fallthru
        _
      // Predicated region
      $region37: #{mid_block_temporal_decoder_forward.7} parent=11 // pred_check
        %p334 = pneg %p191
      $region38: #{mid_block_temporal_decoder_forward.7} parent=11 // pred_check_branch
        %336 = sbr.rel (%p334) target = $region40
      $region39: #{mid_block_temporal_decoder_forward.7} parent=11 // pred_region
        _
      $region40: #{mid_block_temporal_decoder_forward.7} parent=11 // pred_fallthru
        _
      // Predicated region
      $region41: #{mid_block_temporal_decoder_forward.7} parent=11 // pred_check
        %p337 = pneg %p212
      $region42: #{mid_block_temporal_decoder_forward.7} parent=11 // pred_check_branch
        %339 = sbr.rel (%p337) target = $region44
      $region43: #{mid_block_temporal_decoder_forward.7} parent=11 // pred_region
        _
      $region44: #{mid_block_temporal_decoder_forward.7} parent=11 // pred_fallthru
        _
      // Predicated region
      $region45: #{mid_block_temporal_decoder_forward.7} parent=11 // pred_check
        %p340 = pneg %p233
      $region46: #{mid_block_temporal_decoder_forward.7} parent=11 // pred_check_branch
        %342 = sbr.rel (%p340) target = $region48
      $region47: #{mid_block_temporal_decoder_forward.7} parent=11 // pred_region
        _
      $region48: #{mid_block_temporal_decoder_forward.7} parent=11 // pred_fallthru
        _
      // Predicated region
      $region49: #{mid_block_temporal_decoder_forward.7} parent=11 // pred_check
        %p343 = pneg %p254
      $region50: #{mid_block_temporal_decoder_forward.7} parent=11 // pred_check_branch
        %345 = sbr.rel (%p343) target = $region52
      $region51: #{mid_block_temporal_decoder_forward.7} parent=11 // pred_region
        _
      $region52: #{mid_block_temporal_decoder_forward.7} parent=11 // pred_fallthru
        _
      // Predicated region
      $region53: #{mid_block_temporal_decoder_forward.7} parent=11 // pred_check
        %p346 = pneg %p275
      $region54: #{mid_block_temporal_decoder_forward.7} parent=11 // pred_check_branch
        %348 = sbr.rel (%p346) target = $region56
      $region55: #{mid_block_temporal_decoder_forward.7} parent=11 // pred_region
        _
      $region56: #{mid_block_temporal_decoder_forward.7} parent=11 // pred_fallthru
        _
    $region12: #{mid_block_temporal_decoder_forward.7} parent=5 // pred_fallthru
      _
    %p349 = scmp.lt.s32.totalorder %s18, 8
    // Predicated region
    $region57: #{mid_block_temporal_decoder_forward.7} parent=5 // pred_check
      %p350 = pneg %p349
    $region58: #{mid_block_temporal_decoder_forward.7} parent=5 // pred_check_branch
      %352 = sbr.rel (%p350) target = $region60
    $region59: #{mid_block_temporal_decoder_forward.7} parent=5 // pred_region
      // Predicated region
      $region61: #{mid_block_temporal_decoder_forward.7} parent=59 // pred_check
        %p353 = pneg %p38
      $region62: #{mid_block_temporal_decoder_forward.7} parent=59 // pred_check_branch
        %355 = sbr.rel (%p353) target = $region64
      $region63: #{mid_block_temporal_decoder_forward.7} parent=59 // pred_region
        %p356 = scmp.lt.s32.totalorder %s18, 7
        %s357 = scalar_select %p356, %s18, 7
        %s358 = smul.addr %s357, 8
        %s359 = smul.addr %s358, 4
        %s360 = scalar_lea.vmem %s0, %s359
      $region64: #{mid_block_temporal_decoder_forward.7} parent=59 // pred_fallthru
        _
    $region60: #{mid_block_temporal_decoder_forward.7} parent=5 // pred_fallthru
      _
    %p361 = scmp.le.s32.totalorder 1, %s18
    %p362 = scmp.lt.s32.totalorder %s18, 9
    %p363 = pnand %p361, %p362
    %p364 = pneg %p363
    // Predicated region
    $region65: #{mid_block_temporal_decoder_forward.7} parent=5 // pred_check
      _
    $region66: #{mid_block_temporal_decoder_forward.7} parent=5 // pred_check_branch
      %366 = sbr.rel (%p363) target = $region68
    $region67: #{mid_block_temporal_decoder_forward.7} parent=5 // pred_region
      %s367 = ssub.s32 %s18, 1
      %p368 = scmp.lt.s32.totalorder %s23, 7
      %s369 = scalar_select %p368, %s23, 7
      %s370 = smul.addr %s369, 8
      %s371 = smul.addr %s370, 4
      %s372 = scalar_lea.vmem %s0, %s371
      %p373 = pneg %p44
      %p374 = pneg %p41
      %p375 = pneg %p65
      %p376 = pneg %p62
      %p377 = pneg %p86
      %p378 = pneg %p83
      %p379 = pneg %p107
      %p380 = pneg %p104
      %p381 = pneg %p128
      %p382 = pneg %p125
      %p383 = pneg %p149
      %p384 = pneg %p146
      %p385 = pneg %p170
      %p386 = pneg %p167
      %p387 = pneg %p191
      %p388 = pneg %p188
      %p389 = pneg %p212
      %p390 = pneg %p209
      %p391 = pneg %p233
      %p392 = pneg %p230
      %p393 = pneg %p254
      %p394 = pneg %p251
      %p395 = pneg %p275
      %p396 = pneg %p272
      %p397 = pneg %p301
      %p398 = pneg %p298
      %p399 = scmp.lt.s32.totalorder %s23, 7
      %s400 = scalar_select %p399, %s23, 7
      %s401 = smul.addr %s400, 8
      %s402 = smul.addr %s401, 4
      %s403 = scalar_lea.vmem %s12, %s402
      %p404 = scmp.lt.s32.totalorder %s23, 7
      %s405 = scalar_select %p404, %s23, 7
      %s406 = smul.addr %s405, 8
      %s407 = smul.addr %s406, 4
      %s408 = scalar_lea.vmem %s0, %s407
      %p409 = scmp.lt.s32.totalorder %s23, 7
      %s410 = scalar_select %p409, %s23, 7
      %s411 = smul.addr %s410, 8
      %s412 = smul.addr %s411, 4
      %s413 = scalar_lea.vmem %s12, %s412
      %v415 = vld [vmem:[%s408] sm:$0xf]
      %v416 = vld [vmem:[%s408 + $0x4] sm:$0xf]
      %v417 = vld [vmem:[%s408 + $0x8] sm:$0xf]
      %v418 = vld [vmem:[%s408 + $0xc] sm:$0xf]
      %v419 = vld [vmem:[%s408 + $0x10] sm:$0xf]
      %v420 = vld [vmem:[%s408 + $0x14] sm:$0xf]
      %v421 = vld [vmem:[%s408 + $0x18] sm:$0xf]
      %v422 = vld [vmem:[%s408 + $0x1c] sm:$0xf]
      %v423 = vunpack.c.l.bf16 %v415
      %v424 = vunpack.c.l.bf16 %v416
      %v425 = vunpack.c.l.bf16 %v417
      %v426 = vunpack.c.l.bf16 %v418
      %v427 = vunpack.c.l.bf16 %v419
      %v428 = vunpack.c.l.bf16 %v420
      %v429 = vunpack.c.l.bf16 %v421
      %v430 = vunpack.c.l.bf16 %v422
      %v431 = vld [vmem:[%s1] sm:$0xf]
      %v432 = vld [vmem:[%s1 + $0x4] sm:$0xf]
      %v433 = vld [vmem:[%s1 + $0x8] sm:$0xf]
      %v434 = vld [vmem:[%s1 + $0xc] sm:$0xf]
      %v435 = vunpack.c.l.bf16 %v431
      %v436 = vunpack.c.l.bf16 %v432
      %v437 = vunpack.c.l.bf16 %v433
      %v438 = vunpack.c.l.bf16 %v434
      %v439 = vld [vmem:[%s2] sm:$0x1]
      %v440 = vld [vmem:[%s3] sm:$0x1]
      %vm441 = vcmask 261120
      %v442 = vsel %vm441, %v423, 0.0
      %v443 = vsel %vm441, %v424, 0.0
      %v444 = vadd.f32 %v442, %v443
      %v445 = vsel %vm441, %v425, 0.0
      %v446 = vadd.f32 %v444, %v445
      %v447 = vsel %vm441, %v426, 0.0
      %v448 = vadd.f32 %v446, %v447
      %v449 = vsel %vm441, %v427, 0.0
      %v450 = vadd.f32 %v448, %v449
      %v451 = vsel %vm441, %v428, 0.0
      %v452 = vadd.f32 %v450, %v451
      %v453 = vsel %vm441, %v429, 0.0
      %v454 = vadd.f32 %v452, %v453
      %v455 = vsel %vm441, %v430, 0.0
      %v456 = vadd.f32 %v454, %v455
      %v457 = vrot.slane %v456, 4
      %v458 = vadd.f32 %v456, %v457
      %v459 = vrot.slane %v458, 2
      %v460 = vadd.f32 %v458, %v459
      %v461 = vrot.slane %v460, 1
      %v462 = vadd.f32 %v460, %v461
      %v464 = vsel %vm441, %v462, 0
      %466 = vmatprep.subr.mxu0 0.0
      %467 = vmatpush1.msra.mxu0 %v435
      %468 = vmatprep.subr.mxu0 0.0
      %469 = vmatpush1.msra.mxu0 %v436
      %470 = vmatprep.subr.mxu0 0.0
      %471 = vmatpush1.msra.mxu0 %v437
      %472 = vmatprep.subr.mxu0 0.0
      %473 = vmatpush1.msra.mxu0 %v438
      %474 = vmatprep.subr.mxu0 0.0
      %475 = vmatpush1.msra.mxu0 0.0
      %476 = vmatprep.subr.mxu0 0.0
      %477 = vmatpush1.msra.mxu0 0.0
      %478 = vmatprep.subr.mxu0 0.0
      %479 = vmatpush1.msra.mxu0 0.0
      %480 = vmatprep.subr.mxu0 0.0
      %481 = vmatpush1.msra.mxu0 0.0
      %482 = vmatprep.subr.mxu0 0.0
      %483 = vmatpush1.msra.mxu0 0.0
      %484 = vmatprep.subr.mxu0 0.0
      %485 = vmatpush1.msra.mxu0 0.0
      %486 = vmatprep.subr.mxu0 0.0
      %487 = vmatpush1.msra.mxu0 0.0
      %488 = vmatprep.subr.mxu0 0.0
      %489 = vmatpush1.msra.mxu0 0.0
      %490 = vmatprep.subr.mxu0 0.0
      %491 = vmatpush1.msra.mxu0 0.0
      %492 = vmatprep.subr.mxu0 0.0
      %493 = vmatpush1.msra.mxu0 0.0
      %494 = vmatprep.subr.mxu0 0.0
      %495 = vmatpush1.msra.mxu0 0.0
      %496 = vmatprep.subr.mxu0 0.0
      %497 = vmatpush1.msra.mxu0 0.0
      %498 = vmatprep.subr.mxu0 0.0
      %499 = vmatpush1.msra.mxu0 0.0
      %500 = vmatprep.subr.mxu0 0.0
      %501 = vmatpush1.msra.mxu0 0.0
      %502 = vmatprep.subr.mxu0 0.0
      %503 = vmatpush1.msra.mxu0 0.0
      %504 = vmatprep.subr.mxu0 0.0
      %505 = vmatpush1.msra.mxu0 0.0
      %506 = vmatprep.subr.mxu0 0.0
      %507 = vmatpush1.msra.mxu0 0.0
      %508 = vmatprep.subr.mxu0 0.0
      %509 = vmatpush1.msra.mxu0 0.0
      %510 = vmatprep.subr.mxu0 0.0
      %511 = vmatpush1.msra.mxu0 0.0
      %512 = vmatprep.subr.mxu0 0.0
      %513 = vmatpush1.msra.mxu0 0.0
      %514 = vmatprep.subr.mxu0 0.0
      %515 = vmatpush1.msra.mxu0 0.0
      %516 = vmatprep.subr.mxu0 0.0
      %517 = vmatpush1.msra.mxu0 0.0
      %518 = vmatprep.subr.mxu0 0.0
      %519 = vmatpush1.msra.mxu0 0.0
      %520 = vmatprep.subr.mxu0 0.0
      %521 = vmatpush1.msra.mxu0 0.0
      %522 = vmatprep.subr.mxu0 0.0
      %523 = vmatpush1.msra.mxu0 0.0
      %524 = vmatprep.subr.mxu0 0.0
      %525 = vmatpush1.msra.mxu0 0.0
      %526 = vmatprep.subr.mxu0 0.0
      %527 = vmatpush1.msra.mxu0 0.0
      %528 = vmatprep.subr.mxu0 0.0
      %529 = vmatpush1.msra.mxu0 0.0
      %530 = vmatprep.mubr.f32.mxu0 0.0
      %531 = vmatmul.mubr.f32.gmra.mrb[0].mxu0 %v464
      %v532 = vpop.f32.mrb[0].mxu0
      %v533 = vadd.f32 0.0, %v532
      %v534 = vpop.f32.mrb[0].mxu0
      %535 = vdwg.mxu0
      %v536 = vmul.f32 %v533, 0.015625
      %v537 = vlaneseq
      %v538 = vshrl.u32 %v537, 7
      %v539 = vsub.s32 0, %v538
      %v540 = vrot.slane %v536, %v539
      %v541 = vsub.f32 %v423, %v540
      %v542 = vsub.f32 %v424, %v540
      %v543 = vsub.f32 %v425, %v540
      %v544 = vsub.f32 %v426, %v540
      %v545 = vsub.f32 %v427, %v540
      %v546 = vsub.f32 %v428, %v540
      %v547 = vsub.f32 %v429, %v540
      %v548 = vsub.f32 %v430, %v540
      %v549 = vmul.f32 %v541, %v541
      %v550 = vmul.f32 %v542, %v542
      %v551 = vmul.f32 %v543, %v543
      %v552 = vmul.f32 %v544, %v544
      %v553 = vmul.f32 %v545, %v545
      %v554 = vmul.f32 %v546, %v546
      %v555 = vmul.f32 %v547, %v547
      %v556 = vmul.f32 %v548, %v548
      %v557 = vsel %vm441, %v549, 0.0
      %v558 = vsel %vm441, %v550, 0.0
      %v559 = vadd.f32 %v557, %v558
      %v560 = vsel %vm441, %v551, 0.0
      %v561 = vadd.f32 %v559, %v560
      %v562 = vsel %vm441, %v552, 0.0
      %v563 = vadd.f32 %v561, %v562
      %v564 = vsel %vm441, %v553, 0.0
      %v565 = vadd.f32 %v563, %v564
      %v566 = vsel %vm441, %v554, 0.0
      %v567 = vadd.f32 %v565, %v566
      %v568 = vsel %vm441, %v555, 0.0
      %v569 = vadd.f32 %v567, %v568
      %v570 = vsel %vm441, %v556, 0.0
      %v571 = vadd.f32 %v569, %v570
      %v572 = vrot.slane %v571, 4
      %v573 = vadd.f32 %v571, %v572
      %v574 = vrot.slane %v573, 2
      %v575 = vadd.f32 %v573, %v574
      %v576 = vrot.slane %v575, 1
      %v577 = vadd.f32 %v575, %v576
      %v579 = vsel %vm441, %v577, 0
      %581 = vmatprep.subr.mxu0 0.0
      %582 = vmatpush1.msra.mxu0 %v435
      %583 = vmatprep.subr.mxu0 0.0
      %584 = vmatpush1.msra.mxu0 %v436
      %585 = vmatprep.subr.mxu0 0.0
      %586 = vmatpush1.msra.mxu0 %v437
      %587 = vmatprep.subr.mxu0 0.0
      %588 = vmatpush1.msra.mxu0 %v438
      %589 = vmatprep.subr.mxu0 0.0
      %590 = vmatpush1.msra.mxu0 0.0
      %591 = vmatprep.subr.mxu0 0.0
      %592 = vmatpush1.msra.mxu0 0.0
      %593 = vmatprep.subr.mxu0 0.0
      %594 = vmatpush1.msra.mxu0 0.0
      %595 = vmatprep.subr.mxu0 0.0
      %596 = vmatpush1.msra.mxu0 0.0
      %597 = vmatprep.subr.mxu0 0.0
      %598 = vmatpush1.msra.mxu0 0.0
      %599 = vmatprep.subr.mxu0 0.0
      %600 = vmatpush1.msra.mxu0 0.0
      %601 = vmatprep.subr.mxu0 0.0
      %602 = vmatpush1.msra.mxu0 0.0
      %603 = vmatprep.subr.mxu0 0.0
      %604 = vmatpush1.msra.mxu0 0.0
      %605 = vmatprep.subr.mxu0 0.0
      %606 = vmatpush1.msra.mxu0 0.0
      %607 = vmatprep.subr.mxu0 0.0
      %608 = vmatpush1.msra.mxu0 0.0
      %609 = vmatprep.subr.mxu0 0.0
      %610 = vmatpush1.msra.mxu0 0.0
      %611 = vmatprep.subr.mxu0 0.0
      %612 = vmatpush1.msra.mxu0 0.0
      %613 = vmatprep.subr.mxu0 0.0
      %614 = vmatpush1.msra.mxu0 0.0
      %615 = vmatprep.subr.mxu0 0.0
      %616 = vmatpush1.msra.mxu0 0.0
      %617 = vmatprep.subr.mxu0 0.0
      %618 = vmatpush1.msra.mxu0 0.0
      %619 = vmatprep.subr.mxu0 0.0
      %620 = vmatpush1.msra.mxu0 0.0
      %621 = vmatprep.subr.mxu0 0.0
      %622 = vmatpush1.msra.mxu0 0.0
      %623 = vmatprep.subr.mxu0 0.0
      %624 = vmatpush1.msra.mxu0 0.0
      %625 = vmatprep.subr.mxu0 0.0
      %626 = vmatpush1.msra.mxu0 0.0
      %627 = vmatprep.subr.mxu0 0.0
      %628 = vmatpush1.msra.mxu0 0.0
      %629 = vmatprep.subr.mxu0 0.0
      %630 = vmatpush1.msra.mxu0 0.0
      %631 = vmatprep.subr.mxu0 0.0
      %632 = vmatpush1.msra.mxu0 0.0
      %633 = vmatprep.subr.mxu0 0.0
      %634 = vmatpush1.msra.mxu0 0.0
      %635 = vmatprep.subr.mxu0 0.0
      %636 = vmatpush1.msra.mxu0 0.0
      %637 = vmatprep.subr.mxu0 0.0
      %638 = vmatpush1.msra.mxu0 0.0
      %639 = vmatprep.subr.mxu0 0.0
      %640 = vmatpush1.msra.mxu0 0.0
      %641 = vmatprep.subr.mxu0 0.0
      %642 = vmatpush1.msra.mxu0 0.0
      %643 = vmatprep.subr.mxu0 0.0
      %644 = vmatpush1.msra.mxu0 0.0
      %645 = vmatprep.mubr.f32.mxu0 0.0
      %646 = vmatmul.mubr.f32.gmra.mrb[0].mxu0 %v579
      %v647 = vpop.f32.mrb[0].mxu0
      %v648 = vadd.f32 0.0, %v647
      %v649 = vpop.f32.mrb[0].mxu0
      %650 = vdwg.mxu0
      %v651 = vmul.f32 %v648, 0.015625
      %v652 = vadd.f32 %v651, 1e-06
      %v653 = vrsqrt.pop %v652
      %v654 = vmul.f32 %v653, %v439
      %v655 = vlaneseq
      %v656 = vshrl.u32 %v655, 7
      %v657 = vsub.s32 0, %v656
      %v658 = vrot.slane %v654, %v657
      %v659 = vmul.f32 %v541, %v658
      %v660 = vmul.f32 %v542, %v658
      %v661 = vmul.f32 %v543, %v658
      %v662 = vmul.f32 %v544, %v658
      %v663 = vmul.f32 %v545, %v658
      %v664 = vmul.f32 %v546, %v658
      %v665 = vmul.f32 %v547, %v658
      %v666 = vmul.f32 %v548, %v658
      %v668 = vlaneseq
      %v669 = vshrl.u32 %v668, 7
      %v670 = vsub.s32 0, %v669
      %v671 = vrot.slane %v440, %v670
      %v673 = vadd.f32 %v659, %v671
      %v674 = vadd.f32 %v660, %v671
      %v675 = vadd.f32 %v661, %v671
      %v676 = vadd.f32 %v662, %v671
      %v677 = vadd.f32 %v663, %v671
      %v678 = vadd.f32 %v664, %v671
      %v679 = vadd.f32 %v665, %v671
      %v680 = vadd.f32 %v666, %v671
      %v681 = vpack.c.bf16 %v674, %v673
      %v682 = vpack.c.bf16 %v676, %v675
      %v683 = vpack.c.bf16 %v678, %v677
      %v684 = vpack.c.bf16 %v680, %v679
      %v685 = vld [vmem:[%s4] sm:$0xf]
      %v686 = vld [vmem:[%s4 + $0x4] sm:$0xf]
      %v687 = vld [vmem:[%s4 + $0x8] sm:$0xf]
      %v688 = vld [vmem:[%s4 + $0xc] sm:$0xf]
      %v689 = vld [vmem:[%s5] sm:$0x1]
      %v691 = vlaneseq
      %v692 = vshrl.u32 %v691, 7
      %v693 = vsub.s32 0, %v692
      %v694 = vrot.slane %v689, %v693
      %v700 = vunpack.c.l.b16 %v685
      %v701 = vunpack.c.l.b16 %v686
      %v702 = vunpack.c.l.b16 %v687
      %v703 = vunpack.c.l.b16 %v688
      %v704 = vpack.c.b16 %v701, %v700
      %v705 = vpack.c.b16 %v703, %v702
      %v709 = vsel %vm441, %v681, 0
      %v712 = vsel %vm441, %v682, 0
      %v715 = vsel %vm441, %v683, 0
      %v718 = vsel %vm441, %v684, 0
      %720 = vmatprep.subr.bf16.mxu0 0
      %721 = vmatpush1.bf16.msra.mxu0 %v704
      %722 = vmatprep.subr.bf16.mxu0 0
      %723 = vmatpush1.bf16.msra.mxu0 %v705
      %724 = vmatprep.subr.bf16.mxu0 0
      %725 = vmatpush1.bf16.msra.mxu0 0
      %726 = vmatprep.subr.bf16.mxu0 0
      %727 = vmatpush1.bf16.msra.mxu0 0
      %728 = vmatprep.subr.bf16.mxu0 0
      %729 = vmatpush1.bf16.msra.mxu0 0
      %730 = vmatprep.subr.bf16.mxu0 0
      %731 = vmatpush1.bf16.msra.mxu0 0
      %732 = vmatprep.subr.bf16.mxu0 0
      %733 = vmatpush1.bf16.msra.mxu0 0
      %734 = vmatprep.subr.bf16.mxu0 0
      %735 = vmatpush1.bf16.msra.mxu0 0
      %736 = vmatprep.subr.bf16.mxu0 0
      %737 = vmatpush1.bf16.msra.mxu0 0
      %738 = vmatprep.subr.bf16.mxu0 0
      %739 = vmatpush1.bf16.msra.mxu0 0
      %740 = vmatprep.subr.bf16.mxu0 0
      %741 = vmatpush1.bf16.msra.mxu0 0
      %742 = vmatprep.subr.bf16.mxu0 0
      %743 = vmatpush1.bf16.msra.mxu0 0
      %744 = vmatprep.subr.bf16.mxu0 0
      %745 = vmatpush1.bf16.msra.mxu0 0
      %746 = vmatprep.subr.bf16.mxu0 0
      %747 = vmatpush1.bf16.msra.mxu0 0
      %748 = vmatprep.subr.bf16.mxu0 0
      %749 = vmatpush1.bf16.msra.mxu0 0
      %750 = vmatprep.subr.bf16.mxu0 0
      %751 = vmatpush1.bf16.msra.mxu0 0
      %752 = vmatprep.mubr.bf16.mxu0 0
      %753 = vmatmul.mubr.bf16.gmra.mrb[0].mxu0 %v709
      %v754 = vpop.f32.mrb[0].mxu0
      %v755 = vadd.f32 %v694, %v754
      %v756 = vpop.f32.mrb[0].mxu0
      %v757 = vpop.f32.mrb[0].mxu0
      %v758 = vadd.f32 %v694, %v757
      %v759 = vpop.f32.mrb[0].mxu0
      %760 = vmatprep.mubr.bf16.mxu0 0
      %761 = vmatmul.mubr.bf16.gmra.mrb[0].mxu0 %v712
      %v762 = vpop.f32.mrb[0].mxu0
      %v763 = vadd.f32 %v694, %v762
      %v764 = vpop.f32.mrb[0].mxu0
      %v765 = vpop.f32.mrb[0].mxu0
      %v766 = vadd.f32 %v694, %v765
      %v767 = vpop.f32.mrb[0].mxu0
      %768 = vmatprep.mubr.bf16.mxu0 0
      %769 = vmatmul.mubr.bf16.gmra.mrb[0].mxu0 %v715
      %v770 = vpop.f32.mrb[0].mxu0
      %v771 = vadd.f32 %v694, %v770
      %v772 = vpop.f32.mrb[0].mxu0
      %v773 = vpop.f32.mrb[0].mxu0
      %v774 = vadd.f32 %v694, %v773
      %v775 = vpop.f32.mrb[0].mxu0
      %776 = vmatprep.mubr.bf16.mxu0 0
      %777 = vmatmul.mubr.bf16.gmra.mrb[0].mxu0 %v718
      %v778 = vpop.f32.mrb[0].mxu0
      %v779 = vadd.f32 %v694, %v778
      %v780 = vpop.f32.mrb[0].mxu0
      %v781 = vpop.f32.mrb[0].mxu0
      %v782 = vadd.f32 %v694, %v781
      %v783 = vpop.f32.mrb[0].mxu0
      %784 = vdwg.mxu0
      %v785 = vld [vmem:[%s6] sm:$0xf]
      %v786 = vld [vmem:[%s6 + $0x4] sm:$0xf]
      %v787 = vld [vmem:[%s6 + $0x8] sm:$0xf]
      %v788 = vld [vmem:[%s6 + $0xc] sm:$0xf]
      %v789 = vld [vmem:[%s7] sm:$0x1]
      %v791 = vlaneseq
      %v792 = vshrl.u32 %v791, 7
      %v793 = vsub.s32 0, %v792
      %v794 = vrot.slane %v789, %v793
      %v800 = vunpack.c.l.b16 %v785
      %v801 = vunpack.c.l.b16 %v786
      %v802 = vunpack.c.l.b16 %v787
      %v803 = vunpack.c.l.b16 %v788
      %v804 = vpack.c.b16 %v801, %v800
      %v805 = vpack.c.b16 %v803, %v802
      %808 = vmatprep.subr.bf16.mxu0 0
      %809 = vmatpush1.bf16.msra.mxu0 %v804
      %810 = vmatprep.subr.bf16.mxu0 0
      %811 = vmatpush1.bf16.msra.mxu0 %v805
      %812 = vmatprep.subr.bf16.mxu0 0
      %813 = vmatpush1.bf16.msra.mxu0 0
      %814 = vmatprep.subr.bf16.mxu0 0
      %815 = vmatpush1.bf16.msra.mxu0 0
      %816 = vmatprep.subr.bf16.mxu0 0
      %817 = vmatpush1.bf16.msra.mxu0 0
      %818 = vmatprep.subr.bf16.mxu0 0
      %819 = vmatpush1.bf16.msra.mxu0 0
      %820 = vmatprep.subr.bf16.mxu0 0
      %821 = vmatpush1.bf16.msra.mxu0 0
      %822 = vmatprep.subr.bf16.mxu0 0
      %823 = vmatpush1.bf16.msra.mxu0 0
      %824 = vmatprep.subr.bf16.mxu0 0
      %825 = vmatpush1.bf16.msra.mxu0 0
      %826 = vmatprep.subr.bf16.mxu0 0
      %827 = vmatpush1.bf16.msra.mxu0 0
      %828 = vmatprep.subr.bf16.mxu0 0
      %829 = vmatpush1.bf16.msra.mxu0 0
      %830 = vmatprep.subr.bf16.mxu0 0
      %831 = vmatpush1.bf16.msra.mxu0 0
      %832 = vmatprep.subr.bf16.mxu0 0
      %833 = vmatpush1.bf16.msra.mxu0 0
      %834 = vmatprep.subr.bf16.mxu0 0
      %835 = vmatpush1.bf16.msra.mxu0 0
      %836 = vmatprep.subr.bf16.mxu0 0
      %837 = vmatpush1.bf16.msra.mxu0 0
      %838 = vmatprep.subr.bf16.mxu0 0
      %839 = vmatpush1.bf16.msra.mxu0 0
      %840 = vmatprep.mubr.bf16.mxu0 0
      %841 = vmatmul.mubr.bf16.gmra.mrb[0].mxu0 %v709
      %v842 = vpop.f32.mrb[0].mxu0
      %v843 = vadd.f32 %v794, %v842
      %v844 = vpop.f32.mrb[0].mxu0
      %v845 = vpop.f32.mrb[0].mxu0
      %v846 = vadd.f32 %v794, %v845
      %v847 = vpop.f32.mrb[0].mxu0
      %848 = vmatprep.mubr.bf16.mxu0 0
      %849 = vmatmul.mubr.bf16.gmra.mrb[0].mxu0 %v712
      %v850 = vpop.f32.mrb[0].mxu0
      %v851 = vadd.f32 %v794, %v850
      %v852 = vpop.f32.mrb[0].mxu0
      %v853 = vpop.f32.mrb[0].mxu0
      %v854 = vadd.f32 %v794, %v853
      %v855 = vpop.f32.mrb[0].mxu0
      %856 = vmatprep.mubr.bf16.mxu0 0
      %857 = vmatmul.mubr.bf16.gmra.mrb[0].mxu0 %v715
      %v858 = vpop.f32.mrb[0].mxu0
      %v859 = vadd.f32 %v794, %v858
      %v860 = vpop.f32.mrb[0].mxu0
      %v861 = vpop.f32.mrb[0].mxu0
      %v862 = vadd.f32 %v794, %v861
      %v863 = vpop.f32.mrb[0].mxu0
      %864 = vmatprep.mubr.bf16.mxu0 0
      %865 = vmatmul.mubr.bf16.gmra.mrb[0].mxu0 %v718
      %v866 = vpop.f32.mrb[0].mxu0
      %v867 = vadd.f32 %v794, %v866
      %v868 = vpop.f32.mrb[0].mxu0
      %v869 = vpop.f32.mrb[0].mxu0
      %v870 = vadd.f32 %v794, %v869
      %v871 = vpop.f32.mrb[0].mxu0
      %872 = vdwg.mxu0
      %v873 = vld [vmem:[%s8] sm:$0xf]
      %v874 = vld [vmem:[%s8 + $0x4] sm:$0xf]
      %v875 = vld [vmem:[%s8 + $0x8] sm:$0xf]
      %v876 = vld [vmem:[%s8 + $0xc] sm:$0xf]
      %v877 = vld [vmem:[%s9] sm:$0x1]
      %v879 = vlaneseq
      %v880 = vshrl.u32 %v879, 7
      %v881 = vsub.s32 0, %v880
      %v882 = vrot.slane %v877, %v881
      %v888 = vunpack.c.l.b16 %v873
      %v889 = vunpack.c.l.b16 %v874
      %v890 = vunpack.c.l.b16 %v875
      %v891 = vunpack.c.l.b16 %v876
      %v892 = vpack.c.b16 %v889, %v888
      %v893 = vpack.c.b16 %v891, %v890
      %896 = vmatprep.subr.bf16.mxu0 0
      %897 = vmatpush1.bf16.msra.mxu0 %v892
      %898 = vmatprep.subr.bf16.mxu0 0
      %899 = vmatpush1.bf16.msra.mxu0 %v893
      %900 = vmatprep.subr.bf16.mxu0 0
      %901 = vmatpush1.bf16.msra.mxu0 0
      %902 = vmatprep.subr.bf16.mxu0 0
      %903 = vmatpush1.bf16.msra.mxu0 0
      %904 = vmatprep.subr.bf16.mxu0 0
      %905 = vmatpush1.bf16.msra.mxu0 0
      %906 = vmatprep.subr.bf16.mxu0 0
      %907 = vmatpush1.bf16.msra.mxu0 0
      %908 = vmatprep.subr.bf16.mxu0 0
      %909 = vmatpush1.bf16.msra.mxu0 0
      %910 = vmatprep.subr.bf16.mxu0 0
      %911 = vmatpush1.bf16.msra.mxu0 0
      %912 = vmatprep.subr.bf16.mxu0 0
      %913 = vmatpush1.bf16.msra.mxu0 0
      %914 = vmatprep.subr.bf16.mxu0 0
      %915 = vmatpush1.bf16.msra.mxu0 0
      %916 = vmatprep.subr.bf16.mxu0 0
      %917 = vmatpush1.bf16.msra.mxu0 0
      %918 = vmatprep.subr.bf16.mxu0 0
      %919 = vmatpush1.bf16.msra.mxu0 0
      %920 = vmatprep.subr.bf16.mxu0 0
      %921 = vmatpush1.bf16.msra.mxu0 0
      %922 = vmatprep.subr.bf16.mxu0 0
      %923 = vmatpush1.bf16.msra.mxu0 0
      %924 = vmatprep.subr.bf16.mxu0 0
      %925 = vmatpush1.bf16.msra.mxu0 0
      %926 = vmatprep.subr.bf16.mxu0 0
      %927 = vmatpush1.bf16.msra.mxu0 0
      %928 = vmatprep.mubr.bf16.mxu0 0
      %929 = vmatmul.mubr.bf16.gmra.mrb[0].mxu0 %v709
      %v930 = vpop.f32.mrb[0].mxu0
      %v931 = vadd.f32 %v882, %v930
      %v932 = vpop.f32.mrb[0].mxu0
      %v933 = vpop.f32.mrb[0].mxu0
      %v934 = vadd.f32 %v882, %v933
      %v935 = vpop.f32.mrb[0].mxu0
      %936 = vmatprep.mubr.bf16.mxu0 0
      %937 = vmatmul.mubr.bf16.gmra.mrb[0].mxu0 %v712
      %v938 = vpop.f32.mrb[0].mxu0
      %v939 = vadd.f32 %v882, %v938
      %v940 = vpop.f32.mrb[0].mxu0
      %v941 = vpop.f32.mrb[0].mxu0
      %v942 = vadd.f32 %v882, %v941
      %v943 = vpop.f32.mrb[0].mxu0
      %944 = vmatprep.mubr.bf16.mxu0 0
      %945 = vmatmul.mubr.bf16.gmra.mrb[0].mxu0 %v715
      %v946 = vpop.f32.mrb[0].mxu0
      %v947 = vadd.f32 %v882, %v946
      %v948 = vpop.f32.mrb[0].mxu0
      %v949 = vpop.f32.mrb[0].mxu0
      %v950 = vadd.f32 %v882, %v949
      %v951 = vpop.f32.mrb[0].mxu0
      %952 = vmatprep.mubr.bf16.mxu0 0
      %953 = vmatmul.mubr.bf16.gmra.mrb[0].mxu0 %v718
      %v954 = vpop.f32.mrb[0].mxu0
      %v955 = vadd.f32 %v882, %v954
      %v956 = vpop.f32.mrb[0].mxu0
      %v957 = vpop.f32.mrb[0].mxu0
      %v958 = vadd.f32 %v882, %v957
      %v959 = vpop.f32.mrb[0].mxu0
      %960 = vdwg.mxu0
      %v961 = vpack.c.bf16 %v758, %v755
      %v962 = vpack.c.bf16 %v766, %v763
      %v963 = vpack.c.bf16 %v774, %v771
      %v964 = vpack.c.bf16 %v782, %v779
      %v965 = vpack.c.bf16 %v846, %v843
      %v966 = vpack.c.bf16 %v854, %v851
      %v967 = vpack.c.bf16 %v862, %v859
      %v968 = vpack.c.bf16 %v870, %v867
      %v969 = vpack.c.bf16 %v934, %v931
      %v970 = vpack.c.bf16 %v942, %v939
      %v971 = vpack.c.bf16 %v950, %v947
      %v972 = vpack.c.bf16 %v958, %v955
      %v974 = vsel %vm441, %v961, 0
      %v977 = vsel %vm441, %v962, 0
      %v980 = vsel %vm441, %v963, 0
      %v983 = vsel %vm441, %v964, 0
      %v986 = vsel %vm441, %v965, 0
      %v989 = vsel %vm441, %v966, 0
      %v992 = vsel %vm441, %v967, 0
      %v995 = vsel %vm441, %v968, 0
      %997 = vmatprep.subr.bf16.mxu0 0
      %998 = vmatpush1.bf16.xpose.msra.mxu0 %v986
      %999 = vmatprep.subr.bf16.mxu0 0
      %1000 = vmatpush1.bf16.xpose.msra.mxu0 %v989
      %1001 = vmatprep.subr.bf16.mxu0 0
      %1002 = vmatpush1.bf16.xpose.msra.mxu0 %v992
      %1003 = vmatprep.subr.bf16.mxu0 0
      %1004 = vmatpush1.bf16.xpose.msra.mxu0 %v995
      %1005 = vmatprep.subr.bf16.mxu0 0
      %1006 = vmatpush1.bf16.xpose.msra.mxu0 0
      %1007 = vmatprep.subr.bf16.mxu0 0
      %1008 = vmatpush1.bf16.xpose.msra.mxu0 0
      %1009 = vmatprep.subr.bf16.mxu0 0
      %1010 = vmatpush1.bf16.xpose.msra.mxu0 0
      %1011 = vmatprep.subr.bf16.mxu0 0
      %1012 = vmatpush1.bf16.xpose.msra.mxu0 0
      %1013 = vmatprep.subr.bf16.mxu0 0
      %1014 = vmatpush1.bf16.xpose.msra.mxu0 0
      %1015 = vmatprep.subr.bf16.mxu0 0
      %1016 = vmatpush1.bf16.xpose.msra.mxu0 0
      %1017 = vmatprep.subr.bf16.mxu0 0
      %1018 = vmatpush1.bf16.xpose.msra.mxu0 0
      %1019 = vmatprep.subr.bf16.mxu0 0
      %1020 = vmatpush1.bf16.xpose.msra.mxu0 0
      %1021 = vmatprep.subr.bf16.mxu0 0
      %1022 = vmatpush1.bf16.xpose.msra.mxu0 0
      %1023 = vmatprep.subr.bf16.mxu0 0
      %1024 = vmatpush1.bf16.xpose.msra.mxu0 0
      %1025 = vmatprep.subr.bf16.mxu0 0
      %1026 = vmatpush1.bf16.xpose.msra.mxu0 0
      %1027 = vmatprep.subr.bf16.mxu0 0
      %1028 = vmatpush1.bf16.xpose.msra.mxu0 0
      %1029 = vmatprep.mubr.bf16.mxu0 0
      %1030 = vmatmul.mubr.bf16.gmra.mrb[0].mxu0 %v974
      %v1031 = vpop.f32.mrb[0].mxu0
      %v1032 = vadd.f32 0.0, %v1031
      %v1033 = vpop.f32.mrb[0].mxu0
      %v1034 = vpop.f32.mrb[0].mxu0
      %v1035 = vadd.f32 0.0, %v1034
      %v1036 = vpop.f32.mrb[0].mxu0
      %1037 = vmatprep.mubr.bf16.mxu0 0
      %1038 = vmatmul.mubr.bf16.gmra.mrb[0].mxu0 %v977
      %v1039 = vpop.f32.mrb[0].mxu0
      %v1040 = vadd.f32 0.0, %v1039
      %v1041 = vpop.f32.mrb[0].mxu0
      %v1042 = vpop.f32.mrb[0].mxu0
      %v1043 = vadd.f32 0.0, %v1042
      %v1044 = vpop.f32.mrb[0].mxu0
      %1045 = vmatprep.mubr.bf16.mxu0 0
      %1046 = vmatmul.mubr.bf16.gmra.mrb[0].mxu0 %v980
      %v1047 = vpop.f32.mrb[0].mxu0
      %v1048 = vadd.f32 0.0, %v1047
      %v1049 = vpop.f32.mrb[0].mxu0
      %v1050 = vpop.f32.mrb[0].mxu0
      %v1051 = vadd.f32 0.0, %v1050
      %v1052 = vpop.f32.mrb[0].mxu0
      %1053 = vmatprep.mubr.bf16.mxu0 0
      %1054 = vmatmul.mubr.bf16.gmra.mrb[0].mxu0 %v983
      %v1055 = vpop.f32.mrb[0].mxu0
      %v1056 = vadd.f32 0.0, %v1055
      %v1057 = vpop.f32.mrb[0].mxu0
      %v1058 = vpop.f32.mrb[0].mxu0
      %v1059 = vadd.f32 0.0, %v1058
      %v1060 = vpop.f32.mrb[0].mxu0
      %1061 = vdwg.mxu0
      %v1062 = vmul.f32 %v1032, 0.17677669
      %v1063 = vmul.f32 %v1035, 0.17677669
      %v1064 = vmul.f32 %v1040, 0.17677669
      %v1065 = vmul.f32 %v1043, 0.17677669
      %v1066 = vmul.f32 %v1048, 0.17677669
      %v1067 = vmul.f32 %v1051, 0.17677669
      %v1068 = vmul.f32 %v1056, 0.17677669
      %v1069 = vmul.f32 %v1059, 0.17677669
      %vm1070 = vcmask 523264
      %v1071 = vsel %vm1070, %v1062, -inf
      %1072 = vmax.xlane.f32.xlu0 %v1071
      %v1073 = vpop.xlane.xlu0 %1072
      %v1074 = vsel %vm1070, %v1063, -inf
      %1075 = vmax.xlane.f32.xlu0 %v1074
      %v1076 = vpop.xlane.xlu0 %1075
      %v1077 = vsel %vm1070, %v1064, -inf
      %1078 = vmax.xlane.f32.xlu0 %v1077
      %v1079 = vpop.xlane.xlu0 %1078
      %v1080 = vsel %vm1070, %v1065, -inf
      %1081 = vmax.xlane.f32.xlu0 %v1080
      %v1082 = vpop.xlane.xlu0 %1081
      %v1083 = vsel %vm1070, %v1066, -inf
      %1084 = vmax.xlane.f32.xlu0 %v1083
      %v1085 = vpop.xlane.xlu0 %1084
      %v1086 = vsel %vm1070, %v1067, -inf
      %1087 = vmax.xlane.f32.xlu0 %v1086
      %v1088 = vpop.xlane.xlu0 %1087
      %v1089 = vsel %vm1070, %v1068, -inf
      %1090 = vmax.xlane.f32.xlu0 %v1089
      %v1091 = vpop.xlane.xlu0 %1090
      %v1092 = vsel %vm1070, %v1069, -inf
      %1093 = vmax.xlane.f32.xlu0 %v1092
      %v1094 = vpop.xlane.xlu0 %1093
      %v1095 = vsub.f32 -inf, %v1073
      %v1096 = vsub.f32 -inf, %v1076
      %v1097 = vsub.f32 -inf, %v1079
      %v1098 = vsub.f32 -inf, %v1082
      %v1099 = vsub.f32 -inf, %v1085
      %v1100 = vsub.f32 -inf, %v1088
      %v1101 = vsub.f32 -inf, %v1091
      %v1102 = vsub.f32 -inf, %v1094
      %v1103 = vmul.f32 %v1095, 1.442695
      %v1104 = vpow.pop %v1103
      %v1105 = vmul.f32 %v1096, 1.442695
      %v1106 = vpow.pop %v1105
      %v1107 = vmul.f32 %v1097, 1.442695
      %v1108 = vpow.pop %v1107
      %v1109 = vmul.f32 %v1098, 1.442695
      %v1110 = vpow.pop %v1109
      %v1111 = vmul.f32 %v1099, 1.442695
      %v1112 = vpow.pop %v1111
      %v1113 = vmul.f32 %v1100, 1.442695
      %v1114 = vpow.pop %v1113
      %v1115 = vmul.f32 %v1101, 1.442695
      %v1116 = vpow.pop %v1115
      %v1117 = vmul.f32 %v1102, 1.442695
      %v1118 = vpow.pop %v1117
      %v1119 = vsub.f32 %v1062, %v1073
      %v1120 = vsub.f32 %v1063, %v1076
      %v1121 = vsub.f32 %v1064, %v1079
      %v1122 = vsub.f32 %v1065, %v1082
      %v1123 = vsub.f32 %v1066, %v1085
      %v1124 = vsub.f32 %v1067, %v1088
      %v1125 = vsub.f32 %v1068, %v1091
      %v1126 = vsub.f32 %v1069, %v1094
      %v1127 = vmul.f32 %v1119, 1.442695
      %v1128 = vpow.pop %v1127
      %v1129 = vmul.f32 %v1120, 1.442695
      %v1130 = vpow.pop %v1129
      %v1131 = vmul.f32 %v1121, 1.442695
      %v1132 = vpow.pop %v1131
      %v1133 = vmul.f32 %v1122, 1.442695
      %v1134 = vpow.pop %v1133
      %v1135 = vmul.f32 %v1123, 1.442695
      %v1136 = vpow.pop %v1135
      %v1137 = vmul.f32 %v1124, 1.442695
      %v1138 = vpow.pop %v1137
      %v1139 = vmul.f32 %v1125, 1.442695
      %v1140 = vpow.pop %v1139
      %v1141 = vmul.f32 %v1126, 1.442695
      %v1142 = vpow.pop %v1141
      %v1143 = vmul.f32 %v1104, 0.0
      %v1144 = vmul.f32 %v1106, 0.0
      %v1145 = vmul.f32 %v1108, 0.0
      %v1146 = vmul.f32 %v1110, 0.0
      %v1147 = vmul.f32 %v1112, 0.0
      %v1148 = vmul.f32 %v1114, 0.0
      %v1149 = vmul.f32 %v1116, 0.0
      %v1150 = vmul.f32 %v1118, 0.0
      %v1151 = vsel %vm1070, %v1128, 0.0
      %1152 = vadd.xlane.f32.xlu0 %v1151
      %v1153 = vpop.xlane.xlu0 %1152
      %v1154 = vsel %vm1070, %v1130, 0.0
      %1155 = vadd.xlane.f32.xlu0 %v1154
      %v1156 = vpop.xlane.xlu0 %1155
      %v1157 = vsel %vm1070, %v1132, 0.0
      %1158 = vadd.xlane.f32.xlu0 %v1157
      %v1159 = vpop.xlane.xlu0 %1158
      %v1160 = vsel %vm1070, %v1134, 0.0
      %1161 = vadd.xlane.f32.xlu0 %v1160
      %v1162 = vpop.xlane.xlu0 %1161
      %v1163 = vsel %vm1070, %v1136, 0.0
      %1164 = vadd.xlane.f32.xlu0 %v1163
      %v1165 = vpop.xlane.xlu0 %1164
      %v1166 = vsel %vm1070, %v1138, 0.0
      %1167 = vadd.xlane.f32.xlu0 %v1166
      %v1168 = vpop.xlane.xlu0 %1167
      %v1169 = vsel %vm1070, %v1140, 0.0
      %1170 = vadd.xlane.f32.xlu0 %v1169
      %v1171 = vpop.xlane.xlu0 %1170
      %v1172 = vsel %vm1070, %v1142, 0.0
      %1173 = vadd.xlane.f32.xlu0 %v1172
      %v1174 = vpop.xlane.xlu0 %1173
      %v1175 = vadd.f32 %v1143, %v1153
      %v1176 = vadd.f32 %v1144, %v1156
      %v1177 = vadd.f32 %v1145, %v1159
      %v1178 = vadd.f32 %v1146, %v1162
      %v1179 = vadd.f32 %v1147, %v1165
      %v1180 = vadd.f32 %v1148, %v1168
      %v1181 = vadd.f32 %v1149, %v1171
      %v1182 = vadd.f32 %v1150, %v1174
      %v1183 = vpack.c.bf16 %v1130, %v1128
      %v1184 = vpack.c.bf16 %v1134, %v1132
      %v1185 = vpack.c.bf16 %v1138, %v1136
      %v1186 = vpack.c.bf16 %v1142, %v1140
      %v1188 = vsel %vm1070, %v1183, 0
      %v1191 = vsel %vm1070, %v1184, 0
      %v1194 = vsel %vm1070, %v1185, 0
      %v1197 = vsel %vm1070, %v1186, 0
      %1199 = vmatprep.subr.bf16.mxu0 0
      %1200 = vmatpush1.bf16.msra.mxu0 %v969
      %1201 = vmatprep.subr.bf16.mxu0 0
      %1202 = vmatpush1.bf16.msra.mxu0 %v970
      %1203 = vmatprep.subr.bf16.mxu0 0
      %1204 = vmatpush1.bf16.msra.mxu0 %v971
      %1205 = vmatprep.subr.bf16.mxu0 0
      %1206 = vmatpush1.bf16.msra.mxu0 %v972
      %1207 = vmatprep.subr.bf16.mxu0 0
      %1208 = vmatpush1.bf16.msra.mxu0 0
      %1209 = vmatprep.subr.bf16.mxu0 0
      %1210 = vmatpush1.bf16.msra.mxu0 0
      %1211 = vmatprep.subr.bf16.mxu0 0
      %1212 = vmatpush1.bf16.msra.mxu0 0
      %1213 = vmatprep.subr.bf16.mxu0 0
      %1214 = vmatpush1.bf16.msra.mxu0 0
      %1215 = vmatprep.subr.bf16.mxu0 0
      %1216 = vmatpush1.bf16.msra.mxu0 0
      %1217 = vmatprep.subr.bf16.mxu0 0
      %1218 = vmatpush1.bf16.msra.mxu0 0
      %1219 = vmatprep.subr.bf16.mxu0 0
      %1220 = vmatpush1.bf16.msra.mxu0 0
      %1221 = vmatprep.subr.bf16.mxu0 0
      %1222 = vmatpush1.bf16.msra.mxu0 0
      %1223 = vmatprep.subr.bf16.mxu0 0
      %1224 = vmatpush1.bf16.msra.mxu0 0
      %1225 = vmatprep.subr.bf16.mxu0 0
      %1226 = vmatpush1.bf16.msra.mxu0 0
      %1227 = vmatprep.subr.bf16.mxu0 0
      %1228 = vmatpush1.bf16.msra.mxu0 0
      %1229 = vmatprep.subr.bf16.mxu0 0
      %1230 = vmatpush1.bf16.msra.mxu0 0
      %1231 = vmatprep.mubr.bf16.mxu0 0
      %1232 = vmatmul.mubr.bf16.gmra.mrb[0].mxu0 %v1188
      %v1233 = vpop.f32.mrb[0].mxu0
      %v1234 = vadd.f32 0.0, %v1233
      %v1235 = vpop.f32.mrb[0].mxu0
      %v1236 = vpop.f32.mrb[0].mxu0
      %v1237 = vadd.f32 0.0, %v1236
      %v1238 = vpop.f32.mrb[0].mxu0
      %1239 = vmatprep.mubr.bf16.mxu0 0
      %1240 = vmatmul.mubr.bf16.gmra.mrb[0].mxu0 %v1191
      %v1241 = vpop.f32.mrb[0].mxu0
      %v1242 = vadd.f32 0.0, %v1241
      %v1243 = vpop.f32.mrb[0].mxu0
      %v1244 = vpop.f32.mrb[0].mxu0
      %v1245 = vadd.f32 0.0, %v1244
      %v1246 = vpop.f32.mrb[0].mxu0
      %1247 = vmatprep.mubr.bf16.mxu0 0
      %1248 = vmatmul.mubr.bf16.gmra.mrb[0].mxu0 %v1194
      %v1249 = vpop.f32.mrb[0].mxu0
      %v1250 = vadd.f32 0.0, %v1249
      %v1251 = vpop.f32.mrb[0].mxu0
      %v1252 = vpop.f32.mrb[0].mxu0
      %v1253 = vadd.f32 0.0, %v1252
      %v1254 = vpop.f32.mrb[0].mxu0
      %1255 = vmatprep.mubr.bf16.mxu0 0
      %1256 = vmatmul.mubr.bf16.gmra.mrb[0].mxu0 %v1197
      %v1257 = vpop.f32.mrb[0].mxu0
      %v1258 = vadd.f32 0.0, %v1257
      %v1259 = vpop.f32.mrb[0].mxu0
      %v1260 = vpop.f32.mrb[0].mxu0
      %v1261 = vadd.f32 0.0, %v1260
      %v1262 = vpop.f32.mrb[0].mxu0
      %1263 = vdwg.mxu0
      %v1264 = vadd.f32 %v1143, %v1234
      %v1265 = vadd.f32 %v1144, %v1237
      %v1266 = vadd.f32 %v1145, %v1242
      %v1267 = vadd.f32 %v1146, %v1245
      %v1268 = vadd.f32 %v1147, %v1250
      %v1269 = vadd.f32 %v1148, %v1253
      %v1270 = vadd.f32 %v1149, %v1258
      %v1271 = vadd.f32 %v1150, %v1261
      %v1272 = vrcp.pop %v1175
      %v1273 = vmul.f32 %v1264, %v1272
      %v1274 = vrcp.pop %v1176
      %v1275 = vmul.f32 %v1265, %v1274
      %v1276 = vrcp.pop %v1177
      %v1277 = vmul.f32 %v1266, %v1276
      %v1278 = vrcp.pop %v1178
      %v1279 = vmul.f32 %v1267, %v1278
      %v1280 = vrcp.pop %v1179
      %v1281 = vmul.f32 %v1268, %v1280
      %v1282 = vrcp.pop %v1180
      %v1283 = vmul.f32 %v1269, %v1282
      %v1284 = vrcp.pop %v1181
      %v1285 = vmul.f32 %v1270, %v1284
      %v1286 = vrcp.pop %v1182
      %v1287 = vmul.f32 %v1271, %v1286
      %v1288 = vpack.c.bf16 %v1275, %v1273
      %v1289 = vpack.c.bf16 %v1279, %v1277
      %v1290 = vpack.c.bf16 %v1283, %v1281
      %v1291 = vpack.c.bf16 %v1287, %v1285
      %v1292 = vld [vmem:[%s10] sm:$0xf]
      %v1293 = vld [vmem:[%s10 + $0x4] sm:$0xf]
      %v1294 = vld [vmem:[%s10 + $0x8] sm:$0xf]
      %v1295 = vld [vmem:[%s10 + $0xc] sm:$0xf]
      %v1296 = vld [vmem:[%s11] sm:$0x1]
      %v1298 = vlaneseq
      %v1299 = vshrl.u32 %v1298, 7
      %v1300 = vsub.s32 0, %v1299
      %v1301 = vrot.slane %v1296, %v1300
      %v1307 = vunpack.c.l.b16 %v1292
      %v1308 = vunpack.c.l.b16 %v1293
      %v1309 = vunpack.c.l.b16 %v1294
      %v1310 = vunpack.c.l.b16 %v1295
      %v1311 = vpack.c.b16 %v1308, %v1307
      %v1312 = vpack.c.b16 %v1310, %v1309
      %v1316 = vsel %vm441, %v1288, 0
      %v1319 = vsel %vm441, %v1289, 0
      %v1322 = vsel %vm441, %v1290, 0
      %v1325 = vsel %vm441, %v1291, 0
      %1327 = vmatprep.subr.bf16.mxu0 0
      %1328 = vmatpush1.bf16.msra.mxu0 %v1311
      %1329 = vmatprep.subr.bf16.mxu0 0
      %1330 = vmatpush1.bf16.msra.mxu0 %v1312
      %1331 = vmatprep.subr.bf16.mxu0 0
      %1332 = vmatpush1.bf16.msra.mxu0 0
      %1333 = vmatprep.subr.bf16.mxu0 0
      %1334 = vmatpush1.bf16.msra.mxu0 0
      %1335 = vmatprep.subr.bf16.mxu0 0
      %1336 = vmatpush1.bf16.msra.mxu0 0
      %1337 = vmatprep.subr.bf16.mxu0 0
      %1338 = vmatpush1.bf16.msra.mxu0 0
      %1339 = vmatprep.subr.bf16.mxu0 0
      %1340 = vmatpush1.bf16.msra.mxu0 0
      %1341 = vmatprep.subr.bf16.mxu0 0
      %1342 = vmatpush1.bf16.msra.mxu0 0
      %1343 = vmatprep.subr.bf16.mxu0 0
      %1344 = vmatpush1.bf16.msra.mxu0 0
      %1345 = vmatprep.subr.bf16.mxu0 0
      %1346 = vmatpush1.bf16.msra.mxu0 0
      %1347 = vmatprep.subr.bf16.mxu0 0
      %1348 = vmatpush1.bf16.msra.mxu0 0
      %1349 = vmatprep.subr.bf16.mxu0 0
      %1350 = vmatpush1.bf16.msra.mxu0 0
      %1351 = vmatprep.subr.bf16.mxu0 0
      %1352 = vmatpush1.bf16.msra.mxu0 0
      %1353 = vmatprep.subr.bf16.mxu0 0
      %1354 = vmatpush1.bf16.msra.mxu0 0
      %1355 = vmatprep.subr.bf16.mxu0 0
      %1356 = vmatpush1.bf16.msra.mxu0 0
      %1357 = vmatprep.subr.bf16.mxu0 0
      %1358 = vmatpush1.bf16.msra.mxu0 0
      %1359 = vmatprep.mubr.bf16.mxu0 0
      %1360 = vmatmul.mubr.bf16.gmra.mrb[0].mxu0 %v1316
      %v1361 = vpop.f32.mrb[0].mxu0
      %v1362 = vadd.f32 %v1301, %v1361
      %v1363 = vpop.f32.mrb[0].mxu0
      %v1364 = vpop.f32.mrb[0].mxu0
      %v1365 = vadd.f32 %v1301, %v1364
      %v1366 = vpop.f32.mrb[0].mxu0
      %1367 = vmatprep.mubr.bf16.mxu0 0
      %1368 = vmatmul.mubr.bf16.gmra.mrb[0].mxu0 %v1319
      %v1369 = vpop.f32.mrb[0].mxu0
      %v1370 = vadd.f32 %v1301, %v1369
      %v1371 = vpop.f32.mrb[0].mxu0
      %v1372 = vpop.f32.mrb[0].mxu0
      %v1373 = vadd.f32 %v1301, %v1372
      %v1374 = vpop.f32.mrb[0].mxu0
      %1375 = vmatprep.mubr.bf16.mxu0 0
      %1376 = vmatmul.mubr.bf16.gmra.mrb[0].mxu0 %v1322
      %v1377 = vpop.f32.mrb[0].mxu0
      %v1378 = vadd.f32 %v1301, %v1377
      %v1379 = vpop.f32.mrb[0].mxu0
      %v1380 = vpop.f32.mrb[0].mxu0
      %v1381 = vadd.f32 %v1301, %v1380
      %v1382 = vpop.f32.mrb[0].mxu0
      %1383 = vmatprep.mubr.bf16.mxu0 0
      %1384 = vmatmul.mubr.bf16.gmra.mrb[0].mxu0 %v1325
      %v1385 = vpop.f32.mrb[0].mxu0
      %v1386 = vadd.f32 %v1301, %v1385
      %v1387 = vpop.f32.mrb[0].mxu0
      %v1388 = vpop.f32.mrb[0].mxu0
      %v1389 = vadd.f32 %v1301, %v1388
      %v1390 = vpop.f32.mrb[0].mxu0
      %1391 = vdwg.mxu0
      %v1392 = vadd.f32 %v1362, %v423
      %v1393 = vadd.f32 %v1365, %v424
      %v1394 = vadd.f32 %v1370, %v425
      %v1395 = vadd.f32 %v1373, %v426
      %v1396 = vadd.f32 %v1378, %v427
      %v1397 = vadd.f32 %v1381, %v428
      %v1398 = vadd.f32 %v1386, %v429
      %v1399 = vadd.f32 %v1389, %v430
      %v1400 = vpack.c.bf16 %v1393, %v1392
      %v1401 = vpack.c.bf16 %v1395, %v1394
      %v1402 = vpack.c.bf16 %v1397, %v1396
      %v1403 = vpack.c.bf16 %v1399, %v1398
      %v1408 = vunpack.c.l.b16 %v1400
      %v1409 = vunpack.c.h.b16 %v1400
      %v1410 = vunpack.c.l.b16 %v1401
      %v1411 = vunpack.c.h.b16 %v1401
      %v1412 = vunpack.c.l.b16 %v1402
      %v1413 = vunpack.c.h.b16 %v1402
      %v1414 = vunpack.c.l.b16 %v1403
      %v1415 = vunpack.c.h.b16 %v1403
      %v1416 = vpack.c.b16 %v1408, %v1408
      %v1417 = vpack.c.b16 %v1409, %v1409
      %v1418 = vpack.c.b16 %v1410, %v1410
      %v1419 = vpack.c.b16 %v1411, %v1411
      %v1420 = vpack.c.b16 %v1412, %v1412
      %v1421 = vpack.c.b16 %v1413, %v1413
      %v1422 = vpack.c.b16 %v1414, %v1414
      %v1423 = vpack.c.b16 %v1415, %v1415
      %vm1432 = vcmask 257024
      %1433 = vst.msk [vmem:[%s413] sm:$0xf] %vm1432, %v1416
      %1434 = vst.msk [vmem:[%s413 + $0x4] sm:$0xf] %vm1432, %v1417
      %1435 = vst.msk [vmem:[%s413 + $0x8] sm:$0xf] %vm1432, %v1418
      %1436 = vst.msk [vmem:[%s413 + $0xc] sm:$0xf] %vm1432, %v1419
      %1437 = vst.msk [vmem:[%s413 + $0x10] sm:$0xf] %vm1432, %v1420
      %1438 = vst.msk [vmem:[%s413 + $0x14] sm:$0xf] %vm1432, %v1421
      %1439 = vst.msk [vmem:[%s413 + $0x18] sm:$0xf] %vm1432, %v1422
      %1440 = vst.msk [vmem:[%s413 + $0x1c] sm:$0xf] %vm1432, %v1423
      %p1441 = scmp.lt.s32.totalorder %s23, 7
      %s1442 = scalar_select %p1441, %s23, 7
      %s1443 = smul.addr %s1442, 8
      %s1444 = smul.addr %s1443, 4
      %s1445 = scalar_lea.vmem %s12, %s1444
      // Predicated region
      $region69: #{mid_block_temporal_decoder_forward.7} parent=67 // pred_check
        %p1446 = pneg %p298
      $region70: #{mid_block_temporal_decoder_forward.7} parent=67 // pred_check_branch
        %1448 = sbr.rel (%p1446) target = $region72
      $region71: #{mid_block_temporal_decoder_forward.7} parent=67 // pred_region
        _
      $region72: #{mid_block_temporal_decoder_forward.7} parent=67 // pred_fallthru
        _
    $region68: #{mid_block_temporal_decoder_forward.7} parent=5 // pred_fallthru
      _
    %p1449 = scmp.le.s32.totalorder 2, %s18
    // Predicated region
    $region73: #{mid_block_temporal_decoder_forward.7} parent=5 // pred_check
      %p1450 = pneg %p1449
    $region74: #{mid_block_temporal_decoder_forward.7} parent=5 // pred_check_branch
      %1452 = sbr.rel (%p1450) target = $region76
    $region75: #{mid_block_temporal_decoder_forward.7} parent=5 // pred_region
      %s1453 = ssub.s32 %s18, 2
      // Predicated region
      $region77: #{mid_block_temporal_decoder_forward.7} parent=75 // pred_check
        %p1454 = pneg %p304
      $region78: #{mid_block_temporal_decoder_forward.7} parent=75 // pred_check_branch
        %1456 = sbr.rel (%p1454) target = $region80
      $region79: #{mid_block_temporal_decoder_forward.7} parent=75 // pred_region
        %p1457 = scmp.lt.s32.totalorder %s24, 7
        %s1458 = scalar_select %p1457, %s24, 7
        %s1459 = smul.addr %s1458, 8
        %s1460 = smul.addr %s1459, 4
        %s1461 = scalar_lea.vmem %s12, %s1460
      $region80: #{mid_block_temporal_decoder_forward.7} parent=75 // pred_fallthru
        _
    $region76: #{mid_block_temporal_decoder_forward.7} parent=5 // pred_fallthru
      _
  $region6: #{mid_block_temporal_decoder_forward.7} parent=0 // loop_footer
    %s22 = sadd.s32 1, %s18
  $region7: #{mid_block_temporal_decoder_forward.7} parent=0 // loop_footer_branch
    %17 = sbr.rel target = $region3
  $region8: #{mid_block_temporal_decoder_forward.7} parent=0 // loop_exit
    _

// kernel: mid_block_temporal_decoder_forward.6
$region0: #{mid_block_temporal_decoder_forward.6}
  #allocation0 [shape = 'u32[]', space=smem, size = 0x4, offset = 0x4, fixed_abs, tag = 'smem constant byte address 0x4 - core index']
  #allocation1 [shape = 'u32[144,128]{1,0:T(1,128)}', space=vmem, size = 0x12000, scoped, tag = 'internal scratch']
  #allocation2 [shape = 'f32[1]{0:T(128)S(6)}', space=smem, size = 0x200, scoped, tag = 'scoped memory for mid_block_temporal_decoder_forward.6']
  %s0 = inlined_call_operand.vmem [shape: bf16[2,256,32], index: 0, kind: input, shape index: {}]
  %s1 = inlined_call_operand.vmem [shape: bf16[32,32], index: 1, kind: input, shape index: {}]
  %s2 = inlined_call_operand.vmem [shape: f32[1,32], index: 2, kind: input, shape index: {}]
  %s3 = inlined_call_operand.vmem [shape: f32[1,32], index: 3, kind: input, shape index: {}]
  %s4 = inlined_call_operand.vmem [shape: bf16[3,32,32], index: 4, kind: input, shape index: {}]
  %s5 = inlined_call_operand.vmem [shape: f32[1,32], index: 5, kind: input, shape index: {}]
  %s6 = inlined_call_operand.vmem [shape: f32[1,32], index: 6, kind: input, shape index: {}]
  %s7 = inlined_call_operand.vmem [shape: f32[1,32], index: 7, kind: input, shape index: {}]
  %s8 = inlined_call_operand.vmem [shape: bf16[3,32,32], index: 8, kind: input, shape index: {}]
  %s9 = inlined_call_operand.vmem [shape: f32[1,32], index: 9, kind: input, shape index: {}]
  %s10 = inlined_call_operand.<no memory space> [shape: f32[1], index: 10, kind: input, shape index: {}]
  %s11 = inlined_call_operand.vmem [shape: bf16[2,256,32], index: 11, kind: output, shape index: {}]
  %s12 = sld [smem:[#allocation0]]
  $region77: #{mid_block_temporal_decoder_forward.6} parent=0
    _
  %s14 = ssub.s32 1, %s12
  %s15 = scalar_select 0, %s14, %s12
  %16 = sst [smem:[#allocation2]] %s10
  loop: start=0, step=1, limit=4
  $region2: #{mid_block_temporal_decoder_forward.6} parent=0 // loop_pre_header
    _
  $region3: #{mid_block_temporal_decoder_forward.6} parent=0 // loop_header
    %s18 = sphi 0, %s22
    %p19 = scmp.ge.s32.totalorder %s18, 4
    %s28 = sphi 0, %s30
    %s31 = sphi 0, %s28
    %s32 = sphi 0, %s31
    %s48 = sphi 0, %s32
    %s52 = sphi 0, %s52
    %s54 = sphi 0, %s52
    %s55 = sphi 0, %s54
    %s69 = sphi 0, %s55
    %s73 = sphi 0, %s73
    %s75 = sphi 0, %s73
    %s76 = sphi 0, %s75
    %s90 = sphi 0, %s76
    %s94 = sphi 0, %s94
    %s96 = sphi 0, %s94
    %s97 = sphi 0, %s96
    %s111 = sphi 0, %s97
    %s115 = sphi 0, %s115
    %s117 = sphi 0, %s115
    %s118 = sphi 0, %s117
    %s132 = sphi 0, %s118
    %s136 = sphi 0, %s136
    %s138 = sphi 0, %s136
    %s139 = sphi 0, %s138
    %s153 = sphi 0, %s139
    %s157 = sphi 0, %s157
    %s159 = sphi 0, %s157
    %s160 = sphi 0, %s159
    %s174 = sphi 0, %s160
    %s178 = sphi 0, %s178
    %s180 = sphi 0, %s178
    %s181 = sphi 0, %s180
    %s195 = sphi 0, %s181
    %s199 = sphi 0, %s199
    %s201 = sphi 0, %s199
    %s202 = sphi 0, %s201
    %s216 = sphi 0, %s202
    %s220 = sphi 0, %s220
    %s222 = sphi 0, %s220
    %s223 = sphi 0, %s222
    %s237 = sphi 0, %s223
    %s241 = sphi 0, %s241
    %s243 = sphi 0, %s241
    %s244 = sphi 0, %s243
    %s258 = sphi 0, %s244
    %s264 = sphi 0, %s266
    %s267 = sphi 0, %s264
    %s268 = sphi 0, %s267
    %s284 = sphi 0, %s268
  $region4: #{mid_block_temporal_decoder_forward.6} parent=0 // loop_header_branch
    %21 = sbr.rel (%p19) target = $region8
  $region5: #{mid_block_temporal_decoder_forward.6} parent=0 // loop_body
    %s23 = ssub.s32 %s18, 1
    %s24 = ssub.s32 %s18, 2
    %s25 = sadd.s32 %s18, 1
    %s26 = ssub.s32 %s18, %s25
    %p27 = scmp.eq.s32.totalorder %s26, 0
    %s29 = sadd.s32 %s28, 1
    %s30 = scalar_select %p27, %s28, %s29
    %p33 = pneg %p27
    %p34 = scmp.eq.s32.totalorder %s18, 1
    %p35 = por %p33, %p34
    %p36 = scmp.ne.s32.totalorder %s28, %s31
    %p37 = scmp.eq.s32.totalorder %s18, 0
    %p38 = por %p36, %p37
    %p39 = scmp.ne.s32.totalorder %s28, %s31
    %p40 = scmp.eq.s32.totalorder %s23, 1
    %p41 = por %p39, %p40
    %p42 = scmp.ne.s32.totalorder %s31, %s32
    %p43 = scmp.eq.s32.totalorder %s23, 0
    %p44 = por %p42, %p43
    %p45 = scmp.ne.s32.totalorder %s31, %s32
    %p46 = scmp.eq.s32.totalorder %s24, 1
    %p47 = por %p45, %p46
    %p49 = scmp.ne.s32.totalorder %s32, %s48
    %p50 = scmp.eq.s32.totalorder %s24, 0
    %p51 = por %p49, %p50
    %s53 = sadd.s32 %s52, 1
    %p56 = scmp.eq.s32.totalorder %s18, 1
    %p57 = scmp.ne.s32.totalorder %s52, %s54
    %p58 = scmp.eq.s32.totalorder %s18, 0
    %p59 = por %p57, %p58
    %p60 = scmp.ne.s32.totalorder %s52, %s54
    %p61 = scmp.eq.s32.totalorder %s23, 1
    %p62 = por %p60, %p61
    %p63 = scmp.ne.s32.totalorder %s54, %s55
    %p64 = scmp.eq.s32.totalorder %s23, 0
    %p65 = por %p63, %p64
    %p66 = scmp.ne.s32.totalorder %s54, %s55
    %p67 = scmp.eq.s32.totalorder %s24, 1
    %p68 = por %p66, %p67
    %p70 = scmp.ne.s32.totalorder %s55, %s69
    %p71 = scmp.eq.s32.totalorder %s24, 0
    %p72 = por %p70, %p71
    %s74 = sadd.s32 %s73, 1
    %p77 = scmp.eq.s32.totalorder %s18, 1
    %p78 = scmp.ne.s32.totalorder %s73, %s75
    %p79 = scmp.eq.s32.totalorder %s18, 0
    %p80 = por %p78, %p79
    %p81 = scmp.ne.s32.totalorder %s73, %s75
    %p82 = scmp.eq.s32.totalorder %s23, 1
    %p83 = por %p81, %p82
    %p84 = scmp.ne.s32.totalorder %s75, %s76
    %p85 = scmp.eq.s32.totalorder %s23, 0
    %p86 = por %p84, %p85
    %p87 = scmp.ne.s32.totalorder %s75, %s76
    %p88 = scmp.eq.s32.totalorder %s24, 1
    %p89 = por %p87, %p88
    %p91 = scmp.ne.s32.totalorder %s76, %s90
    %p92 = scmp.eq.s32.totalorder %s24, 0
    %p93 = por %p91, %p92
    %s95 = sadd.s32 %s94, 1
    %p98 = scmp.eq.s32.totalorder %s18, 1
    %p99 = scmp.ne.s32.totalorder %s94, %s96
    %p100 = scmp.eq.s32.totalorder %s18, 0
    %p101 = por %p99, %p100
    %p102 = scmp.ne.s32.totalorder %s94, %s96
    %p103 = scmp.eq.s32.totalorder %s23, 1
    %p104 = por %p102, %p103
    %p105 = scmp.ne.s32.totalorder %s96, %s97
    %p106 = scmp.eq.s32.totalorder %s23, 0
    %p107 = por %p105, %p106
    %p108 = scmp.ne.s32.totalorder %s96, %s97
    %p109 = scmp.eq.s32.totalorder %s24, 1
    %p110 = por %p108, %p109
    %p112 = scmp.ne.s32.totalorder %s97, %s111
    %p113 = scmp.eq.s32.totalorder %s24, 0
    %p114 = por %p112, %p113
    %s116 = sadd.s32 %s115, 1
    %p119 = scmp.eq.s32.totalorder %s18, 1
    %p120 = scmp.ne.s32.totalorder %s115, %s117
    %p121 = scmp.eq.s32.totalorder %s18, 0
    %p122 = por %p120, %p121
    %p123 = scmp.ne.s32.totalorder %s115, %s117
    %p124 = scmp.eq.s32.totalorder %s23, 1
    %p125 = por %p123, %p124
    %p126 = scmp.ne.s32.totalorder %s117, %s118
    %p127 = scmp.eq.s32.totalorder %s23, 0
    %p128 = por %p126, %p127
    %p129 = scmp.ne.s32.totalorder %s117, %s118
    %p130 = scmp.eq.s32.totalorder %s24, 1
    %p131 = por %p129, %p130
    %p133 = scmp.ne.s32.totalorder %s118, %s132
    %p134 = scmp.eq.s32.totalorder %s24, 0
    %p135 = por %p133, %p134
    %s137 = sadd.s32 %s136, 1
    %p140 = scmp.eq.s32.totalorder %s18, 1
    %p141 = scmp.ne.s32.totalorder %s136, %s138
    %p142 = scmp.eq.s32.totalorder %s18, 0
    %p143 = por %p141, %p142
    %p144 = scmp.ne.s32.totalorder %s136, %s138
    %p145 = scmp.eq.s32.totalorder %s23, 1
    %p146 = por %p144, %p145
    %p147 = scmp.ne.s32.totalorder %s138, %s139
    %p148 = scmp.eq.s32.totalorder %s23, 0
    %p149 = por %p147, %p148
    %p150 = scmp.ne.s32.totalorder %s138, %s139
    %p151 = scmp.eq.s32.totalorder %s24, 1
    %p152 = por %p150, %p151
    %p154 = scmp.ne.s32.totalorder %s139, %s153
    %p155 = scmp.eq.s32.totalorder %s24, 0
    %p156 = por %p154, %p155
    %s158 = sadd.s32 %s157, 1
    %p161 = scmp.eq.s32.totalorder %s18, 1
    %p162 = scmp.ne.s32.totalorder %s157, %s159
    %p163 = scmp.eq.s32.totalorder %s18, 0
    %p164 = por %p162, %p163
    %p165 = scmp.ne.s32.totalorder %s157, %s159
    %p166 = scmp.eq.s32.totalorder %s23, 1
    %p167 = por %p165, %p166
    %p168 = scmp.ne.s32.totalorder %s159, %s160
    %p169 = scmp.eq.s32.totalorder %s23, 0
    %p170 = por %p168, %p169
    %p171 = scmp.ne.s32.totalorder %s159, %s160
    %p172 = scmp.eq.s32.totalorder %s24, 1
    %p173 = por %p171, %p172
    %p175 = scmp.ne.s32.totalorder %s160, %s174
    %p176 = scmp.eq.s32.totalorder %s24, 0
    %p177 = por %p175, %p176
    %s179 = sadd.s32 %s178, 1
    %p182 = scmp.eq.s32.totalorder %s18, 1
    %p183 = scmp.ne.s32.totalorder %s178, %s180
    %p184 = scmp.eq.s32.totalorder %s18, 0
    %p185 = por %p183, %p184
    %p186 = scmp.ne.s32.totalorder %s178, %s180
    %p187 = scmp.eq.s32.totalorder %s23, 1
    %p188 = por %p186, %p187
    %p189 = scmp.ne.s32.totalorder %s180, %s181
    %p190 = scmp.eq.s32.totalorder %s23, 0
    %p191 = por %p189, %p190
    %p192 = scmp.ne.s32.totalorder %s180, %s181
    %p193 = scmp.eq.s32.totalorder %s24, 1
    %p194 = por %p192, %p193
    %p196 = scmp.ne.s32.totalorder %s181, %s195
    %p197 = scmp.eq.s32.totalorder %s24, 0
    %p198 = por %p196, %p197
    %s200 = sadd.s32 %s199, 1
    %p203 = scmp.eq.s32.totalorder %s18, 1
    %p204 = scmp.ne.s32.totalorder %s199, %s201
    %p205 = scmp.eq.s32.totalorder %s18, 0
    %p206 = por %p204, %p205
    %p207 = scmp.ne.s32.totalorder %s199, %s201
    %p208 = scmp.eq.s32.totalorder %s23, 1
    %p209 = por %p207, %p208
    %p210 = scmp.ne.s32.totalorder %s201, %s202
    %p211 = scmp.eq.s32.totalorder %s23, 0
    %p212 = por %p210, %p211
    %p213 = scmp.ne.s32.totalorder %s201, %s202
    %p214 = scmp.eq.s32.totalorder %s24, 1
    %p215 = por %p213, %p214
    %p217 = scmp.ne.s32.totalorder %s202, %s216
    %p218 = scmp.eq.s32.totalorder %s24, 0
    %p219 = por %p217, %p218
    %s221 = sadd.s32 %s220, 1
    %p224 = scmp.eq.s32.totalorder %s18, 1
    %p225 = scmp.ne.s32.totalorder %s220, %s222
    %p226 = scmp.eq.s32.totalorder %s18, 0
    %p227 = por %p225, %p226
    %p228 = scmp.ne.s32.totalorder %s220, %s222
    %p229 = scmp.eq.s32.totalorder %s23, 1
    %p230 = por %p228, %p229
    %p231 = scmp.ne.s32.totalorder %s222, %s223
    %p232 = scmp.eq.s32.totalorder %s23, 0
    %p233 = por %p231, %p232
    %p234 = scmp.ne.s32.totalorder %s222, %s223
    %p235 = scmp.eq.s32.totalorder %s24, 1
    %p236 = por %p234, %p235
    %p238 = scmp.ne.s32.totalorder %s223, %s237
    %p239 = scmp.eq.s32.totalorder %s24, 0
    %p240 = por %p238, %p239
    %s242 = sadd.s32 %s241, 1
    %p245 = scmp.eq.s32.totalorder %s18, 1
    %p246 = scmp.ne.s32.totalorder %s241, %s243
    %p247 = scmp.eq.s32.totalorder %s18, 0
    %p248 = por %p246, %p247
    %p249 = scmp.ne.s32.totalorder %s241, %s243
    %p250 = scmp.eq.s32.totalorder %s23, 1
    %p251 = por %p249, %p250
    %p252 = scmp.ne.s32.totalorder %s243, %s244
    %p253 = scmp.eq.s32.totalorder %s23, 0
    %p254 = por %p252, %p253
    %p255 = scmp.ne.s32.totalorder %s243, %s244
    %p256 = scmp.eq.s32.totalorder %s24, 1
    %p257 = por %p255, %p256
    %p259 = scmp.ne.s32.totalorder %s244, %s258
    %p260 = scmp.eq.s32.totalorder %s24, 0
    %p261 = por %p259, %p260
    %s262 = ssub.s32 %s18, %s25
    %p263 = scmp.eq.s32.totalorder %s262, 0
    %s265 = sadd.s32 %s264, 1
    %s266 = scalar_select %p263, %s264, %s265
    %p269 = pneg %p263
    %p270 = scmp.eq.s32.totalorder %s18, 1
    %p271 = por %p269, %p270
    %p272 = scmp.ne.s32.totalorder %s264, %s267
    %p273 = scmp.eq.s32.totalorder %s18, 0
    %p274 = por %p272, %p273
    %p275 = scmp.ne.s32.totalorder %s264, %s267
    %p276 = scmp.eq.s32.totalorder %s23, 1
    %p277 = por %p275, %p276
    %p278 = scmp.ne.s32.totalorder %s267, %s268
    %p279 = scmp.eq.s32.totalorder %s23, 0
    %p280 = por %p278, %p279
    %p281 = scmp.ne.s32.totalorder %s267, %s268
    %p282 = scmp.eq.s32.totalorder %s24, 1
    %p283 = por %p281, %p282
    %p285 = scmp.ne.s32.totalorder %s268, %s284
    %p286 = scmp.eq.s32.totalorder %s24, 0
    %p287 = por %p285, %p286
    %p288 = scmp.le.s32.totalorder 1, %s18
    %p289 = scmp.lt.s32.totalorder %s18, 3
    %p290 = pnand %p288, %p289
    %p291 = pneg %p290
    // Predicated region
    $region9: #{mid_block_temporal_decoder_forward.6} parent=5 // pred_check
      _
    $region10: #{mid_block_temporal_decoder_forward.6} parent=5 // pred_check_branch
      %293 = sbr.rel (%p290) target = $region12
    $region11: #{mid_block_temporal_decoder_forward.6} parent=5 // pred_region
      %s294 = ssub.s32 %s18, 1
      // Predicated region
      $region13: #{mid_block_temporal_decoder_forward.6} parent=11 // pred_check
        %p295 = pneg %p65
      $region14: #{mid_block_temporal_decoder_forward.6} parent=11 // pred_check_branch
        %297 = sbr.rel (%p295) target = $region16
      $region15: #{mid_block_temporal_decoder_forward.6} parent=11 // pred_region
        _
      $region16: #{mid_block_temporal_decoder_forward.6} parent=11 // pred_fallthru
        _
      // Predicated region
      $region17: #{mid_block_temporal_decoder_forward.6} parent=11 // pred_check
        %p298 = pneg %p86
      $region18: #{mid_block_temporal_decoder_forward.6} parent=11 // pred_check_branch
        %300 = sbr.rel (%p298) target = $region20
      $region19: #{mid_block_temporal_decoder_forward.6} parent=11 // pred_region
        _
      $region20: #{mid_block_temporal_decoder_forward.6} parent=11 // pred_fallthru
        _
      // Predicated region
      $region21: #{mid_block_temporal_decoder_forward.6} parent=11 // pred_check
        %p301 = pneg %p107
      $region22: #{mid_block_temporal_decoder_forward.6} parent=11 // pred_check_branch
        %303 = sbr.rel (%p301) target = $region24
      $region23: #{mid_block_temporal_decoder_forward.6} parent=11 // pred_region
        _
      $region24: #{mid_block_temporal_decoder_forward.6} parent=11 // pred_fallthru
        _
      // Predicated region
      $region25: #{mid_block_temporal_decoder_forward.6} parent=11 // pred_check
        %p304 = pneg %p128
      $region26: #{mid_block_temporal_decoder_forward.6} parent=11 // pred_check_branch
        %306 = sbr.rel (%p304) target = $region28
      $region27: #{mid_block_temporal_decoder_forward.6} parent=11 // pred_region
        _
      $region28: #{mid_block_temporal_decoder_forward.6} parent=11 // pred_fallthru
        _
      // Predicated region
      $region29: #{mid_block_temporal_decoder_forward.6} parent=11 // pred_check
        %p307 = pneg %p149
      $region30: #{mid_block_temporal_decoder_forward.6} parent=11 // pred_check_branch
        %309 = sbr.rel (%p307) target = $region32
      $region31: #{mid_block_temporal_decoder_forward.6} parent=11 // pred_region
        _
      $region32: #{mid_block_temporal_decoder_forward.6} parent=11 // pred_fallthru
        _
      // Predicated region
      $region33: #{mid_block_temporal_decoder_forward.6} parent=11 // pred_check
        %p310 = pneg %p170
      $region34: #{mid_block_temporal_decoder_forward.6} parent=11 // pred_check_branch
        %312 = sbr.rel (%p310) target = $region36
      $region35: #{mid_block_temporal_decoder_forward.6} parent=11 // pred_region
        _
      $region36: #{mid_block_temporal_decoder_forward.6} parent=11 // pred_fallthru
        _
      // Predicated region
      $region37: #{mid_block_temporal_decoder_forward.6} parent=11 // pred_check
        %p313 = pneg %p191
      $region38: #{mid_block_temporal_decoder_forward.6} parent=11 // pred_check_branch
        %315 = sbr.rel (%p313) target = $region40
      $region39: #{mid_block_temporal_decoder_forward.6} parent=11 // pred_region
        _
      $region40: #{mid_block_temporal_decoder_forward.6} parent=11 // pred_fallthru
        _
      // Predicated region
      $region41: #{mid_block_temporal_decoder_forward.6} parent=11 // pred_check
        %p316 = pneg %p212
      $region42: #{mid_block_temporal_decoder_forward.6} parent=11 // pred_check_branch
        %318 = sbr.rel (%p316) target = $region44
      $region43: #{mid_block_temporal_decoder_forward.6} parent=11 // pred_region
        _
      $region44: #{mid_block_temporal_decoder_forward.6} parent=11 // pred_fallthru
        _
      // Predicated region
      $region45: #{mid_block_temporal_decoder_forward.6} parent=11 // pred_check
        %p319 = pneg %p233
      $region46: #{mid_block_temporal_decoder_forward.6} parent=11 // pred_check_branch
        %321 = sbr.rel (%p319) target = $region48
      $region47: #{mid_block_temporal_decoder_forward.6} parent=11 // pred_region
        _
      $region48: #{mid_block_temporal_decoder_forward.6} parent=11 // pred_fallthru
        _
      // Predicated region
      $region49: #{mid_block_temporal_decoder_forward.6} parent=11 // pred_check
        %p322 = pneg %p254
      $region50: #{mid_block_temporal_decoder_forward.6} parent=11 // pred_check_branch
        %324 = sbr.rel (%p322) target = $region52
      $region51: #{mid_block_temporal_decoder_forward.6} parent=11 // pred_region
        _
      $region52: #{mid_block_temporal_decoder_forward.6} parent=11 // pred_fallthru
        _
    $region12: #{mid_block_temporal_decoder_forward.6} parent=5 // pred_fallthru
      _
    %p325 = scmp.lt.s32.totalorder %s18, 2
    // Predicated region
    $region53: #{mid_block_temporal_decoder_forward.6} parent=5 // pred_check
      %p326 = pneg %p325
    $region54: #{mid_block_temporal_decoder_forward.6} parent=5 // pred_check_branch
      %328 = sbr.rel (%p326) target = $region56
    $region55: #{mid_block_temporal_decoder_forward.6} parent=5 // pred_region
      // Predicated region
      $region57: #{mid_block_temporal_decoder_forward.6} parent=55 // pred_check
        %p329 = pneg %p38
      $region58: #{mid_block_temporal_decoder_forward.6} parent=55 // pred_check_branch
        %331 = sbr.rel (%p329) target = $region60
      $region59: #{mid_block_temporal_decoder_forward.6} parent=55 // pred_region
        %p332 = scmp.lt.s32.totalorder %s18, 1
        %s333 = scalar_select %p332, %s18, 1
        %s334 = smul.addr %s333, 32
        %s335 = smul.addr %s334, 4
        %s336 = scalar_lea.vmem %s0, %s335
      $region60: #{mid_block_temporal_decoder_forward.6} parent=55 // pred_fallthru
        _
    $region56: #{mid_block_temporal_decoder_forward.6} parent=5 // pred_fallthru
      _
    %p337 = scmp.le.s32.totalorder 1, %s18
    %p338 = scmp.lt.s32.totalorder %s18, 3
    %p339 = pnand %p337, %p338
    %p340 = pneg %p339
    // Predicated region
    $region61: #{mid_block_temporal_decoder_forward.6} parent=5 // pred_check
      _
    $region62: #{mid_block_temporal_decoder_forward.6} parent=5 // pred_check_branch
      %342 = sbr.rel (%p339) target = $region64
    $region63: #{mid_block_temporal_decoder_forward.6} parent=5 // pred_region
      %s343 = ssub.s32 %s18, 1
      %p344 = scmp.lt.s32.totalorder %s23, 1
      %s345 = scalar_select %p344, %s23, 1
      %s346 = smul.addr %s345, 32
      %s347 = smul.addr %s346, 4
      %s348 = scalar_lea.vmem %s0, %s347
      %p349 = pneg %p44
      %p350 = pneg %p41
      %p351 = pneg %p65
      %p352 = pneg %p62
      %p353 = pneg %p86
      %p354 = pneg %p83
      %p355 = pneg %p107
      %p356 = pneg %p104
      %p357 = pneg %p128
      %p358 = pneg %p125
      %p359 = pneg %p149
      %p360 = pneg %p146
      %p361 = pneg %p170
      %p362 = pneg %p167
      %p363 = pneg %p191
      %p364 = pneg %p188
      %p365 = pneg %p212
      %p366 = pneg %p209
      %p367 = pneg %p233
      %p368 = pneg %p230
      %p369 = pneg %p254
      %p370 = pneg %p251
      %p371 = pneg %p280
      %p372 = pneg %p277
      %p373 = scmp.lt.s32.totalorder %s23, 1
      %s374 = scalar_select %p373, %s23, 1
      %s375 = smul.addr %s374, 32
      %s376 = smul.addr %s375, 4
      %s377 = scalar_lea.vmem %s11, %s376
      %p378 = scmp.lt.s32.totalorder %s23, 1
      %s379 = scalar_select %p378, %s23, 1
      %s380 = smul.addr %s379, 32
      %s381 = smul.addr %s380, 4
      %s382 = scalar_lea.vmem %s0, %s381
      %p383 = scmp.lt.s32.totalorder %s23, 1
      %s384 = scalar_select %p383, %s23, 1
      %s385 = smul.addr %s384, 32
      %s386 = smul.addr %s385, 4
      %s387 = scalar_lea.vmem %s11, %s386
      %v389 = vld [vmem:[%s382] sm:$0xf]
      %v390 = vld [vmem:[%s382 + $0x4] sm:$0xf]
      %v391 = vld [vmem:[%s382 + $0x8] sm:$0xf]
      %v392 = vld [vmem:[%s382 + $0xc] sm:$0xf]
      %v393 = vld [vmem:[%s382 + $0x10] sm:$0xf]
      %v394 = vld [vmem:[%s382 + $0x14] sm:$0xf]
      %v395 = vld [vmem:[%s382 + $0x18] sm:$0xf]
      %v396 = vld [vmem:[%s382 + $0x1c] sm:$0xf]
      %v397 = vld [vmem:[%s382 + $0x20] sm:$0xf]
      %v398 = vld [vmem:[%s382 + $0x24] sm:$0xf]
      %v399 = vld [vmem:[%s382 + $0x28] sm:$0xf]
      %v400 = vld [vmem:[%s382 + $0x2c] sm:$0xf]
      %v401 = vld [vmem:[%s382 + $0x30] sm:$0xf]
      %v402 = vld [vmem:[%s382 + $0x34] sm:$0xf]
      %v403 = vld [vmem:[%s382 + $0x38] sm:$0xf]
      %v404 = vld [vmem:[%s382 + $0x3c] sm:$0xf]
      %v405 = vld [vmem:[%s382 + $0x40] sm:$0xf]
      %v406 = vld [vmem:[%s382 + $0x44] sm:$0xf]
      %v407 = vld [vmem:[%s382 + $0x48] sm:$0xf]
      %v408 = vld [vmem:[%s382 + $0x4c] sm:$0xf]
      %v409 = vld [vmem:[%s382 + $0x50] sm:$0xf]
      %v410 = vld [vmem:[%s382 + $0x54] sm:$0xf]
      %v411 = vld [vmem:[%s382 + $0x58] sm:$0xf]
      %v412 = vld [vmem:[%s382 + $0x5c] sm:$0xf]
      %v413 = vld [vmem:[%s382 + $0x60] sm:$0xf]
      %v414 = vld [vmem:[%s382 + $0x64] sm:$0xf]
      %v415 = vld [vmem:[%s382 + $0x68] sm:$0xf]
      %v416 = vld [vmem:[%s382 + $0x6c] sm:$0xf]
      %v417 = vld [vmem:[%s382 + $0x70] sm:$0xf]
      %v418 = vld [vmem:[%s382 + $0x74] sm:$0xf]
      %v419 = vld [vmem:[%s382 + $0x78] sm:$0xf]
      %v420 = vld [vmem:[%s382 + $0x7c] sm:$0xf]
      %v421 = vunpack.c.l.bf16 %v389
      %v422 = vunpack.c.l.bf16 %v390
      %v423 = vunpack.c.l.bf16 %v391
      %v424 = vunpack.c.l.bf16 %v392
      %v425 = vunpack.c.l.bf16 %v393
      %v426 = vunpack.c.l.bf16 %v394
      %v427 = vunpack.c.l.bf16 %v395
      %v428 = vunpack.c.l.bf16 %v396
      %v429 = vunpack.c.l.bf16 %v397
      %v430 = vunpack.c.l.bf16 %v398
      %v431 = vunpack.c.l.bf16 %v399
      %v432 = vunpack.c.l.bf16 %v400
      %v433 = vunpack.c.l.bf16 %v401
      %v434 = vunpack.c.l.bf16 %v402
      %v435 = vunpack.c.l.bf16 %v403
      %v436 = vunpack.c.l.bf16 %v404
      %v437 = vunpack.c.l.bf16 %v405
      %v438 = vunpack.c.l.bf16 %v406
      %v439 = vunpack.c.l.bf16 %v407
      %v440 = vunpack.c.l.bf16 %v408
      %v441 = vunpack.c.l.bf16 %v409
      %v442 = vunpack.c.l.bf16 %v410
      %v443 = vunpack.c.l.bf16 %v411
      %v444 = vunpack.c.l.bf16 %v412
      %v445 = vunpack.c.l.bf16 %v413
      %v446 = vunpack.c.l.bf16 %v414
      %v447 = vunpack.c.l.bf16 %v415
      %v448 = vunpack.c.l.bf16 %v416
      %v449 = vunpack.c.l.bf16 %v417
      %v450 = vunpack.c.l.bf16 %v418
      %v451 = vunpack.c.l.bf16 %v419
      %v452 = vunpack.c.l.bf16 %v420
      %v453 = vld [vmem:[%s1] sm:$0xf]
      %v454 = vld [vmem:[%s1 + $0x4] sm:$0xf]
      %v455 = vld [vmem:[%s1 + $0x8] sm:$0xf]
      %v456 = vld [vmem:[%s1 + $0xc] sm:$0xf]
      %v457 = vunpack.c.l.bf16 %v453
      %v458 = vunpack.c.l.bf16 %v454
      %v459 = vunpack.c.l.bf16 %v455
      %v460 = vunpack.c.l.bf16 %v456
      %v461 = vld [vmem:[%s2] sm:$0x1]
      %v462 = vld [vmem:[%s3] sm:$0x1]
      %vm463 = vcmask 261120
      %v464 = vsel %vm463, %v421, 0.0
      %v465 = vsel %vm463, %v422, 0.0
      %v466 = vadd.f32 %v464, %v465
      %v467 = vsel %vm463, %v423, 0.0
      %v468 = vadd.f32 %v466, %v467
      %v469 = vsel %vm463, %v424, 0.0
      %v470 = vadd.f32 %v468, %v469
      %v471 = vsel %vm463, %v425, 0.0
      %v472 = vadd.f32 %v470, %v471
      %v473 = vsel %vm463, %v426, 0.0
      %v474 = vadd.f32 %v472, %v473
      %v475 = vsel %vm463, %v427, 0.0
      %v476 = vadd.f32 %v474, %v475
      %v477 = vsel %vm463, %v428, 0.0
      %v478 = vadd.f32 %v476, %v477
      %v479 = vsel %vm463, %v429, 0.0
      %v480 = vadd.f32 %v478, %v479
      %v481 = vsel %vm463, %v430, 0.0
      %v482 = vadd.f32 %v480, %v481
      %v483 = vsel %vm463, %v431, 0.0
      %v484 = vadd.f32 %v482, %v483
      %v485 = vsel %vm463, %v432, 0.0
      %v486 = vadd.f32 %v484, %v485
      %v487 = vsel %vm463, %v433, 0.0
      %v488 = vadd.f32 %v486, %v487
      %v489 = vsel %vm463, %v434, 0.0
      %v490 = vadd.f32 %v488, %v489
      %v491 = vsel %vm463, %v435, 0.0
      %v492 = vadd.f32 %v490, %v491
      %v493 = vsel %vm463, %v436, 0.0
      %v494 = vadd.f32 %v492, %v493
      %v495 = vsel %vm463, %v437, 0.0
      %v496 = vadd.f32 %v494, %v495
      %v497 = vsel %vm463, %v438, 0.0
      %v498 = vadd.f32 %v496, %v497
      %v499 = vsel %vm463, %v439, 0.0
      %v500 = vadd.f32 %v498, %v499
      %v501 = vsel %vm463, %v440, 0.0
      %v502 = vadd.f32 %v500, %v501
      %v503 = vsel %vm463, %v441, 0.0
      %v504 = vadd.f32 %v502, %v503
      %v505 = vsel %vm463, %v442, 0.0
      %v506 = vadd.f32 %v504, %v505
      %v507 = vsel %vm463, %v443, 0.0
      %v508 = vadd.f32 %v506, %v507
      %v509 = vsel %vm463, %v444, 0.0
      %v510 = vadd.f32 %v508, %v509
      %v511 = vsel %vm463, %v445, 0.0
      %v512 = vadd.f32 %v510, %v511
      %v513 = vsel %vm463, %v446, 0.0
      %v514 = vadd.f32 %v512, %v513
      %v515 = vsel %vm463, %v447, 0.0
      %v516 = vadd.f32 %v514, %v515
      %v517 = vsel %vm463, %v448, 0.0
      %v518 = vadd.f32 %v516, %v517
      %v519 = vsel %vm463, %v449, 0.0
      %v520 = vadd.f32 %v518, %v519
      %v521 = vsel %vm463, %v450, 0.0
      %v522 = vadd.f32 %v520, %v521
      %v523 = vsel %vm463, %v451, 0.0
      %v524 = vadd.f32 %v522, %v523
      %v525 = vsel %vm463, %v452, 0.0
      %v526 = vadd.f32 %v524, %v525
      %v527 = vrot.slane %v526, 4
      %v528 = vadd.f32 %v526, %v527
      %v529 = vrot.slane %v528, 2
      %v530 = vadd.f32 %v528, %v529
      %v531 = vrot.slane %v530, 1
      %v532 = vadd.f32 %v530, %v531
      %v534 = vsel %vm463, %v532, 0
      %536 = vmatprep.subr.mxu0 0.0
      %537 = vmatpush1.msra.mxu0 %v457
      %538 = vmatprep.subr.mxu0 0.0
      %539 = vmatpush1.msra.mxu0 %v458
      %540 = vmatprep.subr.mxu0 0.0
      %541 = vmatpush1.msra.mxu0 %v459
      %542 = vmatprep.subr.mxu0 0.0
      %543 = vmatpush1.msra.mxu0 %v460
      %544 = vmatprep.subr.mxu0 0.0
      %545 = vmatpush1.msra.mxu0 0.0
      %546 = vmatprep.subr.mxu0 0.0
      %547 = vmatpush1.msra.mxu0 0.0
      %548 = vmatprep.subr.mxu0 0.0
      %549 = vmatpush1.msra.mxu0 0.0
      %550 = vmatprep.subr.mxu0 0.0
      %551 = vmatpush1.msra.mxu0 0.0
      %552 = vmatprep.subr.mxu0 0.0
      %553 = vmatpush1.msra.mxu0 0.0
      %554 = vmatprep.subr.mxu0 0.0
      %555 = vmatpush1.msra.mxu0 0.0
      %556 = vmatprep.subr.mxu0 0.0
      %557 = vmatpush1.msra.mxu0 0.0
      %558 = vmatprep.subr.mxu0 0.0
      %559 = vmatpush1.msra.mxu0 0.0
      %560 = vmatprep.subr.mxu0 0.0
      %561 = vmatpush1.msra.mxu0 0.0
      %562 = vmatprep.subr.mxu0 0.0
      %563 = vmatpush1.msra.mxu0 0.0
      %564 = vmatprep.subr.mxu0 0.0
      %565 = vmatpush1.msra.mxu0 0.0
      %566 = vmatprep.subr.mxu0 0.0
      %567 = vmatpush1.msra.mxu0 0.0
      %568 = vmatprep.subr.mxu0 0.0
      %569 = vmatpush1.msra.mxu0 0.0
      %570 = vmatprep.subr.mxu0 0.0
      %571 = vmatpush1.msra.mxu0 0.0
      %572 = vmatprep.subr.mxu0 0.0
      %573 = vmatpush1.msra.mxu0 0.0
      %574 = vmatprep.subr.mxu0 0.0
      %575 = vmatpush1.msra.mxu0 0.0
      %576 = vmatprep.subr.mxu0 0.0
      %577 = vmatpush1.msra.mxu0 0.0
      %578 = vmatprep.subr.mxu0 0.0
      %579 = vmatpush1.msra.mxu0 0.0
      %580 = vmatprep.subr.mxu0 0.0
      %581 = vmatpush1.msra.mxu0 0.0
      %582 = vmatprep.subr.mxu0 0.0
      %583 = vmatpush1.msra.mxu0 0.0
      %584 = vmatprep.subr.mxu0 0.0
      %585 = vmatpush1.msra.mxu0 0.0
      %586 = vmatprep.subr.mxu0 0.0
      %587 = vmatpush1.msra.mxu0 0.0
      %588 = vmatprep.subr.mxu0 0.0
      %589 = vmatpush1.msra.mxu0 0.0
      %590 = vmatprep.subr.mxu0 0.0
      %591 = vmatpush1.msra.mxu0 0.0
      %592 = vmatprep.subr.mxu0 0.0
      %593 = vmatpush1.msra.mxu0 0.0
      %594 = vmatprep.subr.mxu0 0.0
      %595 = vmatpush1.msra.mxu0 0.0
      %596 = vmatprep.subr.mxu0 0.0
      %597 = vmatpush1.msra.mxu0 0.0
      %598 = vmatprep.subr.mxu0 0.0
      %599 = vmatpush1.msra.mxu0 0.0
      %600 = vmatprep.mubr.f32.mxu0 0.0
      %601 = vmatmul.mubr.f32.gmra.mrb[0].mxu0 %v534
      %v602 = vpop.f32.mrb[0].mxu0
      %v603 = vadd.f32 0.0, %v602
      %v604 = vpop.f32.mrb[0].mxu0
      %605 = vdwg.mxu0
      %v606 = vmul.f32 %v603, 0.00390625
      %v607 = vlaneseq
      %v608 = vshrl.u32 %v607, 7
      %v609 = vsub.s32 0, %v608
      %v610 = vrot.slane %v606, %v609
      %v611 = vsub.f32 %v421, %v610
      %v612 = vsub.f32 %v422, %v610
      %v613 = vsub.f32 %v423, %v610
      %v614 = vsub.f32 %v424, %v610
      %v615 = vsub.f32 %v425, %v610
      %v616 = vsub.f32 %v426, %v610
      %v617 = vsub.f32 %v427, %v610
      %v618 = vsub.f32 %v428, %v610
      %v619 = vsub.f32 %v429, %v610
      %v620 = vsub.f32 %v430, %v610
      %v621 = vsub.f32 %v431, %v610
      %v622 = vsub.f32 %v432, %v610
      %v623 = vsub.f32 %v433, %v610
      %v624 = vsub.f32 %v434, %v610
      %v625 = vsub.f32 %v435, %v610
      %v626 = vsub.f32 %v436, %v610
      %v627 = vsub.f32 %v437, %v610
      %v628 = vsub.f32 %v438, %v610
      %v629 = vsub.f32 %v439, %v610
      %v630 = vsub.f32 %v440, %v610
      %v631 = vsub.f32 %v441, %v610
      %v632 = vsub.f32 %v442, %v610
      %v633 = vsub.f32 %v443, %v610
      %v634 = vsub.f32 %v444, %v610
      %v635 = vsub.f32 %v445, %v610
      %v636 = vsub.f32 %v446, %v610
      %v637 = vsub.f32 %v447, %v610
      %v638 = vsub.f32 %v448, %v610
      %v639 = vsub.f32 %v449, %v610
      %v640 = vsub.f32 %v450, %v610
      %v641 = vsub.f32 %v451, %v610
      %v642 = vsub.f32 %v452, %v610
      %v643 = vmul.f32 %v611, %v611
      %v644 = vmul.f32 %v612, %v612
      %v645 = vmul.f32 %v613, %v613
      %v646 = vmul.f32 %v614, %v614
      %v647 = vmul.f32 %v615, %v615
      %v648 = vmul.f32 %v616, %v616
      %v649 = vmul.f32 %v617, %v617
      %v650 = vmul.f32 %v618, %v618
      %v651 = vmul.f32 %v619, %v619
      %v652 = vmul.f32 %v620, %v620
      %v653 = vmul.f32 %v621, %v621
      %v654 = vmul.f32 %v622, %v622
      %v655 = vmul.f32 %v623, %v623
      %v656 = vmul.f32 %v624, %v624
      %v657 = vmul.f32 %v625, %v625
      %v658 = vmul.f32 %v626, %v626
      %v659 = vmul.f32 %v627, %v627
      %v660 = vmul.f32 %v628, %v628
      %v661 = vmul.f32 %v629, %v629
      %v662 = vmul.f32 %v630, %v630
      %v663 = vmul.f32 %v631, %v631
      %v664 = vmul.f32 %v632, %v632
      %v665 = vmul.f32 %v633, %v633
      %v666 = vmul.f32 %v634, %v634
      %v667 = vmul.f32 %v635, %v635
      %v668 = vmul.f32 %v636, %v636
      %v669 = vmul.f32 %v637, %v637
      %v670 = vmul.f32 %v638, %v638
      %v671 = vmul.f32 %v639, %v639
      %v672 = vmul.f32 %v640, %v640
      %v673 = vmul.f32 %v641, %v641
      %v674 = vmul.f32 %v642, %v642
      %v675 = vsel %vm463, %v643, 0.0
      %v676 = vsel %vm463, %v644, 0.0
      %v677 = vadd.f32 %v675, %v676
      %v678 = vsel %vm463, %v645, 0.0
      %v679 = vadd.f32 %v677, %v678
      %v680 = vsel %vm463, %v646, 0.0
      %v681 = vadd.f32 %v679, %v680
      %v682 = vsel %vm463, %v647, 0.0
      %v683 = vadd.f32 %v681, %v682
      %v684 = vsel %vm463, %v648, 0.0
      %v685 = vadd.f32 %v683, %v684
      %v686 = vsel %vm463, %v649, 0.0
      %v687 = vadd.f32 %v685, %v686
      %v688 = vsel %vm463, %v650, 0.0
      %v689 = vadd.f32 %v687, %v688
      %v690 = vsel %vm463, %v651, 0.0
      %v691 = vadd.f32 %v689, %v690
      %v692 = vsel %vm463, %v652, 0.0
      %v693 = vadd.f32 %v691, %v692
      %v694 = vsel %vm463, %v653, 0.0
      %v695 = vadd.f32 %v693, %v694
      %v696 = vsel %vm463, %v654, 0.0
      %v697 = vadd.f32 %v695, %v696
      %v698 = vsel %vm463, %v655, 0.0
      %v699 = vadd.f32 %v697, %v698
      %v700 = vsel %vm463, %v656, 0.0
      %v701 = vadd.f32 %v699, %v700
      %v702 = vsel %vm463, %v657, 0.0
      %v703 = vadd.f32 %v701, %v702
      %v704 = vsel %vm463, %v658, 0.0
      %v705 = vadd.f32 %v703, %v704
      %v706 = vsel %vm463, %v659, 0.0
      %v707 = vadd.f32 %v705, %v706
      %v708 = vsel %vm463, %v660, 0.0
      %v709 = vadd.f32 %v707, %v708
      %v710 = vsel %vm463, %v661, 0.0
      %v711 = vadd.f32 %v709, %v710
      %v712 = vsel %vm463, %v662, 0.0
      %v713 = vadd.f32 %v711, %v712
      %v714 = vsel %vm463, %v663, 0.0
      %v715 = vadd.f32 %v713, %v714
      %v716 = vsel %vm463, %v664, 0.0
      %v717 = vadd.f32 %v715, %v716
      %v718 = vsel %vm463, %v665, 0.0
      %v719 = vadd.f32 %v717, %v718
      %v720 = vsel %vm463, %v666, 0.0
      %v721 = vadd.f32 %v719, %v720
      %v722 = vsel %vm463, %v667, 0.0
      %v723 = vadd.f32 %v721, %v722
      %v724 = vsel %vm463, %v668, 0.0
      %v725 = vadd.f32 %v723, %v724
      %v726 = vsel %vm463, %v669, 0.0
      %v727 = vadd.f32 %v725, %v726
      %v728 = vsel %vm463, %v670, 0.0
      %v729 = vadd.f32 %v727, %v728
      %v730 = vsel %vm463, %v671, 0.0
      %v731 = vadd.f32 %v729, %v730
      %v732 = vsel %vm463, %v672, 0.0
      %v733 = vadd.f32 %v731, %v732
      %v734 = vsel %vm463, %v673, 0.0
      %v735 = vadd.f32 %v733, %v734
      %v736 = vsel %vm463, %v674, 0.0
      %v737 = vadd.f32 %v735, %v736
      %v738 = vrot.slane %v737, 4
      %v739 = vadd.f32 %v737, %v738
      %v740 = vrot.slane %v739, 2
      %v741 = vadd.f32 %v739, %v740
      %v742 = vrot.slane %v741, 1
      %v743 = vadd.f32 %v741, %v742
      %v745 = vsel %vm463, %v743, 0
      %747 = vmatprep.subr.mxu0 0.0
      %748 = vmatpush1.msra.mxu0 %v457
      %749 = vmatprep.subr.mxu0 0.0
      %750 = vmatpush1.msra.mxu0 %v458
      %751 = vmatprep.subr.mxu0 0.0
      %752 = vmatpush1.msra.mxu0 %v459
      %753 = vmatprep.subr.mxu0 0.0
      %754 = vmatpush1.msra.mxu0 %v460
      %755 = vmatprep.subr.mxu0 0.0
      %756 = vmatpush1.msra.mxu0 0.0
      %757 = vmatprep.subr.mxu0 0.0
      %758 = vmatpush1.msra.mxu0 0.0
      %759 = vmatprep.subr.mxu0 0.0
      %760 = vmatpush1.msra.mxu0 0.0
      %761 = vmatprep.subr.mxu0 0.0
      %762 = vmatpush1.msra.mxu0 0.0
      %763 = vmatprep.subr.mxu0 0.0
      %764 = vmatpush1.msra.mxu0 0.0
      %765 = vmatprep.subr.mxu0 0.0
      %766 = vmatpush1.msra.mxu0 0.0
      %767 = vmatprep.subr.mxu0 0.0
      %768 = vmatpush1.msra.mxu0 0.0
      %769 = vmatprep.subr.mxu0 0.0
      %770 = vmatpush1.msra.mxu0 0.0
      %771 = vmatprep.subr.mxu0 0.0
      %772 = vmatpush1.msra.mxu0 0.0
      %773 = vmatprep.subr.mxu0 0.0
      %774 = vmatpush1.msra.mxu0 0.0
      %775 = vmatprep.subr.mxu0 0.0
      %776 = vmatpush1.msra.mxu0 0.0
      %777 = vmatprep.subr.mxu0 0.0
      %778 = vmatpush1.msra.mxu0 0.0
      %779 = vmatprep.subr.mxu0 0.0
      %780 = vmatpush1.msra.mxu0 0.0
      %781 = vmatprep.subr.mxu0 0.0
      %782 = vmatpush1.msra.mxu0 0.0
      %783 = vmatprep.subr.mxu0 0.0
      %784 = vmatpush1.msra.mxu0 0.0
      %785 = vmatprep.subr.mxu0 0.0
      %786 = vmatpush1.msra.mxu0 0.0
      %787 = vmatprep.subr.mxu0 0.0
      %788 = vmatpush1.msra.mxu0 0.0
      %789 = vmatprep.subr.mxu0 0.0
      %790 = vmatpush1.msra.mxu0 0.0
      %791 = vmatprep.subr.mxu0 0.0
      %792 = vmatpush1.msra.mxu0 0.0
      %793 = vmatprep.subr.mxu0 0.0
      %794 = vmatpush1.msra.mxu0 0.0
      %795 = vmatprep.subr.mxu0 0.0
      %796 = vmatpush1.msra.mxu0 0.0
      %797 = vmatprep.subr.mxu0 0.0
      %798 = vmatpush1.msra.mxu0 0.0
      %799 = vmatprep.subr.mxu0 0.0
      %800 = vmatpush1.msra.mxu0 0.0
      %801 = vmatprep.subr.mxu0 0.0
      %802 = vmatpush1.msra.mxu0 0.0
      %803 = vmatprep.subr.mxu0 0.0
      %804 = vmatpush1.msra.mxu0 0.0
      %805 = vmatprep.subr.mxu0 0.0
      %806 = vmatpush1.msra.mxu0 0.0
      %807 = vmatprep.subr.mxu0 0.0
      %808 = vmatpush1.msra.mxu0 0.0
      %809 = vmatprep.subr.mxu0 0.0
      %810 = vmatpush1.msra.mxu0 0.0
      %811 = vmatprep.mubr.f32.mxu0 0.0
      %812 = vmatmul.mubr.f32.gmra.mrb[0].mxu0 %v745
      %v813 = vpop.f32.mrb[0].mxu0
      %v814 = vadd.f32 0.0, %v813
      %v815 = vpop.f32.mrb[0].mxu0
      %816 = vdwg.mxu0
      %v817 = vmul.f32 %v814, 0.00390625
      %v818 = vadd.f32 %v817, 1e-05
      %v819 = vrsqrt.pop %v818
      %v820 = vmul.f32 %v819, %v461
      %v821 = vlaneseq
      %v822 = vshrl.u32 %v821, 7
      %v823 = vsub.s32 0, %v822
      %v824 = vrot.slane %v820, %v823
      %v825 = vmul.f32 %v611, %v824
      %v826 = vmul.f32 %v612, %v824
      %v827 = vmul.f32 %v613, %v824
      %v828 = vmul.f32 %v614, %v824
      %v829 = vmul.f32 %v615, %v824
      %v830 = vmul.f32 %v616, %v824
      %v831 = vmul.f32 %v617, %v824
      %v832 = vmul.f32 %v618, %v824
      %v833 = vmul.f32 %v619, %v824
      %v834 = vmul.f32 %v620, %v824
      %v835 = vmul.f32 %v621, %v824
      %v836 = vmul.f32 %v622, %v824
      %v837 = vmul.f32 %v623, %v824
      %v838 = vmul.f32 %v624, %v824
      %v839 = vmul.f32 %v625, %v824
      %v840 = vmul.f32 %v626, %v824
      %v841 = vmul.f32 %v627, %v824
      %v842 = vmul.f32 %v628, %v824
      %v843 = vmul.f32 %v629, %v824
      %v844 = vmul.f32 %v630, %v824
      %v845 = vmul.f32 %v631, %v824
      %v846 = vmul.f32 %v632, %v824
      %v847 = vmul.f32 %v633, %v824
      %v848 = vmul.f32 %v634, %v824
      %v849 = vmul.f32 %v635, %v824
      %v850 = vmul.f32 %v636, %v824
      %v851 = vmul.f32 %v637, %v824
      %v852 = vmul.f32 %v638, %v824
      %v853 = vmul.f32 %v639, %v824
      %v854 = vmul.f32 %v640, %v824
      %v855 = vmul.f32 %v641, %v824
      %v856 = vmul.f32 %v642, %v824
      %v858 = vlaneseq
      %v859 = vshrl.u32 %v858, 7
      %v860 = vsub.s32 0, %v859
      %v861 = vrot.slane %v462, %v860
      %v863 = vadd.f32 %v825, %v861
      %v864 = vadd.f32 %v826, %v861
      %v865 = vadd.f32 %v827, %v861
      %v866 = vadd.f32 %v828, %v861
      %v867 = vadd.f32 %v829, %v861
      %v868 = vadd.f32 %v830, %v861
      %v869 = vadd.f32 %v831, %v861
      %v870 = vadd.f32 %v832, %v861
      %v871 = vadd.f32 %v833, %v861
      %v872 = vadd.f32 %v834, %v861
      %v873 = vadd.f32 %v835, %v861
      %v874 = vadd.f32 %v836, %v861
      %v875 = vadd.f32 %v837, %v861
      %v876 = vadd.f32 %v838, %v861
      %v877 = vadd.f32 %v839, %v861
      %v878 = vadd.f32 %v840, %v861
      %v879 = vadd.f32 %v841, %v861
      %v880 = vadd.f32 %v842, %v861
      %v881 = vadd.f32 %v843, %v861
      %v882 = vadd.f32 %v844, %v861
      %v883 = vadd.f32 %v845, %v861
      %v884 = vadd.f32 %v846, %v861
      %v885 = vadd.f32 %v847, %v861
      %v886 = vadd.f32 %v848, %v861
      %v887 = vadd.f32 %v849, %v861
      %v888 = vadd.f32 %v850, %v861
      %v889 = vadd.f32 %v851, %v861
      %v890 = vadd.f32 %v852, %v861
      %v891 = vadd.f32 %v853, %v861
      %v892 = vadd.f32 %v854, %v861
      %v893 = vadd.f32 %v855, %v861
      %v894 = vadd.f32 %v856, %v861
      %v895 = vxor.u32 %v863, 2147483648
      %v896 = vxor.u32 %v864, 2147483648
      %v897 = vxor.u32 %v865, 2147483648
      %v898 = vxor.u32 %v866, 2147483648
      %v899 = vxor.u32 %v867, 2147483648
      %v900 = vxor.u32 %v868, 2147483648
      %v901 = vxor.u32 %v869, 2147483648
      %v902 = vxor.u32 %v870, 2147483648
      %v903 = vxor.u32 %v871, 2147483648
      %v904 = vxor.u32 %v872, 2147483648
      %v905 = vxor.u32 %v873, 2147483648
      %v906 = vxor.u32 %v874, 2147483648
      %v907 = vxor.u32 %v875, 2147483648
      %v908 = vxor.u32 %v876, 2147483648
      %v909 = vxor.u32 %v877, 2147483648
      %v910 = vxor.u32 %v878, 2147483648
      %v911 = vxor.u32 %v879, 2147483648
      %v912 = vxor.u32 %v880, 2147483648
      %v913 = vxor.u32 %v881, 2147483648
      %v914 = vxor.u32 %v882, 2147483648
      %v915 = vxor.u32 %v883, 2147483648
      %v916 = vxor.u32 %v884, 2147483648
      %v917 = vxor.u32 %v885, 2147483648
      %v918 = vxor.u32 %v886, 2147483648
      %v919 = vxor.u32 %v887, 2147483648
      %v920 = vxor.u32 %v888, 2147483648
      %v921 = vxor.u32 %v889, 2147483648
      %v922 = vxor.u32 %v890, 2147483648
      %v923 = vxor.u32 %v891, 2147483648
      %v924 = vxor.u32 %v892, 2147483648
      %v925 = vxor.u32 %v893, 2147483648
      %v926 = vxor.u32 %v894, 2147483648
      %v927 = vmul.f32 %v895, 1.442695
      %v928 = vpow.pop %v927
      %v929 = vmul.f32 %v896, 1.442695
      %v930 = vpow.pop %v929
      %v931 = vmul.f32 %v897, 1.442695
      %v932 = vpow.pop %v931
      %v933 = vmul.f32 %v898, 1.442695
      %v934 = vpow.pop %v933
      %v935 = vmul.f32 %v899, 1.442695
      %v936 = vpow.pop %v935
      %v937 = vmul.f32 %v900, 1.442695
      %v938 = vpow.pop %v937
      %v939 = vmul.f32 %v901, 1.442695
      %v940 = vpow.pop %v939
      %v941 = vmul.f32 %v902, 1.442695
      %v942 = vpow.pop %v941
      %v943 = vmul.f32 %v903, 1.442695
      %v944 = vpow.pop %v943
      %v945 = vmul.f32 %v904, 1.442695
      %v946 = vpow.pop %v945
      %v947 = vmul.f32 %v905, 1.442695
      %v948 = vpow.pop %v947
      %v949 = vmul.f32 %v906, 1.442695
      %v950 = vpow.pop %v949
      %v951 = vmul.f32 %v907, 1.442695
      %v952 = vpow.pop %v951
      %v953 = vmul.f32 %v908, 1.442695
      %v954 = vpow.pop %v953
      %v955 = vmul.f32 %v909, 1.442695
      %v956 = vpow.pop %v955
      %v957 = vmul.f32 %v910, 1.442695
      %v958 = vpow.pop %v957
      %v959 = vmul.f32 %v911, 1.442695
      %v960 = vpow.pop %v959
      %v961 = vmul.f32 %v912, 1.442695
      %v962 = vpow.pop %v961
      %v963 = vmul.f32 %v913, 1.442695
      %v964 = vpow.pop %v963
      %v965 = vmul.f32 %v914, 1.442695
      %v966 = vpow.pop %v965
      %v967 = vmul.f32 %v915, 1.442695
      %v968 = vpow.pop %v967
      %v969 = vmul.f32 %v916, 1.442695
      %v970 = vpow.pop %v969
      %v971 = vmul.f32 %v917, 1.442695
      %v972 = vpow.pop %v971
      %v973 = vmul.f32 %v918, 1.442695
      %v974 = vpow.pop %v973
      %v975 = vmul.f32 %v919, 1.442695
      %v976 = vpow.pop %v975
      %v977 = vmul.f32 %v920, 1.442695
      %v978 = vpow.pop %v977
      %v979 = vmul.f32 %v921, 1.442695
      %v980 = vpow.pop %v979
      %v981 = vmul.f32 %v922, 1.442695
      %v982 = vpow.pop %v981
      %v983 = vmul.f32 %v923, 1.442695
      %v984 = vpow.pop %v983
      %v985 = vmul.f32 %v924, 1.442695
      %v986 = vpow.pop %v985
      %v987 = vmul.f32 %v925, 1.442695
      %v988 = vpow.pop %v987
      %v989 = vmul.f32 %v926, 1.442695
      %v990 = vpow.pop %v989
      %v991 = vadd.f32 %v928, 1.0
      %v992 = vadd.f32 %v930, 1.0
      %v993 = vadd.f32 %v932, 1.0
      %v994 = vadd.f32 %v934, 1.0
      %v995 = vadd.f32 %v936, 1.0
      %v996 = vadd.f32 %v938, 1.0
      %v997 = vadd.f32 %v940, 1.0
      %v998 = vadd.f32 %v942, 1.0
      %v999 = vadd.f32 %v944, 1.0
      %v1000 = vadd.f32 %v946, 1.0
      %v1001 = vadd.f32 %v948, 1.0
      %v1002 = vadd.f32 %v950, 1.0
      %v1003 = vadd.f32 %v952, 1.0
      %v1004 = vadd.f32 %v954, 1.0
      %v1005 = vadd.f32 %v956, 1.0
      %v1006 = vadd.f32 %v958, 1.0
      %v1007 = vadd.f32 %v960, 1.0
      %v1008 = vadd.f32 %v962, 1.0
      %v1009 = vadd.f32 %v964, 1.0
      %v1010 = vadd.f32 %v966, 1.0
      %v1011 = vadd.f32 %v968, 1.0
      %v1012 = vadd.f32 %v970, 1.0
      %v1013 = vadd.f32 %v972, 1.0
      %v1014 = vadd.f32 %v974, 1.0
      %v1015 = vadd.f32 %v976, 1.0
      %v1016 = vadd.f32 %v978, 1.0
      %v1017 = vadd.f32 %v980, 1.0
      %v1018 = vadd.f32 %v982, 1.0
      %v1019 = vadd.f32 %v984, 1.0
      %v1020 = vadd.f32 %v986, 1.0
      %v1021 = vadd.f32 %v988, 1.0
      %v1022 = vadd.f32 %v990, 1.0
      %v1023 = vrcp.pop %v991
      %v1024 = vmul.f32 1.0, %v1023
      %v1025 = vrcp.pop %v992
      %v1026 = vmul.f32 1.0, %v1025
      %v1027 = vrcp.pop %v993
      %v1028 = vmul.f32 1.0, %v1027
      %v1029 = vrcp.pop %v994
      %v1030 = vmul.f32 1.0, %v1029
      %v1031 = vrcp.pop %v995
      %v1032 = vmul.f32 1.0, %v1031
      %v1033 = vrcp.pop %v996
      %v1034 = vmul.f32 1.0, %v1033
      %v1035 = vrcp.pop %v997
      %v1036 = vmul.f32 1.0, %v1035
      %v1037 = vrcp.pop %v998
      %v1038 = vmul.f32 1.0, %v1037
      %v1039 = vrcp.pop %v999
      %v1040 = vmul.f32 1.0, %v1039
      %v1041 = vrcp.pop %v1000
      %v1042 = vmul.f32 1.0, %v1041
      %v1043 = vrcp.pop %v1001
      %v1044 = vmul.f32 1.0, %v1043
      %v1045 = vrcp.pop %v1002
      %v1046 = vmul.f32 1.0, %v1045
      %v1047 = vrcp.pop %v1003
      %v1048 = vmul.f32 1.0, %v1047
      %v1049 = vrcp.pop %v1004
      %v1050 = vmul.f32 1.0, %v1049
      %v1051 = vrcp.pop %v1005
      %v1052 = vmul.f32 1.0, %v1051
      %v1053 = vrcp.pop %v1006
      %v1054 = vmul.f32 1.0, %v1053
      %v1055 = vrcp.pop %v1007
      %v1056 = vmul.f32 1.0, %v1055
      %v1057 = vrcp.pop %v1008
      %v1058 = vmul.f32 1.0, %v1057
      %v1059 = vrcp.pop %v1009
      %v1060 = vmul.f32 1.0, %v1059
      %v1061 = vrcp.pop %v1010
      %v1062 = vmul.f32 1.0, %v1061
      %v1063 = vrcp.pop %v1011
      %v1064 = vmul.f32 1.0, %v1063
      %v1065 = vrcp.pop %v1012
      %v1066 = vmul.f32 1.0, %v1065
      %v1067 = vrcp.pop %v1013
      %v1068 = vmul.f32 1.0, %v1067
      %v1069 = vrcp.pop %v1014
      %v1070 = vmul.f32 1.0, %v1069
      %v1071 = vrcp.pop %v1015
      %v1072 = vmul.f32 1.0, %v1071
      %v1073 = vrcp.pop %v1016
      %v1074 = vmul.f32 1.0, %v1073
      %v1075 = vrcp.pop %v1017
      %v1076 = vmul.f32 1.0, %v1075
      %v1077 = vrcp.pop %v1018
      %v1078 = vmul.f32 1.0, %v1077
      %v1079 = vrcp.pop %v1019
      %v1080 = vmul.f32 1.0, %v1079
      %v1081 = vrcp.pop %v1020
      %v1082 = vmul.f32 1.0, %v1081
      %v1083 = vrcp.pop %v1021
      %v1084 = vmul.f32 1.0, %v1083
      %v1085 = vrcp.pop %v1022
      %v1086 = vmul.f32 1.0, %v1085
      %v1087 = vmul.f32 %v863, %v1024
      %v1088 = vmul.f32 %v864, %v1026
      %v1089 = vmul.f32 %v865, %v1028
      %v1090 = vmul.f32 %v866, %v1030
      %v1091 = vmul.f32 %v867, %v1032
      %v1092 = vmul.f32 %v868, %v1034
      %v1093 = vmul.f32 %v869, %v1036
      %v1094 = vmul.f32 %v870, %v1038
      %v1095 = vmul.f32 %v871, %v1040
      %v1096 = vmul.f32 %v872, %v1042
      %v1097 = vmul.f32 %v873, %v1044
      %v1098 = vmul.f32 %v874, %v1046
      %v1099 = vmul.f32 %v875, %v1048
      %v1100 = vmul.f32 %v876, %v1050
      %v1101 = vmul.f32 %v877, %v1052
      %v1102 = vmul.f32 %v878, %v1054
      %v1103 = vmul.f32 %v879, %v1056
      %v1104 = vmul.f32 %v880, %v1058
      %v1105 = vmul.f32 %v881, %v1060
      %v1106 = vmul.f32 %v882, %v1062
      %v1107 = vmul.f32 %v883, %v1064
      %v1108 = vmul.f32 %v884, %v1066
      %v1109 = vmul.f32 %v885, %v1068
      %v1110 = vmul.f32 %v886, %v1070
      %v1111 = vmul.f32 %v887, %v1072
      %v1112 = vmul.f32 %v888, %v1074
      %v1113 = vmul.f32 %v889, %v1076
      %v1114 = vmul.f32 %v890, %v1078
      %v1115 = vmul.f32 %v891, %v1080
      %v1116 = vmul.f32 %v892, %v1082
      %v1117 = vmul.f32 %v893, %v1084
      %v1118 = vmul.f32 %v894, %v1086
      %v1119 = vld [vmem:[%s5] sm:$0x1]
      %v1120 = vpack.c.bf16 %v1088, %v1087
      %v1121 = vpack.c.bf16 %v1090, %v1089
      %v1122 = vpack.c.bf16 %v1092, %v1091
      %v1123 = vpack.c.bf16 %v1094, %v1093
      %v1124 = vpack.c.bf16 %v1096, %v1095
      %v1125 = vpack.c.bf16 %v1098, %v1097
      %v1126 = vpack.c.bf16 %v1100, %v1099
      %v1127 = vpack.c.bf16 %v1102, %v1101
      %v1128 = vpack.c.bf16 %v1104, %v1103
      %v1129 = vpack.c.bf16 %v1106, %v1105
      %v1130 = vpack.c.bf16 %v1108, %v1107
      %v1131 = vpack.c.bf16 %v1110, %v1109
      %v1132 = vpack.c.bf16 %v1112, %v1111
      %v1133 = vpack.c.bf16 %v1114, %v1113
      %v1134 = vpack.c.bf16 %v1116, %v1115
      %v1135 = vpack.c.bf16 %v1118, %v1117
      %v1136 = vld [vmem:[%s4] sm:$0xf]
      %v1137 = vld [vmem:[%s4 + $0x4] sm:$0xf]
      %v1138 = vld [vmem:[%s4 + $0x8] sm:$0xf]
      %v1139 = vld [vmem:[%s4 + $0xc] sm:$0xf]
      %s1140 = scalar_lea.vmem %s4, 16
      %v1141 = vld [vmem:[%s1140] sm:$0xf]
      %v1142 = vld [vmem:[%s1140 + $0x4] sm:$0xf]
      %v1143 = vld [vmem:[%s1140 + $0x8] sm:$0xf]
      %v1144 = vld [vmem:[%s1140 + $0xc] sm:$0xf]
      %v1149 = vunpack.c.l.b16 %v1141
      %v1150 = vunpack.c.l.b16 %v1142
      %v1151 = vunpack.c.l.b16 %v1143
      %v1152 = vunpack.c.l.b16 %v1144
      %v1153 = vpack.c.b16 %v1150, %v1149
      %v1154 = vpack.c.b16 %v1152, %v1151
      %v1158 = vsel %vm463, %v1120, 0
      %v1161 = vsel %vm463, %v1121, 0
      %v1164 = vsel %vm463, %v1122, 0
      %v1167 = vsel %vm463, %v1123, 0
      %v1170 = vsel %vm463, %v1124, 0
      %v1173 = vsel %vm463, %v1125, 0
      %v1176 = vsel %vm463, %v1126, 0
      %v1179 = vsel %vm463, %v1127, 0
      %v1182 = vsel %vm463, %v1128, 0
      %v1185 = vsel %vm463, %v1129, 0
      %v1188 = vsel %vm463, %v1130, 0
      %v1191 = vsel %vm463, %v1131, 0
      %v1194 = vsel %vm463, %v1132, 0
      %v1197 = vsel %vm463, %v1133, 0
      %v1200 = vsel %vm463, %v1134, 0
      %v1203 = vsel %vm463, %v1135, 0
      %1205 = vmatprep.subr.bf16.mxu0 0
      %1206 = vmatpush1.bf16.msra.mxu0 %v1153
      %1207 = vmatprep.subr.bf16.mxu0 0
      %1208 = vmatpush1.bf16.msra.mxu0 %v1154
      %1209 = vmatprep.subr.bf16.mxu0 0
      %1210 = vmatpush1.bf16.msra.mxu0 0
      %1211 = vmatprep.subr.bf16.mxu0 0
      %1212 = vmatpush1.bf16.msra.mxu0 0
      %1213 = vmatprep.subr.bf16.mxu0 0
      %1214 = vmatpush1.bf16.msra.mxu0 0
      %1215 = vmatprep.subr.bf16.mxu0 0
      %1216 = vmatpush1.bf16.msra.mxu0 0
      %1217 = vmatprep.subr.bf16.mxu0 0
      %1218 = vmatpush1.bf16.msra.mxu0 0
      %1219 = vmatprep.subr.bf16.mxu0 0
      %1220 = vmatpush1.bf16.msra.mxu0 0
      %1221 = vmatprep.subr.bf16.mxu0 0
      %1222 = vmatpush1.bf16.msra.mxu0 0
      %1223 = vmatprep.subr.bf16.mxu0 0
      %1224 = vmatpush1.bf16.msra.mxu0 0
      %1225 = vmatprep.subr.bf16.mxu0 0
      %1226 = vmatpush1.bf16.msra.mxu0 0
      %1227 = vmatprep.subr.bf16.mxu0 0
      %1228 = vmatpush1.bf16.msra.mxu0 0
      %1229 = vmatprep.subr.bf16.mxu0 0
      %1230 = vmatpush1.bf16.msra.mxu0 0
      %1231 = vmatprep.subr.bf16.mxu0 0
      %1232 = vmatpush1.bf16.msra.mxu0 0
      %1233 = vmatprep.subr.bf16.mxu0 0
      %1234 = vmatpush1.bf16.msra.mxu0 0
      %1235 = vmatprep.subr.bf16.mxu0 0
      %1236 = vmatpush1.bf16.msra.mxu0 0
      %1237 = vmatprep.mubr.bf16.mxu0 0
      %1238 = vmatmul.mubr.bf16.gmra.mrb[0].mxu0 %v1158
      %v1239 = vpop.f32.mrb[0].mxu0
      %v1240 = vadd.f32 0.0, %v1239
      %v1241 = vpop.f32.mrb[0].mxu0
      %v1242 = vpop.f32.mrb[0].mxu0
      %v1243 = vadd.f32 0.0, %v1242
      %v1244 = vpop.f32.mrb[0].mxu0
      %1245 = vmatprep.mubr.bf16.mxu0 0
      %1246 = vmatmul.mubr.bf16.gmra.mrb[0].mxu0 %v1161
      %v1247 = vpop.f32.mrb[0].mxu0
      %v1248 = vadd.f32 0.0, %v1247
      %v1249 = vpop.f32.mrb[0].mxu0
      %v1250 = vpop.f32.mrb[0].mxu0
      %v1251 = vadd.f32 0.0, %v1250
      %v1252 = vpop.f32.mrb[0].mxu0
      %1253 = vmatprep.mubr.bf16.mxu0 0
      %1254 = vmatmul.mubr.bf16.gmra.mrb[0].mxu0 %v1164
      %v1255 = vpop.f32.mrb[0].mxu0
      %v1256 = vadd.f32 0.0, %v1255
      %v1257 = vpop.f32.mrb[0].mxu0
      %v1258 = vpop.f32.mrb[0].mxu0
      %v1259 = vadd.f32 0.0, %v1258
      %v1260 = vpop.f32.mrb[0].mxu0
      %1261 = vmatprep.mubr.bf16.mxu0 0
      %1262 = vmatmul.mubr.bf16.gmra.mrb[0].mxu0 %v1167
      %v1263 = vpop.f32.mrb[0].mxu0
      %v1264 = vadd.f32 0.0, %v1263
      %v1265 = vpop.f32.mrb[0].mxu0
      %v1266 = vpop.f32.mrb[0].mxu0
      %v1267 = vadd.f32 0.0, %v1266
      %v1268 = vpop.f32.mrb[0].mxu0
      %1269 = vmatprep.mubr.bf16.mxu0 0
      %1270 = vmatmul.mubr.bf16.gmra.mrb[0].mxu0 %v1170
      %v1271 = vpop.f32.mrb[0].mxu0
      %v1272 = vadd.f32 0.0, %v1271
      %v1273 = vpop.f32.mrb[0].mxu0
      %v1274 = vpop.f32.mrb[0].mxu0
      %v1275 = vadd.f32 0.0, %v1274
      %v1276 = vpop.f32.mrb[0].mxu0
      %1277 = vmatprep.mubr.bf16.mxu0 0
      %1278 = vmatmul.mubr.bf16.gmra.mrb[0].mxu0 %v1173
      %v1279 = vpop.f32.mrb[0].mxu0
      %v1280 = vadd.f32 0.0, %v1279
      %v1281 = vpop.f32.mrb[0].mxu0
      %v1282 = vpop.f32.mrb[0].mxu0
      %v1283 = vadd.f32 0.0, %v1282
      %v1284 = vpop.f32.mrb[0].mxu0
      %1285 = vmatprep.mubr.bf16.mxu0 0
      %1286 = vmatmul.mubr.bf16.gmra.mrb[0].mxu0 %v1176
      %v1287 = vpop.f32.mrb[0].mxu0
      %v1288 = vadd.f32 0.0, %v1287
      %v1289 = vpop.f32.mrb[0].mxu0
      %v1290 = vpop.f32.mrb[0].mxu0
      %v1291 = vadd.f32 0.0, %v1290
      %v1292 = vpop.f32.mrb[0].mxu0
      %1293 = vmatprep.mubr.bf16.mxu0 0
      %1294 = vmatmul.mubr.bf16.gmra.mrb[0].mxu0 %v1179
      %v1295 = vpop.f32.mrb[0].mxu0
      %v1296 = vadd.f32 0.0, %v1295
      %v1297 = vpop.f32.mrb[0].mxu0
      %v1298 = vpop.f32.mrb[0].mxu0
      %v1299 = vadd.f32 0.0, %v1298
      %v1300 = vpop.f32.mrb[0].mxu0
      %1301 = vmatprep.mubr.bf16.mxu0 0
      %1302 = vmatmul.mubr.bf16.gmra.mrb[0].mxu0 %v1182
      %v1303 = vpop.f32.mrb[0].mxu0
      %v1304 = vadd.f32 0.0, %v1303
      %v1305 = vpop.f32.mrb[0].mxu0
      %v1306 = vpop.f32.mrb[0].mxu0
      %v1307 = vadd.f32 0.0, %v1306
      %v1308 = vpop.f32.mrb[0].mxu0
      %1309 = vmatprep.mubr.bf16.mxu0 0
      %1310 = vmatmul.mubr.bf16.gmra.mrb[0].mxu0 %v1185
      %v1311 = vpop.f32.mrb[0].mxu0
      %v1312 = vadd.f32 0.0, %v1311
      %v1313 = vpop.f32.mrb[0].mxu0
      %v1314 = vpop.f32.mrb[0].mxu0
      %v1315 = vadd.f32 0.0, %v1314
      %v1316 = vpop.f32.mrb[0].mxu0
      %1317 = vmatprep.mubr.bf16.mxu0 0
      %1318 = vmatmul.mubr.bf16.gmra.mrb[0].mxu0 %v1188
      %v1319 = vpop.f32.mrb[0].mxu0
      %v1320 = vadd.f32 0.0, %v1319
      %v1321 = vpop.f32.mrb[0].mxu0
      %v1322 = vpop.f32.mrb[0].mxu0
      %v1323 = vadd.f32 0.0, %v1322
      %v1324 = vpop.f32.mrb[0].mxu0
      %1325 = vmatprep.mubr.bf16.mxu0 0
      %1326 = vmatmul.mubr.bf16.gmra.mrb[0].mxu0 %v1191
      %v1327 = vpop.f32.mrb[0].mxu0
      %v1328 = vadd.f32 0.0, %v1327
      %v1329 = vpop.f32.mrb[0].mxu0
      %v1330 = vpop.f32.mrb[0].mxu0
      %v1331 = vadd.f32 0.0, %v1330
      %v1332 = vpop.f32.mrb[0].mxu0
      %1333 = vmatprep.mubr.bf16.mxu0 0
      %1334 = vmatmul.mubr.bf16.gmra.mrb[0].mxu0 %v1194
      %v1335 = vpop.f32.mrb[0].mxu0
      %v1336 = vadd.f32 0.0, %v1335
      %v1337 = vpop.f32.mrb[0].mxu0
      %v1338 = vpop.f32.mrb[0].mxu0
      %v1339 = vadd.f32 0.0, %v1338
      %v1340 = vpop.f32.mrb[0].mxu0
      %1341 = vmatprep.mubr.bf16.mxu0 0
      %1342 = vmatmul.mubr.bf16.gmra.mrb[0].mxu0 %v1197
      %v1343 = vpop.f32.mrb[0].mxu0
      %v1344 = vadd.f32 0.0, %v1343
      %v1345 = vpop.f32.mrb[0].mxu0
      %v1346 = vpop.f32.mrb[0].mxu0
      %v1347 = vadd.f32 0.0, %v1346
      %v1348 = vpop.f32.mrb[0].mxu0
      %1349 = vmatprep.mubr.bf16.mxu0 0
      %1350 = vmatmul.mubr.bf16.gmra.mrb[0].mxu0 %v1200
      %v1351 = vpop.f32.mrb[0].mxu0
      %v1352 = vadd.f32 0.0, %v1351
      %v1353 = vpop.f32.mrb[0].mxu0
      %v1354 = vpop.f32.mrb[0].mxu0
      %v1355 = vadd.f32 0.0, %v1354
      %v1356 = vpop.f32.mrb[0].mxu0
      %1357 = vmatprep.mubr.bf16.mxu0 0
      %1358 = vmatmul.mubr.bf16.gmra.mrb[0].mxu0 %v1203
      %v1359 = vpop.f32.mrb[0].mxu0
      %v1360 = vadd.f32 0.0, %v1359
      %v1361 = vpop.f32.mrb[0].mxu0
      %v1362 = vpop.f32.mrb[0].mxu0
      %v1363 = vadd.f32 0.0, %v1362
      %v1364 = vpop.f32.mrb[0].mxu0
      %1365 = vdwg.mxu0
      %v1370 = vunpack.c.l.b16 %v1136
      %v1371 = vunpack.c.l.b16 %v1137
      %v1372 = vunpack.c.l.b16 %v1138
      %v1373 = vunpack.c.l.b16 %v1139
      %v1374 = vpack.c.b16 %v1371, %v1370
      %v1375 = vpack.c.b16 %v1373, %v1372
      %v1379 = vsel %vm463, 0, 0
      %1381 = vmatprep.subr.bf16.mxu0 0
      %1382 = vmatpush1.bf16.msra.mxu0 %v1374
      %1383 = vmatprep.subr.bf16.mxu0 0
      %1384 = vmatpush1.bf16.msra.mxu0 %v1375
      %1385 = vmatprep.subr.bf16.mxu0 0
      %1386 = vmatpush1.bf16.msra.mxu0 0
      %1387 = vmatprep.subr.bf16.mxu0 0
      %1388 = vmatpush1.bf16.msra.mxu0 0
      %1389 = vmatprep.subr.bf16.mxu0 0
      %1390 = vmatpush1.bf16.msra.mxu0 0
      %1391 = vmatprep.subr.bf16.mxu0 0
      %1392 = vmatpush1.bf16.msra.mxu0 0
      %1393 = vmatprep.subr.bf16.mxu0 0
      %1394 = vmatpush1.bf16.msra.mxu0 0
      %1395 = vmatprep.subr.bf16.mxu0 0
      %1396 = vmatpush1.bf16.msra.mxu0 0
      %1397 = vmatprep.subr.bf16.mxu0 0
      %1398 = vmatpush1.bf16.msra.mxu0 0
      %1399 = vmatprep.subr.bf16.mxu0 0
      %1400 = vmatpush1.bf16.msra.mxu0 0
      %1401 = vmatprep.subr.bf16.mxu0 0
      %1402 = vmatpush1.bf16.msra.mxu0 0
      %1403 = vmatprep.subr.bf16.mxu0 0
      %1404 = vmatpush1.bf16.msra.mxu0 0
      %1405 = vmatprep.subr.bf16.mxu0 0
      %1406 = vmatpush1.bf16.msra.mxu0 0
      %1407 = vmatprep.subr.bf16.mxu0 0
      %1408 = vmatpush1.bf16.msra.mxu0 0
      %1409 = vmatprep.subr.bf16.mxu0 0
      %1410 = vmatpush1.bf16.msra.mxu0 0
      %1411 = vmatprep.subr.bf16.mxu0 0
      %1412 = vmatpush1.bf16.msra.mxu0 0
      %1413 = vmatprep.mubr.bf16.mxu0 0
      %1414 = vmatmul.mubr.bf16.gmra.mrb[0].mxu0 %v1379
      %v1415 = vpop.f32.mrb[0].mxu0
      %v1416 = vadd.f32 %v1240, %v1415
      %v1417 = vpop.f32.mrb[0].mxu0
      %v1418 = vpop.f32.mrb[0].mxu0
      %v1419 = vadd.f32 %v1243, %v1418
      %v1420 = vpop.f32.mrb[0].mxu0
      %1421 = vmatprep.mubr.bf16.mxu0 0
      %1422 = vmatmul.mubr.bf16.gmra.mrb[0].mxu0 %v1379
      %v1423 = vpop.f32.mrb[0].mxu0
      %v1424 = vadd.f32 %v1248, %v1423
      %v1425 = vpop.f32.mrb[0].mxu0
      %v1426 = vpop.f32.mrb[0].mxu0
      %v1427 = vadd.f32 %v1251, %v1426
      %v1428 = vpop.f32.mrb[0].mxu0
      %1429 = vmatprep.mubr.bf16.mxu0 0
      %1430 = vmatmul.mubr.bf16.gmra.mrb[0].mxu0 %v1379
      %v1431 = vpop.f32.mrb[0].mxu0
      %v1432 = vadd.f32 %v1256, %v1431
      %v1433 = vpop.f32.mrb[0].mxu0
      %v1434 = vpop.f32.mrb[0].mxu0
      %v1435 = vadd.f32 %v1259, %v1434
      %v1436 = vpop.f32.mrb[0].mxu0
      %1437 = vmatprep.mubr.bf16.mxu0 0
      %1438 = vmatmul.mubr.bf16.gmra.mrb[0].mxu0 %v1379
      %v1439 = vpop.f32.mrb[0].mxu0
      %v1440 = vadd.f32 %v1264, %v1439
      %v1441 = vpop.f32.mrb[0].mxu0
      %v1442 = vpop.f32.mrb[0].mxu0
      %v1443 = vadd.f32 %v1267, %v1442
      %v1444 = vpop.f32.mrb[0].mxu0
      %1445 = vmatprep.mubr.bf16.mxu0 0
      %1446 = vmatmul.mubr.bf16.gmra.mrb[0].mxu0 %v1158
      %v1447 = vpop.f32.mrb[0].mxu0
      %v1448 = vadd.f32 %v1272, %v1447
      %v1449 = vpop.f32.mrb[0].mxu0
      %v1450 = vpop.f32.mrb[0].mxu0
      %v1451 = vadd.f32 %v1275, %v1450
      %v1452 = vpop.f32.mrb[0].mxu0
      %1453 = vmatprep.mubr.bf16.mxu0 0
      %1454 = vmatmul.mubr.bf16.gmra.mrb[0].mxu0 %v1161
      %v1455 = vpop.f32.mrb[0].mxu0
      %v1456 = vadd.f32 %v1280, %v1455
      %v1457 = vpop.f32.mrb[0].mxu0
      %v1458 = vpop.f32.mrb[0].mxu0
      %v1459 = vadd.f32 %v1283, %v1458
      %v1460 = vpop.f32.mrb[0].mxu0
      %1461 = vmatprep.mubr.bf16.mxu0 0
      %1462 = vmatmul.mubr.bf16.gmra.mrb[0].mxu0 %v1164
      %v1463 = vpop.f32.mrb[0].mxu0
      %v1464 = vadd.f32 %v1288, %v1463
      %v1465 = vpop.f32.mrb[0].mxu0
      %v1466 = vpop.f32.mrb[0].mxu0
      %v1467 = vadd.f32 %v1291, %v1466
      %v1468 = vpop.f32.mrb[0].mxu0
      %1469 = vmatprep.mubr.bf16.mxu0 0
      %1470 = vmatmul.mubr.bf16.gmra.mrb[0].mxu0 %v1167
      %v1471 = vpop.f32.mrb[0].mxu0
      %v1472 = vadd.f32 %v1296, %v1471
      %v1473 = vpop.f32.mrb[0].mxu0
      %v1474 = vpop.f32.mrb[0].mxu0
      %v1475 = vadd.f32 %v1299, %v1474
      %v1476 = vpop.f32.mrb[0].mxu0
      %1477 = vmatprep.mubr.bf16.mxu0 0
      %1478 = vmatmul.mubr.bf16.gmra.mrb[0].mxu0 %v1170
      %v1479 = vpop.f32.mrb[0].mxu0
      %v1480 = vadd.f32 %v1304, %v1479
      %v1481 = vpop.f32.mrb[0].mxu0
      %v1482 = vpop.f32.mrb[0].mxu0
      %v1483 = vadd.f32 %v1307, %v1482
      %v1484 = vpop.f32.mrb[0].mxu0
      %1485 = vmatprep.mubr.bf16.mxu0 0
      %1486 = vmatmul.mubr.bf16.gmra.mrb[0].mxu0 %v1173
      %v1487 = vpop.f32.mrb[0].mxu0
      %v1488 = vadd.f32 %v1312, %v1487
      %v1489 = vpop.f32.mrb[0].mxu0
      %v1490 = vpop.f32.mrb[0].mxu0
      %v1491 = vadd.f32 %v1315, %v1490
      %v1492 = vpop.f32.mrb[0].mxu0
      %1493 = vmatprep.mubr.bf16.mxu0 0
      %1494 = vmatmul.mubr.bf16.gmra.mrb[0].mxu0 %v1176
      %v1495 = vpop.f32.mrb[0].mxu0
      %v1496 = vadd.f32 %v1320, %v1495
      %v1497 = vpop.f32.mrb[0].mxu0
      %v1498 = vpop.f32.mrb[0].mxu0
      %v1499 = vadd.f32 %v1323, %v1498
      %v1500 = vpop.f32.mrb[0].mxu0
      %1501 = vmatprep.mubr.bf16.mxu0 0
      %1502 = vmatmul.mubr.bf16.gmra.mrb[0].mxu0 %v1179
      %v1503 = vpop.f32.mrb[0].mxu0
      %v1504 = vadd.f32 %v1328, %v1503
      %v1505 = vpop.f32.mrb[0].mxu0
      %v1506 = vpop.f32.mrb[0].mxu0
      %v1507 = vadd.f32 %v1331, %v1506
      %v1508 = vpop.f32.mrb[0].mxu0
      %1509 = vmatprep.mubr.bf16.mxu0 0
      %1510 = vmatmul.mubr.bf16.gmra.mrb[0].mxu0 %v1182
      %v1511 = vpop.f32.mrb[0].mxu0
      %v1512 = vadd.f32 %v1336, %v1511
      %v1513 = vpop.f32.mrb[0].mxu0
      %v1514 = vpop.f32.mrb[0].mxu0
      %v1515 = vadd.f32 %v1339, %v1514
      %v1516 = vpop.f32.mrb[0].mxu0
      %1517 = vmatprep.mubr.bf16.mxu0 0
      %1518 = vmatmul.mubr.bf16.gmra.mrb[0].mxu0 %v1185
      %v1519 = vpop.f32.mrb[0].mxu0
      %v1520 = vadd.f32 %v1344, %v1519
      %v1521 = vpop.f32.mrb[0].mxu0
      %v1522 = vpop.f32.mrb[0].mxu0
      %v1523 = vadd.f32 %v1347, %v1522
      %v1524 = vpop.f32.mrb[0].mxu0
      %1525 = vmatprep.mubr.bf16.mxu0 0
      %1526 = vmatmul.mubr.bf16.gmra.mrb[0].mxu0 %v1188
      %v1527 = vpop.f32.mrb[0].mxu0
      %v1528 = vadd.f32 %v1352, %v1527
      %v1529 = vpop.f32.mrb[0].mxu0
      %v1530 = vpop.f32.mrb[0].mxu0
      %v1531 = vadd.f32 %v1355, %v1530
      %v1532 = vpop.f32.mrb[0].mxu0
      %1533 = vmatprep.mubr.bf16.mxu0 0
      %1534 = vmatmul.mubr.bf16.gmra.mrb[0].mxu0 %v1191
      %v1535 = vpop.f32.mrb[0].mxu0
      %v1536 = vadd.f32 %v1360, %v1535
      %v1537 = vpop.f32.mrb[0].mxu0
      %v1538 = vpop.f32.mrb[0].mxu0
      %v1539 = vadd.f32 %v1363, %v1538
      %v1540 = vpop.f32.mrb[0].mxu0
      %1541 = vdwg.mxu0
      %s1542 = scalar_lea.vmem %s4, 32
      %v1543 = vld [vmem:[%s1542] sm:$0xf]
      %v1544 = vld [vmem:[%s1542 + $0x4] sm:$0xf]
      %v1545 = vld [vmem:[%s1542 + $0x8] sm:$0xf]
      %v1546 = vld [vmem:[%s1542 + $0xc] sm:$0xf]
      %v1551 = vunpack.c.l.b16 %v1543
      %v1552 = vunpack.c.l.b16 %v1544
      %v1553 = vunpack.c.l.b16 %v1545
      %v1554 = vunpack.c.l.b16 %v1546
      %v1555 = vpack.c.b16 %v1552, %v1551
      %v1556 = vpack.c.b16 %v1554, %v1553
      %1559 = vmatprep.subr.bf16.mxu0 0
      %1560 = vmatpush1.bf16.msra.mxu0 %v1555
      %1561 = vmatprep.subr.bf16.mxu0 0
      %1562 = vmatpush1.bf16.msra.mxu0 %v1556
      %1563 = vmatprep.subr.bf16.mxu0 0
      %1564 = vmatpush1.bf16.msra.mxu0 0
      %1565 = vmatprep.subr.bf16.mxu0 0
      %1566 = vmatpush1.bf16.msra.mxu0 0
      %1567 = vmatprep.subr.bf16.mxu0 0
      %1568 = vmatpush1.bf16.msra.mxu0 0
      %1569 = vmatprep.subr.bf16.mxu0 0
      %1570 = vmatpush1.bf16.msra.mxu0 0
      %1571 = vmatprep.subr.bf16.mxu0 0
      %1572 = vmatpush1.bf16.msra.mxu0 0
      %1573 = vmatprep.subr.bf16.mxu0 0
      %1574 = vmatpush1.bf16.msra.mxu0 0
      %1575 = vmatprep.subr.bf16.mxu0 0
      %1576 = vmatpush1.bf16.msra.mxu0 0
      %1577 = vmatprep.subr.bf16.mxu0 0
      %1578 = vmatpush1.bf16.msra.mxu0 0
      %1579 = vmatprep.subr.bf16.mxu0 0
      %1580 = vmatpush1.bf16.msra.mxu0 0
      %1581 = vmatprep.subr.bf16.mxu0 0
      %1582 = vmatpush1.bf16.msra.mxu0 0
      %1583 = vmatprep.subr.bf16.mxu0 0
      %1584 = vmatpush1.bf16.msra.mxu0 0
      %1585 = vmatprep.subr.bf16.mxu0 0
      %1586 = vmatpush1.bf16.msra.mxu0 0
      %1587 = vmatprep.subr.bf16.mxu0 0
      %1588 = vmatpush1.bf16.msra.mxu0 0
      %1589 = vmatprep.subr.bf16.mxu0 0
      %1590 = vmatpush1.bf16.msra.mxu0 0
      %1591 = vmatprep.mubr.bf16.mxu0 0
      %1592 = vmatmul.mubr.bf16.gmra.mrb[0].mxu0 %v1170
      %v1593 = vpop.f32.mrb[0].mxu0
      %v1594 = vadd.f32 0.0, %v1593
      %v1595 = vpop.f32.mrb[0].mxu0
      %v1596 = vpop.f32.mrb[0].mxu0
      %v1597 = vadd.f32 0.0, %v1596
      %v1598 = vpop.f32.mrb[0].mxu0
      %1599 = vmatprep.mubr.bf16.mxu0 0
      %1600 = vmatmul.mubr.bf16.gmra.mrb[0].mxu0 %v1173
      %v1601 = vpop.f32.mrb[0].mxu0
      %v1602 = vadd.f32 0.0, %v1601
      %v1603 = vpop.f32.mrb[0].mxu0
      %v1604 = vpop.f32.mrb[0].mxu0
      %v1605 = vadd.f32 0.0, %v1604
      %v1606 = vpop.f32.mrb[0].mxu0
      %1607 = vmatprep.mubr.bf16.mxu0 0
      %1608 = vmatmul.mubr.bf16.gmra.mrb[0].mxu0 %v1176
      %v1609 = vpop.f32.mrb[0].mxu0
      %v1610 = vadd.f32 0.0, %v1609
      %v1611 = vpop.f32.mrb[0].mxu0
      %v1612 = vpop.f32.mrb[0].mxu0
      %v1613 = vadd.f32 0.0, %v1612
      %v1614 = vpop.f32.mrb[0].mxu0
      %1615 = vmatprep.mubr.bf16.mxu0 0
      %1616 = vmatmul.mubr.bf16.gmra.mrb[0].mxu0 %v1179
      %v1617 = vpop.f32.mrb[0].mxu0
      %v1618 = vadd.f32 0.0, %v1617
      %v1619 = vpop.f32.mrb[0].mxu0
      %v1620 = vpop.f32.mrb[0].mxu0
      %v1621 = vadd.f32 0.0, %v1620
      %v1622 = vpop.f32.mrb[0].mxu0
      %1623 = vmatprep.mubr.bf16.mxu0 0
      %1624 = vmatmul.mubr.bf16.gmra.mrb[0].mxu0 %v1182
      %v1625 = vpop.f32.mrb[0].mxu0
      %v1626 = vadd.f32 0.0, %v1625
      %v1627 = vpop.f32.mrb[0].mxu0
      %v1628 = vpop.f32.mrb[0].mxu0
      %v1629 = vadd.f32 0.0, %v1628
      %v1630 = vpop.f32.mrb[0].mxu0
      %1631 = vmatprep.mubr.bf16.mxu0 0
      %1632 = vmatmul.mubr.bf16.gmra.mrb[0].mxu0 %v1185
      %v1633 = vpop.f32.mrb[0].mxu0
      %v1634 = vadd.f32 0.0, %v1633
      %v1635 = vpop.f32.mrb[0].mxu0
      %v1636 = vpop.f32.mrb[0].mxu0
      %v1637 = vadd.f32 0.0, %v1636
      %v1638 = vpop.f32.mrb[0].mxu0
      %1639 = vmatprep.mubr.bf16.mxu0 0
      %1640 = vmatmul.mubr.bf16.gmra.mrb[0].mxu0 %v1188
      %v1641 = vpop.f32.mrb[0].mxu0
      %v1642 = vadd.f32 0.0, %v1641
      %v1643 = vpop.f32.mrb[0].mxu0
      %v1644 = vpop.f32.mrb[0].mxu0
      %v1645 = vadd.f32 0.0, %v1644
      %v1646 = vpop.f32.mrb[0].mxu0
      %1647 = vmatprep.mubr.bf16.mxu0 0
      %1648 = vmatmul.mubr.bf16.gmra.mrb[0].mxu0 %v1191
      %v1649 = vpop.f32.mrb[0].mxu0
      %v1650 = vadd.f32 0.0, %v1649
      %v1651 = vpop.f32.mrb[0].mxu0
      %v1652 = vpop.f32.mrb[0].mxu0
      %v1653 = vadd.f32 0.0, %v1652
      %v1654 = vpop.f32.mrb[0].mxu0
      %1655 = vmatprep.mubr.bf16.mxu0 0
      %1656 = vmatmul.mubr.bf16.gmra.mrb[0].mxu0 %v1194
      %v1657 = vpop.f32.mrb[0].mxu0
      %v1658 = vadd.f32 0.0, %v1657
      %v1659 = vpop.f32.mrb[0].mxu0
      %v1660 = vpop.f32.mrb[0].mxu0
      %v1661 = vadd.f32 0.0, %v1660
      %v1662 = vpop.f32.mrb[0].mxu0
      %1663 = vmatprep.mubr.bf16.mxu0 0
      %1664 = vmatmul.mubr.bf16.gmra.mrb[0].mxu0 %v1197
      %v1665 = vpop.f32.mrb[0].mxu0
      %v1666 = vadd.f32 0.0, %v1665
      %v1667 = vpop.f32.mrb[0].mxu0
      %v1668 = vpop.f32.mrb[0].mxu0
      %v1669 = vadd.f32 0.0, %v1668
      %v1670 = vpop.f32.mrb[0].mxu0
      %1671 = vmatprep.mubr.bf16.mxu0 0
      %1672 = vmatmul.mubr.bf16.gmra.mrb[0].mxu0 %v1200
      %v1673 = vpop.f32.mrb[0].mxu0
      %v1674 = vadd.f32 0.0, %v1673
      %v1675 = vpop.f32.mrb[0].mxu0
      %v1676 = vpop.f32.mrb[0].mxu0
      %v1677 = vadd.f32 0.0, %v1676
      %v1678 = vpop.f32.mrb[0].mxu0
      %1679 = vmatprep.mubr.bf16.mxu0 0
      %1680 = vmatmul.mubr.bf16.gmra.mrb[0].mxu0 %v1203
      %v1681 = vpop.f32.mrb[0].mxu0
      %v1682 = vadd.f32 0.0, %v1681
      %v1683 = vpop.f32.mrb[0].mxu0
      %v1684 = vpop.f32.mrb[0].mxu0
      %v1685 = vadd.f32 0.0, %v1684
      %v1686 = vpop.f32.mrb[0].mxu0
      %1687 = vmatprep.mubr.bf16.mxu0 0
      %1688 = vmatmul.mubr.bf16.gmra.mrb[0].mxu0 %v1379
      %v1689 = vpop.f32.mrb[0].mxu0
      %v1690 = vadd.f32 0.0, %v1689
      %v1691 = vpop.f32.mrb[0].mxu0
      %v1692 = vpop.f32.mrb[0].mxu0
      %v1693 = vadd.f32 0.0, %v1692
      %v1694 = vpop.f32.mrb[0].mxu0
      %1695 = vmatprep.mubr.bf16.mxu0 0
      %1696 = vmatmul.mubr.bf16.gmra.mrb[0].mxu0 %v1379
      %v1697 = vpop.f32.mrb[0].mxu0
      %v1698 = vadd.f32 0.0, %v1697
      %v1699 = vpop.f32.mrb[0].mxu0
      %v1700 = vpop.f32.mrb[0].mxu0
      %v1701 = vadd.f32 0.0, %v1700
      %v1702 = vpop.f32.mrb[0].mxu0
      %1703 = vmatprep.mubr.bf16.mxu0 0
      %1704 = vmatmul.mubr.bf16.gmra.mrb[0].mxu0 %v1379
      %v1705 = vpop.f32.mrb[0].mxu0
      %v1706 = vadd.f32 0.0, %v1705
      %v1707 = vpop.f32.mrb[0].mxu0
      %v1708 = vpop.f32.mrb[0].mxu0
      %v1709 = vadd.f32 0.0, %v1708
      %v1710 = vpop.f32.mrb[0].mxu0
      %1711 = vmatprep.mubr.bf16.mxu0 0
      %1712 = vmatmul.mubr.bf16.gmra.mrb[0].mxu0 %v1379
      %v1713 = vpop.f32.mrb[0].mxu0
      %v1714 = vadd.f32 0.0, %v1713
      %v1715 = vpop.f32.mrb[0].mxu0
      %v1716 = vpop.f32.mrb[0].mxu0
      %v1717 = vadd.f32 0.0, %v1716
      %v1718 = vpop.f32.mrb[0].mxu0
      %1719 = vdwg.mxu0
      %v1720 = vadd.f32 %v1416, %v1594
      %v1721 = vadd.f32 %v1419, %v1597
      %v1722 = vadd.f32 %v1424, %v1602
      %v1723 = vadd.f32 %v1427, %v1605
      %v1724 = vadd.f32 %v1432, %v1610
      %v1725 = vadd.f32 %v1435, %v1613
      %v1726 = vadd.f32 %v1440, %v1618
      %v1727 = vadd.f32 %v1443, %v1621
      %v1728 = vadd.f32 %v1448, %v1626
      %v1729 = vadd.f32 %v1451, %v1629
      %v1730 = vadd.f32 %v1456, %v1634
      %v1731 = vadd.f32 %v1459, %v1637
      %v1732 = vadd.f32 %v1464, %v1642
      %v1733 = vadd.f32 %v1467, %v1645
      %v1734 = vadd.f32 %v1472, %v1650
      %v1735 = vadd.f32 %v1475, %v1653
      %v1736 = vadd.f32 %v1480, %v1658
      %v1737 = vadd.f32 %v1483, %v1661
      %v1738 = vadd.f32 %v1488, %v1666
      %v1739 = vadd.f32 %v1491, %v1669
      %v1740 = vadd.f32 %v1496, %v1674
      %v1741 = vadd.f32 %v1499, %v1677
      %v1742 = vadd.f32 %v1504, %v1682
      %v1743 = vadd.f32 %v1507, %v1685
      %v1744 = vadd.f32 %v1512, %v1690
      %v1745 = vadd.f32 %v1515, %v1693
      %v1746 = vadd.f32 %v1520, %v1698
      %v1747 = vadd.f32 %v1523, %v1701
      %v1748 = vadd.f32 %v1528, %v1706
      %v1749 = vadd.f32 %v1531, %v1709
      %v1750 = vadd.f32 %v1536, %v1714
      %v1751 = vadd.f32 %v1539, %v1717
      %v1753 = vlaneseq
      %v1754 = vshrl.u32 %v1753, 7
      %v1755 = vsub.s32 0, %v1754
      %v1756 = vrot.slane %v1119, %v1755
      %v1758 = vadd.f32 %v1720, %v1756
      %v1759 = vadd.f32 %v1721, %v1756
      %v1760 = vadd.f32 %v1722, %v1756
      %v1761 = vadd.f32 %v1723, %v1756
      %v1762 = vadd.f32 %v1724, %v1756
      %v1763 = vadd.f32 %v1725, %v1756
      %v1764 = vadd.f32 %v1726, %v1756
      %v1765 = vadd.f32 %v1727, %v1756
      %v1766 = vadd.f32 %v1728, %v1756
      %v1767 = vadd.f32 %v1729, %v1756
      %v1768 = vadd.f32 %v1730, %v1756
      %v1769 = vadd.f32 %v1731, %v1756
      %v1770 = vadd.f32 %v1732, %v1756
      %v1771 = vadd.f32 %v1733, %v1756
      %v1772 = vadd.f32 %v1734, %v1756
      %v1773 = vadd.f32 %v1735, %v1756
      %v1774 = vadd.f32 %v1736, %v1756
      %v1775 = vadd.f32 %v1737, %v1756
      %v1776 = vadd.f32 %v1738, %v1756
      %v1777 = vadd.f32 %v1739, %v1756
      %v1778 = vadd.f32 %v1740, %v1756
      %v1779 = vadd.f32 %v1741, %v1756
      %v1780 = vadd.f32 %v1742, %v1756
      %v1781 = vadd.f32 %v1743, %v1756
      %v1782 = vadd.f32 %v1744, %v1756
      %v1783 = vadd.f32 %v1745, %v1756
      %v1784 = vadd.f32 %v1746, %v1756
      %v1785 = vadd.f32 %v1747, %v1756
      %v1786 = vadd.f32 %v1748, %v1756
      %v1787 = vadd.f32 %v1749, %v1756
      %v1788 = vadd.f32 %v1750, %v1756
      %v1789 = vadd.f32 %v1751, %v1756
      %v1790 = vld [vmem:[%s6] sm:$0x1]
      %v1791 = vld [vmem:[%s7] sm:$0x1]
      %v1792 = vsel %vm463, %v1758, 0.0
      %v1793 = vsel %vm463, %v1759, 0.0
      %v1794 = vadd.f32 %v1792, %v1793
      %v1795 = vsel %vm463, %v1760, 0.0
      %v1796 = vadd.f32 %v1794, %v1795
      %v1797 = vsel %vm463, %v1761, 0.0
      %v1798 = vadd.f32 %v1796, %v1797
      %v1799 = vsel %vm463, %v1762, 0.0
      %v1800 = vadd.f32 %v1798, %v1799
      %v1801 = vsel %vm463, %v1763, 0.0
      %v1802 = vadd.f32 %v1800, %v1801
      %v1803 = vsel %vm463, %v1764, 0.0
      %v1804 = vadd.f32 %v1802, %v1803
      %v1805 = vsel %vm463, %v1765, 0.0
      %v1806 = vadd.f32 %v1804, %v1805
      %v1807 = vsel %vm463, %v1766, 0.0
      %v1808 = vadd.f32 %v1806, %v1807
      %v1809 = vsel %vm463, %v1767, 0.0
      %v1810 = vadd.f32 %v1808, %v1809
      %v1811 = vsel %vm463, %v1768, 0.0
      %v1812 = vadd.f32 %v1810, %v1811
      %v1813 = vsel %vm463, %v1769, 0.0
      %v1814 = vadd.f32 %v1812, %v1813
      %v1815 = vsel %vm463, %v1770, 0.0
      %v1816 = vadd.f32 %v1814, %v1815
      %v1817 = vsel %vm463, %v1771, 0.0
      %v1818 = vadd.f32 %v1816, %v1817
      %v1819 = vsel %vm463, %v1772, 0.0
      %v1820 = vadd.f32 %v1818, %v1819
      %v1821 = vsel %vm463, %v1773, 0.0
      %v1822 = vadd.f32 %v1820, %v1821
      %v1823 = vsel %vm463, %v1774, 0.0
      %v1824 = vadd.f32 %v1822, %v1823
      %v1825 = vsel %vm463, %v1775, 0.0
      %v1826 = vadd.f32 %v1824, %v1825
      %v1827 = vsel %vm463, %v1776, 0.0
      %v1828 = vadd.f32 %v1826, %v1827
      %v1829 = vsel %vm463, %v1777, 0.0
      %v1830 = vadd.f32 %v1828, %v1829
      %v1831 = vsel %vm463, %v1778, 0.0
      %v1832 = vadd.f32 %v1830, %v1831
      %v1833 = vsel %vm463, %v1779, 0.0
      %v1834 = vadd.f32 %v1832, %v1833
      %v1835 = vsel %vm463, %v1780, 0.0
      %v1836 = vadd.f32 %v1834, %v1835
      %v1837 = vsel %vm463, %v1781, 0.0
      %v1838 = vadd.f32 %v1836, %v1837
      %v1839 = vsel %vm463, %v1782, 0.0
      %v1840 = vadd.f32 %v1838, %v1839
      %v1841 = vsel %vm463, %v1783, 0.0
      %v1842 = vadd.f32 %v1840, %v1841
      %v1843 = vsel %vm463, %v1784, 0.0
      %v1844 = vadd.f32 %v1842, %v1843
      %v1845 = vsel %vm463, %v1785, 0.0
      %v1846 = vadd.f32 %v1844, %v1845
      %v1847 = vsel %vm463, %v1786, 0.0
      %v1848 = vadd.f32 %v1846, %v1847
      %v1849 = vsel %vm463, %v1787, 0.0
      %v1850 = vadd.f32 %v1848, %v1849
      %v1851 = vsel %vm463, %v1788, 0.0
      %v1852 = vadd.f32 %v1850, %v1851
      %v1853 = vsel %vm463, %v1789, 0.0
      %v1854 = vadd.f32 %v1852, %v1853
      %v1855 = vrot.slane %v1854, 4
      %v1856 = vadd.f32 %v1854, %v1855
      %v1857 = vrot.slane %v1856, 2
      %v1858 = vadd.f32 %v1856, %v1857
      %v1859 = vrot.slane %v1858, 1
      %v1860 = vadd.f32 %v1858, %v1859
      %v1862 = vsel %vm463, %v1860, 0
      %1864 = vmatprep.subr.mxu0 0.0
      %1865 = vmatpush1.msra.mxu0 %v457
      %1866 = vmatprep.subr.mxu0 0.0
      %1867 = vmatpush1.msra.mxu0 %v458
      %1868 = vmatprep.subr.mxu0 0.0
      %1869 = vmatpush1.msra.mxu0 %v459
      %1870 = vmatprep.subr.mxu0 0.0
      %1871 = vmatpush1.msra.mxu0 %v460
      %1872 = vmatprep.subr.mxu0 0.0
      %1873 = vmatpush1.msra.mxu0 0.0
      %1874 = vmatprep.subr.mxu0 0.0
      %1875 = vmatpush1.msra.mxu0 0.0
      %1876 = vmatprep.subr.mxu0 0.0
      %1877 = vmatpush1.msra.mxu0 0.0
      %1878 = vmatprep.subr.mxu0 0.0
      %1879 = vmatpush1.msra.mxu0 0.0
      %1880 = vmatprep.subr.mxu0 0.0
      %1881 = vmatpush1.msra.mxu0 0.0
      %1882 = vmatprep.subr.mxu0 0.0
      %1883 = vmatpush1.msra.mxu0 0.0
      %1884 = vmatprep.subr.mxu0 0.0
      %1885 = vmatpush1.msra.mxu0 0.0
      %1886 = vmatprep.subr.mxu0 0.0
      %1887 = vmatpush1.msra.mxu0 0.0
      %1888 = vmatprep.subr.mxu0 0.0
      %1889 = vmatpush1.msra.mxu0 0.0
      %1890 = vmatprep.subr.mxu0 0.0
      %1891 = vmatpush1.msra.mxu0 0.0
      %1892 = vmatprep.subr.mxu0 0.0
      %1893 = vmatpush1.msra.mxu0 0.0
      %1894 = vmatprep.subr.mxu0 0.0
      %1895 = vmatpush1.msra.mxu0 0.0
      %1896 = vmatprep.subr.mxu0 0.0
      %1897 = vmatpush1.msra.mxu0 0.0
      %1898 = vmatprep.subr.mxu0 0.0
      %1899 = vmatpush1.msra.mxu0 0.0
      %1900 = vmatprep.subr.mxu0 0.0
      %1901 = vmatpush1.msra.mxu0 0.0
      %1902 = vmatprep.subr.mxu0 0.0
      %1903 = vmatpush1.msra.mxu0 0.0
      %1904 = vmatprep.subr.mxu0 0.0
      %1905 = vmatpush1.msra.mxu0 0.0
      %1906 = vmatprep.subr.mxu0 0.0
      %1907 = vmatpush1.msra.mxu0 0.0
      %1908 = vmatprep.subr.mxu0 0.0
      %1909 = vmatpush1.msra.mxu0 0.0
      %1910 = vmatprep.subr.mxu0 0.0
      %1911 = vmatpush1.msra.mxu0 0.0
      %1912 = vmatprep.subr.mxu0 0.0
      %1913 = vmatpush1.msra.mxu0 0.0
      %1914 = vmatprep.subr.mxu0 0.0
      %1915 = vmatpush1.msra.mxu0 0.0
      %1916 = vmatprep.subr.mxu0 0.0
      %1917 = vmatpush1.msra.mxu0 0.0
      %1918 = vmatprep.subr.mxu0 0.0
      %1919 = vmatpush1.msra.mxu0 0.0
      %1920 = vmatprep.subr.mxu0 0.0
      %1921 = vmatpush1.msra.mxu0 0.0
      %1922 = vmatprep.subr.mxu0 0.0
      %1923 = vmatpush1.msra.mxu0 0.0
      %1924 = vmatprep.subr.mxu0 0.0
      %1925 = vmatpush1.msra.mxu0 0.0
      %1926 = vmatprep.subr.mxu0 0.0
      %1927 = vmatpush1.msra.mxu0 0.0
      %1928 = vmatprep.mubr.f32.mxu0 0.0
      %1929 = vmatmul.mubr.f32.gmra.mrb[0].mxu0 %v1862
      %v1930 = vpop.f32.mrb[0].mxu0
      %v1931 = vadd.f32 0.0, %v1930
      %v1932 = vpop.f32.mrb[0].mxu0
      %1933 = vdwg.mxu0
      %v1934 = vmul.f32 %v1931, 0.00390625
      %v1935 = vlaneseq
      %v1936 = vshrl.u32 %v1935, 7
      %v1937 = vsub.s32 0, %v1936
      %v1938 = vrot.slane %v1934, %v1937
      %v1939 = vsub.f32 %v1758, %v1938
      %v1940 = vsub.f32 %v1759, %v1938
      %v1941 = vsub.f32 %v1760, %v1938
      %v1942 = vsub.f32 %v1761, %v1938
      %v1943 = vsub.f32 %v1762, %v1938
      %v1944 = vsub.f32 %v1763, %v1938
      %v1945 = vsub.f32 %v1764, %v1938
      %v1946 = vsub.f32 %v1765, %v1938
      %v1947 = vsub.f32 %v1766, %v1938
      %v1948 = vsub.f32 %v1767, %v1938
      %v1949 = vsub.f32 %v1768, %v1938
      %v1950 = vsub.f32 %v1769, %v1938
      %v1951 = vsub.f32 %v1770, %v1938
      %v1952 = vsub.f32 %v1771, %v1938
      %v1953 = vsub.f32 %v1772, %v1938
      %v1954 = vsub.f32 %v1773, %v1938
      %v1955 = vsub.f32 %v1774, %v1938
      %v1956 = vsub.f32 %v1775, %v1938
      %v1957 = vsub.f32 %v1776, %v1938
      %v1958 = vsub.f32 %v1777, %v1938
      %v1959 = vsub.f32 %v1778, %v1938
      %v1960 = vsub.f32 %v1779, %v1938
      %v1961 = vsub.f32 %v1780, %v1938
      %v1962 = vsub.f32 %v1781, %v1938
      %v1963 = vsub.f32 %v1782, %v1938
      %v1964 = vsub.f32 %v1783, %v1938
      %v1965 = vsub.f32 %v1784, %v1938
      %v1966 = vsub.f32 %v1785, %v1938
      %v1967 = vsub.f32 %v1786, %v1938
      %v1968 = vsub.f32 %v1787, %v1938
      %v1969 = vsub.f32 %v1788, %v1938
      %v1970 = vsub.f32 %v1789, %v1938
      %v1971 = vmul.f32 %v1939, %v1939
      %v1972 = vmul.f32 %v1940, %v1940
      %v1973 = vmul.f32 %v1941, %v1941
      %v1974 = vmul.f32 %v1942, %v1942
      %v1975 = vmul.f32 %v1943, %v1943
      %v1976 = vmul.f32 %v1944, %v1944
      %v1977 = vmul.f32 %v1945, %v1945
      %v1978 = vmul.f32 %v1946, %v1946
      %v1979 = vmul.f32 %v1947, %v1947
      %v1980 = vmul.f32 %v1948, %v1948
      %v1981 = vmul.f32 %v1949, %v1949
      %v1982 = vmul.f32 %v1950, %v1950
      %v1983 = vmul.f32 %v1951, %v1951
      %v1984 = vmul.f32 %v1952, %v1952
      %v1985 = vmul.f32 %v1953, %v1953
      %v1986 = vmul.f32 %v1954, %v1954
      %v1987 = vmul.f32 %v1955, %v1955
      %v1988 = vmul.f32 %v1956, %v1956
      %v1989 = vmul.f32 %v1957, %v1957
      %v1990 = vmul.f32 %v1958, %v1958
      %v1991 = vmul.f32 %v1959, %v1959
      %v1992 = vmul.f32 %v1960, %v1960
      %v1993 = vmul.f32 %v1961, %v1961
      %v1994 = vmul.f32 %v1962, %v1962
      %v1995 = vmul.f32 %v1963, %v1963
      %v1996 = vmul.f32 %v1964, %v1964
      %v1997 = vmul.f32 %v1965, %v1965
      %v1998 = vmul.f32 %v1966, %v1966
      %v1999 = vmul.f32 %v1967, %v1967
      %v2000 = vmul.f32 %v1968, %v1968
      %v2001 = vmul.f32 %v1969, %v1969
      %v2002 = vmul.f32 %v1970, %v1970
      %v2003 = vsel %vm463, %v1971, 0.0
      %v2004 = vsel %vm463, %v1972, 0.0
      %v2005 = vadd.f32 %v2003, %v2004
      %v2006 = vsel %vm463, %v1973, 0.0
      %v2007 = vadd.f32 %v2005, %v2006
      %v2008 = vsel %vm463, %v1974, 0.0
      %v2009 = vadd.f32 %v2007, %v2008
      %v2010 = vsel %vm463, %v1975, 0.0
      %v2011 = vadd.f32 %v2009, %v2010
      %v2012 = vsel %vm463, %v1976, 0.0
      %v2013 = vadd.f32 %v2011, %v2012
      %v2014 = vsel %vm463, %v1977, 0.0
      %v2015 = vadd.f32 %v2013, %v2014
      %v2016 = vsel %vm463, %v1978, 0.0
      %v2017 = vadd.f32 %v2015, %v2016
      %v2018 = vsel %vm463, %v1979, 0.0
      %v2019 = vadd.f32 %v2017, %v2018
      %v2020 = vsel %vm463, %v1980, 0.0
      %v2021 = vadd.f32 %v2019, %v2020
      %v2022 = vsel %vm463, %v1981, 0.0
      %v2023 = vadd.f32 %v2021, %v2022
      %v2024 = vsel %vm463, %v1982, 0.0
      %v2025 = vadd.f32 %v2023, %v2024
      %v2026 = vsel %vm463, %v1983, 0.0
      %v2027 = vadd.f32 %v2025, %v2026
      %v2028 = vsel %vm463, %v1984, 0.0
      %v2029 = vadd.f32 %v2027, %v2028
      %v2030 = vsel %vm463, %v1985, 0.0
      %v2031 = vadd.f32 %v2029, %v2030
      %v2032 = vsel %vm463, %v1986, 0.0
      %v2033 = vadd.f32 %v2031, %v2032
      %v2034 = vsel %vm463, %v1987, 0.0
      %v2035 = vadd.f32 %v2033, %v2034
      %v2036 = vsel %vm463, %v1988, 0.0
      %v2037 = vadd.f32 %v2035, %v2036
      %v2038 = vsel %vm463, %v1989, 0.0
      %v2039 = vadd.f32 %v2037, %v2038
      %v2040 = vsel %vm463, %v1990, 0.0
      %v2041 = vadd.f32 %v2039, %v2040
      %v2042 = vsel %vm463, %v1991, 0.0
      %v2043 = vadd.f32 %v2041, %v2042
      %v2044 = vsel %vm463, %v1992, 0.0
      %v2045 = vadd.f32 %v2043, %v2044
      %v2046 = vsel %vm463, %v1993, 0.0
      %v2047 = vadd.f32 %v2045, %v2046
      %v2048 = vsel %vm463, %v1994, 0.0
      %v2049 = vadd.f32 %v2047, %v2048
      %v2050 = vsel %vm463, %v1995, 0.0
      %v2051 = vadd.f32 %v2049, %v2050
      %v2052 = vsel %vm463, %v1996, 0.0
      %v2053 = vadd.f32 %v2051, %v2052
      %v2054 = vsel %vm463, %v1997, 0.0
      %v2055 = vadd.f32 %v2053, %v2054
      %v2056 = vsel %vm463, %v1998, 0.0
      %v2057 = vadd.f32 %v2055, %v2056
      %v2058 = vsel %vm463, %v1999, 0.0
      %v2059 = vadd.f32 %v2057, %v2058
      %v2060 = vsel %vm463, %v2000, 0.0
      %v2061 = vadd.f32 %v2059, %v2060
      %v2062 = vsel %vm463, %v2001, 0.0
      %v2063 = vadd.f32 %v2061, %v2062
      %v2064 = vsel %vm463, %v2002, 0.0
      %v2065 = vadd.f32 %v2063, %v2064
      %v2066 = vrot.slane %v2065, 4
      %v2067 = vadd.f32 %v2065, %v2066
      %v2068 = vrot.slane %v2067, 2
      %v2069 = vadd.f32 %v2067, %v2068
      %v2070 = vrot.slane %v2069, 1
      %v2071 = vadd.f32 %v2069, %v2070
      %v2073 = vsel %vm463, %v2071, 0
      %2075 = vmatprep.subr.mxu0 0.0
      %2076 = vmatpush1.msra.mxu0 %v457
      %2077 = vmatprep.subr.mxu0 0.0
      %2078 = vmatpush1.msra.mxu0 %v458
      %2079 = vmatprep.subr.mxu0 0.0
      %2080 = vmatpush1.msra.mxu0 %v459
      %2081 = vmatprep.subr.mxu0 0.0
      %2082 = vmatpush1.msra.mxu0 %v460
      %2083 = vmatprep.subr.mxu0 0.0
      %2084 = vmatpush1.msra.mxu0 0.0
      %2085 = vmatprep.subr.mxu0 0.0
      %2086 = vmatpush1.msra.mxu0 0.0
      %2087 = vmatprep.subr.mxu0 0.0
      %2088 = vmatpush1.msra.mxu0 0.0
      %2089 = vmatprep.subr.mxu0 0.0
      %2090 = vmatpush1.msra.mxu0 0.0
      %2091 = vmatprep.subr.mxu0 0.0
      %2092 = vmatpush1.msra.mxu0 0.0
      %2093 = vmatprep.subr.mxu0 0.0
      %2094 = vmatpush1.msra.mxu0 0.0
      %2095 = vmatprep.subr.mxu0 0.0
      %2096 = vmatpush1.msra.mxu0 0.0
      %2097 = vmatprep.subr.mxu0 0.0
      %2098 = vmatpush1.msra.mxu0 0.0
      %2099 = vmatprep.subr.mxu0 0.0
      %2100 = vmatpush1.msra.mxu0 0.0
      %2101 = vmatprep.subr.mxu0 0.0
      %2102 = vmatpush1.msra.mxu0 0.0
      %2103 = vmatprep.subr.mxu0 0.0
      %2104 = vmatpush1.msra.mxu0 0.0
      %2105 = vmatprep.subr.mxu0 0.0
      %2106 = vmatpush1.msra.mxu0 0.0
      %2107 = vmatprep.subr.mxu0 0.0
      %2108 = vmatpush1.msra.mxu0 0.0
      %2109 = vmatprep.subr.mxu0 0.0
      %2110 = vmatpush1.msra.mxu0 0.0
      %2111 = vmatprep.subr.mxu0 0.0
      %2112 = vmatpush1.msra.mxu0 0.0
      %2113 = vmatprep.subr.mxu0 0.0
      %2114 = vmatpush1.msra.mxu0 0.0
      %2115 = vmatprep.subr.mxu0 0.0
      %2116 = vmatpush1.msra.mxu0 0.0
      %2117 = vmatprep.subr.mxu0 0.0
      %2118 = vmatpush1.msra.mxu0 0.0
      %2119 = vmatprep.subr.mxu0 0.0
      %2120 = vmatpush1.msra.mxu0 0.0
      %2121 = vmatprep.subr.mxu0 0.0
      %2122 = vmatpush1.msra.mxu0 0.0
      %2123 = vmatprep.subr.mxu0 0.0
      %2124 = vmatpush1.msra.mxu0 0.0
      %2125 = vmatprep.subr.mxu0 0.0
      %2126 = vmatpush1.msra.mxu0 0.0
      %2127 = vmatprep.subr.mxu0 0.0
      %2128 = vmatpush1.msra.mxu0 0.0
      %2129 = vmatprep.subr.mxu0 0.0
      %2130 = vmatpush1.msra.mxu0 0.0
      %2131 = vmatprep.subr.mxu0 0.0
      %2132 = vmatpush1.msra.mxu0 0.0
      %2133 = vmatprep.subr.mxu0 0.0
      %2134 = vmatpush1.msra.mxu0 0.0
      %2135 = vmatprep.subr.mxu0 0.0
      %2136 = vmatpush1.msra.mxu0 0.0
      %2137 = vmatprep.subr.mxu0 0.0
      %2138 = vmatpush1.msra.mxu0 0.0
      %2139 = vmatprep.mubr.f32.mxu0 0.0
      %2140 = vmatmul.mubr.f32.gmra.mrb[0].mxu0 %v2073
      %v2141 = vpop.f32.mrb[0].mxu0
      %v2142 = vadd.f32 0.0, %v2141
      %v2143 = vpop.f32.mrb[0].mxu0
      %2144 = vdwg.mxu0
      %v2145 = vmul.f32 %v2142, 0.00390625
      %v2146 = vadd.f32 %v2145, 1e-05
      %v2147 = vrsqrt.pop %v2146
      %v2148 = vmul.f32 %v2147, %v1790
      %v2149 = vlaneseq
      %v2150 = vshrl.u32 %v2149, 7
      %v2151 = vsub.s32 0, %v2150
      %v2152 = vrot.slane %v2148, %v2151
      %v2153 = vmul.f32 %v1939, %v2152
      %v2154 = vmul.f32 %v1940, %v2152
      %v2155 = vmul.f32 %v1941, %v2152
      %v2156 = vmul.f32 %v1942, %v2152
      %v2157 = vmul.f32 %v1943, %v2152
      %v2158 = vmul.f32 %v1944, %v2152
      %v2159 = vmul.f32 %v1945, %v2152
      %v2160 = vmul.f32 %v1946, %v2152
      %v2161 = vmul.f32 %v1947, %v2152
      %v2162 = vmul.f32 %v1948, %v2152
      %v2163 = vmul.f32 %v1949, %v2152
      %v2164 = vmul.f32 %v1950, %v2152
      %v2165 = vmul.f32 %v1951, %v2152
      %v2166 = vmul.f32 %v1952, %v2152
      %v2167 = vmul.f32 %v1953, %v2152
      %v2168 = vmul.f32 %v1954, %v2152
      %v2169 = vmul.f32 %v1955, %v2152
      %v2170 = vmul.f32 %v1956, %v2152
      %v2171 = vmul.f32 %v1957, %v2152
      %v2172 = vmul.f32 %v1958, %v2152
      %v2173 = vmul.f32 %v1959, %v2152
      %v2174 = vmul.f32 %v1960, %v2152
      %v2175 = vmul.f32 %v1961, %v2152
      %v2176 = vmul.f32 %v1962, %v2152
      %v2177 = vmul.f32 %v1963, %v2152
      %v2178 = vmul.f32 %v1964, %v2152
      %v2179 = vmul.f32 %v1965, %v2152
      %v2180 = vmul.f32 %v1966, %v2152
      %v2181 = vmul.f32 %v1967, %v2152
      %v2182 = vmul.f32 %v1968, %v2152
      %v2183 = vmul.f32 %v1969, %v2152
      %v2184 = vmul.f32 %v1970, %v2152
      %v2186 = vlaneseq
      %v2187 = vshrl.u32 %v2186, 7
      %v2188 = vsub.s32 0, %v2187
      %v2189 = vrot.slane %v1791, %v2188
      %v2191 = vadd.f32 %v2153, %v2189
      %v2192 = vadd.f32 %v2154, %v2189
      %v2193 = vadd.f32 %v2155, %v2189
      %v2194 = vadd.f32 %v2156, %v2189
      %v2195 = vadd.f32 %v2157, %v2189
      %v2196 = vadd.f32 %v2158, %v2189
      %v2197 = vadd.f32 %v2159, %v2189
      %v2198 = vadd.f32 %v2160, %v2189
      %v2199 = vadd.f32 %v2161, %v2189
      %v2200 = vadd.f32 %v2162, %v2189
      %v2201 = vadd.f32 %v2163, %v2189
      %v2202 = vadd.f32 %v2164, %v2189
      %v2203 = vadd.f32 %v2165, %v2189
      %v2204 = vadd.f32 %v2166, %v2189
      %v2205 = vadd.f32 %v2167, %v2189
      %v2206 = vadd.f32 %v2168, %v2189
      %v2207 = vadd.f32 %v2169, %v2189
      %v2208 = vadd.f32 %v2170, %v2189
      %v2209 = vadd.f32 %v2171, %v2189
      %v2210 = vadd.f32 %v2172, %v2189
      %v2211 = vadd.f32 %v2173, %v2189
      %v2212 = vadd.f32 %v2174, %v2189
      %v2213 = vadd.f32 %v2175, %v2189
      %v2214 = vadd.f32 %v2176, %v2189
      %v2215 = vadd.f32 %v2177, %v2189
      %v2216 = vadd.f32 %v2178, %v2189
      %v2217 = vadd.f32 %v2179, %v2189
      %v2218 = vadd.f32 %v2180, %v2189
      %v2219 = vadd.f32 %v2181, %v2189
      %v2220 = vadd.f32 %v2182, %v2189
      %v2221 = vadd.f32 %v2183, %v2189
      %v2222 = vadd.f32 %v2184, %v2189
      %v2223 = vxor.u32 %v2191, 2147483648
      %v2224 = vxor.u32 %v2192, 2147483648
      %v2225 = vxor.u32 %v2193, 2147483648
      %v2226 = vxor.u32 %v2194, 2147483648
      %v2227 = vxor.u32 %v2195, 2147483648
      %v2228 = vxor.u32 %v2196, 2147483648
      %v2229 = vxor.u32 %v2197, 2147483648
      %v2230 = vxor.u32 %v2198, 2147483648
      %v2231 = vxor.u32 %v2199, 2147483648
      %v2232 = vxor.u32 %v2200, 2147483648
      %v2233 = vxor.u32 %v2201, 2147483648
      %v2234 = vxor.u32 %v2202, 2147483648
      %v2235 = vxor.u32 %v2203, 2147483648
      %v2236 = vxor.u32 %v2204, 2147483648
      %v2237 = vxor.u32 %v2205, 2147483648
      %v2238 = vxor.u32 %v2206, 2147483648
      %v2239 = vxor.u32 %v2207, 2147483648
      %v2240 = vxor.u32 %v2208, 2147483648
      %v2241 = vxor.u32 %v2209, 2147483648
      %v2242 = vxor.u32 %v2210, 2147483648
      %v2243 = vxor.u32 %v2211, 2147483648
      %v2244 = vxor.u32 %v2212, 2147483648
      %v2245 = vxor.u32 %v2213, 2147483648
      %v2246 = vxor.u32 %v2214, 2147483648
      %v2247 = vxor.u32 %v2215, 2147483648
      %v2248 = vxor.u32 %v2216, 2147483648
      %v2249 = vxor.u32 %v2217, 2147483648
      %v2250 = vxor.u32 %v2218, 2147483648
      %v2251 = vxor.u32 %v2219, 2147483648
      %v2252 = vxor.u32 %v2220, 2147483648
      %v2253 = vxor.u32 %v2221, 2147483648
      %v2254 = vxor.u32 %v2222, 2147483648
      %v2255 = vmul.f32 %v2223, 1.442695
      %v2256 = vpow.pop %v2255
      %v2257 = vmul.f32 %v2224, 1.442695
      %v2258 = vpow.pop %v2257
      %v2259 = vmul.f32 %v2225, 1.442695
      %v2260 = vpow.pop %v2259
      %v2261 = vmul.f32 %v2226, 1.442695
      %v2262 = vpow.pop %v2261
      %v2263 = vmul.f32 %v2227, 1.442695
      %v2264 = vpow.pop %v2263
      %v2265 = vmul.f32 %v2228, 1.442695
      %v2266 = vpow.pop %v2265
      %v2267 = vmul.f32 %v2229, 1.442695
      %v2268 = vpow.pop %v2267
      %v2269 = vmul.f32 %v2230, 1.442695
      %v2270 = vpow.pop %v2269
      %v2271 = vmul.f32 %v2231, 1.442695
      %v2272 = vpow.pop %v2271
      %v2273 = vmul.f32 %v2232, 1.442695
      %v2274 = vpow.pop %v2273
      %v2275 = vmul.f32 %v2233, 1.442695
      %v2276 = vpow.pop %v2275
      %v2277 = vmul.f32 %v2234, 1.442695
      %v2278 = vpow.pop %v2277
      %v2279 = vmul.f32 %v2235, 1.442695
      %v2280 = vpow.pop %v2279
      %v2281 = vmul.f32 %v2236, 1.442695
      %v2282 = vpow.pop %v2281
      %v2283 = vmul.f32 %v2237, 1.442695
      %v2284 = vpow.pop %v2283
      %v2285 = vmul.f32 %v2238, 1.442695
      %v2286 = vpow.pop %v2285
      %v2287 = vmul.f32 %v2239, 1.442695
      %v2288 = vpow.pop %v2287
      %v2289 = vmul.f32 %v2240, 1.442695
      %v2290 = vpow.pop %v2289
      %v2291 = vmul.f32 %v2241, 1.442695
      %v2292 = vpow.pop %v2291
      %v2293 = vmul.f32 %v2242, 1.442695
      %v2294 = vpow.pop %v2293
      %v2295 = vmul.f32 %v2243, 1.442695
      %v2296 = vpow.pop %v2295
      %v2297 = vmul.f32 %v2244, 1.442695
      %v2298 = vpow.pop %v2297
      %v2299 = vmul.f32 %v2245, 1.442695
      %v2300 = vpow.pop %v2299
      %v2301 = vmul.f32 %v2246, 1.442695
      %v2302 = vpow.pop %v2301
      %v2303 = vmul.f32 %v2247, 1.442695
      %v2304 = vpow.pop %v2303
      %v2305 = vmul.f32 %v2248, 1.442695
      %v2306 = vpow.pop %v2305
      %v2307 = vmul.f32 %v2249, 1.442695
      %v2308 = vpow.pop %v2307
      %v2309 = vmul.f32 %v2250, 1.442695
      %v2310 = vpow.pop %v2309
      %v2311 = vmul.f32 %v2251, 1.442695
      %v2312 = vpow.pop %v2311
      %v2313 = vmul.f32 %v2252, 1.442695
      %v2314 = vpow.pop %v2313
      %v2315 = vmul.f32 %v2253, 1.442695
      %v2316 = vpow.pop %v2315
      %v2317 = vmul.f32 %v2254, 1.442695
      %v2318 = vpow.pop %v2317
      %v2319 = vadd.f32 %v2256, 1.0
      %v2320 = vadd.f32 %v2258, 1.0
      %v2321 = vadd.f32 %v2260, 1.0
      %v2322 = vadd.f32 %v2262, 1.0
      %v2323 = vadd.f32 %v2264, 1.0
      %v2324 = vadd.f32 %v2266, 1.0
      %v2325 = vadd.f32 %v2268, 1.0
      %v2326 = vadd.f32 %v2270, 1.0
      %v2327 = vadd.f32 %v2272, 1.0
      %v2328 = vadd.f32 %v2274, 1.0
      %v2329 = vadd.f32 %v2276, 1.0
      %v2330 = vadd.f32 %v2278, 1.0
      %v2331 = vadd.f32 %v2280, 1.0
      %v2332 = vadd.f32 %v2282, 1.0
      %v2333 = vadd.f32 %v2284, 1.0
      %v2334 = vadd.f32 %v2286, 1.0
      %v2335 = vadd.f32 %v2288, 1.0
      %v2336 = vadd.f32 %v2290, 1.0
      %v2337 = vadd.f32 %v2292, 1.0
      %v2338 = vadd.f32 %v2294, 1.0
      %v2339 = vadd.f32 %v2296, 1.0
      %v2340 = vadd.f32 %v2298, 1.0
      %v2341 = vadd.f32 %v2300, 1.0
      %v2342 = vadd.f32 %v2302, 1.0
      %v2343 = vadd.f32 %v2304, 1.0
      %v2344 = vadd.f32 %v2306, 1.0
      %v2345 = vadd.f32 %v2308, 1.0
      %v2346 = vadd.f32 %v2310, 1.0
      %v2347 = vadd.f32 %v2312, 1.0
      %v2348 = vadd.f32 %v2314, 1.0
      %v2349 = vadd.f32 %v2316, 1.0
      %v2350 = vadd.f32 %v2318, 1.0
      %v2351 = vrcp.pop %v2319
      %v2352 = vmul.f32 1.0, %v2351
      %v2353 = vrcp.pop %v2320
      %v2354 = vmul.f32 1.0, %v2353
      %v2355 = vrcp.pop %v2321
      %v2356 = vmul.f32 1.0, %v2355
      %v2357 = vrcp.pop %v2322
      %v2358 = vmul.f32 1.0, %v2357
      %v2359 = vrcp.pop %v2323
      %v2360 = vmul.f32 1.0, %v2359
      %v2361 = vrcp.pop %v2324
      %v2362 = vmul.f32 1.0, %v2361
      %v2363 = vrcp.pop %v2325
      %v2364 = vmul.f32 1.0, %v2363
      %v2365 = vrcp.pop %v2326
      %v2366 = vmul.f32 1.0, %v2365
      %v2367 = vrcp.pop %v2327
      %v2368 = vmul.f32 1.0, %v2367
      %v2369 = vrcp.pop %v2328
      %v2370 = vmul.f32 1.0, %v2369
      %v2371 = vrcp.pop %v2329
      %v2372 = vmul.f32 1.0, %v2371
      %v2373 = vrcp.pop %v2330
      %v2374 = vmul.f32 1.0, %v2373
      %v2375 = vrcp.pop %v2331
      %v2376 = vmul.f32 1.0, %v2375
      %v2377 = vrcp.pop %v2332
      %v2378 = vmul.f32 1.0, %v2377
      %v2379 = vrcp.pop %v2333
      %v2380 = vmul.f32 1.0, %v2379
      %v2381 = vrcp.pop %v2334
      %v2382 = vmul.f32 1.0, %v2381
      %v2383 = vrcp.pop %v2335
      %v2384 = vmul.f32 1.0, %v2383
      %v2385 = vrcp.pop %v2336
      %v2386 = vmul.f32 1.0, %v2385
      %v2387 = vrcp.pop %v2337
      %v2388 = vmul.f32 1.0, %v2387
      %v2389 = vrcp.pop %v2338
      %v2390 = vmul.f32 1.0, %v2389
      %v2391 = vrcp.pop %v2339
      %v2392 = vmul.f32 1.0, %v2391
      %v2393 = vrcp.pop %v2340
      %v2394 = vmul.f32 1.0, %v2393
      %v2395 = vrcp.pop %v2341
      %v2396 = vmul.f32 1.0, %v2395
      %v2397 = vrcp.pop %v2342
      %v2398 = vmul.f32 1.0, %v2397
      %v2399 = vrcp.pop %v2343
      %v2400 = vmul.f32 1.0, %v2399
      %v2401 = vrcp.pop %v2344
      %v2402 = vmul.f32 1.0, %v2401
      %v2403 = vrcp.pop %v2345
      %v2404 = vmul.f32 1.0, %v2403
      %v2405 = vrcp.pop %v2346
      %v2406 = vmul.f32 1.0, %v2405
      %v2407 = vrcp.pop %v2347
      %v2408 = vmul.f32 1.0, %v2407
      %v2409 = vrcp.pop %v2348
      %v2410 = vmul.f32 1.0, %v2409
      %v2411 = vrcp.pop %v2349
      %v2412 = vmul.f32 1.0, %v2411
      %v2413 = vrcp.pop %v2350
      %v2414 = vmul.f32 1.0, %v2413
      %v2415 = vmul.f32 %v2191, %v2352
      %v2416 = vmul.f32 %v2192, %v2354
      %v2417 = vmul.f32 %v2193, %v2356
      %v2418 = vmul.f32 %v2194, %v2358
      %v2419 = vmul.f32 %v2195, %v2360
      %v2420 = vmul.f32 %v2196, %v2362
      %v2421 = vmul.f32 %v2197, %v2364
      %v2422 = vmul.f32 %v2198, %v2366
      %v2423 = vmul.f32 %v2199, %v2368
      %v2424 = vmul.f32 %v2200, %v2370
      %v2425 = vmul.f32 %v2201, %v2372
      %v2426 = vmul.f32 %v2202, %v2374
      %v2427 = vmul.f32 %v2203, %v2376
      %v2428 = vmul.f32 %v2204, %v2378
      %v2429 = vmul.f32 %v2205, %v2380
      %v2430 = vmul.f32 %v2206, %v2382
      %v2431 = vmul.f32 %v2207, %v2384
      %v2432 = vmul.f32 %v2208, %v2386
      %v2433 = vmul.f32 %v2209, %v2388
      %v2434 = vmul.f32 %v2210, %v2390
      %v2435 = vmul.f32 %v2211, %v2392
      %v2436 = vmul.f32 %v2212, %v2394
      %v2437 = vmul.f32 %v2213, %v2396
      %v2438 = vmul.f32 %v2214, %v2398
      %v2439 = vmul.f32 %v2215, %v2400
      %v2440 = vmul.f32 %v2216, %v2402
      %v2441 = vmul.f32 %v2217, %v2404
      %v2442 = vmul.f32 %v2218, %v2406
      %v2443 = vmul.f32 %v2219, %v2408
      %v2444 = vmul.f32 %v2220, %v2410
      %v2445 = vmul.f32 %v2221, %v2412
      %v2446 = vmul.f32 %v2222, %v2414
      %v2447 = vld [vmem:[%s9] sm:$0x1]
      %v2448 = vpack.c.bf16 %v2416, %v2415
      %v2449 = vpack.c.bf16 %v2418, %v2417
      %v2450 = vpack.c.bf16 %v2420, %v2419
      %v2451 = vpack.c.bf16 %v2422, %v2421
      %v2452 = vpack.c.bf16 %v2424, %v2423
      %v2453 = vpack.c.bf16 %v2426, %v2425
      %v2454 = vpack.c.bf16 %v2428, %v2427
      %v2455 = vpack.c.bf16 %v2430, %v2429
      %v2456 = vpack.c.bf16 %v2432, %v2431
      %v2457 = vpack.c.bf16 %v2434, %v2433
      %v2458 = vpack.c.bf16 %v2436, %v2435
      %v2459 = vpack.c.bf16 %v2438, %v2437
      %v2460 = vpack.c.bf16 %v2440, %v2439
      %v2461 = vpack.c.bf16 %v2442, %v2441
      %v2462 = vpack.c.bf16 %v2444, %v2443
      %v2463 = vpack.c.bf16 %v2446, %v2445
      %v2464 = vld [vmem:[%s8] sm:$0xf]
      %v2465 = vld [vmem:[%s8 + $0x4] sm:$0xf]
      %v2466 = vld [vmem:[%s8 + $0x8] sm:$0xf]
      %v2467 = vld [vmem:[%s8 + $0xc] sm:$0xf]
      %s2468 = scalar_lea.vmem %s8, 16
      %v2469 = vld [vmem:[%s2468] sm:$0xf]
      %v2470 = vld [vmem:[%s2468 + $0x4] sm:$0xf]
      %v2471 = vld [vmem:[%s2468 + $0x8] sm:$0xf]
      %v2472 = vld [vmem:[%s2468 + $0xc] sm:$0xf]
      %v2477 = vunpack.c.l.b16 %v2469
      %v2478 = vunpack.c.l.b16 %v2470
      %v2479 = vunpack.c.l.b16 %v2471
      %v2480 = vunpack.c.l.b16 %v2472
      %v2481 = vpack.c.b16 %v2478, %v2477
      %v2482 = vpack.c.b16 %v2480, %v2479
      %v2486 = vsel %vm463, %v2448, 0
      %v2489 = vsel %vm463, %v2449, 0
      %v2492 = vsel %vm463, %v2450, 0
      %v2495 = vsel %vm463, %v2451, 0
      %v2498 = vsel %vm463, %v2452, 0
      %v2501 = vsel %vm463, %v2453, 0
      %v2504 = vsel %vm463, %v2454, 0
      %v2507 = vsel %vm463, %v2455, 0
      %v2510 = vsel %vm463, %v2456, 0
      %v2513 = vsel %vm463, %v2457, 0
      %v2516 = vsel %vm463, %v2458, 0
      %v2519 = vsel %vm463, %v2459, 0
      %v2522 = vsel %vm463, %v2460, 0
      %v2525 = vsel %vm463, %v2461, 0
      %v2528 = vsel %vm463, %v2462, 0
      %v2531 = vsel %vm463, %v2463, 0
      %2533 = vmatprep.subr.bf16.mxu0 0
      %2534 = vmatpush1.bf16.msra.mxu0 %v2481
      %2535 = vmatprep.subr.bf16.mxu0 0
      %2536 = vmatpush1.bf16.msra.mxu0 %v2482
      %2537 = vmatprep.subr.bf16.mxu0 0
      %2538 = vmatpush1.bf16.msra.mxu0 0
      %2539 = vmatprep.subr.bf16.mxu0 0
      %2540 = vmatpush1.bf16.msra.mxu0 0
      %2541 = vmatprep.subr.bf16.mxu0 0
      %2542 = vmatpush1.bf16.msra.mxu0 0
      %2543 = vmatprep.subr.bf16.mxu0 0
      %2544 = vmatpush1.bf16.msra.mxu0 0
      %2545 = vmatprep.subr.bf16.mxu0 0
      %2546 = vmatpush1.bf16.msra.mxu0 0
      %2547 = vmatprep.subr.bf16.mxu0 0
      %2548 = vmatpush1.bf16.msra.mxu0 0
      %2549 = vmatprep.subr.bf16.mxu0 0
      %2550 = vmatpush1.bf16.msra.mxu0 0
      %2551 = vmatprep.subr.bf16.mxu0 0
      %2552 = vmatpush1.bf16.msra.mxu0 0
      %2553 = vmatprep.subr.bf16.mxu0 0
      %2554 = vmatpush1.bf16.msra.mxu0 0
      %2555 = vmatprep.subr.bf16.mxu0 0
      %2556 = vmatpush1.bf16.msra.mxu0 0
      %2557 = vmatprep.subr.bf16.mxu0 0
      %2558 = vmatpush1.bf16.msra.mxu0 0
      %2559 = vmatprep.subr.bf16.mxu0 0
      %2560 = vmatpush1.bf16.msra.mxu0 0
      %2561 = vmatprep.subr.bf16.mxu0 0
      %2562 = vmatpush1.bf16.msra.mxu0 0
      %2563 = vmatprep.subr.bf16.mxu0 0
      %2564 = vmatpush1.bf16.msra.mxu0 0
      %2565 = vmatprep.mubr.bf16.mxu0 0
      %2566 = vmatmul.mubr.bf16.gmra.mrb[0].mxu0 %v2486
      %v2567 = vpop.f32.mrb[0].mxu0
      %v2568 = vadd.f32 0.0, %v2567
      %v2569 = vpop.f32.mrb[0].mxu0
      %v2570 = vpop.f32.mrb[0].mxu0
      %v2571 = vadd.f32 0.0, %v2570
      %v2572 = vpop.f32.mrb[0].mxu0
      %2573 = vmatprep.mubr.bf16.mxu0 0
      %2574 = vmatmul.mubr.bf16.gmra.mrb[0].mxu0 %v2489
      %v2575 = vpop.f32.mrb[0].mxu0
      %v2576 = vadd.f32 0.0, %v2575
      %v2577 = vpop.f32.mrb[0].mxu0
      %v2578 = vpop.f32.mrb[0].mxu0
      %v2579 = vadd.f32 0.0, %v2578
      %v2580 = vpop.f32.mrb[0].mxu0
      %2581 = vmatprep.mubr.bf16.mxu0 0
      %2582 = vmatmul.mubr.bf16.gmra.mrb[0].mxu0 %v2492
      %v2583 = vpop.f32.mrb[0].mxu0
      %v2584 = vadd.f32 0.0, %v2583
      %v2585 = vpop.f32.mrb[0].mxu0
      %v2586 = vpop.f32.mrb[0].mxu0
      %v2587 = vadd.f32 0.0, %v2586
      %v2588 = vpop.f32.mrb[0].mxu0
      %2589 = vmatprep.mubr.bf16.mxu0 0
      %2590 = vmatmul.mubr.bf16.gmra.mrb[0].mxu0 %v2495
      %v2591 = vpop.f32.mrb[0].mxu0
      %v2592 = vadd.f32 0.0, %v2591
      %v2593 = vpop.f32.mrb[0].mxu0
      %v2594 = vpop.f32.mrb[0].mxu0
      %v2595 = vadd.f32 0.0, %v2594
      %v2596 = vpop.f32.mrb[0].mxu0
      %2597 = vmatprep.mubr.bf16.mxu0 0
      %2598 = vmatmul.mubr.bf16.gmra.mrb[0].mxu0 %v2498
      %v2599 = vpop.f32.mrb[0].mxu0
      %v2600 = vadd.f32 0.0, %v2599
      %v2601 = vpop.f32.mrb[0].mxu0
      %v2602 = vpop.f32.mrb[0].mxu0
      %v2603 = vadd.f32 0.0, %v2602
      %v2604 = vpop.f32.mrb[0].mxu0
      %2605 = vmatprep.mubr.bf16.mxu0 0
      %2606 = vmatmul.mubr.bf16.gmra.mrb[0].mxu0 %v2501
      %v2607 = vpop.f32.mrb[0].mxu0
      %v2608 = vadd.f32 0.0, %v2607
      %v2609 = vpop.f32.mrb[0].mxu0
      %v2610 = vpop.f32.mrb[0].mxu0
      %v2611 = vadd.f32 0.0, %v2610
      %v2612 = vpop.f32.mrb[0].mxu0
      %2613 = vmatprep.mubr.bf16.mxu0 0
      %2614 = vmatmul.mubr.bf16.gmra.mrb[0].mxu0 %v2504
      %v2615 = vpop.f32.mrb[0].mxu0
      %v2616 = vadd.f32 0.0, %v2615
      %v2617 = vpop.f32.mrb[0].mxu0
      %v2618 = vpop.f32.mrb[0].mxu0
      %v2619 = vadd.f32 0.0, %v2618
      %v2620 = vpop.f32.mrb[0].mxu0
      %2621 = vmatprep.mubr.bf16.mxu0 0
      %2622 = vmatmul.mubr.bf16.gmra.mrb[0].mxu0 %v2507
      %v2623 = vpop.f32.mrb[0].mxu0
      %v2624 = vadd.f32 0.0, %v2623
      %v2625 = vpop.f32.mrb[0].mxu0
      %v2626 = vpop.f32.mrb[0].mxu0
      %v2627 = vadd.f32 0.0, %v2626
      %v2628 = vpop.f32.mrb[0].mxu0
      %2629 = vmatprep.mubr.bf16.mxu0 0
      %2630 = vmatmul.mubr.bf16.gmra.mrb[0].mxu0 %v2510
      %v2631 = vpop.f32.mrb[0].mxu0
      %v2632 = vadd.f32 0.0, %v2631
      %v2633 = vpop.f32.mrb[0].mxu0
      %v2634 = vpop.f32.mrb[0].mxu0
      %v2635 = vadd.f32 0.0, %v2634
      %v2636 = vpop.f32.mrb[0].mxu0
      %2637 = vmatprep.mubr.bf16.mxu0 0
      %2638 = vmatmul.mubr.bf16.gmra.mrb[0].mxu0 %v2513
      %v2639 = vpop.f32.mrb[0].mxu0
      %v2640 = vadd.f32 0.0, %v2639
      %v2641 = vpop.f32.mrb[0].mxu0
      %v2642 = vpop.f32.mrb[0].mxu0
      %v2643 = vadd.f32 0.0, %v2642
      %v2644 = vpop.f32.mrb[0].mxu0
      %2645 = vmatprep.mubr.bf16.mxu0 0
      %2646 = vmatmul.mubr.bf16.gmra.mrb[0].mxu0 %v2516
      %v2647 = vpop.f32.mrb[0].mxu0
      %v2648 = vadd.f32 0.0, %v2647
      %v2649 = vpop.f32.mrb[0].mxu0
      %v2650 = vpop.f32.mrb[0].mxu0
      %v2651 = vadd.f32 0.0, %v2650
      %v2652 = vpop.f32.mrb[0].mxu0
      %2653 = vmatprep.mubr.bf16.mxu0 0
      %2654 = vmatmul.mubr.bf16.gmra.mrb[0].mxu0 %v2519
      %v2655 = vpop.f32.mrb[0].mxu0
      %v2656 = vadd.f32 0.0, %v2655
      %v2657 = vpop.f32.mrb[0].mxu0
      %v2658 = vpop.f32.mrb[0].mxu0
      %v2659 = vadd.f32 0.0, %v2658
      %v2660 = vpop.f32.mrb[0].mxu0
      %2661 = vmatprep.mubr.bf16.mxu0 0
      %2662 = vmatmul.mubr.bf16.gmra.mrb[0].mxu0 %v2522
      %v2663 = vpop.f32.mrb[0].mxu0
      %v2664 = vadd.f32 0.0, %v2663
      %v2665 = vpop.f32.mrb[0].mxu0
      %v2666 = vpop.f32.mrb[0].mxu0
      %v2667 = vadd.f32 0.0, %v2666
      %v2668 = vpop.f32.mrb[0].mxu0
      %2669 = vmatprep.mubr.bf16.mxu0 0
      %2670 = vmatmul.mubr.bf16.gmra.mrb[0].mxu0 %v2525
      %v2671 = vpop.f32.mrb[0].mxu0
      %v2672 = vadd.f32 0.0, %v2671
      %v2673 = vpop.f32.mrb[0].mxu0
      %v2674 = vpop.f32.mrb[0].mxu0
      %v2675 = vadd.f32 0.0, %v2674
      %v2676 = vpop.f32.mrb[0].mxu0
      %2677 = vmatprep.mubr.bf16.mxu0 0
      %2678 = vmatmul.mubr.bf16.gmra.mrb[0].mxu0 %v2528
      %v2679 = vpop.f32.mrb[0].mxu0
      %v2680 = vadd.f32 0.0, %v2679
      %v2681 = vpop.f32.mrb[0].mxu0
      %v2682 = vpop.f32.mrb[0].mxu0
      %v2683 = vadd.f32 0.0, %v2682
      %v2684 = vpop.f32.mrb[0].mxu0
      %2685 = vmatprep.mubr.bf16.mxu0 0
      %2686 = vmatmul.mubr.bf16.gmra.mrb[0].mxu0 %v2531
      %v2687 = vpop.f32.mrb[0].mxu0
      %v2688 = vadd.f32 0.0, %v2687
      %v2689 = vpop.f32.mrb[0].mxu0
      %v2690 = vpop.f32.mrb[0].mxu0
      %v2691 = vadd.f32 0.0, %v2690
      %v2692 = vpop.f32.mrb[0].mxu0
      %2693 = vdwg.mxu0
      %v2698 = vunpack.c.l.b16 %v2464
      %v2699 = vunpack.c.l.b16 %v2465
      %v2700 = vunpack.c.l.b16 %v2466
      %v2701 = vunpack.c.l.b16 %v2467
      %v2702 = vpack.c.b16 %v2699, %v2698
      %v2703 = vpack.c.b16 %v2701, %v2700
      %2706 = vmatprep.subr.bf16.mxu0 0
      %2707 = vmatpush1.bf16.msra.mxu0 %v2702
      %2708 = vmatprep.subr.bf16.mxu0 0
      %2709 = vmatpush1.bf16.msra.mxu0 %v2703
      %2710 = vmatprep.subr.bf16.mxu0 0
      %2711 = vmatpush1.bf16.msra.mxu0 0
      %2712 = vmatprep.subr.bf16.mxu0 0
      %2713 = vmatpush1.bf16.msra.mxu0 0
      %2714 = vmatprep.subr.bf16.mxu0 0
      %2715 = vmatpush1.bf16.msra.mxu0 0
      %2716 = vmatprep.subr.bf16.mxu0 0
      %2717 = vmatpush1.bf16.msra.mxu0 0
      %2718 = vmatprep.subr.bf16.mxu0 0
      %2719 = vmatpush1.bf16.msra.mxu0 0
      %2720 = vmatprep.subr.bf16.mxu0 0
      %2721 = vmatpush1.bf16.msra.mxu0 0
      %2722 = vmatprep.subr.bf16.mxu0 0
      %2723 = vmatpush1.bf16.msra.mxu0 0
      %2724 = vmatprep.subr.bf16.mxu0 0
      %2725 = vmatpush1.bf16.msra.mxu0 0
      %2726 = vmatprep.subr.bf16.mxu0 0
      %2727 = vmatpush1.bf16.msra.mxu0 0
      %2728 = vmatprep.subr.bf16.mxu0 0
      %2729 = vmatpush1.bf16.msra.mxu0 0
      %2730 = vmatprep.subr.bf16.mxu0 0
      %2731 = vmatpush1.bf16.msra.mxu0 0
      %2732 = vmatprep.subr.bf16.mxu0 0
      %2733 = vmatpush1.bf16.msra.mxu0 0
      %2734 = vmatprep.subr.bf16.mxu0 0
      %2735 = vmatpush1.bf16.msra.mxu0 0
      %2736 = vmatprep.subr.bf16.mxu0 0
      %2737 = vmatpush1.bf16.msra.mxu0 0
      %2738 = vmatprep.mubr.bf16.mxu0 0
      %2739 = vmatmul.mubr.bf16.gmra.mrb[0].mxu0 %v1379
      %v2740 = vpop.f32.mrb[0].mxu0
      %v2741 = vadd.f32 %v2568, %v2740
      %v2742 = vpop.f32.mrb[0].mxu0
      %v2743 = vpop.f32.mrb[0].mxu0
      %v2744 = vadd.f32 %v2571, %v2743
      %v2745 = vpop.f32.mrb[0].mxu0
      %2746 = vmatprep.mubr.bf16.mxu0 0
      %2747 = vmatmul.mubr.bf16.gmra.mrb[0].mxu0 %v1379
      %v2748 = vpop.f32.mrb[0].mxu0
      %v2749 = vadd.f32 %v2576, %v2748
      %v2750 = vpop.f32.mrb[0].mxu0
      %v2751 = vpop.f32.mrb[0].mxu0
      %v2752 = vadd.f32 %v2579, %v2751
      %v2753 = vpop.f32.mrb[0].mxu0
      %2754 = vmatprep.mubr.bf16.mxu0 0
      %2755 = vmatmul.mubr.bf16.gmra.mrb[0].mxu0 %v1379
      %v2756 = vpop.f32.mrb[0].mxu0
      %v2757 = vadd.f32 %v2584, %v2756
      %v2758 = vpop.f32.mrb[0].mxu0
      %v2759 = vpop.f32.mrb[0].mxu0
      %v2760 = vadd.f32 %v2587, %v2759
      %v2761 = vpop.f32.mrb[0].mxu0
      %2762 = vmatprep.mubr.bf16.mxu0 0
      %2763 = vmatmul.mubr.bf16.gmra.mrb[0].mxu0 %v1379
      %v2764 = vpop.f32.mrb[0].mxu0
      %v2765 = vadd.f32 %v2592, %v2764
      %v2766 = vpop.f32.mrb[0].mxu0
      %v2767 = vpop.f32.mrb[0].mxu0
      %v2768 = vadd.f32 %v2595, %v2767
      %v2769 = vpop.f32.mrb[0].mxu0
      %2770 = vmatprep.mubr.bf16.mxu0 0
      %2771 = vmatmul.mubr.bf16.gmra.mrb[0].mxu0 %v2486
      %v2772 = vpop.f32.mrb[0].mxu0
      %v2773 = vadd.f32 %v2600, %v2772
      %v2774 = vpop.f32.mrb[0].mxu0
      %v2775 = vpop.f32.mrb[0].mxu0
      %v2776 = vadd.f32 %v2603, %v2775
      %v2777 = vpop.f32.mrb[0].mxu0
      %2778 = vmatprep.mubr.bf16.mxu0 0
      %2779 = vmatmul.mubr.bf16.gmra.mrb[0].mxu0 %v2489
      %v2780 = vpop.f32.mrb[0].mxu0
      %v2781 = vadd.f32 %v2608, %v2780
      %v2782 = vpop.f32.mrb[0].mxu0
      %v2783 = vpop.f32.mrb[0].mxu0
      %v2784 = vadd.f32 %v2611, %v2783
      %v2785 = vpop.f32.mrb[0].mxu0
      %2786 = vmatprep.mubr.bf16.mxu0 0
      %2787 = vmatmul.mubr.bf16.gmra.mrb[0].mxu0 %v2492
      %v2788 = vpop.f32.mrb[0].mxu0
      %v2789 = vadd.f32 %v2616, %v2788
      %v2790 = vpop.f32.mrb[0].mxu0
      %v2791 = vpop.f32.mrb[0].mxu0
      %v2792 = vadd.f32 %v2619, %v2791
      %v2793 = vpop.f32.mrb[0].mxu0
      %2794 = vmatprep.mubr.bf16.mxu0 0
      %2795 = vmatmul.mubr.bf16.gmra.mrb[0].mxu0 %v2495
      %v2796 = vpop.f32.mrb[0].mxu0
      %v2797 = vadd.f32 %v2624, %v2796
      %v2798 = vpop.f32.mrb[0].mxu0
      %v2799 = vpop.f32.mrb[0].mxu0
      %v2800 = vadd.f32 %v2627, %v2799
      %v2801 = vpop.f32.mrb[0].mxu0
      %2802 = vmatprep.mubr.bf16.mxu0 0
      %2803 = vmatmul.mubr.bf16.gmra.mrb[0].mxu0 %v2498
      %v2804 = vpop.f32.mrb[0].mxu0
      %v2805 = vadd.f32 %v2632, %v2804
      %v2806 = vpop.f32.mrb[0].mxu0
      %v2807 = vpop.f32.mrb[0].mxu0
      %v2808 = vadd.f32 %v2635, %v2807
      %v2809 = vpop.f32.mrb[0].mxu0
      %2810 = vmatprep.mubr.bf16.mxu0 0
      %2811 = vmatmul.mubr.bf16.gmra.mrb[0].mxu0 %v2501
      %v2812 = vpop.f32.mrb[0].mxu0
      %v2813 = vadd.f32 %v2640, %v2812
      %v2814 = vpop.f32.mrb[0].mxu0
      %v2815 = vpop.f32.mrb[0].mxu0
      %v2816 = vadd.f32 %v2643, %v2815
      %v2817 = vpop.f32.mrb[0].mxu0
      %2818 = vmatprep.mubr.bf16.mxu0 0
      %2819 = vmatmul.mubr.bf16.gmra.mrb[0].mxu0 %v2504
      %v2820 = vpop.f32.mrb[0].mxu0
      %v2821 = vadd.f32 %v2648, %v2820
      %v2822 = vpop.f32.mrb[0].mxu0
      %v2823 = vpop.f32.mrb[0].mxu0
      %v2824 = vadd.f32 %v2651, %v2823
      %v2825 = vpop.f32.mrb[0].mxu0
      %2826 = vmatprep.mubr.bf16.mxu0 0
      %2827 = vmatmul.mubr.bf16.gmra.mrb[0].mxu0 %v2507
      %v2828 = vpop.f32.mrb[0].mxu0
      %v2829 = vadd.f32 %v2656, %v2828
      %v2830 = vpop.f32.mrb[0].mxu0
      %v2831 = vpop.f32.mrb[0].mxu0
      %v2832 = vadd.f32 %v2659, %v2831
      %v2833 = vpop.f32.mrb[0].mxu0
      %2834 = vmatprep.mubr.bf16.mxu0 0
      %2835 = vmatmul.mubr.bf16.gmra.mrb[0].mxu0 %v2510
      %v2836 = vpop.f32.mrb[0].mxu0
      %v2837 = vadd.f32 %v2664, %v2836
      %v2838 = vpop.f32.mrb[0].mxu0
      %v2839 = vpop.f32.mrb[0].mxu0
      %v2840 = vadd.f32 %v2667, %v2839
      %v2841 = vpop.f32.mrb[0].mxu0
      %2842 = vmatprep.mubr.bf16.mxu0 0
      %2843 = vmatmul.mubr.bf16.gmra.mrb[0].mxu0 %v2513
      %v2844 = vpop.f32.mrb[0].mxu0
      %v2845 = vadd.f32 %v2672, %v2844
      %v2846 = vpop.f32.mrb[0].mxu0
      %v2847 = vpop.f32.mrb[0].mxu0
      %v2848 = vadd.f32 %v2675, %v2847
      %v2849 = vpop.f32.mrb[0].mxu0
      %2850 = vmatprep.mubr.bf16.mxu0 0
      %2851 = vmatmul.mubr.bf16.gmra.mrb[0].mxu0 %v2516
      %v2852 = vpop.f32.mrb[0].mxu0
      %v2853 = vadd.f32 %v2680, %v2852
      %v2854 = vpop.f32.mrb[0].mxu0
      %v2855 = vpop.f32.mrb[0].mxu0
      %v2856 = vadd.f32 %v2683, %v2855
      %v2857 = vpop.f32.mrb[0].mxu0
      %2858 = vmatprep.mubr.bf16.mxu0 0
      %2859 = vmatmul.mubr.bf16.gmra.mrb[0].mxu0 %v2519
      %v2860 = vpop.f32.mrb[0].mxu0
      %v2861 = vadd.f32 %v2688, %v2860
      %v2862 = vpop.f32.mrb[0].mxu0
      %v2863 = vpop.f32.mrb[0].mxu0
      %v2864 = vadd.f32 %v2691, %v2863
      %v2865 = vpop.f32.mrb[0].mxu0
      %2866 = vdwg.mxu0
      %s2867 = scalar_lea.vmem %s8, 32
      %v2868 = vld [vmem:[%s2867] sm:$0xf]
      %v2869 = vld [vmem:[%s2867 + $0x4] sm:$0xf]
      %v2870 = vld [vmem:[%s2867 + $0x8] sm:$0xf]
      %v2871 = vld [vmem:[%s2867 + $0xc] sm:$0xf]
      %v2876 = vunpack.c.l.b16 %v2868
      %v2877 = vunpack.c.l.b16 %v2869
      %v2878 = vunpack.c.l.b16 %v2870
      %v2879 = vunpack.c.l.b16 %v2871
      %v2880 = vpack.c.b16 %v2877, %v2876
      %v2881 = vpack.c.b16 %v2879, %v2878
      %2884 = vmatprep.subr.bf16.mxu0 0
      %2885 = vmatpush1.bf16.msra.mxu0 %v2880
      %2886 = vmatprep.subr.bf16.mxu0 0
      %2887 = vmatpush1.bf16.msra.mxu0 %v2881
      %2888 = vmatprep.subr.bf16.mxu0 0
      %2889 = vmatpush1.bf16.msra.mxu0 0
      %2890 = vmatprep.subr.bf16.mxu0 0
      %2891 = vmatpush1.bf16.msra.mxu0 0
      %2892 = vmatprep.subr.bf16.mxu0 0
      %2893 = vmatpush1.bf16.msra.mxu0 0
      %2894 = vmatprep.subr.bf16.mxu0 0
      %2895 = vmatpush1.bf16.msra.mxu0 0
      %2896 = vmatprep.subr.bf16.mxu0 0
      %2897 = vmatpush1.bf16.msra.mxu0 0
      %2898 = vmatprep.subr.bf16.mxu0 0
      %2899 = vmatpush1.bf16.msra.mxu0 0
      %2900 = vmatprep.subr.bf16.mxu0 0
      %2901 = vmatpush1.bf16.msra.mxu0 0
      %2902 = vmatprep.subr.bf16.mxu0 0
      %2903 = vmatpush1.bf16.msra.mxu0 0
      %2904 = vmatprep.subr.bf16.mxu0 0
      %2905 = vmatpush1.bf16.msra.mxu0 0
      %2906 = vmatprep.subr.bf16.mxu0 0
      %2907 = vmatpush1.bf16.msra.mxu0 0
      %2908 = vmatprep.subr.bf16.mxu0 0
      %2909 = vmatpush1.bf16.msra.mxu0 0
      %2910 = vmatprep.subr.bf16.mxu0 0
      %2911 = vmatpush1.bf16.msra.mxu0 0
      %2912 = vmatprep.subr.bf16.mxu0 0
      %2913 = vmatpush1.bf16.msra.mxu0 0
      %2914 = vmatprep.subr.bf16.mxu0 0
      %2915 = vmatpush1.bf16.msra.mxu0 0
      %2916 = vmatprep.mubr.bf16.mxu0 0
      %2917 = vmatmul.mubr.bf16.gmra.mrb[0].mxu0 %v2498
      %v2918 = vpop.f32.mrb[0].mxu0
      %v2919 = vadd.f32 0.0, %v2918
      %v2920 = vpop.f32.mrb[0].mxu0
      %v2921 = vpop.f32.mrb[0].mxu0
      %v2922 = vadd.f32 0.0, %v2921
      %v2923 = vpop.f32.mrb[0].mxu0
      %2924 = vmatprep.mubr.bf16.mxu0 0
      %2925 = vmatmul.mubr.bf16.gmra.mrb[0].mxu0 %v2501
      %v2926 = vpop.f32.mrb[0].mxu0
      %v2927 = vadd.f32 0.0, %v2926
      %v2928 = vpop.f32.mrb[0].mxu0
      %v2929 = vpop.f32.mrb[0].mxu0
      %v2930 = vadd.f32 0.0, %v2929
      %v2931 = vpop.f32.mrb[0].mxu0
      %2932 = vmatprep.mubr.bf16.mxu0 0
      %2933 = vmatmul.mubr.bf16.gmra.mrb[0].mxu0 %v2504
      %v2934 = vpop.f32.mrb[0].mxu0
      %v2935 = vadd.f32 0.0, %v2934
      %v2936 = vpop.f32.mrb[0].mxu0
      %v2937 = vpop.f32.mrb[0].mxu0
      %v2938 = vadd.f32 0.0, %v2937
      %v2939 = vpop.f32.mrb[0].mxu0
      %2940 = vmatprep.mubr.bf16.mxu0 0
      %2941 = vmatmul.mubr.bf16.gmra.mrb[0].mxu0 %v2507
      %v2942 = vpop.f32.mrb[0].mxu0
      %v2943 = vadd.f32 0.0, %v2942
      %v2944 = vpop.f32.mrb[0].mxu0
      %v2945 = vpop.f32.mrb[0].mxu0
      %v2946 = vadd.f32 0.0, %v2945
      %v2947 = vpop.f32.mrb[0].mxu0
      %2948 = vmatprep.mubr.bf16.mxu0 0
      %2949 = vmatmul.mubr.bf16.gmra.mrb[0].mxu0 %v2510
      %v2950 = vpop.f32.mrb[0].mxu0
      %v2951 = vadd.f32 0.0, %v2950
      %v2952 = vpop.f32.mrb[0].mxu0
      %v2953 = vpop.f32.mrb[0].mxu0
      %v2954 = vadd.f32 0.0, %v2953
      %v2955 = vpop.f32.mrb[0].mxu0
      %2956 = vmatprep.mubr.bf16.mxu0 0
      %2957 = vmatmul.mubr.bf16.gmra.mrb[0].mxu0 %v2513
      %v2958 = vpop.f32.mrb[0].mxu0
      %v2959 = vadd.f32 0.0, %v2958
      %v2960 = vpop.f32.mrb[0].mxu0
      %v2961 = vpop.f32.mrb[0].mxu0
      %v2962 = vadd.f32 0.0, %v2961
      %v2963 = vpop.f32.mrb[0].mxu0
      %2964 = vmatprep.mubr.bf16.mxu0 0
      %2965 = vmatmul.mubr.bf16.gmra.mrb[0].mxu0 %v2516
      %v2966 = vpop.f32.mrb[0].mxu0
      %v2967 = vadd.f32 0.0, %v2966
      %v2968 = vpop.f32.mrb[0].mxu0
      %v2969 = vpop.f32.mrb[0].mxu0
      %v2970 = vadd.f32 0.0, %v2969
      %v2971 = vpop.f32.mrb[0].mxu0
      %2972 = vmatprep.mubr.bf16.mxu0 0
      %2973 = vmatmul.mubr.bf16.gmra.mrb[0].mxu0 %v2519
      %v2974 = vpop.f32.mrb[0].mxu0
      %v2975 = vadd.f32 0.0, %v2974
      %v2976 = vpop.f32.mrb[0].mxu0
      %v2977 = vpop.f32.mrb[0].mxu0
      %v2978 = vadd.f32 0.0, %v2977
      %v2979 = vpop.f32.mrb[0].mxu0
      %2980 = vmatprep.mubr.bf16.mxu0 0
      %2981 = vmatmul.mubr.bf16.gmra.mrb[0].mxu0 %v2522
      %v2982 = vpop.f32.mrb[0].mxu0
      %v2983 = vadd.f32 0.0, %v2982
      %v2984 = vpop.f32.mrb[0].mxu0
      %v2985 = vpop.f32.mrb[0].mxu0
      %v2986 = vadd.f32 0.0, %v2985
      %v2987 = vpop.f32.mrb[0].mxu0
      %2988 = vmatprep.mubr.bf16.mxu0 0
      %2989 = vmatmul.mubr.bf16.gmra.mrb[0].mxu0 %v2525
      %v2990 = vpop.f32.mrb[0].mxu0
      %v2991 = vadd.f32 0.0, %v2990
      %v2992 = vpop.f32.mrb[0].mxu0
      %v2993 = vpop.f32.mrb[0].mxu0
      %v2994 = vadd.f32 0.0, %v2993
      %v2995 = vpop.f32.mrb[0].mxu0
      %2996 = vmatprep.mubr.bf16.mxu0 0
      %2997 = vmatmul.mubr.bf16.gmra.mrb[0].mxu0 %v2528
      %v2998 = vpop.f32.mrb[0].mxu0
      %v2999 = vadd.f32 0.0, %v2998
      %v3000 = vpop.f32.mrb[0].mxu0
      %v3001 = vpop.f32.mrb[0].mxu0
      %v3002 = vadd.f32 0.0, %v3001
      %v3003 = vpop.f32.mrb[0].mxu0
      %3004 = vmatprep.mubr.bf16.mxu0 0
      %3005 = vmatmul.mubr.bf16.gmra.mrb[0].mxu0 %v2531
      %v3006 = vpop.f32.mrb[0].mxu0
      %v3007 = vadd.f32 0.0, %v3006
      %v3008 = vpop.f32.mrb[0].mxu0
      %v3009 = vpop.f32.mrb[0].mxu0
      %v3010 = vadd.f32 0.0, %v3009
      %v3011 = vpop.f32.mrb[0].mxu0
      %3012 = vmatprep.mubr.bf16.mxu0 0
      %3013 = vmatmul.mubr.bf16.gmra.mrb[0].mxu0 %v1379
      %v3014 = vpop.f32.mrb[0].mxu0
      %v3015 = vadd.f32 0.0, %v3014
      %v3016 = vpop.f32.mrb[0].mxu0
      %v3017 = vpop.f32.mrb[0].mxu0
      %v3018 = vadd.f32 0.0, %v3017
      %v3019 = vpop.f32.mrb[0].mxu0
      %3020 = vmatprep.mubr.bf16.mxu0 0
      %3021 = vmatmul.mubr.bf16.gmra.mrb[0].mxu0 %v1379
      %v3022 = vpop.f32.mrb[0].mxu0
      %v3023 = vadd.f32 0.0, %v3022
      %v3024 = vpop.f32.mrb[0].mxu0
      %v3025 = vpop.f32.mrb[0].mxu0
      %v3026 = vadd.f32 0.0, %v3025
      %v3027 = vpop.f32.mrb[0].mxu0
      %3028 = vmatprep.mubr.bf16.mxu0 0
      %3029 = vmatmul.mubr.bf16.gmra.mrb[0].mxu0 %v1379
      %v3030 = vpop.f32.mrb[0].mxu0
      %v3031 = vadd.f32 0.0, %v3030
      %v3032 = vpop.f32.mrb[0].mxu0
      %v3033 = vpop.f32.mrb[0].mxu0
      %v3034 = vadd.f32 0.0, %v3033
      %v3035 = vpop.f32.mrb[0].mxu0
      %3036 = vmatprep.mubr.bf16.mxu0 0
      %3037 = vmatmul.mubr.bf16.gmra.mrb[0].mxu0 %v1379
      %v3038 = vpop.f32.mrb[0].mxu0
      %v3039 = vadd.f32 0.0, %v3038
      %v3040 = vpop.f32.mrb[0].mxu0
      %v3041 = vpop.f32.mrb[0].mxu0
      %v3042 = vadd.f32 0.0, %v3041
      %v3043 = vpop.f32.mrb[0].mxu0
      %3044 = vdwg.mxu0
      %v3045 = vadd.f32 %v2741, %v2919
      %v3046 = vadd.f32 %v2744, %v2922
      %v3047 = vadd.f32 %v2749, %v2927
      %v3048 = vadd.f32 %v2752, %v2930
      %v3049 = vadd.f32 %v2757, %v2935
      %v3050 = vadd.f32 %v2760, %v2938
      %v3051 = vadd.f32 %v2765, %v2943
      %v3052 = vadd.f32 %v2768, %v2946
      %v3053 = vadd.f32 %v2773, %v2951
      %v3054 = vadd.f32 %v2776, %v2954
      %v3055 = vadd.f32 %v2781, %v2959
      %v3056 = vadd.f32 %v2784, %v2962
      %v3057 = vadd.f32 %v2789, %v2967
      %v3058 = vadd.f32 %v2792, %v2970
      %v3059 = vadd.f32 %v2797, %v2975
      %v3060 = vadd.f32 %v2800, %v2978
      %v3061 = vadd.f32 %v2805, %v2983
      %v3062 = vadd.f32 %v2808, %v2986
      %v3063 = vadd.f32 %v2813, %v2991
      %v3064 = vadd.f32 %v2816, %v2994
      %v3065 = vadd.f32 %v2821, %v2999
      %v3066 = vadd.f32 %v2824, %v3002
      %v3067 = vadd.f32 %v2829, %v3007
      %v3068 = vadd.f32 %v2832, %v3010
      %v3069 = vadd.f32 %v2837, %v3015
      %v3070 = vadd.f32 %v2840, %v3018
      %v3071 = vadd.f32 %v2845, %v3023
      %v3072 = vadd.f32 %v2848, %v3026
      %v3073 = vadd.f32 %v2853, %v3031
      %v3074 = vadd.f32 %v2856, %v3034
      %v3075 = vadd.f32 %v2861, %v3039
      %v3076 = vadd.f32 %v2864, %v3042
      %v3078 = vlaneseq
      %v3079 = vshrl.u32 %v3078, 7
      %v3080 = vsub.s32 0, %v3079
      %v3081 = vrot.slane %v2447, %v3080
      %v3083 = vadd.f32 %v3045, %v3081
      %v3084 = vadd.f32 %v3046, %v3081
      %v3085 = vadd.f32 %v3047, %v3081
      %v3086 = vadd.f32 %v3048, %v3081
      %v3087 = vadd.f32 %v3049, %v3081
      %v3088 = vadd.f32 %v3050, %v3081
      %v3089 = vadd.f32 %v3051, %v3081
      %v3090 = vadd.f32 %v3052, %v3081
      %v3091 = vadd.f32 %v3053, %v3081
      %v3092 = vadd.f32 %v3054, %v3081
      %v3093 = vadd.f32 %v3055, %v3081
      %v3094 = vadd.f32 %v3056, %v3081
      %v3095 = vadd.f32 %v3057, %v3081
      %v3096 = vadd.f32 %v3058, %v3081
      %v3097 = vadd.f32 %v3059, %v3081
      %v3098 = vadd.f32 %v3060, %v3081
      %v3099 = vadd.f32 %v3061, %v3081
      %v3100 = vadd.f32 %v3062, %v3081
      %v3101 = vadd.f32 %v3063, %v3081
      %v3102 = vadd.f32 %v3064, %v3081
      %v3103 = vadd.f32 %v3065, %v3081
      %v3104 = vadd.f32 %v3066, %v3081
      %v3105 = vadd.f32 %v3067, %v3081
      %v3106 = vadd.f32 %v3068, %v3081
      %v3107 = vadd.f32 %v3069, %v3081
      %v3108 = vadd.f32 %v3070, %v3081
      %v3109 = vadd.f32 %v3071, %v3081
      %v3110 = vadd.f32 %v3072, %v3081
      %v3111 = vadd.f32 %v3073, %v3081
      %v3112 = vadd.f32 %v3074, %v3081
      %v3113 = vadd.f32 %v3075, %v3081
      %v3114 = vadd.f32 %v3076, %v3081
      %s3115 = sld [smem:[#allocation2]]
      %v3116 = vstv %s3115
      %v3117 = vmul.f32 %v3116, %v3083
      %v3118 = vmul.f32 %v3116, %v3084
      %v3119 = vmul.f32 %v3116, %v3085
      %v3120 = vmul.f32 %v3116, %v3086
      %v3121 = vmul.f32 %v3116, %v3087
      %v3122 = vmul.f32 %v3116, %v3088
      %v3123 = vmul.f32 %v3116, %v3089
      %v3124 = vmul.f32 %v3116, %v3090
      %v3125 = vmul.f32 %v3116, %v3091
      %v3126 = vmul.f32 %v3116, %v3092
      %v3127 = vmul.f32 %v3116, %v3093
      %v3128 = vmul.f32 %v3116, %v3094
      %v3129 = vmul.f32 %v3116, %v3095
      %v3130 = vmul.f32 %v3116, %v3096
      %v3131 = vmul.f32 %v3116, %v3097
      %v3132 = vmul.f32 %v3116, %v3098
      %v3133 = vmul.f32 %v3116, %v3099
      %v3134 = vmul.f32 %v3116, %v3100
      %v3135 = vmul.f32 %v3116, %v3101
      %v3136 = vmul.f32 %v3116, %v3102
      %v3137 = vmul.f32 %v3116, %v3103
      %v3138 = vmul.f32 %v3116, %v3104
      %v3139 = vmul.f32 %v3116, %v3105
      %v3140 = vmul.f32 %v3116, %v3106
      %v3141 = vmul.f32 %v3116, %v3107
      %v3142 = vmul.f32 %v3116, %v3108
      %v3143 = vmul.f32 %v3116, %v3109
      %v3144 = vmul.f32 %v3116, %v3110
      %v3145 = vmul.f32 %v3116, %v3111
      %v3146 = vmul.f32 %v3116, %v3112
      %v3147 = vmul.f32 %v3116, %v3113
      %v3148 = vmul.f32 %v3116, %v3114
      %v3149 = vadd.f32 %v421, %v3117
      %v3150 = vadd.f32 %v422, %v3118
      %v3151 = vadd.f32 %v423, %v3119
      %v3152 = vadd.f32 %v424, %v3120
      %v3153 = vadd.f32 %v425, %v3121
      %v3154 = vadd.f32 %v426, %v3122
      %v3155 = vadd.f32 %v427, %v3123
      %v3156 = vadd.f32 %v428, %v3124
      %v3157 = vadd.f32 %v429, %v3125
      %v3158 = vadd.f32 %v430, %v3126
      %v3159 = vadd.f32 %v431, %v3127
      %v3160 = vadd.f32 %v432, %v3128
      %v3161 = vadd.f32 %v433, %v3129
      %v3162 = vadd.f32 %v434, %v3130
      %v3163 = vadd.f32 %v435, %v3131
      %v3164 = vadd.f32 %v436, %v3132
      %v3165 = vadd.f32 %v437, %v3133
      %v3166 = vadd.f32 %v438, %v3134
      %v3167 = vadd.f32 %v439, %v3135
      %v3168 = vadd.f32 %v440, %v3136
      %v3169 = vadd.f32 %v441, %v3137
      %v3170 = vadd.f32 %v442, %v3138
      %v3171 = vadd.f32 %v443, %v3139
      %v3172 = vadd.f32 %v444, %v3140
      %v3173 = vadd.f32 %v445, %v3141
      %v3174 = vadd.f32 %v446, %v3142
      %v3175 = vadd.f32 %v447, %v3143
      %v3176 = vadd.f32 %v448, %v3144
      %v3177 = vadd.f32 %v449, %v3145
      %v3178 = vadd.f32 %v450, %v3146
      %v3179 = vadd.f32 %v451, %v3147
      %v3180 = vadd.f32 %v452, %v3148
      %v3181 = vpack.c.bf16 %v3150, %v3149
      %v3182 = vpack.c.bf16 %v3152, %v3151
      %v3183 = vpack.c.bf16 %v3154, %v3153
      %v3184 = vpack.c.bf16 %v3156, %v3155
      %v3185 = vpack.c.bf16 %v3158, %v3157
      %v3186 = vpack.c.bf16 %v3160, %v3159
      %v3187 = vpack.c.bf16 %v3162, %v3161
      %v3188 = vpack.c.bf16 %v3164, %v3163
      %v3189 = vpack.c.bf16 %v3166, %v3165
      %v3190 = vpack.c.bf16 %v3168, %v3167
      %v3191 = vpack.c.bf16 %v3170, %v3169
      %v3192 = vpack.c.bf16 %v3172, %v3171
      %v3193 = vpack.c.bf16 %v3174, %v3173
      %v3194 = vpack.c.bf16 %v3176, %v3175
      %v3195 = vpack.c.bf16 %v3178, %v3177
      %v3196 = vpack.c.bf16 %v3180, %v3179
      %v3213 = vunpack.c.l.b16 %v3181
      %v3214 = vunpack.c.h.b16 %v3181
      %v3215 = vunpack.c.l.b16 %v3182
      %v3216 = vunpack.c.h.b16 %v3182
      %v3217 = vunpack.c.l.b16 %v3183
      %v3218 = vunpack.c.h.b16 %v3183
      %v3219 = vunpack.c.l.b16 %v3184
      %v3220 = vunpack.c.h.b16 %v3184
      %v3221 = vunpack.c.l.b16 %v3185
      %v3222 = vunpack.c.h.b16 %v3185
      %v3223 = vunpack.c.l.b16 %v3186
      %v3224 = vunpack.c.h.b16 %v3186
      %v3225 = vunpack.c.l.b16 %v3187
      %v3226 = vunpack.c.h.b16 %v3187
      %v3227 = vunpack.c.l.b16 %v3188
      %v3228 = vunpack.c.h.b16 %v3188
      %v3229 = vunpack.c.l.b16 %v3189
      %v3230 = vunpack.c.h.b16 %v3189
      %v3231 = vunpack.c.l.b16 %v3190
      %v3232 = vunpack.c.h.b16 %v3190
      %v3233 = vunpack.c.l.b16 %v3191
      %v3234 = vunpack.c.h.b16 %v3191
      %v3235 = vunpack.c.l.b16 %v3192
      %v3236 = vunpack.c.h.b16 %v3192
      %v3237 = vunpack.c.l.b16 %v3193
      %v3238 = vunpack.c.h.b16 %v3193
      %v3239 = vunpack.c.l.b16 %v3194
      %v3240 = vunpack.c.h.b16 %v3194
      %v3241 = vunpack.c.l.b16 %v3195
      %v3242 = vunpack.c.h.b16 %v3195
      %v3243 = vunpack.c.l.b16 %v3196
      %v3244 = vunpack.c.h.b16 %v3196
      %v3245 = vpack.c.b16 %v3213, %v3213
      %v3246 = vpack.c.b16 %v3214, %v3214
      %v3247 = vpack.c.b16 %v3215, %v3215
      %v3248 = vpack.c.b16 %v3216, %v3216
      %v3249 = vpack.c.b16 %v3217, %v3217
      %v3250 = vpack.c.b16 %v3218, %v3218
      %v3251 = vpack.c.b16 %v3219, %v3219
      %v3252 = vpack.c.b16 %v3220, %v3220
      %v3253 = vpack.c.b16 %v3221, %v3221
      %v3254 = vpack.c.b16 %v3222, %v3222
      %v3255 = vpack.c.b16 %v3223, %v3223
      %v3256 = vpack.c.b16 %v3224, %v3224
      %v3257 = vpack.c.b16 %v3225, %v3225
      %v3258 = vpack.c.b16 %v3226, %v3226
      %v3259 = vpack.c.b16 %v3227, %v3227
      %v3260 = vpack.c.b16 %v3228, %v3228
      %v3261 = vpack.c.b16 %v3229, %v3229
      %v3262 = vpack.c.b16 %v3230, %v3230
      %v3263 = vpack.c.b16 %v3231, %v3231
      %v3264 = vpack.c.b16 %v3232, %v3232
      %v3265 = vpack.c.b16 %v3233, %v3233
      %v3266 = vpack.c.b16 %v3234, %v3234
      %v3267 = vpack.c.b16 %v3235, %v3235
      %v3268 = vpack.c.b16 %v3236, %v3236
      %v3269 = vpack.c.b16 %v3237, %v3237
      %v3270 = vpack.c.b16 %v3238, %v3238
      %v3271 = vpack.c.b16 %v3239, %v3239
      %v3272 = vpack.c.b16 %v3240, %v3240
      %v3273 = vpack.c.b16 %v3241, %v3241
      %v3274 = vpack.c.b16 %v3242, %v3242
      %v3275 = vpack.c.b16 %v3243, %v3243
      %v3276 = vpack.c.b16 %v3244, %v3244
      %vm3309 = vcmask 257024
      %3310 = vst.msk [vmem:[%s387] sm:$0xf] %vm3309, %v3245
      %3311 = vst.msk [vmem:[%s387 + $0x4] sm:$0xf] %vm3309, %v3246
      %3312 = vst.msk [vmem:[%s387 + $0x8] sm:$0xf] %vm3309, %v3247
      %3313 = vst.msk [vmem:[%s387 + $0xc] sm:$0xf] %vm3309, %v3248
      %3314 = vst.msk [vmem:[%s387 + $0x10] sm:$0xf] %vm3309, %v3249
      %3315 = vst.msk [vmem:[%s387 + $0x14] sm:$0xf] %vm3309, %v3250
      %3316 = vst.msk [vmem:[%s387 + $0x18] sm:$0xf] %vm3309, %v3251
      %3317 = vst.msk [vmem:[%s387 + $0x1c] sm:$0xf] %vm3309, %v3252
      %3318 = vst.msk [vmem:[%s387 + $0x20] sm:$0xf] %vm3309, %v3253
      %3319 = vst.msk [vmem:[%s387 + $0x24] sm:$0xf] %vm3309, %v3254
      %3320 = vst.msk [vmem:[%s387 + $0x28] sm:$0xf] %vm3309, %v3255
      %3321 = vst.msk [vmem:[%s387 + $0x2c] sm:$0xf] %vm3309, %v3256
      %3322 = vst.msk [vmem:[%s387 + $0x30] sm:$0xf] %vm3309, %v3257
      %3323 = vst.msk [vmem:[%s387 + $0x34] sm:$0xf] %vm3309, %v3258
      %3324 = vst.msk [vmem:[%s387 + $0x38] sm:$0xf] %vm3309, %v3259
      %3325 = vst.msk [vmem:[%s387 + $0x3c] sm:$0xf] %vm3309, %v3260
      %3326 = vst.msk [vmem:[%s387 + $0x40] sm:$0xf] %vm3309, %v3261
      %3327 = vst.msk [vmem:[%s387 + $0x44] sm:$0xf] %vm3309, %v3262
      %3328 = vst.msk [vmem:[%s387 + $0x48] sm:$0xf] %vm3309, %v3263
      %3329 = vst.msk [vmem:[%s387 + $0x4c] sm:$0xf] %vm3309, %v3264
      %3330 = vst.msk [vmem:[%s387 + $0x50] sm:$0xf] %vm3309, %v3265
      %3331 = vst.msk [vmem:[%s387 + $0x54] sm:$0xf] %vm3309, %v3266
      %3332 = vst.msk [vmem:[%s387 + $0x58] sm:$0xf] %vm3309, %v3267
      %3333 = vst.msk [vmem:[%s387 + $0x5c] sm:$0xf] %vm3309, %v3268
      %3334 = vst.msk [vmem:[%s387 + $0x60] sm:$0xf] %vm3309, %v3269
      %3335 = vst.msk [vmem:[%s387 + $0x64] sm:$0xf] %vm3309, %v3270
      %3336 = vst.msk [vmem:[%s387 + $0x68] sm:$0xf] %vm3309, %v3271
      %3337 = vst.msk [vmem:[%s387 + $0x6c] sm:$0xf] %vm3309, %v3272
      %3338 = vst.msk [vmem:[%s387 + $0x70] sm:$0xf] %vm3309, %v3273
      %3339 = vst.msk [vmem:[%s387 + $0x74] sm:$0xf] %vm3309, %v3274
      %3340 = vst.msk [vmem:[%s387 + $0x78] sm:$0xf] %vm3309, %v3275
      %3341 = vst.msk [vmem:[%s387 + $0x7c] sm:$0xf] %vm3309, %v3276
      %p3342 = scmp.lt.s32.totalorder %s23, 1
      %s3343 = scalar_select %p3342, %s23, 1
      %s3344 = smul.addr %s3343, 32
      %s3345 = smul.addr %s3344, 4
      %s3346 = scalar_lea.vmem %s11, %s3345
      // Predicated region
      $region65: #{mid_block_temporal_decoder_forward.6} parent=63 // pred_check
        %p3347 = pneg %p277
      $region66: #{mid_block_temporal_decoder_forward.6} parent=63 // pred_check_branch
        %3349 = sbr.rel (%p3347) target = $region68
      $region67: #{mid_block_temporal_decoder_forward.6} parent=63 // pred_region
        _
      $region68: #{mid_block_temporal_decoder_forward.6} parent=63 // pred_fallthru
        _
    $region64: #{mid_block_temporal_decoder_forward.6} parent=5 // pred_fallthru
      _
    %p3350 = scmp.le.s32.totalorder 2, %s18
    // Predicated region
    $region69: #{mid_block_temporal_decoder_forward.6} parent=5 // pred_check
      %p3351 = pneg %p3350
    $region70: #{mid_block_temporal_decoder_forward.6} parent=5 // pred_check_branch
      %3353 = sbr.rel (%p3351) target = $region72
    $region71: #{mid_block_temporal_decoder_forward.6} parent=5 // pred_region
      %s3354 = ssub.s32 %s18, 2
      // Predicated region
      $region73: #{mid_block_temporal_decoder_forward.6} parent=71 // pred_check
        %p3355 = pneg %p283
      $region74: #{mid_block_temporal_decoder_forward.6} parent=71 // pred_check_branch
        %3357 = sbr.rel (%p3355) target = $region76
      $region75: #{mid_block_temporal_decoder_forward.6} parent=71 // pred_region
        %p3358 = scmp.lt.s32.totalorder %s24, 1
        %s3359 = scalar_select %p3358, %s24, 1
        %s3360 = smul.addr %s3359, 32
        %s3361 = smul.addr %s3360, 4
        %s3362 = scalar_lea.vmem %s11, %s3361
      $region76: #{mid_block_temporal_decoder_forward.6} parent=71 // pred_fallthru
        _
    $region72: #{mid_block_temporal_decoder_forward.6} parent=5 // pred_fallthru
      _
  $region6: #{mid_block_temporal_decoder_forward.6} parent=0 // loop_footer
    %s22 = sadd.s32 1, %s18
  $region7: #{mid_block_temporal_decoder_forward.6} parent=0 // loop_footer_branch
    %17 = sbr.rel target = $region3
  $region8: #{mid_block_temporal_decoder_forward.6} parent=0 // loop_exit
    _

// kernel: mid_block_temporal_decoder_forward.5
$region0: #{mid_block_temporal_decoder_forward.5}
  #allocation0 [shape = 'u32[]', space=smem, size = 0x4, offset = 0x4, fixed_abs, tag = 'smem constant byte address 0x4 - core index']
  #allocation1 [shape = 'u32[144,128]{1,0:T(1,128)}', space=vmem, size = 0x12000, scoped, tag = 'internal scratch']
  %s0 = inlined_call_operand.vmem [shape: bf16[8,64,32], index: 0, kind: input, shape index: {}]
  %s1 = inlined_call_operand.vmem [shape: bf16[32,32], index: 1, kind: input, shape index: {}]
  %s2 = inlined_call_operand.vmem [shape: f32[1,32], index: 2, kind: input, shape index: {}]
  %s3 = inlined_call_operand.vmem [shape: f32[1,32], index: 3, kind: input, shape index: {}]
  %s4 = inlined_call_operand.vmem [shape: bf16[9,32,32], index: 4, kind: input, shape index: {}]
  %s5 = inlined_call_operand.vmem [shape: f32[1,32], index: 5, kind: input, shape index: {}]
  %s6 = inlined_call_operand.vmem [shape: f32[1,32], index: 6, kind: input, shape index: {}]
  %s7 = inlined_call_operand.vmem [shape: f32[1,32], index: 7, kind: input, shape index: {}]
  %s8 = inlined_call_operand.vmem [shape: bf16[9,32,32], index: 8, kind: input, shape index: {}]
  %s9 = inlined_call_operand.vmem [shape: f32[1,32], index: 9, kind: input, shape index: {}]
  %s10 = inlined_call_operand.vmem [shape: bf16[8,64,32], index: 10, kind: output, shape index: {}]
  %s11 = sld [smem:[#allocation0]]
  $region73: #{mid_block_temporal_decoder_forward.5} parent=0
    _
  %s13 = ssub.s32 1, %s11
  %s14 = scalar_select 0, %s13, %s11
  loop: start=0, step=1, limit=10
  $region2: #{mid_block_temporal_decoder_forward.5} parent=0 // loop_pre_header
    _
  $region3: #{mid_block_temporal_decoder_forward.5} parent=0 // loop_header
    %s16 = sphi 0, %s20
    %p17 = scmp.ge.s32.totalorder %s16, 10
    %s26 = sphi 0, %s28
    %s29 = sphi 0, %s26
    %s30 = sphi 0, %s29
    %s46 = sphi 0, %s30
    %s50 = sphi 0, %s50
    %s52 = sphi 0, %s50
    %s53 = sphi 0, %s52
    %s67 = sphi 0, %s53
    %s71 = sphi 0, %s71
    %s73 = sphi 0, %s71
    %s74 = sphi 0, %s73
    %s88 = sphi 0, %s74
    %s92 = sphi 0, %s92
    %s94 = sphi 0, %s92
    %s95 = sphi 0, %s94
    %s109 = sphi 0, %s95
    %s113 = sphi 0, %s113
    %s115 = sphi 0, %s113
    %s116 = sphi 0, %s115
    %s130 = sphi 0, %s116
    %s134 = sphi 0, %s134
    %s136 = sphi 0, %s134
    %s137 = sphi 0, %s136
    %s151 = sphi 0, %s137
    %s155 = sphi 0, %s155
    %s157 = sphi 0, %s155
    %s158 = sphi 0, %s157
    %s172 = sphi 0, %s158
    %s176 = sphi 0, %s176
    %s178 = sphi 0, %s176
    %s179 = sphi 0, %s178
    %s193 = sphi 0, %s179
    %s197 = sphi 0, %s197
    %s199 = sphi 0, %s197
    %s200 = sphi 0, %s199
    %s214 = sphi 0, %s200
    %s218 = sphi 0, %s218
    %s220 = sphi 0, %s218
    %s221 = sphi 0, %s220
    %s235 = sphi 0, %s221
    %s241 = sphi 0, %s243
    %s244 = sphi 0, %s241
    %s245 = sphi 0, %s244
    %s261 = sphi 0, %s245
  $region4: #{mid_block_temporal_decoder_forward.5} parent=0 // loop_header_branch
    %19 = sbr.rel (%p17) target = $region8
  $region5: #{mid_block_temporal_decoder_forward.5} parent=0 // loop_body
    %s21 = ssub.s32 %s16, 1
    %s22 = ssub.s32 %s16, 2
    %s23 = sadd.s32 %s16, 1
    %s24 = ssub.s32 %s16, %s23
    %p25 = scmp.eq.s32.totalorder %s24, 0
    %s27 = sadd.s32 %s26, 1
    %s28 = scalar_select %p25, %s26, %s27
    %p31 = pneg %p25
    %p32 = scmp.eq.s32.totalorder %s16, 7
    %p33 = por %p31, %p32
    %p34 = scmp.ne.s32.totalorder %s26, %s29
    %p35 = scmp.eq.s32.totalorder %s16, 0
    %p36 = por %p34, %p35
    %p37 = scmp.ne.s32.totalorder %s26, %s29
    %p38 = scmp.eq.s32.totalorder %s21, 7
    %p39 = por %p37, %p38
    %p40 = scmp.ne.s32.totalorder %s29, %s30
    %p41 = scmp.eq.s32.totalorder %s21, 0
    %p42 = por %p40, %p41
    %p43 = scmp.ne.s32.totalorder %s29, %s30
    %p44 = scmp.eq.s32.totalorder %s22, 7
    %p45 = por %p43, %p44
    %p47 = scmp.ne.s32.totalorder %s30, %s46
    %p48 = scmp.eq.s32.totalorder %s22, 0
    %p49 = por %p47, %p48
    %s51 = sadd.s32 %s50, 1
    %p54 = scmp.eq.s32.totalorder %s16, 7
    %p55 = scmp.ne.s32.totalorder %s50, %s52
    %p56 = scmp.eq.s32.totalorder %s16, 0
    %p57 = por %p55, %p56
    %p58 = scmp.ne.s32.totalorder %s50, %s52
    %p59 = scmp.eq.s32.totalorder %s21, 7
    %p60 = por %p58, %p59
    %p61 = scmp.ne.s32.totalorder %s52, %s53
    %p62 = scmp.eq.s32.totalorder %s21, 0
    %p63 = por %p61, %p62
    %p64 = scmp.ne.s32.totalorder %s52, %s53
    %p65 = scmp.eq.s32.totalorder %s22, 7
    %p66 = por %p64, %p65
    %p68 = scmp.ne.s32.totalorder %s53, %s67
    %p69 = scmp.eq.s32.totalorder %s22, 0
    %p70 = por %p68, %p69
    %s72 = sadd.s32 %s71, 1
    %p75 = scmp.eq.s32.totalorder %s16, 7
    %p76 = scmp.ne.s32.totalorder %s71, %s73
    %p77 = scmp.eq.s32.totalorder %s16, 0
    %p78 = por %p76, %p77
    %p79 = scmp.ne.s32.totalorder %s71, %s73
    %p80 = scmp.eq.s32.totalorder %s21, 7
    %p81 = por %p79, %p80
    %p82 = scmp.ne.s32.totalorder %s73, %s74
    %p83 = scmp.eq.s32.totalorder %s21, 0
    %p84 = por %p82, %p83
    %p85 = scmp.ne.s32.totalorder %s73, %s74
    %p86 = scmp.eq.s32.totalorder %s22, 7
    %p87 = por %p85, %p86
    %p89 = scmp.ne.s32.totalorder %s74, %s88
    %p90 = scmp.eq.s32.totalorder %s22, 0
    %p91 = por %p89, %p90
    %s93 = sadd.s32 %s92, 1
    %p96 = scmp.eq.s32.totalorder %s16, 7
    %p97 = scmp.ne.s32.totalorder %s92, %s94
    %p98 = scmp.eq.s32.totalorder %s16, 0
    %p99 = por %p97, %p98
    %p100 = scmp.ne.s32.totalorder %s92, %s94
    %p101 = scmp.eq.s32.totalorder %s21, 7
    %p102 = por %p100, %p101
    %p103 = scmp.ne.s32.totalorder %s94, %s95
    %p104 = scmp.eq.s32.totalorder %s21, 0
    %p105 = por %p103, %p104
    %p106 = scmp.ne.s32.totalorder %s94, %s95
    %p107 = scmp.eq.s32.totalorder %s22, 7
    %p108 = por %p106, %p107
    %p110 = scmp.ne.s32.totalorder %s95, %s109
    %p111 = scmp.eq.s32.totalorder %s22, 0
    %p112 = por %p110, %p111
    %s114 = sadd.s32 %s113, 1
    %p117 = scmp.eq.s32.totalorder %s16, 7
    %p118 = scmp.ne.s32.totalorder %s113, %s115
    %p119 = scmp.eq.s32.totalorder %s16, 0
    %p120 = por %p118, %p119
    %p121 = scmp.ne.s32.totalorder %s113, %s115
    %p122 = scmp.eq.s32.totalorder %s21, 7
    %p123 = por %p121, %p122
    %p124 = scmp.ne.s32.totalorder %s115, %s116
    %p125 = scmp.eq.s32.totalorder %s21, 0
    %p126 = por %p124, %p125
    %p127 = scmp.ne.s32.totalorder %s115, %s116
    %p128 = scmp.eq.s32.totalorder %s22, 7
    %p129 = por %p127, %p128
    %p131 = scmp.ne.s32.totalorder %s116, %s130
    %p132 = scmp.eq.s32.totalorder %s22, 0
    %p133 = por %p131, %p132
    %s135 = sadd.s32 %s134, 1
    %p138 = scmp.eq.s32.totalorder %s16, 7
    %p139 = scmp.ne.s32.totalorder %s134, %s136
    %p140 = scmp.eq.s32.totalorder %s16, 0
    %p141 = por %p139, %p140
    %p142 = scmp.ne.s32.totalorder %s134, %s136
    %p143 = scmp.eq.s32.totalorder %s21, 7
    %p144 = por %p142, %p143
    %p145 = scmp.ne.s32.totalorder %s136, %s137
    %p146 = scmp.eq.s32.totalorder %s21, 0
    %p147 = por %p145, %p146
    %p148 = scmp.ne.s32.totalorder %s136, %s137
    %p149 = scmp.eq.s32.totalorder %s22, 7
    %p150 = por %p148, %p149
    %p152 = scmp.ne.s32.totalorder %s137, %s151
    %p153 = scmp.eq.s32.totalorder %s22, 0
    %p154 = por %p152, %p153
    %s156 = sadd.s32 %s155, 1
    %p159 = scmp.eq.s32.totalorder %s16, 7
    %p160 = scmp.ne.s32.totalorder %s155, %s157
    %p161 = scmp.eq.s32.totalorder %s16, 0
    %p162 = por %p160, %p161
    %p163 = scmp.ne.s32.totalorder %s155, %s157
    %p164 = scmp.eq.s32.totalorder %s21, 7
    %p165 = por %p163, %p164
    %p166 = scmp.ne.s32.totalorder %s157, %s158
    %p167 = scmp.eq.s32.totalorder %s21, 0
    %p168 = por %p166, %p167
    %p169 = scmp.ne.s32.totalorder %s157, %s158
    %p170 = scmp.eq.s32.totalorder %s22, 7
    %p171 = por %p169, %p170
    %p173 = scmp.ne.s32.totalorder %s158, %s172
    %p174 = scmp.eq.s32.totalorder %s22, 0
    %p175 = por %p173, %p174
    %s177 = sadd.s32 %s176, 1
    %p180 = scmp.eq.s32.totalorder %s16, 7
    %p181 = scmp.ne.s32.totalorder %s176, %s178
    %p182 = scmp.eq.s32.totalorder %s16, 0
    %p183 = por %p181, %p182
    %p184 = scmp.ne.s32.totalorder %s176, %s178
    %p185 = scmp.eq.s32.totalorder %s21, 7
    %p186 = por %p184, %p185
    %p187 = scmp.ne.s32.totalorder %s178, %s179
    %p188 = scmp.eq.s32.totalorder %s21, 0
    %p189 = por %p187, %p188
    %p190 = scmp.ne.s32.totalorder %s178, %s179
    %p191 = scmp.eq.s32.totalorder %s22, 7
    %p192 = por %p190, %p191
    %p194 = scmp.ne.s32.totalorder %s179, %s193
    %p195 = scmp.eq.s32.totalorder %s22, 0
    %p196 = por %p194, %p195
    %s198 = sadd.s32 %s197, 1
    %p201 = scmp.eq.s32.totalorder %s16, 7
    %p202 = scmp.ne.s32.totalorder %s197, %s199
    %p203 = scmp.eq.s32.totalorder %s16, 0
    %p204 = por %p202, %p203
    %p205 = scmp.ne.s32.totalorder %s197, %s199
    %p206 = scmp.eq.s32.totalorder %s21, 7
    %p207 = por %p205, %p206
    %p208 = scmp.ne.s32.totalorder %s199, %s200
    %p209 = scmp.eq.s32.totalorder %s21, 0
    %p210 = por %p208, %p209
    %p211 = scmp.ne.s32.totalorder %s199, %s200
    %p212 = scmp.eq.s32.totalorder %s22, 7
    %p213 = por %p211, %p212
    %p215 = scmp.ne.s32.totalorder %s200, %s214
    %p216 = scmp.eq.s32.totalorder %s22, 0
    %p217 = por %p215, %p216
    %s219 = sadd.s32 %s218, 1
    %p222 = scmp.eq.s32.totalorder %s16, 7
    %p223 = scmp.ne.s32.totalorder %s218, %s220
    %p224 = scmp.eq.s32.totalorder %s16, 0
    %p225 = por %p223, %p224
    %p226 = scmp.ne.s32.totalorder %s218, %s220
    %p227 = scmp.eq.s32.totalorder %s21, 7
    %p228 = por %p226, %p227
    %p229 = scmp.ne.s32.totalorder %s220, %s221
    %p230 = scmp.eq.s32.totalorder %s21, 0
    %p231 = por %p229, %p230
    %p232 = scmp.ne.s32.totalorder %s220, %s221
    %p233 = scmp.eq.s32.totalorder %s22, 7
    %p234 = por %p232, %p233
    %p236 = scmp.ne.s32.totalorder %s221, %s235
    %p237 = scmp.eq.s32.totalorder %s22, 0
    %p238 = por %p236, %p237
    %s239 = ssub.s32 %s16, %s23
    %p240 = scmp.eq.s32.totalorder %s239, 0
    %s242 = sadd.s32 %s241, 1
    %s243 = scalar_select %p240, %s241, %s242
    %p246 = pneg %p240
    %p247 = scmp.eq.s32.totalorder %s16, 7
    %p248 = por %p246, %p247
    %p249 = scmp.ne.s32.totalorder %s241, %s244
    %p250 = scmp.eq.s32.totalorder %s16, 0
    %p251 = por %p249, %p250
    %p252 = scmp.ne.s32.totalorder %s241, %s244
    %p253 = scmp.eq.s32.totalorder %s21, 7
    %p254 = por %p252, %p253
    %p255 = scmp.ne.s32.totalorder %s244, %s245
    %p256 = scmp.eq.s32.totalorder %s21, 0
    %p257 = por %p255, %p256
    %p258 = scmp.ne.s32.totalorder %s244, %s245
    %p259 = scmp.eq.s32.totalorder %s22, 7
    %p260 = por %p258, %p259
    %p262 = scmp.ne.s32.totalorder %s245, %s261
    %p263 = scmp.eq.s32.totalorder %s22, 0
    %p264 = por %p262, %p263
    %p265 = scmp.le.s32.totalorder 1, %s16
    %p266 = scmp.lt.s32.totalorder %s16, 9
    %p267 = pnand %p265, %p266
    %p268 = pneg %p267
    // Predicated region
    $region9: #{mid_block_temporal_decoder_forward.5} parent=5 // pred_check
      _
    $region10: #{mid_block_temporal_decoder_forward.5} parent=5 // pred_check_branch
      %270 = sbr.rel (%p267) target = $region12
    $region11: #{mid_block_temporal_decoder_forward.5} parent=5 // pred_region
      %s271 = ssub.s32 %s16, 1
      // Predicated region
      $region13: #{mid_block_temporal_decoder_forward.5} parent=11 // pred_check
        %p272 = pneg %p63
      $region14: #{mid_block_temporal_decoder_forward.5} parent=11 // pred_check_branch
        %274 = sbr.rel (%p272) target = $region16
      $region15: #{mid_block_temporal_decoder_forward.5} parent=11 // pred_region
        _
      $region16: #{mid_block_temporal_decoder_forward.5} parent=11 // pred_fallthru
        _
      // Predicated region
      $region17: #{mid_block_temporal_decoder_forward.5} parent=11 // pred_check
        %p275 = pneg %p84
      $region18: #{mid_block_temporal_decoder_forward.5} parent=11 // pred_check_branch
        %277 = sbr.rel (%p275) target = $region20
      $region19: #{mid_block_temporal_decoder_forward.5} parent=11 // pred_region
        _
      $region20: #{mid_block_temporal_decoder_forward.5} parent=11 // pred_fallthru
        _
      // Predicated region
      $region21: #{mid_block_temporal_decoder_forward.5} parent=11 // pred_check
        %p278 = pneg %p105
      $region22: #{mid_block_temporal_decoder_forward.5} parent=11 // pred_check_branch
        %280 = sbr.rel (%p278) target = $region24
      $region23: #{mid_block_temporal_decoder_forward.5} parent=11 // pred_region
        _
      $region24: #{mid_block_temporal_decoder_forward.5} parent=11 // pred_fallthru
        _
      // Predicated region
      $region25: #{mid_block_temporal_decoder_forward.5} parent=11 // pred_check
        %p281 = pneg %p126
      $region26: #{mid_block_temporal_decoder_forward.5} parent=11 // pred_check_branch
        %283 = sbr.rel (%p281) target = $region28
      $region27: #{mid_block_temporal_decoder_forward.5} parent=11 // pred_region
        _
      $region28: #{mid_block_temporal_decoder_forward.5} parent=11 // pred_fallthru
        _
      // Predicated region
      $region29: #{mid_block_temporal_decoder_forward.5} parent=11 // pred_check
        %p284 = pneg %p147
      $region30: #{mid_block_temporal_decoder_forward.5} parent=11 // pred_check_branch
        %286 = sbr.rel (%p284) target = $region32
      $region31: #{mid_block_temporal_decoder_forward.5} parent=11 // pred_region
        _
      $region32: #{mid_block_temporal_decoder_forward.5} parent=11 // pred_fallthru
        _
      // Predicated region
      $region33: #{mid_block_temporal_decoder_forward.5} parent=11 // pred_check
        %p287 = pneg %p168
      $region34: #{mid_block_temporal_decoder_forward.5} parent=11 // pred_check_branch
        %289 = sbr.rel (%p287) target = $region36
      $region35: #{mid_block_temporal_decoder_forward.5} parent=11 // pred_region
        _
      $region36: #{mid_block_temporal_decoder_forward.5} parent=11 // pred_fallthru
        _
      // Predicated region
      $region37: #{mid_block_temporal_decoder_forward.5} parent=11 // pred_check
        %p290 = pneg %p189
      $region38: #{mid_block_temporal_decoder_forward.5} parent=11 // pred_check_branch
        %292 = sbr.rel (%p290) target = $region40
      $region39: #{mid_block_temporal_decoder_forward.5} parent=11 // pred_region
        _
      $region40: #{mid_block_temporal_decoder_forward.5} parent=11 // pred_fallthru
        _
      // Predicated region
      $region41: #{mid_block_temporal_decoder_forward.5} parent=11 // pred_check
        %p293 = pneg %p210
      $region42: #{mid_block_temporal_decoder_forward.5} parent=11 // pred_check_branch
        %295 = sbr.rel (%p293) target = $region44
      $region43: #{mid_block_temporal_decoder_forward.5} parent=11 // pred_region
        _
      $region44: #{mid_block_temporal_decoder_forward.5} parent=11 // pred_fallthru
        _
      // Predicated region
      $region45: #{mid_block_temporal_decoder_forward.5} parent=11 // pred_check
        %p296 = pneg %p231
      $region46: #{mid_block_temporal_decoder_forward.5} parent=11 // pred_check_branch
        %298 = sbr.rel (%p296) target = $region48
      $region47: #{mid_block_temporal_decoder_forward.5} parent=11 // pred_region
        _
      $region48: #{mid_block_temporal_decoder_forward.5} parent=11 // pred_fallthru
        _
    $region12: #{mid_block_temporal_decoder_forward.5} parent=5 // pred_fallthru
      _
    %p299 = scmp.lt.s32.totalorder %s16, 8
    // Predicated region
    $region49: #{mid_block_temporal_decoder_forward.5} parent=5 // pred_check
      %p300 = pneg %p299
    $region50: #{mid_block_temporal_decoder_forward.5} parent=5 // pred_check_branch
      %302 = sbr.rel (%p300) target = $region52
    $region51: #{mid_block_temporal_decoder_forward.5} parent=5 // pred_region
      // Predicated region
      $region53: #{mid_block_temporal_decoder_forward.5} parent=51 // pred_check
        %p303 = pneg %p36
      $region54: #{mid_block_temporal_decoder_forward.5} parent=51 // pred_check_branch
        %305 = sbr.rel (%p303) target = $region56
      $region55: #{mid_block_temporal_decoder_forward.5} parent=51 // pred_region
        %p306 = scmp.lt.s32.totalorder %s16, 7
        %s307 = scalar_select %p306, %s16, 7
        %s308 = smul.addr %s307, 8
        %s309 = smul.addr %s308, 4
        %s310 = scalar_lea.vmem %s0, %s309
      $region56: #{mid_block_temporal_decoder_forward.5} parent=51 // pred_fallthru
        _
    $region52: #{mid_block_temporal_decoder_forward.5} parent=5 // pred_fallthru
      _
    %p311 = scmp.le.s32.totalorder 1, %s16
    %p312 = scmp.lt.s32.totalorder %s16, 9
    %p313 = pnand %p311, %p312
    %p314 = pneg %p313
    // Predicated region
    $region57: #{mid_block_temporal_decoder_forward.5} parent=5 // pred_check
      _
    $region58: #{mid_block_temporal_decoder_forward.5} parent=5 // pred_check_branch
      %316 = sbr.rel (%p313) target = $region60
    $region59: #{mid_block_temporal_decoder_forward.5} parent=5 // pred_region
      %s317 = ssub.s32 %s16, 1
      %p318 = scmp.lt.s32.totalorder %s21, 7
      %s319 = scalar_select %p318, %s21, 7
      %s320 = smul.addr %s319, 8
      %s321 = smul.addr %s320, 4
      %s322 = scalar_lea.vmem %s0, %s321
      %p323 = pneg %p42
      %p324 = pneg %p39
      %p325 = pneg %p63
      %p326 = pneg %p60
      %p327 = pneg %p84
      %p328 = pneg %p81
      %p329 = pneg %p105
      %p330 = pneg %p102
      %p331 = pneg %p126
      %p332 = pneg %p123
      %p333 = pneg %p147
      %p334 = pneg %p144
      %p335 = pneg %p168
      %p336 = pneg %p165
      %p337 = pneg %p189
      %p338 = pneg %p186
      %p339 = pneg %p210
      %p340 = pneg %p207
      %p341 = pneg %p231
      %p342 = pneg %p228
      %p343 = pneg %p257
      %p344 = pneg %p254
      %p345 = scmp.lt.s32.totalorder %s21, 7
      %s346 = scalar_select %p345, %s21, 7
      %s347 = smul.addr %s346, 8
      %s348 = smul.addr %s347, 4
      %s349 = scalar_lea.vmem %s10, %s348
      %p350 = scmp.lt.s32.totalorder %s21, 7
      %s351 = scalar_select %p350, %s21, 7
      %s352 = smul.addr %s351, 8
      %s353 = smul.addr %s352, 4
      %s354 = scalar_lea.vmem %s0, %s353
      %p355 = scmp.lt.s32.totalorder %s21, 7
      %s356 = scalar_select %p355, %s21, 7
      %s357 = smul.addr %s356, 8
      %s358 = smul.addr %s357, 4
      %s359 = scalar_lea.vmem %s10, %s358
      %v363 = vld [vmem:[%s354] sm:$0xf]
      %v364 = vld [vmem:[%s354 + $0x4] sm:$0xf]
      %v365 = vld [vmem:[%s354 + $0x8] sm:$0xf]
      %v366 = vld [vmem:[%s354 + $0xc] sm:$0xf]
      %v367 = vld [vmem:[%s354 + $0x10] sm:$0xf]
      %v368 = vld [vmem:[%s354 + $0x14] sm:$0xf]
      %v369 = vld [vmem:[%s354 + $0x18] sm:$0xf]
      %v370 = vld [vmem:[%s354 + $0x1c] sm:$0xf]
      %v371 = vunpack.c.l.bf16 %v363
      %v372 = vunpack.c.l.bf16 %v364
      %v373 = vunpack.c.l.bf16 %v365
      %v374 = vunpack.c.l.bf16 %v366
      %v375 = vunpack.c.l.bf16 %v367
      %v376 = vunpack.c.l.bf16 %v368
      %v377 = vunpack.c.l.bf16 %v369
      %v378 = vunpack.c.l.bf16 %v370
      %v379 = vld [vmem:[%s1] sm:$0xf]
      %v380 = vld [vmem:[%s1 + $0x4] sm:$0xf]
      %v381 = vld [vmem:[%s1 + $0x8] sm:$0xf]
      %v382 = vld [vmem:[%s1 + $0xc] sm:$0xf]
      %v383 = vunpack.c.l.bf16 %v379
      %v384 = vunpack.c.l.bf16 %v380
      %v385 = vunpack.c.l.bf16 %v381
      %v386 = vunpack.c.l.bf16 %v382
      %v387 = vlaneseq
      %v388 = vshrl.u32 %v387, 7
      %v389 = vadd.s32 %v388, 8
      %v390 = vadd.s32 %v388, 16
      %v391 = vadd.s32 %v388, 24
      %v392 = vadd.s32 %v388, 32
      %v393 = vadd.s32 %v388, 40
      %v394 = vadd.s32 %v388, 48
      %v395 = vadd.s32 %v388, 56
      %vm396 = vcmp.lt.s32.totalorder %v388, 0
      %v397 = vsub.s32 0, %v388
      %v398 = vsel %vm396, %v397, %v388
      %v399 = vshrl.u32 %v398, 3
      %v400 = vand.u32 %v398, 7
      %v401 = vsub.s32 0, %v400
      %v402 = vsel %vm396, %v401, %v400
      %vm403 = vcmp.lt.s32.totalorder %v389, 0
      %v404 = vsub.s32 0, %v389
      %v405 = vsel %vm403, %v404, %v389
      %v406 = vshrl.u32 %v405, 3
      %v407 = vand.u32 %v405, 7
      %v408 = vsub.s32 0, %v407
      %v409 = vsel %vm403, %v408, %v407
      %vm410 = vcmp.lt.s32.totalorder %v390, 0
      %v411 = vsub.s32 0, %v390
      %v412 = vsel %vm410, %v411, %v390
      %v413 = vshrl.u32 %v412, 3
      %v414 = vand.u32 %v412, 7
      %v415 = vsub.s32 0, %v414
      %v416 = vsel %vm410, %v415, %v414
      %vm417 = vcmp.lt.s32.totalorder %v391, 0
      %v418 = vsub.s32 0, %v391
      %v419 = vsel %vm417, %v418, %v391
      %v420 = vshrl.u32 %v419, 3
      %v421 = vand.u32 %v419, 7
      %v422 = vsub.s32 0, %v421
      %v423 = vsel %vm417, %v422, %v421
      %vm424 = vcmp.lt.s32.totalorder %v392, 0
      %v425 = vsub.s32 0, %v392
      %v426 = vsel %vm424, %v425, %v392
      %v427 = vshrl.u32 %v426, 3
      %v428 = vand.u32 %v426, 7
      %v429 = vsub.s32 0, %v428
      %v430 = vsel %vm424, %v429, %v428
      %vm431 = vcmp.lt.s32.totalorder %v393, 0
      %v432 = vsub.s32 0, %v393
      %v433 = vsel %vm431, %v432, %v393
      %v434 = vshrl.u32 %v433, 3
      %v435 = vand.u32 %v433, 7
      %v436 = vsub.s32 0, %v435
      %v437 = vsel %vm431, %v436, %v435
      %vm438 = vcmp.lt.s32.totalorder %v394, 0
      %v439 = vsub.s32 0, %v394
      %v440 = vsel %vm438, %v439, %v394
      %v441 = vshrl.u32 %v440, 3
      %v442 = vand.u32 %v440, 7
      %v443 = vsub.s32 0, %v442
      %v444 = vsel %vm438, %v443, %v442
      %vm445 = vcmp.lt.s32.totalorder %v395, 0
      %v446 = vsub.s32 0, %v395
      %v447 = vsel %vm445, %v446, %v395
      %v448 = vshrl.u32 %v447, 3
      %v449 = vand.u32 %v447, 7
      %v450 = vsub.s32 0, %v449
      %v451 = vsel %vm445, %v450, %v449
      %vm452 = vcmp.ne.s32.totalorder %v402, 0
      %vm453 = vcmp.ne.s32.totalorder %v409, 0
      %vm454 = vcmp.ne.s32.totalorder %v416, 0
      %vm455 = vcmp.ne.s32.totalorder %v423, 0
      %vm456 = vcmp.ne.s32.totalorder %v430, 0
      %vm457 = vcmp.ne.s32.totalorder %v437, 0
      %vm458 = vcmp.ne.s32.totalorder %v444, 0
      %vm459 = vcmp.ne.s32.totalorder %v451, 0
      %vm460 = vcmp.lt.s32.totalorder %v402, 0
      %vm461 = vcmp.lt.s32.totalorder %v409, 0
      %vm462 = vcmp.lt.s32.totalorder %v416, 0
      %vm463 = vcmp.lt.s32.totalorder %v423, 0
      %vm464 = vcmp.lt.s32.totalorder %v430, 0
      %vm465 = vcmp.lt.s32.totalorder %v437, 0
      %vm466 = vcmp.lt.s32.totalorder %v444, 0
      %vm467 = vcmp.lt.s32.totalorder %v451, 0
      %vm468 = vmand %vm460, %vm452
      %vm469 = vmand %vm461, %vm453
      %vm470 = vmand %vm462, %vm454
      %vm471 = vmand %vm463, %vm455
      %vm472 = vmand %vm464, %vm456
      %vm473 = vmand %vm465, %vm457
      %vm474 = vmand %vm466, %vm458
      %vm475 = vmand %vm467, %vm459
      %v476 = vadd.s32 %v402, 8
      %v477 = vadd.s32 %v409, 8
      %v478 = vadd.s32 %v416, 8
      %v479 = vadd.s32 %v423, 8
      %v480 = vadd.s32 %v430, 8
      %v481 = vadd.s32 %v437, 8
      %v482 = vadd.s32 %v444, 8
      %v483 = vadd.s32 %v451, 8
      %v484 = vsel %vm468, %v476, %v402
      %v485 = vsel %vm469, %v477, %v409
      %v486 = vsel %vm470, %v478, %v416
      %v487 = vsel %vm471, %v479, %v423
      %v488 = vsel %vm472, %v480, %v430
      %v489 = vsel %vm473, %v481, %v437
      %v490 = vsel %vm474, %v482, %v444
      %v491 = vsel %vm475, %v483, %v451
      %vm492 = vcmp.ge.s32.totalorder %v484, 1
      %vm493 = vcmp.ge.s32.totalorder %v485, 1
      %vm494 = vcmp.ge.s32.totalorder %v486, 1
      %vm495 = vcmp.ge.s32.totalorder %v487, 1
      %vm496 = vcmp.ge.s32.totalorder %v488, 1
      %vm497 = vcmp.ge.s32.totalorder %v489, 1
      %vm498 = vcmp.ge.s32.totalorder %v490, 1
      %vm499 = vcmp.ge.s32.totalorder %v491, 1
      %vm500 = vcmp.le.s32.totalorder %v484, 6
      %vm501 = vcmp.le.s32.totalorder %v485, 6
      %vm502 = vcmp.le.s32.totalorder %v486, 6
      %vm503 = vcmp.le.s32.totalorder %v487, 6
      %vm504 = vcmp.le.s32.totalorder %v488, 6
      %vm505 = vcmp.le.s32.totalorder %v489, 6
      %vm506 = vcmp.le.s32.totalorder %v490, 6
      %vm507 = vcmp.le.s32.totalorder %v491, 6
      %v508 = vld [vmem:[%s2] sm:$0x1]
      %v509 = vld [vmem:[%s3] sm:$0x1]
      %vm510 = vcmask 261120
      %v511 = vsel %vm510, %v371, 0.0
      %v512 = vsel %vm510, %v372, 0.0
      %v513 = vadd.f32 %v511, %v512
      %v514 = vsel %vm510, %v373, 0.0
      %v515 = vadd.f32 %v513, %v514
      %v516 = vsel %vm510, %v374, 0.0
      %v517 = vadd.f32 %v515, %v516
      %v518 = vsel %vm510, %v375, 0.0
      %v519 = vadd.f32 %v517, %v518
      %v520 = vsel %vm510, %v376, 0.0
      %v521 = vadd.f32 %v519, %v520
      %v522 = vsel %vm510, %v377, 0.0
      %v523 = vadd.f32 %v521, %v522
      %v524 = vsel %vm510, %v378, 0.0
      %v525 = vadd.f32 %v523, %v524
      %v526 = vrot.slane %v525, 4
      %v527 = vadd.f32 %v525, %v526
      %v528 = vrot.slane %v527, 2
      %v529 = vadd.f32 %v527, %v528
      %v530 = vrot.slane %v529, 1
      %v531 = vadd.f32 %v529, %v530
      %v533 = vsel %vm510, %v531, 0
      %535 = vmatprep.subr.mxu0 0.0
      %536 = vmatpush1.msra.mxu0 %v383
      %537 = vmatprep.subr.mxu0 0.0
      %538 = vmatpush1.msra.mxu0 %v384
      %539 = vmatprep.subr.mxu0 0.0
      %540 = vmatpush1.msra.mxu0 %v385
      %541 = vmatprep.subr.mxu0 0.0
      %542 = vmatpush1.msra.mxu0 %v386
      %543 = vmatprep.subr.mxu0 0.0
      %544 = vmatpush1.msra.mxu0 0.0
      %545 = vmatprep.subr.mxu0 0.0
      %546 = vmatpush1.msra.mxu0 0.0
      %547 = vmatprep.subr.mxu0 0.0
      %548 = vmatpush1.msra.mxu0 0.0
      %549 = vmatprep.subr.mxu0 0.0
      %550 = vmatpush1.msra.mxu0 0.0
      %551 = vmatprep.subr.mxu0 0.0
      %552 = vmatpush1.msra.mxu0 0.0
      %553 = vmatprep.subr.mxu0 0.0
      %554 = vmatpush1.msra.mxu0 0.0
      %555 = vmatprep.subr.mxu0 0.0
      %556 = vmatpush1.msra.mxu0 0.0
      %557 = vmatprep.subr.mxu0 0.0
      %558 = vmatpush1.msra.mxu0 0.0
      %559 = vmatprep.subr.mxu0 0.0
      %560 = vmatpush1.msra.mxu0 0.0
      %561 = vmatprep.subr.mxu0 0.0
      %562 = vmatpush1.msra.mxu0 0.0
      %563 = vmatprep.subr.mxu0 0.0
      %564 = vmatpush1.msra.mxu0 0.0
      %565 = vmatprep.subr.mxu0 0.0
      %566 = vmatpush1.msra.mxu0 0.0
      %567 = vmatprep.subr.mxu0 0.0
      %568 = vmatpush1.msra.mxu0 0.0
      %569 = vmatprep.subr.mxu0 0.0
      %570 = vmatpush1.msra.mxu0 0.0
      %571 = vmatprep.subr.mxu0 0.0
      %572 = vmatpush1.msra.mxu0 0.0
      %573 = vmatprep.subr.mxu0 0.0
      %574 = vmatpush1.msra.mxu0 0.0
      %575 = vmatprep.subr.mxu0 0.0
      %576 = vmatpush1.msra.mxu0 0.0
      %577 = vmatprep.subr.mxu0 0.0
      %578 = vmatpush1.msra.mxu0 0.0
      %579 = vmatprep.subr.mxu0 0.0
      %580 = vmatpush1.msra.mxu0 0.0
      %581 = vmatprep.subr.mxu0 0.0
      %582 = vmatpush1.msra.mxu0 0.0
      %583 = vmatprep.subr.mxu0 0.0
      %584 = vmatpush1.msra.mxu0 0.0
      %585 = vmatprep.subr.mxu0 0.0
      %586 = vmatpush1.msra.mxu0 0.0
      %587 = vmatprep.subr.mxu0 0.0
      %588 = vmatpush1.msra.mxu0 0.0
      %589 = vmatprep.subr.mxu0 0.0
      %590 = vmatpush1.msra.mxu0 0.0
      %591 = vmatprep.subr.mxu0 0.0
      %592 = vmatpush1.msra.mxu0 0.0
      %593 = vmatprep.subr.mxu0 0.0
      %594 = vmatpush1.msra.mxu0 0.0
      %595 = vmatprep.subr.mxu0 0.0
      %596 = vmatpush1.msra.mxu0 0.0
      %597 = vmatprep.subr.mxu0 0.0
      %598 = vmatpush1.msra.mxu0 0.0
      %599 = vmatprep.mubr.f32.mxu0 0.0
      %600 = vmatmul.mubr.f32.gmra.mrb[0].mxu0 %v533
      %v601 = vpop.f32.mrb[0].mxu0
      %v602 = vadd.f32 0.0, %v601
      %v603 = vpop.f32.mrb[0].mxu0
      %604 = vdwg.mxu0
      %v605 = vmul.f32 %v602, 0.015625
      %v606 = vlaneseq
      %v607 = vshrl.u32 %v606, 7
      %v608 = vsub.s32 0, %v607
      %v609 = vrot.slane %v605, %v608
      %v610 = vsub.f32 %v371, %v609
      %v611 = vsub.f32 %v372, %v609
      %v612 = vsub.f32 %v373, %v609
      %v613 = vsub.f32 %v374, %v609
      %v614 = vsub.f32 %v375, %v609
      %v615 = vsub.f32 %v376, %v609
      %v616 = vsub.f32 %v377, %v609
      %v617 = vsub.f32 %v378, %v609
      %v618 = vmul.f32 %v610, %v610
      %v619 = vmul.f32 %v611, %v611
      %v620 = vmul.f32 %v612, %v612
      %v621 = vmul.f32 %v613, %v613
      %v622 = vmul.f32 %v614, %v614
      %v623 = vmul.f32 %v615, %v615
      %v624 = vmul.f32 %v616, %v616
      %v625 = vmul.f32 %v617, %v617
      %v626 = vsel %vm510, %v618, 0.0
      %v627 = vsel %vm510, %v619, 0.0
      %v628 = vadd.f32 %v626, %v627
      %v629 = vsel %vm510, %v620, 0.0
      %v630 = vadd.f32 %v628, %v629
      %v631 = vsel %vm510, %v621, 0.0
      %v632 = vadd.f32 %v630, %v631
      %v633 = vsel %vm510, %v622, 0.0
      %v634 = vadd.f32 %v632, %v633
      %v635 = vsel %vm510, %v623, 0.0
      %v636 = vadd.f32 %v634, %v635
      %v637 = vsel %vm510, %v624, 0.0
      %v638 = vadd.f32 %v636, %v637
      %v639 = vsel %vm510, %v625, 0.0
      %v640 = vadd.f32 %v638, %v639
      %v641 = vrot.slane %v640, 4
      %v642 = vadd.f32 %v640, %v641
      %v643 = vrot.slane %v642, 2
      %v644 = vadd.f32 %v642, %v643
      %v645 = vrot.slane %v644, 1
      %v646 = vadd.f32 %v644, %v645
      %v648 = vsel %vm510, %v646, 0
      %650 = vmatprep.subr.mxu0 0.0
      %651 = vmatpush1.msra.mxu0 %v383
      %652 = vmatprep.subr.mxu0 0.0
      %653 = vmatpush1.msra.mxu0 %v384
      %654 = vmatprep.subr.mxu0 0.0
      %655 = vmatpush1.msra.mxu0 %v385
      %656 = vmatprep.subr.mxu0 0.0
      %657 = vmatpush1.msra.mxu0 %v386
      %658 = vmatprep.subr.mxu0 0.0
      %659 = vmatpush1.msra.mxu0 0.0
      %660 = vmatprep.subr.mxu0 0.0
      %661 = vmatpush1.msra.mxu0 0.0
      %662 = vmatprep.subr.mxu0 0.0
      %663 = vmatpush1.msra.mxu0 0.0
      %664 = vmatprep.subr.mxu0 0.0
      %665 = vmatpush1.msra.mxu0 0.0
      %666 = vmatprep.subr.mxu0 0.0
      %667 = vmatpush1.msra.mxu0 0.0
      %668 = vmatprep.subr.mxu0 0.0
      %669 = vmatpush1.msra.mxu0 0.0
      %670 = vmatprep.subr.mxu0 0.0
      %671 = vmatpush1.msra.mxu0 0.0
      %672 = vmatprep.subr.mxu0 0.0
      %673 = vmatpush1.msra.mxu0 0.0
      %674 = vmatprep.subr.mxu0 0.0
      %675 = vmatpush1.msra.mxu0 0.0
      %676 = vmatprep.subr.mxu0 0.0
      %677 = vmatpush1.msra.mxu0 0.0
      %678 = vmatprep.subr.mxu0 0.0
      %679 = vmatpush1.msra.mxu0 0.0
      %680 = vmatprep.subr.mxu0 0.0
      %681 = vmatpush1.msra.mxu0 0.0
      %682 = vmatprep.subr.mxu0 0.0
      %683 = vmatpush1.msra.mxu0 0.0
      %684 = vmatprep.subr.mxu0 0.0
      %685 = vmatpush1.msra.mxu0 0.0
      %686 = vmatprep.subr.mxu0 0.0
      %687 = vmatpush1.msra.mxu0 0.0
      %688 = vmatprep.subr.mxu0 0.0
      %689 = vmatpush1.msra.mxu0 0.0
      %690 = vmatprep.subr.mxu0 0.0
      %691 = vmatpush1.msra.mxu0 0.0
      %692 = vmatprep.subr.mxu0 0.0
      %693 = vmatpush1.msra.mxu0 0.0
      %694 = vmatprep.subr.mxu0 0.0
      %695 = vmatpush1.msra.mxu0 0.0
      %696 = vmatprep.subr.mxu0 0.0
      %697 = vmatpush1.msra.mxu0 0.0
      %698 = vmatprep.subr.mxu0 0.0
      %699 = vmatpush1.msra.mxu0 0.0
      %700 = vmatprep.subr.mxu0 0.0
      %701 = vmatpush1.msra.mxu0 0.0
      %702 = vmatprep.subr.mxu0 0.0
      %703 = vmatpush1.msra.mxu0 0.0
      %704 = vmatprep.subr.mxu0 0.0
      %705 = vmatpush1.msra.mxu0 0.0
      %706 = vmatprep.subr.mxu0 0.0
      %707 = vmatpush1.msra.mxu0 0.0
      %708 = vmatprep.subr.mxu0 0.0
      %709 = vmatpush1.msra.mxu0 0.0
      %710 = vmatprep.subr.mxu0 0.0
      %711 = vmatpush1.msra.mxu0 0.0
      %712 = vmatprep.subr.mxu0 0.0
      %713 = vmatpush1.msra.mxu0 0.0
      %714 = vmatprep.mubr.f32.mxu0 0.0
      %715 = vmatmul.mubr.f32.gmra.mrb[0].mxu0 %v648
      %v716 = vpop.f32.mrb[0].mxu0
      %v717 = vadd.f32 0.0, %v716
      %v718 = vpop.f32.mrb[0].mxu0
      %719 = vdwg.mxu0
      %v720 = vmul.f32 %v717, 0.015625
      %v721 = vadd.f32 %v720, 1e-06
      %v722 = vrsqrt.pop %v721
      %v723 = vmul.f32 %v722, %v508
      %v724 = vlaneseq
      %v725 = vshrl.u32 %v724, 7
      %v726 = vsub.s32 0, %v725
      %v727 = vrot.slane %v723, %v726
      %v728 = vmul.f32 %v610, %v727
      %v729 = vmul.f32 %v611, %v727
      %v730 = vmul.f32 %v612, %v727
      %v731 = vmul.f32 %v613, %v727
      %v732 = vmul.f32 %v614, %v727
      %v733 = vmul.f32 %v615, %v727
      %v734 = vmul.f32 %v616, %v727
      %v735 = vmul.f32 %v617, %v727
      %v737 = vlaneseq
      %v738 = vshrl.u32 %v737, 7
      %v739 = vsub.s32 0, %v738
      %v740 = vrot.slane %v509, %v739
      %v742 = vadd.f32 %v728, %v740
      %v743 = vadd.f32 %v729, %v740
      %v744 = vadd.f32 %v730, %v740
      %v745 = vadd.f32 %v731, %v740
      %v746 = vadd.f32 %v732, %v740
      %v747 = vadd.f32 %v733, %v740
      %v748 = vadd.f32 %v734, %v740
      %v749 = vadd.f32 %v735, %v740
      %v750 = vxor.u32 %v742, 2147483648
      %v751 = vxor.u32 %v743, 2147483648
      %v752 = vxor.u32 %v744, 2147483648
      %v753 = vxor.u32 %v745, 2147483648
      %v754 = vxor.u32 %v746, 2147483648
      %v755 = vxor.u32 %v747, 2147483648
      %v756 = vxor.u32 %v748, 2147483648
      %v757 = vxor.u32 %v749, 2147483648
      %v758 = vmul.f32 %v750, 1.442695
      %v759 = vpow.pop %v758
      %v760 = vmul.f32 %v751, 1.442695
      %v761 = vpow.pop %v760
      %v762 = vmul.f32 %v752, 1.442695
      %v763 = vpow.pop %v762
      %v764 = vmul.f32 %v753, 1.442695
      %v765 = vpow.pop %v764
      %v766 = vmul.f32 %v754, 1.442695
      %v767 = vpow.pop %v766
      %v768 = vmul.f32 %v755, 1.442695
      %v769 = vpow.pop %v768
      %v770 = vmul.f32 %v756, 1.442695
      %v771 = vpow.pop %v770
      %v772 = vmul.f32 %v757, 1.442695
      %v773 = vpow.pop %v772
      %v774 = vadd.f32 %v759, 1.0
      %v775 = vadd.f32 %v761, 1.0
      %v776 = vadd.f32 %v763, 1.0
      %v777 = vadd.f32 %v765, 1.0
      %v778 = vadd.f32 %v767, 1.0
      %v779 = vadd.f32 %v769, 1.0
      %v780 = vadd.f32 %v771, 1.0
      %v781 = vadd.f32 %v773, 1.0
      %v782 = vrcp.pop %v774
      %v783 = vmul.f32 1.0, %v782
      %v784 = vrcp.pop %v775
      %v785 = vmul.f32 1.0, %v784
      %v786 = vrcp.pop %v776
      %v787 = vmul.f32 1.0, %v786
      %v788 = vrcp.pop %v777
      %v789 = vmul.f32 1.0, %v788
      %v790 = vrcp.pop %v778
      %v791 = vmul.f32 1.0, %v790
      %v792 = vrcp.pop %v779
      %v793 = vmul.f32 1.0, %v792
      %v794 = vrcp.pop %v780
      %v795 = vmul.f32 1.0, %v794
      %v796 = vrcp.pop %v781
      %v797 = vmul.f32 1.0, %v796
      %v798 = vmul.f32 %v742, %v783
      %v799 = vmul.f32 %v743, %v785
      %v800 = vmul.f32 %v744, %v787
      %v801 = vmul.f32 %v745, %v789
      %v802 = vmul.f32 %v746, %v791
      %v803 = vmul.f32 %v747, %v793
      %v804 = vmul.f32 %v748, %v795
      %v805 = vmul.f32 %v749, %v797
      %v806 = vld [vmem:[%s5] sm:$0x1]
      %v807 = vpack.c.bf16 %v799, %v798
      %v808 = vpack.c.bf16 %v801, %v800
      %v809 = vpack.c.bf16 %v803, %v802
      %v810 = vpack.c.bf16 %v805, %v804
      %vm811 = vsmask.f32 256
      %v813 = vshrl.u32 %v807, 16
      %v815 = vrot.slane %v813, 7
      %v816 = vshll.u32 %v807, 16
      %v818 = vor.u32 %v815, %v816
      %v820 = vshrl.u32 %v808, 16
      %v822 = vrot.slane %v820, 7
      %v823 = vshll.u32 %v808, 16
      %v825 = vor.u32 %v822, %v823
      %v826 = vsel %vm811, %v815, %v825
      %v828 = vshrl.u32 %v809, 16
      %v830 = vrot.slane %v828, 7
      %v831 = vshll.u32 %v809, 16
      %v833 = vor.u32 %v830, %v831
      %v834 = vsel %vm811, %v822, %v833
      %v836 = vshrl.u32 %v810, 16
      %v838 = vrot.slane %v836, 7
      %v839 = vshll.u32 %v810, 16
      %v841 = vor.u32 %v838, %v839
      %v842 = vsel %vm811, %v830, %v841
      %vm847 = vcmask 1040384
      %vm848 = vmand %vm847, %vm811
      %v849 = vsel %vm848, 0, %v818
      %vm850 = vmpackc.low %vm492, %vm492
      %vm851 = vmpackc.low %vm493, %vm493
      %vm852 = vmpackc.low %vm494, %vm494
      %vm853 = vmpackc.low %vm495, %vm495
      %vm854 = vmpackc.low %vm496, %vm496
      %vm855 = vmpackc.low %vm497, %vm497
      %vm856 = vmpackc.low %vm498, %vm498
      %vm857 = vmpackc.low %vm499, %vm499
      %v858 = vsel %vm850, 65537, 0
      %v859 = vsel %vm851, 65537, 0
      %v860 = vsel %vm852, 65537, 0
      %v861 = vsel %vm853, 65537, 0
      %v862 = vsel %vm854, 65537, 0
      %v863 = vsel %vm855, 65537, 0
      %v864 = vsel %vm856, 65537, 0
      %v865 = vsel %vm857, 65537, 0
      %v866 = vunpack.c.l.b16 %v858
      %v867 = vunpack.c.l.b16 %v859
      %v868 = vunpack.c.l.b16 %v860
      %v869 = vunpack.c.l.b16 %v861
      %v870 = vunpack.c.l.b16 %v862
      %v871 = vunpack.c.l.b16 %v863
      %v872 = vunpack.c.l.b16 %v864
      %v873 = vunpack.c.l.b16 %v865
      %v874 = vpack.c.b16 %v867, %v866
      %v875 = vpack.c.b16 %v869, %v868
      %v876 = vpack.c.b16 %v871, %v870
      %v877 = vpack.c.b16 %v873, %v872
      %vm878 = vcmp.ne.s16.totalorder %v874, 0
      %vm879 = vcmp.ne.s16.totalorder %v875, 0
      %vm880 = vcmp.ne.s16.totalorder %v876, 0
      %vm881 = vcmp.ne.s16.totalorder %v877, 0
      %v882 = vsel %vm878, %v849, 0
      %v883 = vsel %vm879, %v826, 0
      %v884 = vsel %vm880, %v834, 0
      %v885 = vsel %vm881, %v842, 0
      %vm886 = vsmask.f32 7424
      %v887 = vrot.slane %v816, 1
      %v888 = vor.u32 %v813, %v887
      %v889 = vrot.slane %v823, 1
      %v890 = vsel %vm886, %v888, %v889
      %v891 = vor.u32 %v820, %v889
      %v892 = vrot.slane %v831, 1
      %v893 = vsel %vm886, %v891, %v892
      %v894 = vor.u32 %v828, %v892
      %v895 = vrot.slane %v839, 1
      %v896 = vsel %vm886, %v894, %v895
      %v897 = vor.u32 %v836, %v895
      %vm902 = vcmask 1047552
      %vm903 = vmand %vm902, %vm886
      %v904 = vsel %vm903, %v897, 0
      %vm905 = vmpackc.low %vm500, %vm500
      %vm906 = vmpackc.low %vm501, %vm501
      %vm907 = vmpackc.low %vm502, %vm502
      %vm908 = vmpackc.low %vm503, %vm503
      %vm909 = vmpackc.low %vm504, %vm504
      %vm910 = vmpackc.low %vm505, %vm505
      %vm911 = vmpackc.low %vm506, %vm506
      %vm912 = vmpackc.low %vm507, %vm507
      %v913 = vsel %vm905, 65537, 0
      %v914 = vsel %vm906, 65537, 0
      %v915 = vsel %vm907, 65537, 0
      %v916 = vsel %vm908, 65537, 0
      %v917 = vsel %vm909, 65537, 0
      %v918 = vsel %vm910, 65537, 0
      %v919 = vsel %vm911, 65537, 0
      %v920 = vsel %vm912, 65537, 0
      %v921 = vunpack.c.l.b16 %v913
      %v922 = vunpack.c.l.b16 %v914
      %v923 = vunpack.c.l.b16 %v915
      %v924 = vunpack.c.l.b16 %v916
      %v925 = vunpack.c.l.b16 %v917
      %v926 = vunpack.c.l.b16 %v918
      %v927 = vunpack.c.l.b16 %v919
      %v928 = vunpack.c.l.b16 %v920
      %v929 = vpack.c.b16 %v922, %v921
      %v930 = vpack.c.b16 %v924, %v923
      %v931 = vpack.c.b16 %v926, %v925
      %v932 = vpack.c.b16 %v928, %v927
      %vm933 = vcmp.ne.s16.totalorder %v929, 0
      %vm934 = vcmp.ne.s16.totalorder %v930, 0
      %vm935 = vcmp.ne.s16.totalorder %v931, 0
      %vm936 = vcmp.ne.s16.totalorder %v932, 0
      %v937 = vsel %vm933, %v890, 0
      %v938 = vsel %vm934, %v893, 0
      %v939 = vsel %vm935, %v896, 0
      %v940 = vsel %vm936, %v904, 0
      %vm945 = vcmask 1043456
      %v946 = vrot.slane %v882, 4
      %v947 = vrot.slane %v883, 4
      %v948 = vsel %vm945, %v946, %v947
      %v949 = vrot.slane %v884, 4
      %v950 = vsel %vm945, %v947, %v949
      %v951 = vrot.slane %v885, 4
      %v952 = vsel %vm945, %v949, %v951
      %vm953 = vcmask 1043456
      %v956 = vsel %vm953, 0, %v946
      %v958 = vsel %vm953, %v951, 0
      %v963 = vrot.slane %v807, 4
      %v964 = vrot.slane %v808, 4
      %v965 = vsel %vm945, %v963, %v964
      %v966 = vrot.slane %v809, 4
      %v967 = vsel %vm945, %v964, %v966
      %v968 = vrot.slane %v810, 4
      %v969 = vsel %vm945, %v966, %v968
      %v971 = vsel %vm953, 0, %v963
      %v973 = vsel %vm953, %v968, 0
      %v978 = vrot.slane %v937, 4
      %v979 = vrot.slane %v938, 4
      %v980 = vsel %vm945, %v978, %v979
      %v981 = vrot.slane %v939, 4
      %v982 = vsel %vm945, %v979, %v981
      %v983 = vrot.slane %v940, 4
      %v984 = vsel %vm945, %v981, %v983
      %v986 = vsel %vm953, 0, %v978
      %v988 = vsel %vm953, %v983, 0
      %v989 = vld [vmem:[%s4] sm:$0xf]
      %v990 = vld [vmem:[%s4 + $0x4] sm:$0xf]
      %v991 = vld [vmem:[%s4 + $0x8] sm:$0xf]
      %v992 = vld [vmem:[%s4 + $0xc] sm:$0xf]
      %s993 = scalar_lea.vmem %s4, 16
      %v994 = vld [vmem:[%s993] sm:$0xf]
      %v995 = vld [vmem:[%s993 + $0x4] sm:$0xf]
      %v996 = vld [vmem:[%s993 + $0x8] sm:$0xf]
      %v997 = vld [vmem:[%s993 + $0xc] sm:$0xf]
      %v1002 = vunpack.c.l.b16 %v994
      %v1003 = vunpack.c.l.b16 %v995
      %v1004 = vunpack.c.l.b16 %v996
      %v1005 = vunpack.c.l.b16 %v997
      %v1006 = vpack.c.b16 %v1003, %v1002
      %v1007 = vpack.c.b16 %v1005, %v1004
      %v1010 = vsel %vm510, %v971, 0
      %v1013 = vsel %vm510, %v965, 0
      %v1016 = vsel %vm510, %v967, 0
      %v1019 = vsel %vm510, %v969, 0
      %1021 = vmatprep.subr.bf16.mxu0 0
      %1022 = vmatpush1.bf16.msra.mxu0 %v1006
      %1023 = vmatprep.subr.bf16.mxu0 0
      %1024 = vmatpush1.bf16.msra.mxu0 %v1007
      %1025 = vmatprep.subr.bf16.mxu0 0
      %1026 = vmatpush1.bf16.msra.mxu0 0
      %1027 = vmatprep.subr.bf16.mxu0 0
      %1028 = vmatpush1.bf16.msra.mxu0 0
      %1029 = vmatprep.subr.bf16.mxu0 0
      %1030 = vmatpush1.bf16.msra.mxu0 0
      %1031 = vmatprep.subr.bf16.mxu0 0
      %1032 = vmatpush1.bf16.msra.mxu0 0
      %1033 = vmatprep.subr.bf16.mxu0 0
      %1034 = vmatpush1.bf16.msra.mxu0 0
      %1035 = vmatprep.subr.bf16.mxu0 0
      %1036 = vmatpush1.bf16.msra.mxu0 0
      %1037 = vmatprep.subr.bf16.mxu0 0
      %1038 = vmatpush1.bf16.msra.mxu0 0
      %1039 = vmatprep.subr.bf16.mxu0 0
      %1040 = vmatpush1.bf16.msra.mxu0 0
      %1041 = vmatprep.subr.bf16.mxu0 0
      %1042 = vmatpush1.bf16.msra.mxu0 0
      %1043 = vmatprep.subr.bf16.mxu0 0
      %1044 = vmatpush1.bf16.msra.mxu0 0
      %1045 = vmatprep.subr.bf16.mxu0 0
      %1046 = vmatpush1.bf16.msra.mxu0 0
      %1047 = vmatprep.subr.bf16.mxu0 0
      %1048 = vmatpush1.bf16.msra.mxu0 0
      %1049 = vmatprep.subr.bf16.mxu0 0
      %1050 = vmatpush1.bf16.msra.mxu0 0
      %1051 = vmatprep.subr.bf16.mxu0 0
      %1052 = vmatpush1.bf16.msra.mxu0 0
      %1053 = vmatprep.mubr.bf16.mxu0 0
      %1054 = vmatmul.mubr.bf16.gmra.mrb[0].mxu0 %v1010
      %v1055 = vpop.f32.mrb[0].mxu0
      %v1056 = vadd.f32 0.0, %v1055
      %v1057 = vpop.f32.mrb[0].mxu0
      %v1058 = vpop.f32.mrb[0].mxu0
      %v1059 = vadd.f32 0.0, %v1058
      %v1060 = vpop.f32.mrb[0].mxu0
      %1061 = vmatprep.mubr.bf16.mxu0 0
      %1062 = vmatmul.mubr.bf16.gmra.mrb[0].mxu0 %v1013
      %v1063 = vpop.f32.mrb[0].mxu0
      %v1064 = vadd.f32 0.0, %v1063
      %v1065 = vpop.f32.mrb[0].mxu0
      %v1066 = vpop.f32.mrb[0].mxu0
      %v1067 = vadd.f32 0.0, %v1066
      %v1068 = vpop.f32.mrb[0].mxu0
      %1069 = vmatprep.mubr.bf16.mxu0 0
      %1070 = vmatmul.mubr.bf16.gmra.mrb[0].mxu0 %v1016
      %v1071 = vpop.f32.mrb[0].mxu0
      %v1072 = vadd.f32 0.0, %v1071
      %v1073 = vpop.f32.mrb[0].mxu0
      %v1074 = vpop.f32.mrb[0].mxu0
      %v1075 = vadd.f32 0.0, %v1074
      %v1076 = vpop.f32.mrb[0].mxu0
      %1077 = vmatprep.mubr.bf16.mxu0 0
      %1078 = vmatmul.mubr.bf16.gmra.mrb[0].mxu0 %v1019
      %v1079 = vpop.f32.mrb[0].mxu0
      %v1080 = vadd.f32 0.0, %v1079
      %v1081 = vpop.f32.mrb[0].mxu0
      %v1082 = vpop.f32.mrb[0].mxu0
      %v1083 = vadd.f32 0.0, %v1082
      %v1084 = vpop.f32.mrb[0].mxu0
      %1085 = vdwg.mxu0
      %v1090 = vunpack.c.l.b16 %v989
      %v1091 = vunpack.c.l.b16 %v990
      %v1092 = vunpack.c.l.b16 %v991
      %v1093 = vunpack.c.l.b16 %v992
      %v1094 = vpack.c.b16 %v1091, %v1090
      %v1095 = vpack.c.b16 %v1093, %v1092
      %v1098 = vsel %vm510, %v956, 0
      %v1101 = vsel %vm510, %v948, 0
      %v1104 = vsel %vm510, %v950, 0
      %v1107 = vsel %vm510, %v952, 0
      %1109 = vmatprep.subr.bf16.mxu0 0
      %1110 = vmatpush1.bf16.msra.mxu0 %v1094
      %1111 = vmatprep.subr.bf16.mxu0 0
      %1112 = vmatpush1.bf16.msra.mxu0 %v1095
      %1113 = vmatprep.subr.bf16.mxu0 0
      %1114 = vmatpush1.bf16.msra.mxu0 0
      %1115 = vmatprep.subr.bf16.mxu0 0
      %1116 = vmatpush1.bf16.msra.mxu0 0
      %1117 = vmatprep.subr.bf16.mxu0 0
      %1118 = vmatpush1.bf16.msra.mxu0 0
      %1119 = vmatprep.subr.bf16.mxu0 0
      %1120 = vmatpush1.bf16.msra.mxu0 0
      %1121 = vmatprep.subr.bf16.mxu0 0
      %1122 = vmatpush1.bf16.msra.mxu0 0
      %1123 = vmatprep.subr.bf16.mxu0 0
      %1124 = vmatpush1.bf16.msra.mxu0 0
      %1125 = vmatprep.subr.bf16.mxu0 0
      %1126 = vmatpush1.bf16.msra.mxu0 0
      %1127 = vmatprep.subr.bf16.mxu0 0
      %1128 = vmatpush1.bf16.msra.mxu0 0
      %1129 = vmatprep.subr.bf16.mxu0 0
      %1130 = vmatpush1.bf16.msra.mxu0 0
      %1131 = vmatprep.subr.bf16.mxu0 0
      %1132 = vmatpush1.bf16.msra.mxu0 0
      %1133 = vmatprep.subr.bf16.mxu0 0
      %1134 = vmatpush1.bf16.msra.mxu0 0
      %1135 = vmatprep.subr.bf16.mxu0 0
      %1136 = vmatpush1.bf16.msra.mxu0 0
      %1137 = vmatprep.subr.bf16.mxu0 0
      %1138 = vmatpush1.bf16.msra.mxu0 0
      %1139 = vmatprep.subr.bf16.mxu0 0
      %1140 = vmatpush1.bf16.msra.mxu0 0
      %1141 = vmatprep.mubr.bf16.mxu0 0
      %1142 = vmatmul.mubr.bf16.gmra.mrb[0].mxu0 %v1098
      %v1143 = vpop.f32.mrb[0].mxu0
      %v1144 = vadd.f32 %v1056, %v1143
      %v1145 = vpop.f32.mrb[0].mxu0
      %v1146 = vpop.f32.mrb[0].mxu0
      %v1147 = vadd.f32 %v1059, %v1146
      %v1148 = vpop.f32.mrb[0].mxu0
      %1149 = vmatprep.mubr.bf16.mxu0 0
      %1150 = vmatmul.mubr.bf16.gmra.mrb[0].mxu0 %v1101
      %v1151 = vpop.f32.mrb[0].mxu0
      %v1152 = vadd.f32 %v1064, %v1151
      %v1153 = vpop.f32.mrb[0].mxu0
      %v1154 = vpop.f32.mrb[0].mxu0
      %v1155 = vadd.f32 %v1067, %v1154
      %v1156 = vpop.f32.mrb[0].mxu0
      %1157 = vmatprep.mubr.bf16.mxu0 0
      %1158 = vmatmul.mubr.bf16.gmra.mrb[0].mxu0 %v1104
      %v1159 = vpop.f32.mrb[0].mxu0
      %v1160 = vadd.f32 %v1072, %v1159
      %v1161 = vpop.f32.mrb[0].mxu0
      %v1162 = vpop.f32.mrb[0].mxu0
      %v1163 = vadd.f32 %v1075, %v1162
      %v1164 = vpop.f32.mrb[0].mxu0
      %1165 = vmatprep.mubr.bf16.mxu0 0
      %1166 = vmatmul.mubr.bf16.gmra.mrb[0].mxu0 %v1107
      %v1167 = vpop.f32.mrb[0].mxu0
      %v1168 = vadd.f32 %v1080, %v1167
      %v1169 = vpop.f32.mrb[0].mxu0
      %v1170 = vpop.f32.mrb[0].mxu0
      %v1171 = vadd.f32 %v1083, %v1170
      %v1172 = vpop.f32.mrb[0].mxu0
      %1173 = vdwg.mxu0
      %s1174 = scalar_lea.vmem %s4, 32
      %v1175 = vld [vmem:[%s1174] sm:$0xf]
      %v1176 = vld [vmem:[%s1174 + $0x4] sm:$0xf]
      %v1177 = vld [vmem:[%s1174 + $0x8] sm:$0xf]
      %v1178 = vld [vmem:[%s1174 + $0xc] sm:$0xf]
      %v1183 = vunpack.c.l.b16 %v1175
      %v1184 = vunpack.c.l.b16 %v1176
      %v1185 = vunpack.c.l.b16 %v1177
      %v1186 = vunpack.c.l.b16 %v1178
      %v1187 = vpack.c.b16 %v1184, %v1183
      %v1188 = vpack.c.b16 %v1186, %v1185
      %v1191 = vsel %vm510, %v986, 0
      %v1194 = vsel %vm510, %v980, 0
      %v1197 = vsel %vm510, %v982, 0
      %v1200 = vsel %vm510, %v984, 0
      %1202 = vmatprep.subr.bf16.mxu0 0
      %1203 = vmatpush1.bf16.msra.mxu0 %v1187
      %1204 = vmatprep.subr.bf16.mxu0 0
      %1205 = vmatpush1.bf16.msra.mxu0 %v1188
      %1206 = vmatprep.subr.bf16.mxu0 0
      %1207 = vmatpush1.bf16.msra.mxu0 0
      %1208 = vmatprep.subr.bf16.mxu0 0
      %1209 = vmatpush1.bf16.msra.mxu0 0
      %1210 = vmatprep.subr.bf16.mxu0 0
      %1211 = vmatpush1.bf16.msra.mxu0 0
      %1212 = vmatprep.subr.bf16.mxu0 0
      %1213 = vmatpush1.bf16.msra.mxu0 0
      %1214 = vmatprep.subr.bf16.mxu0 0
      %1215 = vmatpush1.bf16.msra.mxu0 0
      %1216 = vmatprep.subr.bf16.mxu0 0
      %1217 = vmatpush1.bf16.msra.mxu0 0
      %1218 = vmatprep.subr.bf16.mxu0 0
      %1219 = vmatpush1.bf16.msra.mxu0 0
      %1220 = vmatprep.subr.bf16.mxu0 0
      %1221 = vmatpush1.bf16.msra.mxu0 0
      %1222 = vmatprep.subr.bf16.mxu0 0
      %1223 = vmatpush1.bf16.msra.mxu0 0
      %1224 = vmatprep.subr.bf16.mxu0 0
      %1225 = vmatpush1.bf16.msra.mxu0 0
      %1226 = vmatprep.subr.bf16.mxu0 0
      %1227 = vmatpush1.bf16.msra.mxu0 0
      %1228 = vmatprep.subr.bf16.mxu0 0
      %1229 = vmatpush1.bf16.msra.mxu0 0
      %1230 = vmatprep.subr.bf16.mxu0 0
      %1231 = vmatpush1.bf16.msra.mxu0 0
      %1232 = vmatprep.subr.bf16.mxu0 0
      %1233 = vmatpush1.bf16.msra.mxu0 0
      %1234 = vmatprep.mubr.bf16.mxu0 0
      %1235 = vmatmul.mubr.bf16.gmra.mrb[0].mxu0 %v1191
      %v1236 = vpop.f32.mrb[0].mxu0
      %v1237 = vadd.f32 0.0, %v1236
      %v1238 = vpop.f32.mrb[0].mxu0
      %v1239 = vpop.f32.mrb[0].mxu0
      %v1240 = vadd.f32 0.0, %v1239
      %v1241 = vpop.f32.mrb[0].mxu0
      %1242 = vmatprep.mubr.bf16.mxu0 0
      %1243 = vmatmul.mubr.bf16.gmra.mrb[0].mxu0 %v1194
      %v1244 = vpop.f32.mrb[0].mxu0
      %v1245 = vadd.f32 0.0, %v1244
      %v1246 = vpop.f32.mrb[0].mxu0
      %v1247 = vpop.f32.mrb[0].mxu0
      %v1248 = vadd.f32 0.0, %v1247
      %v1249 = vpop.f32.mrb[0].mxu0
      %1250 = vmatprep.mubr.bf16.mxu0 0
      %1251 = vmatmul.mubr.bf16.gmra.mrb[0].mxu0 %v1197
      %v1252 = vpop.f32.mrb[0].mxu0
      %v1253 = vadd.f32 0.0, %v1252
      %v1254 = vpop.f32.mrb[0].mxu0
      %v1255 = vpop.f32.mrb[0].mxu0
      %v1256 = vadd.f32 0.0, %v1255
      %v1257 = vpop.f32.mrb[0].mxu0
      %1258 = vmatprep.mubr.bf16.mxu0 0
      %1259 = vmatmul.mubr.bf16.gmra.mrb[0].mxu0 %v1200
      %v1260 = vpop.f32.mrb[0].mxu0
      %v1261 = vadd.f32 0.0, %v1260
      %v1262 = vpop.f32.mrb[0].mxu0
      %v1263 = vpop.f32.mrb[0].mxu0
      %v1264 = vadd.f32 0.0, %v1263
      %v1265 = vpop.f32.mrb[0].mxu0
      %1266 = vdwg.mxu0
      %v1267 = vadd.f32 %v1144, %v1237
      %v1268 = vadd.f32 %v1147, %v1240
      %v1269 = vadd.f32 %v1152, %v1245
      %v1270 = vadd.f32 %v1155, %v1248
      %v1271 = vadd.f32 %v1160, %v1253
      %v1272 = vadd.f32 %v1163, %v1256
      %v1273 = vadd.f32 %v1168, %v1261
      %v1274 = vadd.f32 %v1171, %v1264
      %s1275 = scalar_lea.vmem %s4, 48
      %v1276 = vld [vmem:[%s1275] sm:$0xf]
      %v1277 = vld [vmem:[%s1275 + $0x4] sm:$0xf]
      %v1278 = vld [vmem:[%s1275 + $0x8] sm:$0xf]
      %v1279 = vld [vmem:[%s1275 + $0xc] sm:$0xf]
      %v1282 = vrot.slane %v956, 4
      %v1283 = vrot.slane %v948, 4
      %v1284 = vsel %vm945, %v1282, %v1283
      %v1285 = vrot.slane %v950, 4
      %v1286 = vsel %vm945, %v1283, %v1285
      %v1287 = vrot.slane %v952, 4
      %v1288 = vsel %vm945, %v1285, %v1287
      %v1289 = vrot.slane %v958, 4
      %v1290 = vsel %vm945, %v1287, %v1289
      %v1295 = vunpack.c.l.b16 %v1276
      %v1296 = vunpack.c.l.b16 %v1277
      %v1297 = vunpack.c.l.b16 %v1278
      %v1298 = vunpack.c.l.b16 %v1279
      %v1299 = vpack.c.b16 %v1296, %v1295
      %v1300 = vpack.c.b16 %v1298, %v1297
      %v1304 = vsel %vm510, %v1284, 0
      %v1307 = vsel %vm510, %v1286, 0
      %v1310 = vsel %vm510, %v1288, 0
      %v1313 = vsel %vm510, %v1290, 0
      %1315 = vmatprep.subr.bf16.mxu0 0
      %1316 = vmatpush1.bf16.msra.mxu0 %v1299
      %1317 = vmatprep.subr.bf16.mxu0 0
      %1318 = vmatpush1.bf16.msra.mxu0 %v1300
      %1319 = vmatprep.subr.bf16.mxu0 0
      %1320 = vmatpush1.bf16.msra.mxu0 0
      %1321 = vmatprep.subr.bf16.mxu0 0
      %1322 = vmatpush1.bf16.msra.mxu0 0
      %1323 = vmatprep.subr.bf16.mxu0 0
      %1324 = vmatpush1.bf16.msra.mxu0 0
      %1325 = vmatprep.subr.bf16.mxu0 0
      %1326 = vmatpush1.bf16.msra.mxu0 0
      %1327 = vmatprep.subr.bf16.mxu0 0
      %1328 = vmatpush1.bf16.msra.mxu0 0
      %1329 = vmatprep.subr.bf16.mxu0 0
      %1330 = vmatpush1.bf16.msra.mxu0 0
      %1331 = vmatprep.subr.bf16.mxu0 0
      %1332 = vmatpush1.bf16.msra.mxu0 0
      %1333 = vmatprep.subr.bf16.mxu0 0
      %1334 = vmatpush1.bf16.msra.mxu0 0
      %1335 = vmatprep.subr.bf16.mxu0 0
      %1336 = vmatpush1.bf16.msra.mxu0 0
      %1337 = vmatprep.subr.bf16.mxu0 0
      %1338 = vmatpush1.bf16.msra.mxu0 0
      %1339 = vmatprep.subr.bf16.mxu0 0
      %1340 = vmatpush1.bf16.msra.mxu0 0
      %1341 = vmatprep.subr.bf16.mxu0 0
      %1342 = vmatpush1.bf16.msra.mxu0 0
      %1343 = vmatprep.subr.bf16.mxu0 0
      %1344 = vmatpush1.bf16.msra.mxu0 0
      %1345 = vmatprep.subr.bf16.mxu0 0
      %1346 = vmatpush1.bf16.msra.mxu0 0
      %1347 = vmatprep.mubr.bf16.mxu0 0
      %1348 = vmatmul.mubr.bf16.gmra.mrb[0].mxu0 %v1304
      %v1349 = vpop.f32.mrb[0].mxu0
      %v1350 = vadd.f32 0.0, %v1349
      %v1351 = vpop.f32.mrb[0].mxu0
      %v1352 = vpop.f32.mrb[0].mxu0
      %v1353 = vadd.f32 0.0, %v1352
      %v1354 = vpop.f32.mrb[0].mxu0
      %1355 = vmatprep.mubr.bf16.mxu0 0
      %1356 = vmatmul.mubr.bf16.gmra.mrb[0].mxu0 %v1307
      %v1357 = vpop.f32.mrb[0].mxu0
      %v1358 = vadd.f32 0.0, %v1357
      %v1359 = vpop.f32.mrb[0].mxu0
      %v1360 = vpop.f32.mrb[0].mxu0
      %v1361 = vadd.f32 0.0, %v1360
      %v1362 = vpop.f32.mrb[0].mxu0
      %1363 = vmatprep.mubr.bf16.mxu0 0
      %1364 = vmatmul.mubr.bf16.gmra.mrb[0].mxu0 %v1310
      %v1365 = vpop.f32.mrb[0].mxu0
      %v1366 = vadd.f32 0.0, %v1365
      %v1367 = vpop.f32.mrb[0].mxu0
      %v1368 = vpop.f32.mrb[0].mxu0
      %v1369 = vadd.f32 0.0, %v1368
      %v1370 = vpop.f32.mrb[0].mxu0
      %1371 = vmatprep.mubr.bf16.mxu0 0
      %1372 = vmatmul.mubr.bf16.gmra.mrb[0].mxu0 %v1313
      %v1373 = vpop.f32.mrb[0].mxu0
      %v1374 = vadd.f32 0.0, %v1373
      %v1375 = vpop.f32.mrb[0].mxu0
      %v1376 = vpop.f32.mrb[0].mxu0
      %v1377 = vadd.f32 0.0, %v1376
      %v1378 = vpop.f32.mrb[0].mxu0
      %1379 = vdwg.mxu0
      %v1380 = vadd.f32 %v1267, %v1350
      %v1381 = vadd.f32 %v1268, %v1353
      %v1382 = vadd.f32 %v1269, %v1358
      %v1383 = vadd.f32 %v1270, %v1361
      %v1384 = vadd.f32 %v1271, %v1366
      %v1385 = vadd.f32 %v1272, %v1369
      %v1386 = vadd.f32 %v1273, %v1374
      %v1387 = vadd.f32 %v1274, %v1377
      %s1388 = scalar_lea.vmem %s4, 64
      %v1389 = vld [vmem:[%s1388] sm:$0xf]
      %v1390 = vld [vmem:[%s1388 + $0x4] sm:$0xf]
      %v1391 = vld [vmem:[%s1388 + $0x8] sm:$0xf]
      %v1392 = vld [vmem:[%s1388 + $0xc] sm:$0xf]
      %v1395 = vrot.slane %v971, 4
      %v1396 = vrot.slane %v965, 4
      %v1397 = vsel %vm945, %v1395, %v1396
      %v1398 = vrot.slane %v967, 4
      %v1399 = vsel %vm945, %v1396, %v1398
      %v1400 = vrot.slane %v969, 4
      %v1401 = vsel %vm945, %v1398, %v1400
      %v1402 = vrot.slane %v973, 4
      %v1403 = vsel %vm945, %v1400, %v1402
      %v1408 = vunpack.c.l.b16 %v1389
      %v1409 = vunpack.c.l.b16 %v1390
      %v1410 = vunpack.c.l.b16 %v1391
      %v1411 = vunpack.c.l.b16 %v1392
      %v1412 = vpack.c.b16 %v1409, %v1408
      %v1413 = vpack.c.b16 %v1411, %v1410
      %v1417 = vsel %vm510, %v1397, 0
      %v1420 = vsel %vm510, %v1399, 0
      %v1423 = vsel %vm510, %v1401, 0
      %v1426 = vsel %vm510, %v1403, 0
      %1428 = vmatprep.subr.bf16.mxu0 0
      %1429 = vmatpush1.bf16.msra.mxu0 %v1412
      %1430 = vmatprep.subr.bf16.mxu0 0
      %1431 = vmatpush1.bf16.msra.mxu0 %v1413
      %1432 = vmatprep.subr.bf16.mxu0 0
      %1433 = vmatpush1.bf16.msra.mxu0 0
      %1434 = vmatprep.subr.bf16.mxu0 0
      %1435 = vmatpush1.bf16.msra.mxu0 0
      %1436 = vmatprep.subr.bf16.mxu0 0
      %1437 = vmatpush1.bf16.msra.mxu0 0
      %1438 = vmatprep.subr.bf16.mxu0 0
      %1439 = vmatpush1.bf16.msra.mxu0 0
      %1440 = vmatprep.subr.bf16.mxu0 0
      %1441 = vmatpush1.bf16.msra.mxu0 0
      %1442 = vmatprep.subr.bf16.mxu0 0
      %1443 = vmatpush1.bf16.msra.mxu0 0
      %1444 = vmatprep.subr.bf16.mxu0 0
      %1445 = vmatpush1.bf16.msra.mxu0 0
      %1446 = vmatprep.subr.bf16.mxu0 0
      %1447 = vmatpush1.bf16.msra.mxu0 0
      %1448 = vmatprep.subr.bf16.mxu0 0
      %1449 = vmatpush1.bf16.msra.mxu0 0
      %1450 = vmatprep.subr.bf16.mxu0 0
      %1451 = vmatpush1.bf16.msra.mxu0 0
      %1452 = vmatprep.subr.bf16.mxu0 0
      %1453 = vmatpush1.bf16.msra.mxu0 0
      %1454 = vmatprep.subr.bf16.mxu0 0
      %1455 = vmatpush1.bf16.msra.mxu0 0
      %1456 = vmatprep.subr.bf16.mxu0 0
      %1457 = vmatpush1.bf16.msra.mxu0 0
      %1458 = vmatprep.subr.bf16.mxu0 0
      %1459 = vmatpush1.bf16.msra.mxu0 0
      %1460 = vmatprep.mubr.bf16.mxu0 0
      %1461 = vmatmul.mubr.bf16.gmra.mrb[0].mxu0 %v1417
      %v1462 = vpop.f32.mrb[0].mxu0
      %v1463 = vadd.f32 0.0, %v1462
      %v1464 = vpop.f32.mrb[0].mxu0
      %v1465 = vpop.f32.mrb[0].mxu0
      %v1466 = vadd.f32 0.0, %v1465
      %v1467 = vpop.f32.mrb[0].mxu0
      %1468 = vmatprep.mubr.bf16.mxu0 0
      %1469 = vmatmul.mubr.bf16.gmra.mrb[0].mxu0 %v1420
      %v1470 = vpop.f32.mrb[0].mxu0
      %v1471 = vadd.f32 0.0, %v1470
      %v1472 = vpop.f32.mrb[0].mxu0
      %v1473 = vpop.f32.mrb[0].mxu0
      %v1474 = vadd.f32 0.0, %v1473
      %v1475 = vpop.f32.mrb[0].mxu0
      %1476 = vmatprep.mubr.bf16.mxu0 0
      %1477 = vmatmul.mubr.bf16.gmra.mrb[0].mxu0 %v1423
      %v1478 = vpop.f32.mrb[0].mxu0
      %v1479 = vadd.f32 0.0, %v1478
      %v1480 = vpop.f32.mrb[0].mxu0
      %v1481 = vpop.f32.mrb[0].mxu0
      %v1482 = vadd.f32 0.0, %v1481
      %v1483 = vpop.f32.mrb[0].mxu0
      %1484 = vmatprep.mubr.bf16.mxu0 0
      %1485 = vmatmul.mubr.bf16.gmra.mrb[0].mxu0 %v1426
      %v1486 = vpop.f32.mrb[0].mxu0
      %v1487 = vadd.f32 0.0, %v1486
      %v1488 = vpop.f32.mrb[0].mxu0
      %v1489 = vpop.f32.mrb[0].mxu0
      %v1490 = vadd.f32 0.0, %v1489
      %v1491 = vpop.f32.mrb[0].mxu0
      %1492 = vdwg.mxu0
      %v1493 = vadd.f32 %v1380, %v1463
      %v1494 = vadd.f32 %v1381, %v1466
      %v1495 = vadd.f32 %v1382, %v1471
      %v1496 = vadd.f32 %v1383, %v1474
      %v1497 = vadd.f32 %v1384, %v1479
      %v1498 = vadd.f32 %v1385, %v1482
      %v1499 = vadd.f32 %v1386, %v1487
      %v1500 = vadd.f32 %v1387, %v1490
      %s1501 = scalar_lea.vmem %s4, 80
      %v1502 = vld [vmem:[%s1501] sm:$0xf]
      %v1503 = vld [vmem:[%s1501 + $0x4] sm:$0xf]
      %v1504 = vld [vmem:[%s1501 + $0x8] sm:$0xf]
      %v1505 = vld [vmem:[%s1501 + $0xc] sm:$0xf]
      %v1508 = vrot.slane %v986, 4
      %v1509 = vrot.slane %v980, 4
      %v1510 = vsel %vm945, %v1508, %v1509
      %v1511 = vrot.slane %v982, 4
      %v1512 = vsel %vm945, %v1509, %v1511
      %v1513 = vrot.slane %v984, 4
      %v1514 = vsel %vm945, %v1511, %v1513
      %v1515 = vrot.slane %v988, 4
      %v1516 = vsel %vm945, %v1513, %v1515
      %v1521 = vunpack.c.l.b16 %v1502
      %v1522 = vunpack.c.l.b16 %v1503
      %v1523 = vunpack.c.l.b16 %v1504
      %v1524 = vunpack.c.l.b16 %v1505
      %v1525 = vpack.c.b16 %v1522, %v1521
      %v1526 = vpack.c.b16 %v1524, %v1523
      %v1530 = vsel %vm510, %v1510, 0
      %v1533 = vsel %vm510, %v1512, 0
      %v1536 = vsel %vm510, %v1514, 0
      %v1539 = vsel %vm510, %v1516, 0
      %1541 = vmatprep.subr.bf16.mxu0 0
      %1542 = vmatpush1.bf16.msra.mxu0 %v1525
      %1543 = vmatprep.subr.bf16.mxu0 0
      %1544 = vmatpush1.bf16.msra.mxu0 %v1526
      %1545 = vmatprep.subr.bf16.mxu0 0
      %1546 = vmatpush1.bf16.msra.mxu0 0
      %1547 = vmatprep.subr.bf16.mxu0 0
      %1548 = vmatpush1.bf16.msra.mxu0 0
      %1549 = vmatprep.subr.bf16.mxu0 0
      %1550 = vmatpush1.bf16.msra.mxu0 0
      %1551 = vmatprep.subr.bf16.mxu0 0
      %1552 = vmatpush1.bf16.msra.mxu0 0
      %1553 = vmatprep.subr.bf16.mxu0 0
      %1554 = vmatpush1.bf16.msra.mxu0 0
      %1555 = vmatprep.subr.bf16.mxu0 0
      %1556 = vmatpush1.bf16.msra.mxu0 0
      %1557 = vmatprep.subr.bf16.mxu0 0
      %1558 = vmatpush1.bf16.msra.mxu0 0
      %1559 = vmatprep.subr.bf16.mxu0 0
      %1560 = vmatpush1.bf16.msra.mxu0 0
      %1561 = vmatprep.subr.bf16.mxu0 0
      %1562 = vmatpush1.bf16.msra.mxu0 0
      %1563 = vmatprep.subr.bf16.mxu0 0
      %1564 = vmatpush1.bf16.msra.mxu0 0
      %1565 = vmatprep.subr.bf16.mxu0 0
      %1566 = vmatpush1.bf16.msra.mxu0 0
      %1567 = vmatprep.subr.bf16.mxu0 0
      %1568 = vmatpush1.bf16.msra.mxu0 0
      %1569 = vmatprep.subr.bf16.mxu0 0
      %1570 = vmatpush1.bf16.msra.mxu0 0
      %1571 = vmatprep.subr.bf16.mxu0 0
      %1572 = vmatpush1.bf16.msra.mxu0 0
      %1573 = vmatprep.mubr.bf16.mxu0 0
      %1574 = vmatmul.mubr.bf16.gmra.mrb[0].mxu0 %v1530
      %v1575 = vpop.f32.mrb[0].mxu0
      %v1576 = vadd.f32 0.0, %v1575
      %v1577 = vpop.f32.mrb[0].mxu0
      %v1578 = vpop.f32.mrb[0].mxu0
      %v1579 = vadd.f32 0.0, %v1578
      %v1580 = vpop.f32.mrb[0].mxu0
      %1581 = vmatprep.mubr.bf16.mxu0 0
      %1582 = vmatmul.mubr.bf16.gmra.mrb[0].mxu0 %v1533
      %v1583 = vpop.f32.mrb[0].mxu0
      %v1584 = vadd.f32 0.0, %v1583
      %v1585 = vpop.f32.mrb[0].mxu0
      %v1586 = vpop.f32.mrb[0].mxu0
      %v1587 = vadd.f32 0.0, %v1586
      %v1588 = vpop.f32.mrb[0].mxu0
      %1589 = vmatprep.mubr.bf16.mxu0 0
      %1590 = vmatmul.mubr.bf16.gmra.mrb[0].mxu0 %v1536
      %v1591 = vpop.f32.mrb[0].mxu0
      %v1592 = vadd.f32 0.0, %v1591
      %v1593 = vpop.f32.mrb[0].mxu0
      %v1594 = vpop.f32.mrb[0].mxu0
      %v1595 = vadd.f32 0.0, %v1594
      %v1596 = vpop.f32.mrb[0].mxu0
      %1597 = vmatprep.mubr.bf16.mxu0 0
      %1598 = vmatmul.mubr.bf16.gmra.mrb[0].mxu0 %v1539
      %v1599 = vpop.f32.mrb[0].mxu0
      %v1600 = vadd.f32 0.0, %v1599
      %v1601 = vpop.f32.mrb[0].mxu0
      %v1602 = vpop.f32.mrb[0].mxu0
      %v1603 = vadd.f32 0.0, %v1602
      %v1604 = vpop.f32.mrb[0].mxu0
      %1605 = vdwg.mxu0
      %v1606 = vadd.f32 %v1493, %v1576
      %v1607 = vadd.f32 %v1494, %v1579
      %v1608 = vadd.f32 %v1495, %v1584
      %v1609 = vadd.f32 %v1496, %v1587
      %v1610 = vadd.f32 %v1497, %v1592
      %v1611 = vadd.f32 %v1498, %v1595
      %v1612 = vadd.f32 %v1499, %v1600
      %v1613 = vadd.f32 %v1500, %v1603
      %s1614 = scalar_lea.vmem %s4, 96
      %v1615 = vld [vmem:[%s1614] sm:$0xf]
      %v1616 = vld [vmem:[%s1614 + $0x4] sm:$0xf]
      %v1617 = vld [vmem:[%s1614 + $0x8] sm:$0xf]
      %v1618 = vld [vmem:[%s1614 + $0xc] sm:$0xf]
      %v1623 = vunpack.c.l.b16 %v1615
      %v1624 = vunpack.c.l.b16 %v1616
      %v1625 = vunpack.c.l.b16 %v1617
      %v1626 = vunpack.c.l.b16 %v1618
      %v1627 = vpack.c.b16 %v1624, %v1623
      %v1628 = vpack.c.b16 %v1626, %v1625
      %v1631 = vsel %vm510, %v958, 0
      %1633 = vmatprep.subr.bf16.mxu0 0
      %1634 = vmatpush1.bf16.msra.mxu0 %v1627
      %1635 = vmatprep.subr.bf16.mxu0 0
      %1636 = vmatpush1.bf16.msra.mxu0 %v1628
      %1637 = vmatprep.subr.bf16.mxu0 0
      %1638 = vmatpush1.bf16.msra.mxu0 0
      %1639 = vmatprep.subr.bf16.mxu0 0
      %1640 = vmatpush1.bf16.msra.mxu0 0
      %1641 = vmatprep.subr.bf16.mxu0 0
      %1642 = vmatpush1.bf16.msra.mxu0 0
      %1643 = vmatprep.subr.bf16.mxu0 0
      %1644 = vmatpush1.bf16.msra.mxu0 0
      %1645 = vmatprep.subr.bf16.mxu0 0
      %1646 = vmatpush1.bf16.msra.mxu0 0
      %1647 = vmatprep.subr.bf16.mxu0 0
      %1648 = vmatpush1.bf16.msra.mxu0 0
      %1649 = vmatprep.subr.bf16.mxu0 0
      %1650 = vmatpush1.bf16.msra.mxu0 0
      %1651 = vmatprep.subr.bf16.mxu0 0
      %1652 = vmatpush1.bf16.msra.mxu0 0
      %1653 = vmatprep.subr.bf16.mxu0 0
      %1654 = vmatpush1.bf16.msra.mxu0 0
      %1655 = vmatprep.subr.bf16.mxu0 0
      %1656 = vmatpush1.bf16.msra.mxu0 0
      %1657 = vmatprep.subr.bf16.mxu0 0
      %1658 = vmatpush1.bf16.msra.mxu0 0
      %1659 = vmatprep.subr.bf16.mxu0 0
      %1660 = vmatpush1.bf16.msra.mxu0 0
      %1661 = vmatprep.subr.bf16.mxu0 0
      %1662 = vmatpush1.bf16.msra.mxu0 0
      %1663 = vmatprep.subr.bf16.mxu0 0
      %1664 = vmatpush1.bf16.msra.mxu0 0
      %1665 = vmatprep.mubr.bf16.mxu0 0
      %1666 = vmatmul.mubr.bf16.gmra.mrb[0].mxu0 %v1101
      %v1667 = vpop.f32.mrb[0].mxu0
      %v1668 = vadd.f32 0.0, %v1667
      %v1669 = vpop.f32.mrb[0].mxu0
      %v1670 = vpop.f32.mrb[0].mxu0
      %v1671 = vadd.f32 0.0, %v1670
      %v1672 = vpop.f32.mrb[0].mxu0
      %1673 = vmatprep.mubr.bf16.mxu0 0
      %1674 = vmatmul.mubr.bf16.gmra.mrb[0].mxu0 %v1104
      %v1675 = vpop.f32.mrb[0].mxu0
      %v1676 = vadd.f32 0.0, %v1675
      %v1677 = vpop.f32.mrb[0].mxu0
      %v1678 = vpop.f32.mrb[0].mxu0
      %v1679 = vadd.f32 0.0, %v1678
      %v1680 = vpop.f32.mrb[0].mxu0
      %1681 = vmatprep.mubr.bf16.mxu0 0
      %1682 = vmatmul.mubr.bf16.gmra.mrb[0].mxu0 %v1107
      %v1683 = vpop.f32.mrb[0].mxu0
      %v1684 = vadd.f32 0.0, %v1683
      %v1685 = vpop.f32.mrb[0].mxu0
      %v1686 = vpop.f32.mrb[0].mxu0
      %v1687 = vadd.f32 0.0, %v1686
      %v1688 = vpop.f32.mrb[0].mxu0
      %1689 = vmatprep.mubr.bf16.mxu0 0
      %1690 = vmatmul.mubr.bf16.gmra.mrb[0].mxu0 %v1631
      %v1691 = vpop.f32.mrb[0].mxu0
      %v1692 = vadd.f32 0.0, %v1691
      %v1693 = vpop.f32.mrb[0].mxu0
      %v1694 = vpop.f32.mrb[0].mxu0
      %v1695 = vadd.f32 0.0, %v1694
      %v1696 = vpop.f32.mrb[0].mxu0
      %1697 = vdwg.mxu0
      %v1698 = vadd.f32 %v1606, %v1668
      %v1699 = vadd.f32 %v1607, %v1671
      %v1700 = vadd.f32 %v1608, %v1676
      %v1701 = vadd.f32 %v1609, %v1679
      %v1702 = vadd.f32 %v1610, %v1684
      %v1703 = vadd.f32 %v1611, %v1687
      %v1704 = vadd.f32 %v1612, %v1692
      %v1705 = vadd.f32 %v1613, %v1695
      %s1706 = scalar_lea.vmem %s4, 112
      %v1707 = vld [vmem:[%s1706] sm:$0xf]
      %v1708 = vld [vmem:[%s1706 + $0x4] sm:$0xf]
      %v1709 = vld [vmem:[%s1706 + $0x8] sm:$0xf]
      %v1710 = vld [vmem:[%s1706 + $0xc] sm:$0xf]
      %v1715 = vunpack.c.l.b16 %v1707
      %v1716 = vunpack.c.l.b16 %v1708
      %v1717 = vunpack.c.l.b16 %v1709
      %v1718 = vunpack.c.l.b16 %v1710
      %v1719 = vpack.c.b16 %v1716, %v1715
      %v1720 = vpack.c.b16 %v1718, %v1717
      %v1723 = vsel %vm510, %v973, 0
      %1725 = vmatprep.subr.bf16.mxu0 0
      %1726 = vmatpush1.bf16.msra.mxu0 %v1719
      %1727 = vmatprep.subr.bf16.mxu0 0
      %1728 = vmatpush1.bf16.msra.mxu0 %v1720
      %1729 = vmatprep.subr.bf16.mxu0 0
      %1730 = vmatpush1.bf16.msra.mxu0 0
      %1731 = vmatprep.subr.bf16.mxu0 0
      %1732 = vmatpush1.bf16.msra.mxu0 0
      %1733 = vmatprep.subr.bf16.mxu0 0
      %1734 = vmatpush1.bf16.msra.mxu0 0
      %1735 = vmatprep.subr.bf16.mxu0 0
      %1736 = vmatpush1.bf16.msra.mxu0 0
      %1737 = vmatprep.subr.bf16.mxu0 0
      %1738 = vmatpush1.bf16.msra.mxu0 0
      %1739 = vmatprep.subr.bf16.mxu0 0
      %1740 = vmatpush1.bf16.msra.mxu0 0
      %1741 = vmatprep.subr.bf16.mxu0 0
      %1742 = vmatpush1.bf16.msra.mxu0 0
      %1743 = vmatprep.subr.bf16.mxu0 0
      %1744 = vmatpush1.bf16.msra.mxu0 0
      %1745 = vmatprep.subr.bf16.mxu0 0
      %1746 = vmatpush1.bf16.msra.mxu0 0
      %1747 = vmatprep.subr.bf16.mxu0 0
      %1748 = vmatpush1.bf16.msra.mxu0 0
      %1749 = vmatprep.subr.bf16.mxu0 0
      %1750 = vmatpush1.bf16.msra.mxu0 0
      %1751 = vmatprep.subr.bf16.mxu0 0
      %1752 = vmatpush1.bf16.msra.mxu0 0
      %1753 = vmatprep.subr.bf16.mxu0 0
      %1754 = vmatpush1.bf16.msra.mxu0 0
      %1755 = vmatprep.subr.bf16.mxu0 0
      %1756 = vmatpush1.bf16.msra.mxu0 0
      %1757 = vmatprep.mubr.bf16.mxu0 0
      %1758 = vmatmul.mubr.bf16.gmra.mrb[0].mxu0 %v1013
      %v1759 = vpop.f32.mrb[0].mxu0
      %v1760 = vadd.f32 0.0, %v1759
      %v1761 = vpop.f32.mrb[0].mxu0
      %v1762 = vpop.f32.mrb[0].mxu0
      %v1763 = vadd.f32 0.0, %v1762
      %v1764 = vpop.f32.mrb[0].mxu0
      %1765 = vmatprep.mubr.bf16.mxu0 0
      %1766 = vmatmul.mubr.bf16.gmra.mrb[0].mxu0 %v1016
      %v1767 = vpop.f32.mrb[0].mxu0
      %v1768 = vadd.f32 0.0, %v1767
      %v1769 = vpop.f32.mrb[0].mxu0
      %v1770 = vpop.f32.mrb[0].mxu0
      %v1771 = vadd.f32 0.0, %v1770
      %v1772 = vpop.f32.mrb[0].mxu0
      %1773 = vmatprep.mubr.bf16.mxu0 0
      %1774 = vmatmul.mubr.bf16.gmra.mrb[0].mxu0 %v1019
      %v1775 = vpop.f32.mrb[0].mxu0
      %v1776 = vadd.f32 0.0, %v1775
      %v1777 = vpop.f32.mrb[0].mxu0
      %v1778 = vpop.f32.mrb[0].mxu0
      %v1779 = vadd.f32 0.0, %v1778
      %v1780 = vpop.f32.mrb[0].mxu0
      %1781 = vmatprep.mubr.bf16.mxu0 0
      %1782 = vmatmul.mubr.bf16.gmra.mrb[0].mxu0 %v1723
      %v1783 = vpop.f32.mrb[0].mxu0
      %v1784 = vadd.f32 0.0, %v1783
      %v1785 = vpop.f32.mrb[0].mxu0
      %v1786 = vpop.f32.mrb[0].mxu0
      %v1787 = vadd.f32 0.0, %v1786
      %v1788 = vpop.f32.mrb[0].mxu0
      %1789 = vdwg.mxu0
      %v1790 = vadd.f32 %v1698, %v1760
      %v1791 = vadd.f32 %v1699, %v1763
      %v1792 = vadd.f32 %v1700, %v1768
      %v1793 = vadd.f32 %v1701, %v1771
      %v1794 = vadd.f32 %v1702, %v1776
      %v1795 = vadd.f32 %v1703, %v1779
      %v1796 = vadd.f32 %v1704, %v1784
      %v1797 = vadd.f32 %v1705, %v1787
      %s1798 = scalar_lea.vmem %s4, 128
      %v1799 = vld [vmem:[%s1798] sm:$0xf]
      %v1800 = vld [vmem:[%s1798 + $0x4] sm:$0xf]
      %v1801 = vld [vmem:[%s1798 + $0x8] sm:$0xf]
      %v1802 = vld [vmem:[%s1798 + $0xc] sm:$0xf]
      %v1807 = vunpack.c.l.b16 %v1799
      %v1808 = vunpack.c.l.b16 %v1800
      %v1809 = vunpack.c.l.b16 %v1801
      %v1810 = vunpack.c.l.b16 %v1802
      %v1811 = vpack.c.b16 %v1808, %v1807
      %v1812 = vpack.c.b16 %v1810, %v1809
      %v1815 = vsel %vm510, %v988, 0
      %1817 = vmatprep.subr.bf16.mxu0 0
      %1818 = vmatpush1.bf16.msra.mxu0 %v1811
      %1819 = vmatprep.subr.bf16.mxu0 0
      %1820 = vmatpush1.bf16.msra.mxu0 %v1812
      %1821 = vmatprep.subr.bf16.mxu0 0
      %1822 = vmatpush1.bf16.msra.mxu0 0
      %1823 = vmatprep.subr.bf16.mxu0 0
      %1824 = vmatpush1.bf16.msra.mxu0 0
      %1825 = vmatprep.subr.bf16.mxu0 0
      %1826 = vmatpush1.bf16.msra.mxu0 0
      %1827 = vmatprep.subr.bf16.mxu0 0
      %1828 = vmatpush1.bf16.msra.mxu0 0
      %1829 = vmatprep.subr.bf16.mxu0 0
      %1830 = vmatpush1.bf16.msra.mxu0 0
      %1831 = vmatprep.subr.bf16.mxu0 0
      %1832 = vmatpush1.bf16.msra.mxu0 0
      %1833 = vmatprep.subr.bf16.mxu0 0
      %1834 = vmatpush1.bf16.msra.mxu0 0
      %1835 = vmatprep.subr.bf16.mxu0 0
      %1836 = vmatpush1.bf16.msra.mxu0 0
      %1837 = vmatprep.subr.bf16.mxu0 0
      %1838 = vmatpush1.bf16.msra.mxu0 0
      %1839 = vmatprep.subr.bf16.mxu0 0
      %1840 = vmatpush1.bf16.msra.mxu0 0
      %1841 = vmatprep.subr.bf16.mxu0 0
      %1842 = vmatpush1.bf16.msra.mxu0 0
      %1843 = vmatprep.subr.bf16.mxu0 0
      %1844 = vmatpush1.bf16.msra.mxu0 0
      %1845 = vmatprep.subr.bf16.mxu0 0
      %1846 = vmatpush1.bf16.msra.mxu0 0
      %1847 = vmatprep.subr.bf16.mxu0 0
      %1848 = vmatpush1.bf16.msra.mxu0 0
      %1849 = vmatprep.mubr.bf16.mxu0 0
      %1850 = vmatmul.mubr.bf16.gmra.mrb[0].mxu0 %v1194
      %v1851 = vpop.f32.mrb[0].mxu0
      %v1852 = vadd.f32 0.0, %v1851
      %v1853 = vpop.f32.mrb[0].mxu0
      %v1854 = vpop.f32.mrb[0].mxu0
      %v1855 = vadd.f32 0.0, %v1854
      %v1856 = vpop.f32.mrb[0].mxu0
      %1857 = vmatprep.mubr.bf16.mxu0 0
      %1858 = vmatmul.mubr.bf16.gmra.mrb[0].mxu0 %v1197
      %v1859 = vpop.f32.mrb[0].mxu0
      %v1860 = vadd.f32 0.0, %v1859
      %v1861 = vpop.f32.mrb[0].mxu0
      %v1862 = vpop.f32.mrb[0].mxu0
      %v1863 = vadd.f32 0.0, %v1862
      %v1864 = vpop.f32.mrb[0].mxu0
      %1865 = vmatprep.mubr.bf16.mxu0 0
      %1866 = vmatmul.mubr.bf16.gmra.mrb[0].mxu0 %v1200
      %v1867 = vpop.f32.mrb[0].mxu0
      %v1868 = vadd.f32 0.0, %v1867
      %v1869 = vpop.f32.mrb[0].mxu0
      %v1870 = vpop.f32.mrb[0].mxu0
      %v1871 = vadd.f32 0.0, %v1870
      %v1872 = vpop.f32.mrb[0].mxu0
      %1873 = vmatprep.mubr.bf16.mxu0 0
      %1874 = vmatmul.mubr.bf16.gmra.mrb[0].mxu0 %v1815
      %v1875 = vpop.f32.mrb[0].mxu0
      %v1876 = vadd.f32 0.0, %v1875
      %v1877 = vpop.f32.mrb[0].mxu0
      %v1878 = vpop.f32.mrb[0].mxu0
      %v1879 = vadd.f32 0.0, %v1878
      %v1880 = vpop.f32.mrb[0].mxu0
      %1881 = vdwg.mxu0
      %v1882 = vadd.f32 %v1790, %v1852
      %v1883 = vadd.f32 %v1791, %v1855
      %v1884 = vadd.f32 %v1792, %v1860
      %v1885 = vadd.f32 %v1793, %v1863
      %v1886 = vadd.f32 %v1794, %v1868
      %v1887 = vadd.f32 %v1795, %v1871
      %v1888 = vadd.f32 %v1796, %v1876
      %v1889 = vadd.f32 %v1797, %v1879
      %v1891 = vlaneseq
      %v1892 = vshrl.u32 %v1891, 7
      %v1893 = vsub.s32 0, %v1892
      %v1894 = vrot.slane %v806, %v1893
      %v1896 = vadd.f32 %v1882, %v1894
      %v1897 = vadd.f32 %v1883, %v1894
      %v1898 = vadd.f32 %v1884, %v1894
      %v1899 = vadd.f32 %v1885, %v1894
      %v1900 = vadd.f32 %v1886, %v1894
      %v1901 = vadd.f32 %v1887, %v1894
      %v1902 = vadd.f32 %v1888, %v1894
      %v1903 = vadd.f32 %v1889, %v1894
      %v1904 = vld [vmem:[%s6] sm:$0x1]
      %v1905 = vld [vmem:[%s7] sm:$0x1]
      %v1906 = vsel %vm510, %v1896, 0.0
      %v1907 = vsel %vm510, %v1897, 0.0
      %v1908 = vadd.f32 %v1906, %v1907
      %v1909 = vsel %vm510, %v1898, 0.0
      %v1910 = vadd.f32 %v1908, %v1909
      %v1911 = vsel %vm510, %v1899, 0.0
      %v1912 = vadd.f32 %v1910, %v1911
      %v1913 = vsel %vm510, %v1900, 0.0
      %v1914 = vadd.f32 %v1912, %v1913
      %v1915 = vsel %vm510, %v1901, 0.0
      %v1916 = vadd.f32 %v1914, %v1915
      %v1917 = vsel %vm510, %v1902, 0.0
      %v1918 = vadd.f32 %v1916, %v1917
      %v1919 = vsel %vm510, %v1903, 0.0
      %v1920 = vadd.f32 %v1918, %v1919
      %v1921 = vrot.slane %v1920, 4
      %v1922 = vadd.f32 %v1920, %v1921
      %v1923 = vrot.slane %v1922, 2
      %v1924 = vadd.f32 %v1922, %v1923
      %v1925 = vrot.slane %v1924, 1
      %v1926 = vadd.f32 %v1924, %v1925
      %v1928 = vsel %vm510, %v1926, 0
      %1930 = vmatprep.subr.mxu0 0.0
      %1931 = vmatpush1.msra.mxu0 %v383
      %1932 = vmatprep.subr.mxu0 0.0
      %1933 = vmatpush1.msra.mxu0 %v384
      %1934 = vmatprep.subr.mxu0 0.0
      %1935 = vmatpush1.msra.mxu0 %v385
      %1936 = vmatprep.subr.mxu0 0.0
      %1937 = vmatpush1.msra.mxu0 %v386
      %1938 = vmatprep.subr.mxu0 0.0
      %1939 = vmatpush1.msra.mxu0 0.0
      %1940 = vmatprep.subr.mxu0 0.0
      %1941 = vmatpush1.msra.mxu0 0.0
      %1942 = vmatprep.subr.mxu0 0.0
      %1943 = vmatpush1.msra.mxu0 0.0
      %1944 = vmatprep.subr.mxu0 0.0
      %1945 = vmatpush1.msra.mxu0 0.0
      %1946 = vmatprep.subr.mxu0 0.0
      %1947 = vmatpush1.msra.mxu0 0.0
      %1948 = vmatprep.subr.mxu0 0.0
      %1949 = vmatpush1.msra.mxu0 0.0
      %1950 = vmatprep.subr.mxu0 0.0
      %1951 = vmatpush1.msra.mxu0 0.0
      %1952 = vmatprep.subr.mxu0 0.0
      %1953 = vmatpush1.msra.mxu0 0.0
      %1954 = vmatprep.subr.mxu0 0.0
      %1955 = vmatpush1.msra.mxu0 0.0
      %1956 = vmatprep.subr.mxu0 0.0
      %1957 = vmatpush1.msra.mxu0 0.0
      %1958 = vmatprep.subr.mxu0 0.0
      %1959 = vmatpush1.msra.mxu0 0.0
      %1960 = vmatprep.subr.mxu0 0.0
      %1961 = vmatpush1.msra.mxu0 0.0
      %1962 = vmatprep.subr.mxu0 0.0
      %1963 = vmatpush1.msra.mxu0 0.0
      %1964 = vmatprep.subr.mxu0 0.0
      %1965 = vmatpush1.msra.mxu0 0.0
      %1966 = vmatprep.subr.mxu0 0.0
      %1967 = vmatpush1.msra.mxu0 0.0
      %1968 = vmatprep.subr.mxu0 0.0
      %1969 = vmatpush1.msra.mxu0 0.0
      %1970 = vmatprep.subr.mxu0 0.0
      %1971 = vmatpush1.msra.mxu0 0.0
      %1972 = vmatprep.subr.mxu0 0.0
      %1973 = vmatpush1.msra.mxu0 0.0
      %1974 = vmatprep.subr.mxu0 0.0
      %1975 = vmatpush1.msra.mxu0 0.0
      %1976 = vmatprep.subr.mxu0 0.0
      %1977 = vmatpush1.msra.mxu0 0.0
      %1978 = vmatprep.subr.mxu0 0.0
      %1979 = vmatpush1.msra.mxu0 0.0
      %1980 = vmatprep.subr.mxu0 0.0
      %1981 = vmatpush1.msra.mxu0 0.0
      %1982 = vmatprep.subr.mxu0 0.0
      %1983 = vmatpush1.msra.mxu0 0.0
      %1984 = vmatprep.subr.mxu0 0.0
      %1985 = vmatpush1.msra.mxu0 0.0
      %1986 = vmatprep.subr.mxu0 0.0
      %1987 = vmatpush1.msra.mxu0 0.0
      %1988 = vmatprep.subr.mxu0 0.0
      %1989 = vmatpush1.msra.mxu0 0.0
      %1990 = vmatprep.subr.mxu0 0.0
      %1991 = vmatpush1.msra.mxu0 0.0
      %1992 = vmatprep.subr.mxu0 0.0
      %1993 = vmatpush1.msra.mxu0 0.0
      %1994 = vmatprep.mubr.f32.mxu0 0.0
      %1995 = vmatmul.mubr.f32.gmra.mrb[0].mxu0 %v1928
      %v1996 = vpop.f32.mrb[0].mxu0
      %v1997 = vadd.f32 0.0, %v1996
      %v1998 = vpop.f32.mrb[0].mxu0
      %1999 = vdwg.mxu0
      %v2000 = vmul.f32 %v1997, 0.015625
      %v2001 = vlaneseq
      %v2002 = vshrl.u32 %v2001, 7
      %v2003 = vsub.s32 0, %v2002
      %v2004 = vrot.slane %v2000, %v2003
      %v2005 = vsub.f32 %v1896, %v2004
      %v2006 = vsub.f32 %v1897, %v2004
      %v2007 = vsub.f32 %v1898, %v2004
      %v2008 = vsub.f32 %v1899, %v2004
      %v2009 = vsub.f32 %v1900, %v2004
      %v2010 = vsub.f32 %v1901, %v2004
      %v2011 = vsub.f32 %v1902, %v2004
      %v2012 = vsub.f32 %v1903, %v2004
      %v2013 = vmul.f32 %v2005, %v2005
      %v2014 = vmul.f32 %v2006, %v2006
      %v2015 = vmul.f32 %v2007, %v2007
      %v2016 = vmul.f32 %v2008, %v2008
      %v2017 = vmul.f32 %v2009, %v2009
      %v2018 = vmul.f32 %v2010, %v2010
      %v2019 = vmul.f32 %v2011, %v2011
      %v2020 = vmul.f32 %v2012, %v2012
      %v2021 = vsel %vm510, %v2013, 0.0
      %v2022 = vsel %vm510, %v2014, 0.0
      %v2023 = vadd.f32 %v2021, %v2022
      %v2024 = vsel %vm510, %v2015, 0.0
      %v2025 = vadd.f32 %v2023, %v2024
      %v2026 = vsel %vm510, %v2016, 0.0
      %v2027 = vadd.f32 %v2025, %v2026
      %v2028 = vsel %vm510, %v2017, 0.0
      %v2029 = vadd.f32 %v2027, %v2028
      %v2030 = vsel %vm510, %v2018, 0.0
      %v2031 = vadd.f32 %v2029, %v2030
      %v2032 = vsel %vm510, %v2019, 0.0
      %v2033 = vadd.f32 %v2031, %v2032
      %v2034 = vsel %vm510, %v2020, 0.0
      %v2035 = vadd.f32 %v2033, %v2034
      %v2036 = vrot.slane %v2035, 4
      %v2037 = vadd.f32 %v2035, %v2036
      %v2038 = vrot.slane %v2037, 2
      %v2039 = vadd.f32 %v2037, %v2038
      %v2040 = vrot.slane %v2039, 1
      %v2041 = vadd.f32 %v2039, %v2040
      %v2043 = vsel %vm510, %v2041, 0
      %2045 = vmatprep.subr.mxu0 0.0
      %2046 = vmatpush1.msra.mxu0 %v383
      %2047 = vmatprep.subr.mxu0 0.0
      %2048 = vmatpush1.msra.mxu0 %v384
      %2049 = vmatprep.subr.mxu0 0.0
      %2050 = vmatpush1.msra.mxu0 %v385
      %2051 = vmatprep.subr.mxu0 0.0
      %2052 = vmatpush1.msra.mxu0 %v386
      %2053 = vmatprep.subr.mxu0 0.0
      %2054 = vmatpush1.msra.mxu0 0.0
      %2055 = vmatprep.subr.mxu0 0.0
      %2056 = vmatpush1.msra.mxu0 0.0
      %2057 = vmatprep.subr.mxu0 0.0
      %2058 = vmatpush1.msra.mxu0 0.0
      %2059 = vmatprep.subr.mxu0 0.0
      %2060 = vmatpush1.msra.mxu0 0.0
      %2061 = vmatprep.subr.mxu0 0.0
      %2062 = vmatpush1.msra.mxu0 0.0
      %2063 = vmatprep.subr.mxu0 0.0
      %2064 = vmatpush1.msra.mxu0 0.0
      %2065 = vmatprep.subr.mxu0 0.0
      %2066 = vmatpush1.msra.mxu0 0.0
      %2067 = vmatprep.subr.mxu0 0.0
      %2068 = vmatpush1.msra.mxu0 0.0
      %2069 = vmatprep.subr.mxu0 0.0
      %2070 = vmatpush1.msra.mxu0 0.0
      %2071 = vmatprep.subr.mxu0 0.0
      %2072 = vmatpush1.msra.mxu0 0.0
      %2073 = vmatprep.subr.mxu0 0.0
      %2074 = vmatpush1.msra.mxu0 0.0
      %2075 = vmatprep.subr.mxu0 0.0
      %2076 = vmatpush1.msra.mxu0 0.0
      %2077 = vmatprep.subr.mxu0 0.0
      %2078 = vmatpush1.msra.mxu0 0.0
      %2079 = vmatprep.subr.mxu0 0.0
      %2080 = vmatpush1.msra.mxu0 0.0
      %2081 = vmatprep.subr.mxu0 0.0
      %2082 = vmatpush1.msra.mxu0 0.0
      %2083 = vmatprep.subr.mxu0 0.0
      %2084 = vmatpush1.msra.mxu0 0.0
      %2085 = vmatprep.subr.mxu0 0.0
      %2086 = vmatpush1.msra.mxu0 0.0
      %2087 = vmatprep.subr.mxu0 0.0
      %2088 = vmatpush1.msra.mxu0 0.0
      %2089 = vmatprep.subr.mxu0 0.0
      %2090 = vmatpush1.msra.mxu0 0.0
      %2091 = vmatprep.subr.mxu0 0.0
      %2092 = vmatpush1.msra.mxu0 0.0
      %2093 = vmatprep.subr.mxu0 0.0
      %2094 = vmatpush1.msra.mxu0 0.0
      %2095 = vmatprep.subr.mxu0 0.0
      %2096 = vmatpush1.msra.mxu0 0.0
      %2097 = vmatprep.subr.mxu0 0.0
      %2098 = vmatpush1.msra.mxu0 0.0
      %2099 = vmatprep.subr.mxu0 0.0
      %2100 = vmatpush1.msra.mxu0 0.0
      %2101 = vmatprep.subr.mxu0 0.0
      %2102 = vmatpush1.msra.mxu0 0.0
      %2103 = vmatprep.subr.mxu0 0.0
      %2104 = vmatpush1.msra.mxu0 0.0
      %2105 = vmatprep.subr.mxu0 0.0
      %2106 = vmatpush1.msra.mxu0 0.0
      %2107 = vmatprep.subr.mxu0 0.0
      %2108 = vmatpush1.msra.mxu0 0.0
      %2109 = vmatprep.mubr.f32.mxu0 0.0
      %2110 = vmatmul.mubr.f32.gmra.mrb[0].mxu0 %v2043
      %v2111 = vpop.f32.mrb[0].mxu0
      %v2112 = vadd.f32 0.0, %v2111
      %v2113 = vpop.f32.mrb[0].mxu0
      %2114 = vdwg.mxu0
      %v2115 = vmul.f32 %v2112, 0.015625
      %v2116 = vadd.f32 %v2115, 1e-06
      %v2117 = vrsqrt.pop %v2116
      %v2118 = vmul.f32 %v2117, %v1904
      %v2119 = vlaneseq
      %v2120 = vshrl.u32 %v2119, 7
      %v2121 = vsub.s32 0, %v2120
      %v2122 = vrot.slane %v2118, %v2121
      %v2123 = vmul.f32 %v2005, %v2122
      %v2124 = vmul.f32 %v2006, %v2122
      %v2125 = vmul.f32 %v2007, %v2122
      %v2126 = vmul.f32 %v2008, %v2122
      %v2127 = vmul.f32 %v2009, %v2122
      %v2128 = vmul.f32 %v2010, %v2122
      %v2129 = vmul.f32 %v2011, %v2122
      %v2130 = vmul.f32 %v2012, %v2122
      %v2132 = vlaneseq
      %v2133 = vshrl.u32 %v2132, 7
      %v2134 = vsub.s32 0, %v2133
      %v2135 = vrot.slane %v1905, %v2134
      %v2137 = vadd.f32 %v2123, %v2135
      %v2138 = vadd.f32 %v2124, %v2135
      %v2139 = vadd.f32 %v2125, %v2135
      %v2140 = vadd.f32 %v2126, %v2135
      %v2141 = vadd.f32 %v2127, %v2135
      %v2142 = vadd.f32 %v2128, %v2135
      %v2143 = vadd.f32 %v2129, %v2135
      %v2144 = vadd.f32 %v2130, %v2135
      %v2145 = vxor.u32 %v2137, 2147483648
      %v2146 = vxor.u32 %v2138, 2147483648
      %v2147 = vxor.u32 %v2139, 2147483648
      %v2148 = vxor.u32 %v2140, 2147483648
      %v2149 = vxor.u32 %v2141, 2147483648
      %v2150 = vxor.u32 %v2142, 2147483648
      %v2151 = vxor.u32 %v2143, 2147483648
      %v2152 = vxor.u32 %v2144, 2147483648
      %v2153 = vmul.f32 %v2145, 1.442695
      %v2154 = vpow.pop %v2153
      %v2155 = vmul.f32 %v2146, 1.442695
      %v2156 = vpow.pop %v2155
      %v2157 = vmul.f32 %v2147, 1.442695
      %v2158 = vpow.pop %v2157
      %v2159 = vmul.f32 %v2148, 1.442695
      %v2160 = vpow.pop %v2159
      %v2161 = vmul.f32 %v2149, 1.442695
      %v2162 = vpow.pop %v2161
      %v2163 = vmul.f32 %v2150, 1.442695
      %v2164 = vpow.pop %v2163
      %v2165 = vmul.f32 %v2151, 1.442695
      %v2166 = vpow.pop %v2165
      %v2167 = vmul.f32 %v2152, 1.442695
      %v2168 = vpow.pop %v2167
      %v2169 = vadd.f32 %v2154, 1.0
      %v2170 = vadd.f32 %v2156, 1.0
      %v2171 = vadd.f32 %v2158, 1.0
      %v2172 = vadd.f32 %v2160, 1.0
      %v2173 = vadd.f32 %v2162, 1.0
      %v2174 = vadd.f32 %v2164, 1.0
      %v2175 = vadd.f32 %v2166, 1.0
      %v2176 = vadd.f32 %v2168, 1.0
      %v2177 = vrcp.pop %v2169
      %v2178 = vmul.f32 1.0, %v2177
      %v2179 = vrcp.pop %v2170
      %v2180 = vmul.f32 1.0, %v2179
      %v2181 = vrcp.pop %v2171
      %v2182 = vmul.f32 1.0, %v2181
      %v2183 = vrcp.pop %v2172
      %v2184 = vmul.f32 1.0, %v2183
      %v2185 = vrcp.pop %v2173
      %v2186 = vmul.f32 1.0, %v2185
      %v2187 = vrcp.pop %v2174
      %v2188 = vmul.f32 1.0, %v2187
      %v2189 = vrcp.pop %v2175
      %v2190 = vmul.f32 1.0, %v2189
      %v2191 = vrcp.pop %v2176
      %v2192 = vmul.f32 1.0, %v2191
      %v2193 = vmul.f32 %v2137, %v2178
      %v2194 = vmul.f32 %v2138, %v2180
      %v2195 = vmul.f32 %v2139, %v2182
      %v2196 = vmul.f32 %v2140, %v2184
      %v2197 = vmul.f32 %v2141, %v2186
      %v2198 = vmul.f32 %v2142, %v2188
      %v2199 = vmul.f32 %v2143, %v2190
      %v2200 = vmul.f32 %v2144, %v2192
      %v2201 = vld [vmem:[%s9] sm:$0x1]
      %v2202 = vpack.c.bf16 %v2194, %v2193
      %v2203 = vpack.c.bf16 %v2196, %v2195
      %v2204 = vpack.c.bf16 %v2198, %v2197
      %v2205 = vpack.c.bf16 %v2200, %v2199
      %v2207 = vshrl.u32 %v2202, 16
      %v2209 = vrot.slane %v2207, 7
      %v2210 = vshll.u32 %v2202, 16
      %v2212 = vor.u32 %v2209, %v2210
      %v2214 = vshrl.u32 %v2203, 16
      %v2216 = vrot.slane %v2214, 7
      %v2217 = vshll.u32 %v2203, 16
      %v2219 = vor.u32 %v2216, %v2217
      %v2220 = vsel %vm811, %v2209, %v2219
      %v2222 = vshrl.u32 %v2204, 16
      %v2224 = vrot.slane %v2222, 7
      %v2225 = vshll.u32 %v2204, 16
      %v2227 = vor.u32 %v2224, %v2225
      %v2228 = vsel %vm811, %v2216, %v2227
      %v2230 = vshrl.u32 %v2205, 16
      %v2232 = vrot.slane %v2230, 7
      %v2233 = vshll.u32 %v2205, 16
      %v2235 = vor.u32 %v2232, %v2233
      %v2236 = vsel %vm811, %v2224, %v2235
      %v2241 = vsel %vm848, 0, %v2212
      %v2242 = vsel %vm878, %v2241, 0
      %v2243 = vsel %vm879, %v2220, 0
      %v2244 = vsel %vm880, %v2228, 0
      %v2245 = vsel %vm881, %v2236, 0
      %v2246 = vrot.slane %v2210, 1
      %v2247 = vor.u32 %v2207, %v2246
      %v2248 = vrot.slane %v2217, 1
      %v2249 = vsel %vm886, %v2247, %v2248
      %v2250 = vor.u32 %v2214, %v2248
      %v2251 = vrot.slane %v2225, 1
      %v2252 = vsel %vm886, %v2250, %v2251
      %v2253 = vor.u32 %v2222, %v2251
      %v2254 = vrot.slane %v2233, 1
      %v2255 = vsel %vm886, %v2253, %v2254
      %v2256 = vor.u32 %v2230, %v2254
      %v2261 = vsel %vm903, %v2256, 0
      %v2262 = vsel %vm933, %v2249, 0
      %v2263 = vsel %vm934, %v2252, 0
      %v2264 = vsel %vm935, %v2255, 0
      %v2265 = vsel %vm936, %v2261, 0
      %v2270 = vrot.slane %v2242, 4
      %v2271 = vrot.slane %v2243, 4
      %v2272 = vsel %vm945, %v2270, %v2271
      %v2273 = vrot.slane %v2244, 4
      %v2274 = vsel %vm945, %v2271, %v2273
      %v2275 = vrot.slane %v2245, 4
      %v2276 = vsel %vm945, %v2273, %v2275
      %v2278 = vsel %vm953, 0, %v2270
      %v2280 = vsel %vm953, %v2275, 0
      %v2285 = vrot.slane %v2202, 4
      %v2286 = vrot.slane %v2203, 4
      %v2287 = vsel %vm945, %v2285, %v2286
      %v2288 = vrot.slane %v2204, 4
      %v2289 = vsel %vm945, %v2286, %v2288
      %v2290 = vrot.slane %v2205, 4
      %v2291 = vsel %vm945, %v2288, %v2290
      %v2293 = vsel %vm953, 0, %v2285
      %v2295 = vsel %vm953, %v2290, 0
      %v2300 = vrot.slane %v2262, 4
      %v2301 = vrot.slane %v2263, 4
      %v2302 = vsel %vm945, %v2300, %v2301
      %v2303 = vrot.slane %v2264, 4
      %v2304 = vsel %vm945, %v2301, %v2303
      %v2305 = vrot.slane %v2265, 4
      %v2306 = vsel %vm945, %v2303, %v2305
      %v2308 = vsel %vm953, 0, %v2300
      %v2310 = vsel %vm953, %v2305, 0
      %v2311 = vld [vmem:[%s8] sm:$0xf]
      %v2312 = vld [vmem:[%s8 + $0x4] sm:$0xf]
      %v2313 = vld [vmem:[%s8 + $0x8] sm:$0xf]
      %v2314 = vld [vmem:[%s8 + $0xc] sm:$0xf]
      %s2315 = scalar_lea.vmem %s8, 16
      %v2316 = vld [vmem:[%s2315] sm:$0xf]
      %v2317 = vld [vmem:[%s2315 + $0x4] sm:$0xf]
      %v2318 = vld [vmem:[%s2315 + $0x8] sm:$0xf]
      %v2319 = vld [vmem:[%s2315 + $0xc] sm:$0xf]
      %v2324 = vunpack.c.l.b16 %v2316
      %v2325 = vunpack.c.l.b16 %v2317
      %v2326 = vunpack.c.l.b16 %v2318
      %v2327 = vunpack.c.l.b16 %v2319
      %v2328 = vpack.c.b16 %v2325, %v2324
      %v2329 = vpack.c.b16 %v2327, %v2326
      %v2332 = vsel %vm510, %v2293, 0
      %v2335 = vsel %vm510, %v2287, 0
      %v2338 = vsel %vm510, %v2289, 0
      %v2341 = vsel %vm510, %v2291, 0
      %2343 = vmatprep.subr.bf16.mxu0 0
      %2344 = vmatpush1.bf16.msra.mxu0 %v2328
      %2345 = vmatprep.subr.bf16.mxu0 0
      %2346 = vmatpush1.bf16.msra.mxu0 %v2329
      %2347 = vmatprep.subr.bf16.mxu0 0
      %2348 = vmatpush1.bf16.msra.mxu0 0
      %2349 = vmatprep.subr.bf16.mxu0 0
      %2350 = vmatpush1.bf16.msra.mxu0 0
      %2351 = vmatprep.subr.bf16.mxu0 0
      %2352 = vmatpush1.bf16.msra.mxu0 0
      %2353 = vmatprep.subr.bf16.mxu0 0
      %2354 = vmatpush1.bf16.msra.mxu0 0
      %2355 = vmatprep.subr.bf16.mxu0 0
      %2356 = vmatpush1.bf16.msra.mxu0 0
      %2357 = vmatprep.subr.bf16.mxu0 0
      %2358 = vmatpush1.bf16.msra.mxu0 0
      %2359 = vmatprep.subr.bf16.mxu0 0
      %2360 = vmatpush1.bf16.msra.mxu0 0
      %2361 = vmatprep.subr.bf16.mxu0 0
      %2362 = vmatpush1.bf16.msra.mxu0 0
      %2363 = vmatprep.subr.bf16.mxu0 0
      %2364 = vmatpush1.bf16.msra.mxu0 0
      %2365 = vmatprep.subr.bf16.mxu0 0
      %2366 = vmatpush1.bf16.msra.mxu0 0
      %2367 = vmatprep.subr.bf16.mxu0 0
      %2368 = vmatpush1.bf16.msra.mxu0 0
      %2369 = vmatprep.subr.bf16.mxu0 0
      %2370 = vmatpush1.bf16.msra.mxu0 0
      %2371 = vmatprep.subr.bf16.mxu0 0
      %2372 = vmatpush1.bf16.msra.mxu0 0
      %2373 = vmatprep.subr.bf16.mxu0 0
      %2374 = vmatpush1.bf16.msra.mxu0 0
      %2375 = vmatprep.mubr.bf16.mxu0 0
      %2376 = vmatmul.mubr.bf16.gmra.mrb[0].mxu0 %v2332
      %v2377 = vpop.f32.mrb[0].mxu0
      %v2378 = vadd.f32 0.0, %v2377
      %v2379 = vpop.f32.mrb[0].mxu0
      %v2380 = vpop.f32.mrb[0].mxu0
      %v2381 = vadd.f32 0.0, %v2380
      %v2382 = vpop.f32.mrb[0].mxu0
      %2383 = vmatprep.mubr.bf16.mxu0 0
      %2384 = vmatmul.mubr.bf16.gmra.mrb[0].mxu0 %v2335
      %v2385 = vpop.f32.mrb[0].mxu0
      %v2386 = vadd.f32 0.0, %v2385
      %v2387 = vpop.f32.mrb[0].mxu0
      %v2388 = vpop.f32.mrb[0].mxu0
      %v2389 = vadd.f32 0.0, %v2388
      %v2390 = vpop.f32.mrb[0].mxu0
      %2391 = vmatprep.mubr.bf16.mxu0 0
      %2392 = vmatmul.mubr.bf16.gmra.mrb[0].mxu0 %v2338
      %v2393 = vpop.f32.mrb[0].mxu0
      %v2394 = vadd.f32 0.0, %v2393
      %v2395 = vpop.f32.mrb[0].mxu0
      %v2396 = vpop.f32.mrb[0].mxu0
      %v2397 = vadd.f32 0.0, %v2396
      %v2398 = vpop.f32.mrb[0].mxu0
      %2399 = vmatprep.mubr.bf16.mxu0 0
      %2400 = vmatmul.mubr.bf16.gmra.mrb[0].mxu0 %v2341
      %v2401 = vpop.f32.mrb[0].mxu0
      %v2402 = vadd.f32 0.0, %v2401
      %v2403 = vpop.f32.mrb[0].mxu0
      %v2404 = vpop.f32.mrb[0].mxu0
      %v2405 = vadd.f32 0.0, %v2404
      %v2406 = vpop.f32.mrb[0].mxu0
      %2407 = vdwg.mxu0
      %v2412 = vunpack.c.l.b16 %v2311
      %v2413 = vunpack.c.l.b16 %v2312
      %v2414 = vunpack.c.l.b16 %v2313
      %v2415 = vunpack.c.l.b16 %v2314
      %v2416 = vpack.c.b16 %v2413, %v2412
      %v2417 = vpack.c.b16 %v2415, %v2414
      %v2420 = vsel %vm510, %v2278, 0
      %v2423 = vsel %vm510, %v2272, 0
      %v2426 = vsel %vm510, %v2274, 0
      %v2429 = vsel %vm510, %v2276, 0
      %2431 = vmatprep.subr.bf16.mxu0 0
      %2432 = vmatpush1.bf16.msra.mxu0 %v2416
      %2433 = vmatprep.subr.bf16.mxu0 0
      %2434 = vmatpush1.bf16.msra.mxu0 %v2417
      %2435 = vmatprep.subr.bf16.mxu0 0
      %2436 = vmatpush1.bf16.msra.mxu0 0
      %2437 = vmatprep.subr.bf16.mxu0 0
      %2438 = vmatpush1.bf16.msra.mxu0 0
      %2439 = vmatprep.subr.bf16.mxu0 0
      %2440 = vmatpush1.bf16.msra.mxu0 0
      %2441 = vmatprep.subr.bf16.mxu0 0
      %2442 = vmatpush1.bf16.msra.mxu0 0
      %2443 = vmatprep.subr.bf16.mxu0 0
      %2444 = vmatpush1.bf16.msra.mxu0 0
      %2445 = vmatprep.subr.bf16.mxu0 0
      %2446 = vmatpush1.bf16.msra.mxu0 0
      %2447 = vmatprep.subr.bf16.mxu0 0
      %2448 = vmatpush1.bf16.msra.mxu0 0
      %2449 = vmatprep.subr.bf16.mxu0 0
      %2450 = vmatpush1.bf16.msra.mxu0 0
      %2451 = vmatprep.subr.bf16.mxu0 0
      %2452 = vmatpush1.bf16.msra.mxu0 0
      %2453 = vmatprep.subr.bf16.mxu0 0
      %2454 = vmatpush1.bf16.msra.mxu0 0
      %2455 = vmatprep.subr.bf16.mxu0 0
      %2456 = vmatpush1.bf16.msra.mxu0 0
      %2457 = vmatprep.subr.bf16.mxu0 0
      %2458 = vmatpush1.bf16.msra.mxu0 0
      %2459 = vmatprep.subr.bf16.mxu0 0
      %2460 = vmatpush1.bf16.msra.mxu0 0
      %2461 = vmatprep.subr.bf16.mxu0 0
      %2462 = vmatpush1.bf16.msra.mxu0 0
      %2463 = vmatprep.mubr.bf16.mxu0 0
      %2464 = vmatmul.mubr.bf16.gmra.mrb[0].mxu0 %v2420
      %v2465 = vpop.f32.mrb[0].mxu0
      %v2466 = vadd.f32 %v2378, %v2465
      %v2467 = vpop.f32.mrb[0].mxu0
      %v2468 = vpop.f32.mrb[0].mxu0
      %v2469 = vadd.f32 %v2381, %v2468
      %v2470 = vpop.f32.mrb[0].mxu0
      %2471 = vmatprep.mubr.bf16.mxu0 0
      %2472 = vmatmul.mubr.bf16.gmra.mrb[0].mxu0 %v2423
      %v2473 = vpop.f32.mrb[0].mxu0
      %v2474 = vadd.f32 %v2386, %v2473
      %v2475 = vpop.f32.mrb[0].mxu0
      %v2476 = vpop.f32.mrb[0].mxu0
      %v2477 = vadd.f32 %v2389, %v2476
      %v2478 = vpop.f32.mrb[0].mxu0
      %2479 = vmatprep.mubr.bf16.mxu0 0
      %2480 = vmatmul.mubr.bf16.gmra.mrb[0].mxu0 %v2426
      %v2481 = vpop.f32.mrb[0].mxu0
      %v2482 = vadd.f32 %v2394, %v2481
      %v2483 = vpop.f32.mrb[0].mxu0
      %v2484 = vpop.f32.mrb[0].mxu0
      %v2485 = vadd.f32 %v2397, %v2484
      %v2486 = vpop.f32.mrb[0].mxu0
      %2487 = vmatprep.mubr.bf16.mxu0 0
      %2488 = vmatmul.mubr.bf16.gmra.mrb[0].mxu0 %v2429
      %v2489 = vpop.f32.mrb[0].mxu0
      %v2490 = vadd.f32 %v2402, %v2489
      %v2491 = vpop.f32.mrb[0].mxu0
      %v2492 = vpop.f32.mrb[0].mxu0
      %v2493 = vadd.f32 %v2405, %v2492
      %v2494 = vpop.f32.mrb[0].mxu0
      %2495 = vdwg.mxu0
      %s2496 = scalar_lea.vmem %s8, 32
      %v2497 = vld [vmem:[%s2496] sm:$0xf]
      %v2498 = vld [vmem:[%s2496 + $0x4] sm:$0xf]
      %v2499 = vld [vmem:[%s2496 + $0x8] sm:$0xf]
      %v2500 = vld [vmem:[%s2496 + $0xc] sm:$0xf]
      %v2505 = vunpack.c.l.b16 %v2497
      %v2506 = vunpack.c.l.b16 %v2498
      %v2507 = vunpack.c.l.b16 %v2499
      %v2508 = vunpack.c.l.b16 %v2500
      %v2509 = vpack.c.b16 %v2506, %v2505
      %v2510 = vpack.c.b16 %v2508, %v2507
      %v2513 = vsel %vm510, %v2308, 0
      %v2516 = vsel %vm510, %v2302, 0
      %v2519 = vsel %vm510, %v2304, 0
      %v2522 = vsel %vm510, %v2306, 0
      %2524 = vmatprep.subr.bf16.mxu0 0
      %2525 = vmatpush1.bf16.msra.mxu0 %v2509
      %2526 = vmatprep.subr.bf16.mxu0 0
      %2527 = vmatpush1.bf16.msra.mxu0 %v2510
      %2528 = vmatprep.subr.bf16.mxu0 0
      %2529 = vmatpush1.bf16.msra.mxu0 0
      %2530 = vmatprep.subr.bf16.mxu0 0
      %2531 = vmatpush1.bf16.msra.mxu0 0
      %2532 = vmatprep.subr.bf16.mxu0 0
      %2533 = vmatpush1.bf16.msra.mxu0 0
      %2534 = vmatprep.subr.bf16.mxu0 0
      %2535 = vmatpush1.bf16.msra.mxu0 0
      %2536 = vmatprep.subr.bf16.mxu0 0
      %2537 = vmatpush1.bf16.msra.mxu0 0
      %2538 = vmatprep.subr.bf16.mxu0 0
      %2539 = vmatpush1.bf16.msra.mxu0 0
      %2540 = vmatprep.subr.bf16.mxu0 0
      %2541 = vmatpush1.bf16.msra.mxu0 0
      %2542 = vmatprep.subr.bf16.mxu0 0
      %2543 = vmatpush1.bf16.msra.mxu0 0
      %2544 = vmatprep.subr.bf16.mxu0 0
      %2545 = vmatpush1.bf16.msra.mxu0 0
      %2546 = vmatprep.subr.bf16.mxu0 0
      %2547 = vmatpush1.bf16.msra.mxu0 0
      %2548 = vmatprep.subr.bf16.mxu0 0
      %2549 = vmatpush1.bf16.msra.mxu0 0
      %2550 = vmatprep.subr.bf16.mxu0 0
      %2551 = vmatpush1.bf16.msra.mxu0 0
      %2552 = vmatprep.subr.bf16.mxu0 0
      %2553 = vmatpush1.bf16.msra.mxu0 0
      %2554 = vmatprep.subr.bf16.mxu0 0
      %2555 = vmatpush1.bf16.msra.mxu0 0
      %2556 = vmatprep.mubr.bf16.mxu0 0
      %2557 = vmatmul.mubr.bf16.gmra.mrb[0].mxu0 %v2513
      %v2558 = vpop.f32.mrb[0].mxu0
      %v2559 = vadd.f32 0.0, %v2558
      %v2560 = vpop.f32.mrb[0].mxu0
      %v2561 = vpop.f32.mrb[0].mxu0
      %v2562 = vadd.f32 0.0, %v2561
      %v2563 = vpop.f32.mrb[0].mxu0
      %2564 = vmatprep.mubr.bf16.mxu0 0
      %2565 = vmatmul.mubr.bf16.gmra.mrb[0].mxu0 %v2516
      %v2566 = vpop.f32.mrb[0].mxu0
      %v2567 = vadd.f32 0.0, %v2566
      %v2568 = vpop.f32.mrb[0].mxu0
      %v2569 = vpop.f32.mrb[0].mxu0
      %v2570 = vadd.f32 0.0, %v2569
      %v2571 = vpop.f32.mrb[0].mxu0
      %2572 = vmatprep.mubr.bf16.mxu0 0
      %2573 = vmatmul.mubr.bf16.gmra.mrb[0].mxu0 %v2519
      %v2574 = vpop.f32.mrb[0].mxu0
      %v2575 = vadd.f32 0.0, %v2574
      %v2576 = vpop.f32.mrb[0].mxu0
      %v2577 = vpop.f32.mrb[0].mxu0
      %v2578 = vadd.f32 0.0, %v2577
      %v2579 = vpop.f32.mrb[0].mxu0
      %2580 = vmatprep.mubr.bf16.mxu0 0
      %2581 = vmatmul.mubr.bf16.gmra.mrb[0].mxu0 %v2522
      %v2582 = vpop.f32.mrb[0].mxu0
      %v2583 = vadd.f32 0.0, %v2582
      %v2584 = vpop.f32.mrb[0].mxu0
      %v2585 = vpop.f32.mrb[0].mxu0
      %v2586 = vadd.f32 0.0, %v2585
      %v2587 = vpop.f32.mrb[0].mxu0
      %2588 = vdwg.mxu0
      %v2589 = vadd.f32 %v2466, %v2559
      %v2590 = vadd.f32 %v2469, %v2562
      %v2591 = vadd.f32 %v2474, %v2567
      %v2592 = vadd.f32 %v2477, %v2570
      %v2593 = vadd.f32 %v2482, %v2575
      %v2594 = vadd.f32 %v2485, %v2578
      %v2595 = vadd.f32 %v2490, %v2583
      %v2596 = vadd.f32 %v2493, %v2586
      %s2597 = scalar_lea.vmem %s8, 48
      %v2598 = vld [vmem:[%s2597] sm:$0xf]
      %v2599 = vld [vmem:[%s2597 + $0x4] sm:$0xf]
      %v2600 = vld [vmem:[%s2597 + $0x8] sm:$0xf]
      %v2601 = vld [vmem:[%s2597 + $0xc] sm:$0xf]
      %v2604 = vrot.slane %v2278, 4
      %v2605 = vrot.slane %v2272, 4
      %v2606 = vsel %vm945, %v2604, %v2605
      %v2607 = vrot.slane %v2274, 4
      %v2608 = vsel %vm945, %v2605, %v2607
      %v2609 = vrot.slane %v2276, 4
      %v2610 = vsel %vm945, %v2607, %v2609
      %v2611 = vrot.slane %v2280, 4
      %v2612 = vsel %vm945, %v2609, %v2611
      %v2617 = vunpack.c.l.b16 %v2598
      %v2618 = vunpack.c.l.b16 %v2599
      %v2619 = vunpack.c.l.b16 %v2600
      %v2620 = vunpack.c.l.b16 %v2601
      %v2621 = vpack.c.b16 %v2618, %v2617
      %v2622 = vpack.c.b16 %v2620, %v2619
      %v2626 = vsel %vm510, %v2606, 0
      %v2629 = vsel %vm510, %v2608, 0
      %v2632 = vsel %vm510, %v2610, 0
      %v2635 = vsel %vm510, %v2612, 0
      %2637 = vmatprep.subr.bf16.mxu0 0
      %2638 = vmatpush1.bf16.msra.mxu0 %v2621
      %2639 = vmatprep.subr.bf16.mxu0 0
      %2640 = vmatpush1.bf16.msra.mxu0 %v2622
      %2641 = vmatprep.subr.bf16.mxu0 0
      %2642 = vmatpush1.bf16.msra.mxu0 0
      %2643 = vmatprep.subr.bf16.mxu0 0
      %2644 = vmatpush1.bf16.msra.mxu0 0
      %2645 = vmatprep.subr.bf16.mxu0 0
      %2646 = vmatpush1.bf16.msra.mxu0 0
      %2647 = vmatprep.subr.bf16.mxu0 0
      %2648 = vmatpush1.bf16.msra.mxu0 0
      %2649 = vmatprep.subr.bf16.mxu0 0
      %2650 = vmatpush1.bf16.msra.mxu0 0
      %2651 = vmatprep.subr.bf16.mxu0 0
      %2652 = vmatpush1.bf16.msra.mxu0 0
      %2653 = vmatprep.subr.bf16.mxu0 0
      %2654 = vmatpush1.bf16.msra.mxu0 0
      %2655 = vmatprep.subr.bf16.mxu0 0
      %2656 = vmatpush1.bf16.msra.mxu0 0
      %2657 = vmatprep.subr.bf16.mxu0 0
      %2658 = vmatpush1.bf16.msra.mxu0 0
      %2659 = vmatprep.subr.bf16.mxu0 0
      %2660 = vmatpush1.bf16.msra.mxu0 0
      %2661 = vmatprep.subr.bf16.mxu0 0
      %2662 = vmatpush1.bf16.msra.mxu0 0
      %2663 = vmatprep.subr.bf16.mxu0 0
      %2664 = vmatpush1.bf16.msra.mxu0 0
      %2665 = vmatprep.subr.bf16.mxu0 0
      %2666 = vmatpush1.bf16.msra.mxu0 0
      %2667 = vmatprep.subr.bf16.mxu0 0
      %2668 = vmatpush1.bf16.msra.mxu0 0
      %2669 = vmatprep.mubr.bf16.mxu0 0
      %2670 = vmatmul.mubr.bf16.gmra.mrb[0].mxu0 %v2626
      %v2671 = vpop.f32.mrb[0].mxu0
      %v2672 = vadd.f32 0.0, %v2671
      %v2673 = vpop.f32.mrb[0].mxu0
      %v2674 = vpop.f32.mrb[0].mxu0
      %v2675 = vadd.f32 0.0, %v2674
      %v2676 = vpop.f32.mrb[0].mxu0
      %2677 = vmatprep.mubr.bf16.mxu0 0
      %2678 = vmatmul.mubr.bf16.gmra.mrb[0].mxu0 %v2629
      %v2679 = vpop.f32.mrb[0].mxu0
      %v2680 = vadd.f32 0.0, %v2679
      %v2681 = vpop.f32.mrb[0].mxu0
      %v2682 = vpop.f32.mrb[0].mxu0
      %v2683 = vadd.f32 0.0, %v2682
      %v2684 = vpop.f32.mrb[0].mxu0
      %2685 = vmatprep.mubr.bf16.mxu0 0
      %2686 = vmatmul.mubr.bf16.gmra.mrb[0].mxu0 %v2632
      %v2687 = vpop.f32.mrb[0].mxu0
      %v2688 = vadd.f32 0.0, %v2687
      %v2689 = vpop.f32.mrb[0].mxu0
      %v2690 = vpop.f32.mrb[0].mxu0
      %v2691 = vadd.f32 0.0, %v2690
      %v2692 = vpop.f32.mrb[0].mxu0
      %2693 = vmatprep.mubr.bf16.mxu0 0
      %2694 = vmatmul.mubr.bf16.gmra.mrb[0].mxu0 %v2635
      %v2695 = vpop.f32.mrb[0].mxu0
      %v2696 = vadd.f32 0.0, %v2695
      %v2697 = vpop.f32.mrb[0].mxu0
      %v2698 = vpop.f32.mrb[0].mxu0
      %v2699 = vadd.f32 0.0, %v2698
      %v2700 = vpop.f32.mrb[0].mxu0
      %2701 = vdwg.mxu0
      %v2702 = vadd.f32 %v2589, %v2672
      %v2703 = vadd.f32 %v2590, %v2675
      %v2704 = vadd.f32 %v2591, %v2680
      %v2705 = vadd.f32 %v2592, %v2683
      %v2706 = vadd.f32 %v2593, %v2688
      %v2707 = vadd.f32 %v2594, %v2691
      %v2708 = vadd.f32 %v2595, %v2696
      %v2709 = vadd.f32 %v2596, %v2699
      %s2710 = scalar_lea.vmem %s8, 64
      %v2711 = vld [vmem:[%s2710] sm:$0xf]
      %v2712 = vld [vmem:[%s2710 + $0x4] sm:$0xf]
      %v2713 = vld [vmem:[%s2710 + $0x8] sm:$0xf]
      %v2714 = vld [vmem:[%s2710 + $0xc] sm:$0xf]
      %v2717 = vrot.slane %v2293, 4
      %v2718 = vrot.slane %v2287, 4
      %v2719 = vsel %vm945, %v2717, %v2718
      %v2720 = vrot.slane %v2289, 4
      %v2721 = vsel %vm945, %v2718, %v2720
      %v2722 = vrot.slane %v2291, 4
      %v2723 = vsel %vm945, %v2720, %v2722
      %v2724 = vrot.slane %v2295, 4
      %v2725 = vsel %vm945, %v2722, %v2724
      %v2730 = vunpack.c.l.b16 %v2711
      %v2731 = vunpack.c.l.b16 %v2712
      %v2732 = vunpack.c.l.b16 %v2713
      %v2733 = vunpack.c.l.b16 %v2714
      %v2734 = vpack.c.b16 %v2731, %v2730
      %v2735 = vpack.c.b16 %v2733, %v2732
      %v2739 = vsel %vm510, %v2719, 0
      %v2742 = vsel %vm510, %v2721, 0
      %v2745 = vsel %vm510, %v2723, 0
      %v2748 = vsel %vm510, %v2725, 0
      %2750 = vmatprep.subr.bf16.mxu0 0
      %2751 = vmatpush1.bf16.msra.mxu0 %v2734
      %2752 = vmatprep.subr.bf16.mxu0 0
      %2753 = vmatpush1.bf16.msra.mxu0 %v2735
      %2754 = vmatprep.subr.bf16.mxu0 0
      %2755 = vmatpush1.bf16.msra.mxu0 0
      %2756 = vmatprep.subr.bf16.mxu0 0
      %2757 = vmatpush1.bf16.msra.mxu0 0
      %2758 = vmatprep.subr.bf16.mxu0 0
      %2759 = vmatpush1.bf16.msra.mxu0 0
      %2760 = vmatprep.subr.bf16.mxu0 0
      %2761 = vmatpush1.bf16.msra.mxu0 0
      %2762 = vmatprep.subr.bf16.mxu0 0
      %2763 = vmatpush1.bf16.msra.mxu0 0
      %2764 = vmatprep.subr.bf16.mxu0 0
      %2765 = vmatpush1.bf16.msra.mxu0 0
      %2766 = vmatprep.subr.bf16.mxu0 0
      %2767 = vmatpush1.bf16.msra.mxu0 0
      %2768 = vmatprep.subr.bf16.mxu0 0
      %2769 = vmatpush1.bf16.msra.mxu0 0
      %2770 = vmatprep.subr.bf16.mxu0 0
      %2771 = vmatpush1.bf16.msra.mxu0 0
      %2772 = vmatprep.subr.bf16.mxu0 0
      %2773 = vmatpush1.bf16.msra.mxu0 0
      %2774 = vmatprep.subr.bf16.mxu0 0
      %2775 = vmatpush1.bf16.msra.mxu0 0
      %2776 = vmatprep.subr.bf16.mxu0 0
      %2777 = vmatpush1.bf16.msra.mxu0 0
      %2778 = vmatprep.subr.bf16.mxu0 0
      %2779 = vmatpush1.bf16.msra.mxu0 0
      %2780 = vmatprep.subr.bf16.mxu0 0
      %2781 = vmatpush1.bf16.msra.mxu0 0
      %2782 = vmatprep.mubr.bf16.mxu0 0
      %2783 = vmatmul.mubr.bf16.gmra.mrb[0].mxu0 %v2739
      %v2784 = vpop.f32.mrb[0].mxu0
      %v2785 = vadd.f32 0.0, %v2784
      %v2786 = vpop.f32.mrb[0].mxu0
      %v2787 = vpop.f32.mrb[0].mxu0
      %v2788 = vadd.f32 0.0, %v2787
      %v2789 = vpop.f32.mrb[0].mxu0
      %2790 = vmatprep.mubr.bf16.mxu0 0
      %2791 = vmatmul.mubr.bf16.gmra.mrb[0].mxu0 %v2742
      %v2792 = vpop.f32.mrb[0].mxu0
      %v2793 = vadd.f32 0.0, %v2792
      %v2794 = vpop.f32.mrb[0].mxu0
      %v2795 = vpop.f32.mrb[0].mxu0
      %v2796 = vadd.f32 0.0, %v2795
      %v2797 = vpop.f32.mrb[0].mxu0
      %2798 = vmatprep.mubr.bf16.mxu0 0
      %2799 = vmatmul.mubr.bf16.gmra.mrb[0].mxu0 %v2745
      %v2800 = vpop.f32.mrb[0].mxu0
      %v2801 = vadd.f32 0.0, %v2800
      %v2802 = vpop.f32.mrb[0].mxu0
      %v2803 = vpop.f32.mrb[0].mxu0
      %v2804 = vadd.f32 0.0, %v2803
      %v2805 = vpop.f32.mrb[0].mxu0
      %2806 = vmatprep.mubr.bf16.mxu0 0
      %2807 = vmatmul.mubr.bf16.gmra.mrb[0].mxu0 %v2748
      %v2808 = vpop.f32.mrb[0].mxu0
      %v2809 = vadd.f32 0.0, %v2808
      %v2810 = vpop.f32.mrb[0].mxu0
      %v2811 = vpop.f32.mrb[0].mxu0
      %v2812 = vadd.f32 0.0, %v2811
      %v2813 = vpop.f32.mrb[0].mxu0
      %2814 = vdwg.mxu0
      %v2815 = vadd.f32 %v2702, %v2785
      %v2816 = vadd.f32 %v2703, %v2788
      %v2817 = vadd.f32 %v2704, %v2793
      %v2818 = vadd.f32 %v2705, %v2796
      %v2819 = vadd.f32 %v2706, %v2801
      %v2820 = vadd.f32 %v2707, %v2804
      %v2821 = vadd.f32 %v2708, %v2809
      %v2822 = vadd.f32 %v2709, %v2812
      %s2823 = scalar_lea.vmem %s8, 80
      %v2824 = vld [vmem:[%s2823] sm:$0xf]
      %v2825 = vld [vmem:[%s2823 + $0x4] sm:$0xf]
      %v2826 = vld [vmem:[%s2823 + $0x8] sm:$0xf]
      %v2827 = vld [vmem:[%s2823 + $0xc] sm:$0xf]
      %v2830 = vrot.slane %v2308, 4
      %v2831 = vrot.slane %v2302, 4
      %v2832 = vsel %vm945, %v2830, %v2831
      %v2833 = vrot.slane %v2304, 4
      %v2834 = vsel %vm945, %v2831, %v2833
      %v2835 = vrot.slane %v2306, 4
      %v2836 = vsel %vm945, %v2833, %v2835
      %v2837 = vrot.slane %v2310, 4
      %v2838 = vsel %vm945, %v2835, %v2837
      %v2843 = vunpack.c.l.b16 %v2824
      %v2844 = vunpack.c.l.b16 %v2825
      %v2845 = vunpack.c.l.b16 %v2826
      %v2846 = vunpack.c.l.b16 %v2827
      %v2847 = vpack.c.b16 %v2844, %v2843
      %v2848 = vpack.c.b16 %v2846, %v2845
      %v2852 = vsel %vm510, %v2832, 0
      %v2855 = vsel %vm510, %v2834, 0
      %v2858 = vsel %vm510, %v2836, 0
      %v2861 = vsel %vm510, %v2838, 0
      %2863 = vmatprep.subr.bf16.mxu0 0
      %2864 = vmatpush1.bf16.msra.mxu0 %v2847
      %2865 = vmatprep.subr.bf16.mxu0 0
      %2866 = vmatpush1.bf16.msra.mxu0 %v2848
      %2867 = vmatprep.subr.bf16.mxu0 0
      %2868 = vmatpush1.bf16.msra.mxu0 0
      %2869 = vmatprep.subr.bf16.mxu0 0
      %2870 = vmatpush1.bf16.msra.mxu0 0
      %2871 = vmatprep.subr.bf16.mxu0 0
      %2872 = vmatpush1.bf16.msra.mxu0 0
      %2873 = vmatprep.subr.bf16.mxu0 0
      %2874 = vmatpush1.bf16.msra.mxu0 0
      %2875 = vmatprep.subr.bf16.mxu0 0
      %2876 = vmatpush1.bf16.msra.mxu0 0
      %2877 = vmatprep.subr.bf16.mxu0 0
      %2878 = vmatpush1.bf16.msra.mxu0 0
      %2879 = vmatprep.subr.bf16.mxu0 0
      %2880 = vmatpush1.bf16.msra.mxu0 0
      %2881 = vmatprep.subr.bf16.mxu0 0
      %2882 = vmatpush1.bf16.msra.mxu0 0
      %2883 = vmatprep.subr.bf16.mxu0 0
      %2884 = vmatpush1.bf16.msra.mxu0 0
      %2885 = vmatprep.subr.bf16.mxu0 0
      %2886 = vmatpush1.bf16.msra.mxu0 0
      %2887 = vmatprep.subr.bf16.mxu0 0
      %2888 = vmatpush1.bf16.msra.mxu0 0
      %2889 = vmatprep.subr.bf16.mxu0 0
      %2890 = vmatpush1.bf16.msra.mxu0 0
      %2891 = vmatprep.subr.bf16.mxu0 0
      %2892 = vmatpush1.bf16.msra.mxu0 0
      %2893 = vmatprep.subr.bf16.mxu0 0
      %2894 = vmatpush1.bf16.msra.mxu0 0
      %2895 = vmatprep.mubr.bf16.mxu0 0
      %2896 = vmatmul.mubr.bf16.gmra.mrb[0].mxu0 %v2852
      %v2897 = vpop.f32.mrb[0].mxu0
      %v2898 = vadd.f32 0.0, %v2897
      %v2899 = vpop.f32.mrb[0].mxu0
      %v2900 = vpop.f32.mrb[0].mxu0
      %v2901 = vadd.f32 0.0, %v2900
      %v2902 = vpop.f32.mrb[0].mxu0
      %2903 = vmatprep.mubr.bf16.mxu0 0
      %2904 = vmatmul.mubr.bf16.gmra.mrb[0].mxu0 %v2855
      %v2905 = vpop.f32.mrb[0].mxu0
      %v2906 = vadd.f32 0.0, %v2905
      %v2907 = vpop.f32.mrb[0].mxu0
      %v2908 = vpop.f32.mrb[0].mxu0
      %v2909 = vadd.f32 0.0, %v2908
      %v2910 = vpop.f32.mrb[0].mxu0
      %2911 = vmatprep.mubr.bf16.mxu0 0
      %2912 = vmatmul.mubr.bf16.gmra.mrb[0].mxu0 %v2858
      %v2913 = vpop.f32.mrb[0].mxu0
      %v2914 = vadd.f32 0.0, %v2913
      %v2915 = vpop.f32.mrb[0].mxu0
      %v2916 = vpop.f32.mrb[0].mxu0
      %v2917 = vadd.f32 0.0, %v2916
      %v2918 = vpop.f32.mrb[0].mxu0
      %2919 = vmatprep.mubr.bf16.mxu0 0
      %2920 = vmatmul.mubr.bf16.gmra.mrb[0].mxu0 %v2861
      %v2921 = vpop.f32.mrb[0].mxu0
      %v2922 = vadd.f32 0.0, %v2921
      %v2923 = vpop.f32.mrb[0].mxu0
      %v2924 = vpop.f32.mrb[0].mxu0
      %v2925 = vadd.f32 0.0, %v2924
      %v2926 = vpop.f32.mrb[0].mxu0
      %2927 = vdwg.mxu0
      %v2928 = vadd.f32 %v2815, %v2898
      %v2929 = vadd.f32 %v2816, %v2901
      %v2930 = vadd.f32 %v2817, %v2906
      %v2931 = vadd.f32 %v2818, %v2909
      %v2932 = vadd.f32 %v2819, %v2914
      %v2933 = vadd.f32 %v2820, %v2917
      %v2934 = vadd.f32 %v2821, %v2922
      %v2935 = vadd.f32 %v2822, %v2925
      %s2936 = scalar_lea.vmem %s8, 96
      %v2937 = vld [vmem:[%s2936] sm:$0xf]
      %v2938 = vld [vmem:[%s2936 + $0x4] sm:$0xf]
      %v2939 = vld [vmem:[%s2936 + $0x8] sm:$0xf]
      %v2940 = vld [vmem:[%s2936 + $0xc] sm:$0xf]
      %v2945 = vunpack.c.l.b16 %v2937
      %v2946 = vunpack.c.l.b16 %v2938
      %v2947 = vunpack.c.l.b16 %v2939
      %v2948 = vunpack.c.l.b16 %v2940
      %v2949 = vpack.c.b16 %v2946, %v2945
      %v2950 = vpack.c.b16 %v2948, %v2947
      %v2953 = vsel %vm510, %v2280, 0
      %2955 = vmatprep.subr.bf16.mxu0 0
      %2956 = vmatpush1.bf16.msra.mxu0 %v2949
      %2957 = vmatprep.subr.bf16.mxu0 0
      %2958 = vmatpush1.bf16.msra.mxu0 %v2950
      %2959 = vmatprep.subr.bf16.mxu0 0
      %2960 = vmatpush1.bf16.msra.mxu0 0
      %2961 = vmatprep.subr.bf16.mxu0 0
      %2962 = vmatpush1.bf16.msra.mxu0 0
      %2963 = vmatprep.subr.bf16.mxu0 0
      %2964 = vmatpush1.bf16.msra.mxu0 0
      %2965 = vmatprep.subr.bf16.mxu0 0
      %2966 = vmatpush1.bf16.msra.mxu0 0
      %2967 = vmatprep.subr.bf16.mxu0 0
      %2968 = vmatpush1.bf16.msra.mxu0 0
      %2969 = vmatprep.subr.bf16.mxu0 0
      %2970 = vmatpush1.bf16.msra.mxu0 0
      %2971 = vmatprep.subr.bf16.mxu0 0
      %2972 = vmatpush1.bf16.msra.mxu0 0
      %2973 = vmatprep.subr.bf16.mxu0 0
      %2974 = vmatpush1.bf16.msra.mxu0 0
      %2975 = vmatprep.subr.bf16.mxu0 0
      %2976 = vmatpush1.bf16.msra.mxu0 0
      %2977 = vmatprep.subr.bf16.mxu0 0
      %2978 = vmatpush1.bf16.msra.mxu0 0
      %2979 = vmatprep.subr.bf16.mxu0 0
      %2980 = vmatpush1.bf16.msra.mxu0 0
      %2981 = vmatprep.subr.bf16.mxu0 0
      %2982 = vmatpush1.bf16.msra.mxu0 0
      %2983 = vmatprep.subr.bf16.mxu0 0
      %2984 = vmatpush1.bf16.msra.mxu0 0
      %2985 = vmatprep.subr.bf16.mxu0 0
      %2986 = vmatpush1.bf16.msra.mxu0 0
      %2987 = vmatprep.mubr.bf16.mxu0 0
      %2988 = vmatmul.mubr.bf16.gmra.mrb[0].mxu0 %v2423
      %v2989 = vpop.f32.mrb[0].mxu0
      %v2990 = vadd.f32 0.0, %v2989
      %v2991 = vpop.f32.mrb[0].mxu0
      %v2992 = vpop.f32.mrb[0].mxu0
      %v2993 = vadd.f32 0.0, %v2992
      %v2994 = vpop.f32.mrb[0].mxu0
      %2995 = vmatprep.mubr.bf16.mxu0 0
      %2996 = vmatmul.mubr.bf16.gmra.mrb[0].mxu0 %v2426
      %v2997 = vpop.f32.mrb[0].mxu0
      %v2998 = vadd.f32 0.0, %v2997
      %v2999 = vpop.f32.mrb[0].mxu0
      %v3000 = vpop.f32.mrb[0].mxu0
      %v3001 = vadd.f32 0.0, %v3000
      %v3002 = vpop.f32.mrb[0].mxu0
      %3003 = vmatprep.mubr.bf16.mxu0 0
      %3004 = vmatmul.mubr.bf16.gmra.mrb[0].mxu0 %v2429
      %v3005 = vpop.f32.mrb[0].mxu0
      %v3006 = vadd.f32 0.0, %v3005
      %v3007 = vpop.f32.mrb[0].mxu0
      %v3008 = vpop.f32.mrb[0].mxu0
      %v3009 = vadd.f32 0.0, %v3008
      %v3010 = vpop.f32.mrb[0].mxu0
      %3011 = vmatprep.mubr.bf16.mxu0 0
      %3012 = vmatmul.mubr.bf16.gmra.mrb[0].mxu0 %v2953
      %v3013 = vpop.f32.mrb[0].mxu0
      %v3014 = vadd.f32 0.0, %v3013
      %v3015 = vpop.f32.mrb[0].mxu0
      %v3016 = vpop.f32.mrb[0].mxu0
      %v3017 = vadd.f32 0.0, %v3016
      %v3018 = vpop.f32.mrb[0].mxu0
      %3019 = vdwg.mxu0
      %v3020 = vadd.f32 %v2928, %v2990
      %v3021 = vadd.f32 %v2929, %v2993
      %v3022 = vadd.f32 %v2930, %v2998
      %v3023 = vadd.f32 %v2931, %v3001
      %v3024 = vadd.f32 %v2932, %v3006
      %v3025 = vadd.f32 %v2933, %v3009
      %v3026 = vadd.f32 %v2934, %v3014
      %v3027 = vadd.f32 %v2935, %v3017
      %s3028 = scalar_lea.vmem %s8, 112
      %v3029 = vld [vmem:[%s3028] sm:$0xf]
      %v3030 = vld [vmem:[%s3028 + $0x4] sm:$0xf]
      %v3031 = vld [vmem:[%s3028 + $0x8] sm:$0xf]
      %v3032 = vld [vmem:[%s3028 + $0xc] sm:$0xf]
      %v3037 = vunpack.c.l.b16 %v3029
      %v3038 = vunpack.c.l.b16 %v3030
      %v3039 = vunpack.c.l.b16 %v3031
      %v3040 = vunpack.c.l.b16 %v3032
      %v3041 = vpack.c.b16 %v3038, %v3037
      %v3042 = vpack.c.b16 %v3040, %v3039
      %v3045 = vsel %vm510, %v2295, 0
      %3047 = vmatprep.subr.bf16.mxu0 0
      %3048 = vmatpush1.bf16.msra.mxu0 %v3041
      %3049 = vmatprep.subr.bf16.mxu0 0
      %3050 = vmatpush1.bf16.msra.mxu0 %v3042
      %3051 = vmatprep.subr.bf16.mxu0 0
      %3052 = vmatpush1.bf16.msra.mxu0 0
      %3053 = vmatprep.subr.bf16.mxu0 0
      %3054 = vmatpush1.bf16.msra.mxu0 0
      %3055 = vmatprep.subr.bf16.mxu0 0
      %3056 = vmatpush1.bf16.msra.mxu0 0
      %3057 = vmatprep.subr.bf16.mxu0 0
      %3058 = vmatpush1.bf16.msra.mxu0 0
      %3059 = vmatprep.subr.bf16.mxu0 0
      %3060 = vmatpush1.bf16.msra.mxu0 0
      %3061 = vmatprep.subr.bf16.mxu0 0
      %3062 = vmatpush1.bf16.msra.mxu0 0
      %3063 = vmatprep.subr.bf16.mxu0 0
      %3064 = vmatpush1.bf16.msra.mxu0 0
      %3065 = vmatprep.subr.bf16.mxu0 0
      %3066 = vmatpush1.bf16.msra.mxu0 0
      %3067 = vmatprep.subr.bf16.mxu0 0
      %3068 = vmatpush1.bf16.msra.mxu0 0
      %3069 = vmatprep.subr.bf16.mxu0 0
      %3070 = vmatpush1.bf16.msra.mxu0 0
      %3071 = vmatprep.subr.bf16.mxu0 0
      %3072 = vmatpush1.bf16.msra.mxu0 0
      %3073 = vmatprep.subr.bf16.mxu0 0
      %3074 = vmatpush1.bf16.msra.mxu0 0
      %3075 = vmatprep.subr.bf16.mxu0 0
      %3076 = vmatpush1.bf16.msra.mxu0 0
      %3077 = vmatprep.subr.bf16.mxu0 0
      %3078 = vmatpush1.bf16.msra.mxu0 0
      %3079 = vmatprep.mubr.bf16.mxu0 0
      %3080 = vmatmul.mubr.bf16.gmra.mrb[0].mxu0 %v2335
      %v3081 = vpop.f32.mrb[0].mxu0
      %v3082 = vadd.f32 0.0, %v3081
      %v3083 = vpop.f32.mrb[0].mxu0
      %v3084 = vpop.f32.mrb[0].mxu0
      %v3085 = vadd.f32 0.0, %v3084
      %v3086 = vpop.f32.mrb[0].mxu0
      %3087 = vmatprep.mubr.bf16.mxu0 0
      %3088 = vmatmul.mubr.bf16.gmra.mrb[0].mxu0 %v2338
      %v3089 = vpop.f32.mrb[0].mxu0
      %v3090 = vadd.f32 0.0, %v3089
      %v3091 = vpop.f32.mrb[0].mxu0
      %v3092 = vpop.f32.mrb[0].mxu0
      %v3093 = vadd.f32 0.0, %v3092
      %v3094 = vpop.f32.mrb[0].mxu0
      %3095 = vmatprep.mubr.bf16.mxu0 0
      %3096 = vmatmul.mubr.bf16.gmra.mrb[0].mxu0 %v2341
      %v3097 = vpop.f32.mrb[0].mxu0
      %v3098 = vadd.f32 0.0, %v3097
      %v3099 = vpop.f32.mrb[0].mxu0
      %v3100 = vpop.f32.mrb[0].mxu0
      %v3101 = vadd.f32 0.0, %v3100
      %v3102 = vpop.f32.mrb[0].mxu0
      %3103 = vmatprep.mubr.bf16.mxu0 0
      %3104 = vmatmul.mubr.bf16.gmra.mrb[0].mxu0 %v3045
      %v3105 = vpop.f32.mrb[0].mxu0
      %v3106 = vadd.f32 0.0, %v3105
      %v3107 = vpop.f32.mrb[0].mxu0
      %v3108 = vpop.f32.mrb[0].mxu0
      %v3109 = vadd.f32 0.0, %v3108
      %v3110 = vpop.f32.mrb[0].mxu0
      %3111 = vdwg.mxu0
      %v3112 = vadd.f32 %v3020, %v3082
      %v3113 = vadd.f32 %v3021, %v3085
      %v3114 = vadd.f32 %v3022, %v3090
      %v3115 = vadd.f32 %v3023, %v3093
      %v3116 = vadd.f32 %v3024, %v3098
      %v3117 = vadd.f32 %v3025, %v3101
      %v3118 = vadd.f32 %v3026, %v3106
      %v3119 = vadd.f32 %v3027, %v3109
      %s3120 = scalar_lea.vmem %s8, 128
      %v3121 = vld [vmem:[%s3120] sm:$0xf]
      %v3122 = vld [vmem:[%s3120 + $0x4] sm:$0xf]
      %v3123 = vld [vmem:[%s3120 + $0x8] sm:$0xf]
      %v3124 = vld [vmem:[%s3120 + $0xc] sm:$0xf]
      %v3129 = vunpack.c.l.b16 %v3121
      %v3130 = vunpack.c.l.b16 %v3122
      %v3131 = vunpack.c.l.b16 %v3123
      %v3132 = vunpack.c.l.b16 %v3124
      %v3133 = vpack.c.b16 %v3130, %v3129
      %v3134 = vpack.c.b16 %v3132, %v3131
      %v3137 = vsel %vm510, %v2310, 0
      %3139 = vmatprep.subr.bf16.mxu0 0
      %3140 = vmatpush1.bf16.msra.mxu0 %v3133
      %3141 = vmatprep.subr.bf16.mxu0 0
      %3142 = vmatpush1.bf16.msra.mxu0 %v3134
      %3143 = vmatprep.subr.bf16.mxu0 0
      %3144 = vmatpush1.bf16.msra.mxu0 0
      %3145 = vmatprep.subr.bf16.mxu0 0
      %3146 = vmatpush1.bf16.msra.mxu0 0
      %3147 = vmatprep.subr.bf16.mxu0 0
      %3148 = vmatpush1.bf16.msra.mxu0 0
      %3149 = vmatprep.subr.bf16.mxu0 0
      %3150 = vmatpush1.bf16.msra.mxu0 0
      %3151 = vmatprep.subr.bf16.mxu0 0
      %3152 = vmatpush1.bf16.msra.mxu0 0
      %3153 = vmatprep.subr.bf16.mxu0 0
      %3154 = vmatpush1.bf16.msra.mxu0 0
      %3155 = vmatprep.subr.bf16.mxu0 0
      %3156 = vmatpush1.bf16.msra.mxu0 0
      %3157 = vmatprep.subr.bf16.mxu0 0
      %3158 = vmatpush1.bf16.msra.mxu0 0
      %3159 = vmatprep.subr.bf16.mxu0 0
      %3160 = vmatpush1.bf16.msra.mxu0 0
      %3161 = vmatprep.subr.bf16.mxu0 0
      %3162 = vmatpush1.bf16.msra.mxu0 0
      %3163 = vmatprep.subr.bf16.mxu0 0
      %3164 = vmatpush1.bf16.msra.mxu0 0
      %3165 = vmatprep.subr.bf16.mxu0 0
      %3166 = vmatpush1.bf16.msra.mxu0 0
      %3167 = vmatprep.subr.bf16.mxu0 0
      %3168 = vmatpush1.bf16.msra.mxu0 0
      %3169 = vmatprep.subr.bf16.mxu0 0
      %3170 = vmatpush1.bf16.msra.mxu0 0
      %3171 = vmatprep.mubr.bf16.mxu0 0
      %3172 = vmatmul.mubr.bf16.gmra.mrb[0].mxu0 %v2516
      %v3173 = vpop.f32.mrb[0].mxu0
      %v3174 = vadd.f32 0.0, %v3173
      %v3175 = vpop.f32.mrb[0].mxu0
      %v3176 = vpop.f32.mrb[0].mxu0
      %v3177 = vadd.f32 0.0, %v3176
      %v3178 = vpop.f32.mrb[0].mxu0
      %3179 = vmatprep.mubr.bf16.mxu0 0
      %3180 = vmatmul.mubr.bf16.gmra.mrb[0].mxu0 %v2519
      %v3181 = vpop.f32.mrb[0].mxu0
      %v3182 = vadd.f32 0.0, %v3181
      %v3183 = vpop.f32.mrb[0].mxu0
      %v3184 = vpop.f32.mrb[0].mxu0
      %v3185 = vadd.f32 0.0, %v3184
      %v3186 = vpop.f32.mrb[0].mxu0
      %3187 = vmatprep.mubr.bf16.mxu0 0
      %3188 = vmatmul.mubr.bf16.gmra.mrb[0].mxu0 %v2522
      %v3189 = vpop.f32.mrb[0].mxu0
      %v3190 = vadd.f32 0.0, %v3189
      %v3191 = vpop.f32.mrb[0].mxu0
      %v3192 = vpop.f32.mrb[0].mxu0
      %v3193 = vadd.f32 0.0, %v3192
      %v3194 = vpop.f32.mrb[0].mxu0
      %3195 = vmatprep.mubr.bf16.mxu0 0
      %3196 = vmatmul.mubr.bf16.gmra.mrb[0].mxu0 %v3137
      %v3197 = vpop.f32.mrb[0].mxu0
      %v3198 = vadd.f32 0.0, %v3197
      %v3199 = vpop.f32.mrb[0].mxu0
      %v3200 = vpop.f32.mrb[0].mxu0
      %v3201 = vadd.f32 0.0, %v3200
      %v3202 = vpop.f32.mrb[0].mxu0
      %3203 = vdwg.mxu0
      %v3204 = vadd.f32 %v3112, %v3174
      %v3205 = vadd.f32 %v3113, %v3177
      %v3206 = vadd.f32 %v3114, %v3182
      %v3207 = vadd.f32 %v3115, %v3185
      %v3208 = vadd.f32 %v3116, %v3190
      %v3209 = vadd.f32 %v3117, %v3193
      %v3210 = vadd.f32 %v3118, %v3198
      %v3211 = vadd.f32 %v3119, %v3201
      %v3213 = vlaneseq
      %v3214 = vshrl.u32 %v3213, 7
      %v3215 = vsub.s32 0, %v3214
      %v3216 = vrot.slane %v2201, %v3215
      %v3218 = vadd.f32 %v3204, %v3216
      %v3219 = vadd.f32 %v3205, %v3216
      %v3220 = vadd.f32 %v3206, %v3216
      %v3221 = vadd.f32 %v3207, %v3216
      %v3222 = vadd.f32 %v3208, %v3216
      %v3223 = vadd.f32 %v3209, %v3216
      %v3224 = vadd.f32 %v3210, %v3216
      %v3225 = vadd.f32 %v3211, %v3216
      %v3226 = vadd.f32 %v371, %v3218
      %v3227 = vadd.f32 %v372, %v3219
      %v3228 = vadd.f32 %v373, %v3220
      %v3229 = vadd.f32 %v374, %v3221
      %v3230 = vadd.f32 %v375, %v3222
      %v3231 = vadd.f32 %v376, %v3223
      %v3232 = vadd.f32 %v377, %v3224
      %v3233 = vadd.f32 %v378, %v3225
      %v3234 = vpack.c.bf16 %v3227, %v3226
      %v3235 = vpack.c.bf16 %v3229, %v3228
      %v3236 = vpack.c.bf16 %v3231, %v3230
      %v3237 = vpack.c.bf16 %v3233, %v3232
      %v3242 = vunpack.c.l.b16 %v3234
      %v3243 = vunpack.c.h.b16 %v3234
      %v3244 = vunpack.c.l.b16 %v3235
      %v3245 = vunpack.c.h.b16 %v3235
      %v3246 = vunpack.c.l.b16 %v3236
      %v3247 = vunpack.c.h.b16 %v3236
      %v3248 = vunpack.c.l.b16 %v3237
      %v3249 = vunpack.c.h.b16 %v3237
      %v3250 = vpack.c.b16 %v3242, %v3242
      %v3251 = vpack.c.b16 %v3243, %v3243
      %v3252 = vpack.c.b16 %v3244, %v3244
      %v3253 = vpack.c.b16 %v3245, %v3245
      %v3254 = vpack.c.b16 %v3246, %v3246
      %v3255 = vpack.c.b16 %v3247, %v3247
      %v3256 = vpack.c.b16 %v3248, %v3248
      %v3257 = vpack.c.b16 %v3249, %v3249
      %vm3266 = vcmask 257024
      %3267 = vst.msk [vmem:[%s359] sm:$0xf] %vm3266, %v3250
      %3268 = vst.msk [vmem:[%s359 + $0x4] sm:$0xf] %vm3266, %v3251
      %3269 = vst.msk [vmem:[%s359 + $0x8] sm:$0xf] %vm3266, %v3252
      %3270 = vst.msk [vmem:[%s359 + $0xc] sm:$0xf] %vm3266, %v3253
      %3271 = vst.msk [vmem:[%s359 + $0x10] sm:$0xf] %vm3266, %v3254
      %3272 = vst.msk [vmem:[%s359 + $0x14] sm:$0xf] %vm3266, %v3255
      %3273 = vst.msk [vmem:[%s359 + $0x18] sm:$0xf] %vm3266, %v3256
      %3274 = vst.msk [vmem:[%s359 + $0x1c] sm:$0xf] %vm3266, %v3257
      %p3275 = scmp.lt.s32.totalorder %s21, 7
      %s3276 = scalar_select %p3275, %s21, 7
      %s3277 = smul.addr %s3276, 8
      %s3278 = smul.addr %s3277, 4
      %s3279 = scalar_lea.vmem %s10, %s3278
      // Predicated region
      $region61: #{mid_block_temporal_decoder_forward.5} parent=59 // pred_check
        %p3280 = pneg %p254
      $region62: #{mid_block_temporal_decoder_forward.5} parent=59 // pred_check_branch
        %3282 = sbr.rel (%p3280) target = $region64
      $region63: #{mid_block_temporal_decoder_forward.5} parent=59 // pred_region
        _
      $region64: #{mid_block_temporal_decoder_forward.5} parent=59 // pred_fallthru
        _
    $region60: #{mid_block_temporal_decoder_forward.5} parent=5 // pred_fallthru
      _
    %p3283 = scmp.le.s32.totalorder 2, %s16
    // Predicated region
    $region65: #{mid_block_temporal_decoder_forward.5} parent=5 // pred_check
      %p3284 = pneg %p3283
    $region66: #{mid_block_temporal_decoder_forward.5} parent=5 // pred_check_branch
      %3286 = sbr.rel (%p3284) target = $region68
    $region67: #{mid_block_temporal_decoder_forward.5} parent=5 // pred_region
      %s3287 = ssub.s32 %s16, 2
      // Predicated region
      $region69: #{mid_block_temporal_decoder_forward.5} parent=67 // pred_check
        %p3288 = pneg %p260
      $region70: #{mid_block_temporal_decoder_forward.5} parent=67 // pred_check_branch
        %3290 = sbr.rel (%p3288) target = $region72
      $region71: #{mid_block_temporal_decoder_forward.5} parent=67 // pred_region
        %p3291 = scmp.lt.s32.totalorder %s22, 7
        %s3292 = scalar_select %p3291, %s22, 7
        %s3293 = smul.addr %s3292, 8
        %s3294 = smul.addr %s3293, 4
        %s3295 = scalar_lea.vmem %s10, %s3294
      $region72: #{mid_block_temporal_decoder_forward.5} parent=67 // pred_fallthru
        _
    $region68: #{mid_block_temporal_decoder_forward.5} parent=5 // pred_fallthru
      _
  $region6: #{mid_block_temporal_decoder_forward.5} parent=0 // loop_footer
    %s20 = sadd.s32 1, %s16
  $region7: #{mid_block_temporal_decoder_forward.5} parent=0 // loop_footer_branch
    %15 = sbr.rel target = $region3
  $region8: #{mid_block_temporal_decoder_forward.5} parent=0 // loop_exit
    _

</llo_original>
